<compile_context>
chip_gen: v5e
topology: v5e:2x2
jax: 0.10.0
libtpu: 0.0.40
codegen_flags: <defaults>
</compile_context>

<pallas_src>
import functools

import jax
import jax.numpy as jnp
from jax import lax
from jax.experimental import pallas as pl
from jax.experimental.pallas import tpu as pltpu


def _convstem_kernel(xe_ref, xo_ref, p24_ref, w2_ref, w3_ref, p48_ref,
                     out_ref, y1e_s, y1o_s, pa_s, res_s,
                     *, H, W, C_in, C1, C2, eps_ln):
    """Fused ConvStem forward for one batch image.

    Layouts (per image):
      xe_ref/xo_ref : (1, Se, C_in)  even/odd-column flattened, zero-padded canvas
                      Se = (H+2)*We, We = W//2 + 1, flat index q = r*We + j
      p24_ref       : (9*C_in+1, C1) conv1 taps (BN1-folded) + BN1 shift row
      w2_ref        : (9*C1, C2)     conv2 taps (BN2-folded)
      w3_ref        : (C2, C2)       1x1 conv matrix (in, out)
      p48_ref       : (14, C2)       rows 0..8 depthwise taps, 9 BN2 shift,
                                     10 conv3 bias, 11 PA bias, 12 LN gamma, 13 LN beta
      out_ref       : (1, H2, W2, C2) output tokens
    """
    f32 = jnp.float32
    We = W // 2 + 1
    H2, W2 = H // 2, W // 2
    L1 = H * We - 1                       # conv1 computed window length
    Lz = 2 * (H2 - 1) * We + W2           # stride-2 output canvas length
    P = 2 * We + 1                        # PA canvas zero-pad offset

    xe = xe_ref[0]                        # (Se, C_in)
    xo = xo_ref[0]

    # ---------------- conv1 (3x3, s1, p1) + BN1 + ReLU, parity split ----------
    shift1 = p24_ref[9 * C_in: 9 * C_in + 1, :]          # (1, C1)
    acc_e = jnp.zeros((L1, C1), f32)
    acc_o = jnp.zeros((L1, C1), f32)
    for dy in range(3):
        b0 = dy * We
        w_dx0 = p24_ref[C_in * (dy * 3 + 0): C_in * (dy * 3 + 0) + C_in, :]
        w_dx1 = p24_ref[C_in * (dy * 3 + 1): C_in * (dy * 3 + 1) + C_in, :]
        w_dx2 = p24_ref[C_in * (dy * 3 + 2): C_in * (dy * 3 + 2) + C_in, :]
        # even-column outputs (window starts at flat q = We+1)
        acc_e += jnp.dot(xo[b0:     b0 + L1, :],     w_dx0, preferred_element_type=f32)
        acc_e += jnp.dot(xe[b0 + 1: b0 + 1 + L1, :], w_dx1, preferred_element_type=f32)
        acc_e += jnp.dot(xo[b0 + 1: b0 + 1 + L1, :], w_dx2, preferred_element_type=f32)
        # odd-column outputs (window starts at flat q = We)
        acc_o += jnp.dot(xe[b0:     b0 + L1, :],     w_dx0, preferred_element_type=f32)
        acc_o += jnp.dot(xo[b0:     b0 + L1, :],     w_dx1, preferred_element_type=f32)
        acc_o += jnp.dot(xe[b0 + 1: b0 + 1 + L1, :], w_dx2, preferred_element_type=f32)

    y_e = jnp.maximum(acc_e + shift1, 0.0)
    y_o = jnp.maximum(acc_o + shift1, 0.0)

    # zero the padding columns of each parity canvas
    col_e = (jax.lax.broadcasted_iota(jnp.int32, (L1, 1), 0) + (We + 1)) % We
    col_o = (jax.lax.broadcasted_iota(jnp.int32, (L1, 1), 0) + We) % We
    y_e = jnp.where(col_e != 0, y_e, 0.0)
    y_o = jnp.where(col_o != (We - 1), y_o, 0.0)

    # conv1 result stays in VMEM (no HBM round trip)
    y1e_s[...] = jnp.zeros_like(y1e_s)
    y1o_s[...] = jnp.zeros_like(y1o_s)
    y1e_s[We + 1: We + 1 + L1, :] = y_e
    y1o_s[We:     We + L1, :] = y_o

    # ---------------- conv2 (3x3, s2, p1) + BN2 + ReLU -----------------------
    # Output canvas position q = 2*h2*We + w2 ; every tap is a contiguous slice.
    shift2 = p48_ref[9:10, :]
    acc2 = jnp.zeros((Lz, C2), f32)
    for dy in range(3):
        b0 = dy * We
        w_dx0 = w2_ref[C1 * (dy * 3 + 0): C1 * (dy * 3 + 0) + C1, :]
        w_dx1 = w2_ref[C1 * (dy * 3 + 1): C1 * (dy * 3 + 1) + C1, :]
        w_dx2 = w2_ref[C1 * (dy * 3 + 2): C1 * (dy * 3 + 2) + C1, :]
        acc2 += jnp.dot(y1e_s[b0:     b0 + Lz, :],     w_dx0, preferred_element_type=f32)
        acc2 += jnp.dot(y1o_s[b0:     b0 + Lz, :],     w_dx1, preferred_element_type=f32)
        acc2 += jnp.dot(y1e_s[b0 + 1: b0 + 1 + Lz, :], w_dx2, preferred_element_type=f32)
    z = jnp.maximum(acc2 + shift2, 0.0)

    # ---------------- conv3 (1x1) + bias --------------------------------------
    u = jnp.dot(z, w3_ref[...], preferred_element_type=f32) + p48_ref[10:11, :]

    # zero the canvas positions that do not correspond to a valid (h2, w2)
    q = jax.lax.broadcasted_iota(jnp.int32, (Lz, 1), 0)
    u = jnp.where((q % (2 * We)) < W2, u, 0.0)

    # ---------------- PA: depthwise 3x3 + sigmoid gate -------------------------
    pa_s[...] = jnp.zeros_like(pa_s)
    pa_s[P: P + Lz, :] = u
    acc_pa = jnp.zeros((Lz, C2), f32)
    for dh in range(3):
        for dw in range(3):
            t = dh * 3 + dw
            start = P + (dh - 1) * (2 * We) + (dw - 1)
            acc_pa += pa_s[start: start + Lz, :] * p48_ref[t: t + 1, :]
    pa_pre = acc_pa + p48_ref[11:12, :]
    gate = 1.0 / (1.0 + jnp.exp(-pa_pre))        # sigmoid (EUP)
    g = u * gate

    # ---------------- LayerNorm(C2, eps=1e-6) ----------------------------------
    mu = jnp.mean(g, axis=-1, keepdims=True)
    cen = g - mu
    var = jnp.mean(cen * cen, axis=-1, keepdims=True)
    yn = cen * jax.lax.rsqrt(var + eps_ln) * p48_ref[12:13, :] + p48_ref[13:14, :]
    res_s[...] = yn

    # ---------------- write the H2*W2 valid token rows -------------------------
    def _row(h2, carry):
        out_ref[0, h2] = res_s[pl.ds(2 * h2 * We, W2), :].astype(out_ref.dtype)
        return carry

    lax.fori_loop(0, H2, _row, 0)


def convstem_forward(x, params, patch_size=2, eps_bn=1e-5, eps_ln=1e-6):
    """Pallas implementation of ConvStem.forward (eval-mode BN).

    x: (B, C_in, H, W) NCHW.  Returns (tokens (B, N, out_ch), (H//p, W//p)).
    """
    B, C_in, H, W = x.shape
    assert H % 2 == 0 and W % 2 == 0, "stride-2 stem needs even spatial dims"
    w1, w2, w3 = params["w1"], params["w2"], params["w3"]
    C1 = w1.shape[0]          # out_ch // 2
    C2 = w3.shape[0]          # out_ch

    H2, W2 = H // 2, W // 2
    We = W2 + 1
    Se = (H + 2) * We
    Lz = 2 * (H2 - 1) * We + W2

    # ---- glue on the (small, 3-channel) input: NCHW -> padded NHWC canvases,
    #      split into even/odd columns so all conv taps become contiguous slices.
    #      (If the producer already supplies NHWC, the transpose disappears.)
    xt = jnp.transpose(x, (0, 2, 3, 1))                       # (B, H, W, C)
    xp = jnp.pad(xt, ((0, 0), (1, 1), (1, 1), (0, 0)))        # (B, H+2, W+2, C)
    x_e = xp[:, :, 0::2, :].reshape(B, Se, C_in)
    x_o = xp[:, :, 1::2, :].reshape(B, Se, C_in)

    # ---- fold eval-mode BatchNorm into the conv weights ----
    s1 = params["bn1_g"] / jnp.sqrt(params["bn1_v"] + eps_bn)
    sh1 = params["bn1_b"] - params["bn1_m"] * s1
    w1s = jnp.transpose(w1, (2, 3, 1, 0)).reshape(9 * C_in, C1) * s1[None, :]
    p24 = jnp.concatenate([w1s, sh1[None, :]], axis=0)        # (9*C_in+1, C1)

    s2 = params["bn2_g"] / jnp.sqrt(params["bn2_v"] + eps_bn)
    sh2 = params["bn2_b"] - params["bn2_m"] * s2
    w2s = jnp.transpose(w2, (2, 3, 1, 0)).reshape(9 * C1, C2) * s2[None, :]

    w3m = w3[:, :, 0, 0].T                                    # (C2, C2) (in, out)
    wpa = jnp.transpose(params["w_pa"][:, 0, :, :], (1, 2, 0)).reshape(9, C2)
    p48 = jnp.concatenate([
        wpa,                        # rows 0..8  depthwise taps
        sh2[None, :],               # row 9      folded BN2 shift
        params["b3"][None, :],      # row 10     conv3 bias
        params["b_pa"][None, :],    # row 11     PA bias
        params["ln_g"][None, :],    # row 12     LN gamma
        params["ln_b"][None, :],    # row 13     LN beta
    ], axis=0)                                                 # (14, C2)

    kernel = functools.partial(_convstem_kernel, H=H, W=W, C_in=C_in,
                               C1=C1, C2=C2, eps_ln=eps_ln)

    out = pl.pallas_call(
        kernel,
        out_shape=jax.ShapeDtypeStruct((B, H2, W2, C2), x.dtype),
        grid_spec=pltpu.PrefetchScalarGridSpec(
            num_scalar_prefetch=0,
            grid=(B,),
            in_specs=[
                pl.BlockSpec((1, Se, C_in), lambda b: (b, 0, 0)),       # x even cols
                pl.BlockSpec((1, Se, C_in), lambda b: (b, 0, 0)),       # x odd cols
                pl.BlockSpec((9 * C_in + 1, C1), lambda b: (0, 0)),     # conv1 params
                pl.BlockSpec((9 * C1, C2), lambda b: (0, 0)),           # conv2 taps
                pl.BlockSpec((C2, C2), lambda b: (0, 0)),               # conv3 matrix
                pl.BlockSpec((14, C2), lambda b: (0, 0)),               # packed vectors
            ],
            out_specs=pl.BlockSpec((1, H2, W2, C2), lambda b: (b, 0, 0, 0)),
            scratch_shapes=[
                pltpu.VMEM((Se, C1), jnp.float32),                 # conv1 even canvas
                pltpu.VMEM((Se, C1), jnp.float32),                 # conv1 odd canvas
                pltpu.VMEM((Lz + 4 * We + 2, C2), jnp.float32),    # PA padded canvas
                pltpu.VMEM((Lz, C2), jnp.float32),                 # final result canvas
            ],
        ),
        compiler_params=pltpu.CompilerParams(
            dimension_semantics=("parallel",),     # batch splits across v7x cores
            vmem_limit_bytes=32 * 1024 * 1024,
        ),
    )(x_e, x_o, p24, w2s, w3m, p48)

    tokens = out.reshape(B, H2 * W2, C2)           # free reshape (contiguous)
    return tokens, (H // patch_size, W // patch_size)


def convstem_reference(x, params, patch_size=2, eps_bn=1e-5, eps_ln=1e-6):
    """Pure-JAX reference mirroring the PyTorch module (eval-mode BN)."""
    dn = ("NCHW", "OIHW", "NCHW")

    def bn(y, g, b, m, v):
        return ((y - m[None, :, None, None])
                * jax.lax.rsqrt(v + eps_bn)[None, :, None, None]
                * g[None, :, None, None] + b[None, :, None, None])

    y = lax.conv_general_dilated(x, params["w1"], (1, 1), ((1, 1), (1, 1)),
                                 dimension_numbers=dn)
    y = jnp.maximum(bn(y, params["bn1_g"], params["bn1_b"],
                       params["bn1_m"], params["bn1_v"]), 0.0)
    y = lax.conv_general_dilated(y, params["w2"], (2, 2), ((1, 1), (1, 1)),
                                 dimension_numbers=dn)
    y = jnp.maximum(bn(y, params["bn2_g"], params["bn2_b"],
                       params["bn2_m"], params["bn2_v"]), 0.0)
    y = lax.conv_general_dilated(y, params["w3"], (1, 1), "VALID",
                                 dimension_numbers=dn)
    y = y + params["b3"][None, :, None, None]
    pa = lax.conv_general_dilated(y, params["w_pa"], (1, 1), ((1, 1), (1, 1)),
                                  dimension_numbers=dn,
                                  feature_group_count=y.shape[1])
    pa = pa + params["b_pa"][None, :, None, None]
    y = y * (1.0 / (1.0 + jnp.exp(-pa)))
    B, D, Hp, Wp = y.shape
    t = jnp.transpose(y.reshape(B, D, Hp * Wp), (0, 2, 1))
    mu = jnp.mean(t, axis=-1, keepdims=True)
    var = jnp.mean((t - mu) ** 2, axis=-1, keepdims=True)
    t = (t - mu) * jax.lax.rsqrt(var + eps_ln) * params["ln_g"] + params["ln_b"]
    return t.astype(x.dtype), (x.shape[2] // patch_size, x.shape[3] // patch_size)


def init_convstem_params(key, in_ch=3, out_ch=48):
    c1 = out_ch // 2
    ks = jax.random.split(key, 16)
    n, u = jax.random.normal, jax.random.uniform
    return dict(
        w1=n(ks[0], (c1, in_ch, 3, 3), jnp.float32) * 0.3,
        bn1_g=u(ks[1], (c1,), jnp.float32, minval=0.5, maxval=1.5),
        bn1_b=n(ks[2], (c1,), jnp.float32) * 0.1,
        bn1_m=n(ks[3], (c1,), jnp.float32) * 0.1,
        bn1_v=u(ks[4], (c1,), jnp.float32, minval=0.5, maxval=1.5),
        w2=n(ks[5], (out_ch, c1, 3, 3), jnp.float32) * 0.15,
        bn2_g=u(ks[6], (out_ch,), jnp.float32, minval=0.5, maxval=1.5),
        bn2_b=n(ks[7], (out_ch,), jnp.float32) * 0.1,
        bn2_m=n(ks[8], (out_ch,), jnp.float32) * 0.1,
        bn2_v=u(ks[9], (out_ch,), jnp.float32, minval=0.5, maxval=1.5),
        w3=n(ks[10], (out_ch, out_ch, 1, 1), jnp.float32) * 0.15,
        b3=n(ks[11], (out_ch,), jnp.float32) * 0.05,
        w_pa=n(ks[12], (out_ch, 1, 3, 3), jnp.float32) * 0.2,
        b_pa=n(ks[13], (out_ch,), jnp.float32) * 0.05,
        ln_g=u(ks[14], (out_ch,), jnp.float32, minval=0.8, maxval=1.2),
        ln_b=n(ks[15], (out_ch,), jnp.float32) * 0.05,
    )


if __name__ == "__main__":
    # ConvStem defaults: in_ch=3, out_ch=48, patch_size=2, with_pos=True
    B, C, H, W = 2, 3, 16, 16
    out_ch = 48

    key = jax.random.PRNGKey(0)
    kx, kp = jax.random.split(key)
    x = jax.random.normal(kx, (B, C, H, W), dtype=jnp.float32)
    params = init_convstem_params(kp, in_ch=C, out_ch=out_ch)

    y, (Hp, Wp) = convstem_forward(x, params, patch_size=2)
    y = jax.block_until_ready(y)

    y_ref, (Hp_r, Wp_r) = convstem_reference(x, params, patch_size=2)
    assert (Hp, Wp) == (Hp_r, Wp_r) == (H // 2, W // 2)
    assert y.shape == (B, (H // 2) * (W // 2), out_ch)
    max_err = float(jnp.max(jnp.abs(y - y_ref)))
    assert jnp.allclose(y, y_ref, atol=5e-4, rtol=5e-4), f"mismatch, max abs err {max_err}"

    print("KERNEL_OK")
</pallas_src>

<mosaic_0001>
module attributes {stable_mosaic.version = 11 : i64} {
  func.func @_convstem_kernel(%arg0: i32, %arg1: memref<1x162x3xf32, #tpu.memory_space<vmem>>, %arg2: memref<1x162x3xf32, #tpu.memory_space<vmem>>, %arg3: memref<28x24xf32, #tpu.memory_space<vmem>>, %arg4: memref<216x48xf32, #tpu.memory_space<vmem>>, %arg5: memref<48x48xf32, #tpu.memory_space<vmem>>, %arg6: memref<14x48xf32, #tpu.memory_space<vmem>>, %arg7: memref<1x8x8x48xf32, #tpu.memory_space<vmem>>, %arg8: memref<162x24xf32, #tpu.memory_space<vmem>>, %arg9: memref<162x24xf32, #tpu.memory_space<vmem>>, %arg10: memref<172x48xf32, #tpu.memory_space<vmem>>, %arg11: memref<134x48xf32, #tpu.memory_space<vmem>>) attributes {dimension_semantics = [#tpu.dimension_semantics<parallel>], iteration_bounds = array<i64: 2>, scalar_prefetch = 0 : i64, scratch_operands = 4 : i64, tpu.core_type = #tpu.core_type<tc>, window_params = [{transform_indices = @transform_0, window_bounds = array<i64: 1, 162, 3>}, {transform_indices = @transform_1, window_bounds = array<i64: 1, 162, 3>}, {pipeline_mode = #tpu.pipeline_mode<synchronous>, transform_indices = @transform_2, window_bounds = array<i64: 28, 24>}, {pipeline_mode = #tpu.pipeline_mode<synchronous>, transform_indices = @transform_3, window_bounds = array<i64: 216, 48>}, {pipeline_mode = #tpu.pipeline_mode<synchronous>, transform_indices = @transform_4, window_bounds = array<i64: 48, 48>}, {pipeline_mode = #tpu.pipeline_mode<synchronous>, transform_indices = @transform_5, window_bounds = array<i64: 14, 48>}, {transform_indices = @transform_6, window_bounds = array<i64: 1, 8, 8, 48>}]} {
    %c0 = arith.constant 0 : index
    %c0_0 = arith.constant 0 : index
    %c0_1 = arith.constant 0 : index
    %0 = vector.load %arg1[%c0, %c0_0, %c0_1] : memref<1x162x3xf32, #tpu.memory_space<vmem>>, vector<1x162x3xf32>
    %1 = vector.shape_cast %0 : vector<1x162x3xf32> to vector<162x3xf32>
    %c0_2 = arith.constant 0 : index
    %c0_3 = arith.constant 0 : index
    %c0_4 = arith.constant 0 : index
    %2 = vector.load %arg2[%c0_2, %c0_3, %c0_4] : memref<1x162x3xf32, #tpu.memory_space<vmem>>, vector<1x162x3xf32>
    %3 = vector.shape_cast %2 : vector<1x162x3xf32> to vector<162x3xf32>
    %c27 = arith.constant 27 : index
    %c0_5 = arith.constant 0 : index
    %4 = vector.load %arg3[%c27, %c0_5] : memref<28x24xf32, #tpu.memory_space<vmem>>, vector<1x24xf32>
    %cst = arith.constant 0.000000e+00 : f32
    %5 = vector.broadcast %cst : f32 to vector<143x24xf32>
    %cst_6 = arith.constant 0.000000e+00 : f32
    %6 = vector.broadcast %cst_6 : f32 to vector<143x24xf32>
    %c0_7 = arith.constant 0 : index
    %c0_8 = arith.constant 0 : index
    %7 = vector.load %arg3[%c0_7, %c0_8] : memref<28x24xf32, #tpu.memory_space<vmem>>, vector<3x24xf32>
    %c3 = arith.constant 3 : index
    %c0_9 = arith.constant 0 : index
    %8 = vector.load %arg3[%c3, %c0_9] : memref<28x24xf32, #tpu.memory_space<vmem>>, vector<3x24xf32>
    %c6 = arith.constant 6 : index
    %c0_10 = arith.constant 0 : index
    %9 = vector.load %arg3[%c6, %c0_10] : memref<28x24xf32, #tpu.memory_space<vmem>>, vector<3x24xf32>
    %10 = vector.extract_strided_slice %3 {offsets = [0, 0], sizes = [143, 3], strides = [1, 1]} : vector<162x3xf32> to vector<143x3xf32>
    %cst_11 = arith.constant dense<0.000000e+00> : vector<143x24xf32>
    %11 = tpu.matmul %10, %7, %cst_11 {dimension_numbers = #tpu.dot_dimension_numbers<[1], [0], [0], [1], [0, 0, 1, 1], [], []>} : vector<143x3xf32>, vector<3x24xf32>, vector<143x24xf32> -> vector<143x24xf32>
    %12 = arith.addf %5, %11 : vector<143x24xf32>
    %13 = vector.extract_strided_slice %1 {offsets = [1, 0], sizes = [143, 3], strides = [1, 1]} : vector<162x3xf32> to vector<143x3xf32>
    %cst_12 = arith.constant dense<0.000000e+00> : vector<143x24xf32>
    %14 = tpu.matmul %13, %8, %cst_12 {dimension_numbers = #tpu.dot_dimension_numbers<[1], [0], [0], [1], [0, 0, 1, 1], [], []>} : vector<143x3xf32>, vector<3x24xf32>, vector<143x24xf32> -> vector<143x24xf32>
    %15 = arith.addf %12, %14 : vector<143x24xf32>
    %16 = vector.extract_strided_slice %3 {offsets = [1, 0], sizes = [143, 3], strides = [1, 1]} : vector<162x3xf32> to vector<143x3xf32>
    %cst_13 = arith.constant dense<0.000000e+00> : vector<143x24xf32>
    %17 = tpu.matmul %16, %9, %cst_13 {dimension_numbers = #tpu.dot_dimension_numbers<[1], [0], [0], [1], [0, 0, 1, 1], [], []>} : vector<143x3xf32>, vector<3x24xf32>, vector<143x24xf32> -> vector<143x24xf32>
    %18 = arith.addf %15, %17 : vector<143x24xf32>
    %19 = vector.extract_strided_slice %1 {offsets = [0, 0], sizes = [143, 3], strides = [1, 1]} : vector<162x3xf32> to vector<143x3xf32>
    %cst_14 = arith.constant dense<0.000000e+00> : vector<143x24xf32>
    %20 = tpu.matmul %19, %7, %cst_14 {dimension_numbers = #tpu.dot_dimension_numbers<[1], [0], [0], [1], [0, 0, 1, 1], [], []>} : vector<143x3xf32>, vector<3x24xf32>, vector<143x24xf32> -> vector<143x24xf32>
    %21 = arith.addf %6, %20 : vector<143x24xf32>
    %22 = vector.extract_strided_slice %3 {offsets = [0, 0], sizes = [143, 3], strides = [1, 1]} : vector<162x3xf32> to vector<143x3xf32>
    %cst_15 = arith.constant dense<0.000000e+00> : vector<143x24xf32>
    %23 = tpu.matmul %22, %8, %cst_15 {dimension_numbers = #tpu.dot_dimension_numbers<[1], [0], [0], [1], [0, 0, 1, 1], [], []>} : vector<143x3xf32>, vector<3x24xf32>, vector<143x24xf32> -> vector<143x24xf32>
    %24 = arith.addf %21, %23 : vector<143x24xf32>
    %25 = vector.extract_strided_slice %1 {offsets = [1, 0], sizes = [143, 3], strides = [1, 1]} : vector<162x3xf32> to vector<143x3xf32>
    %cst_16 = arith.constant dense<0.000000e+00> : vector<143x24xf32>
    %26 = tpu.matmul %25, %9, %cst_16 {dimension_numbers = #tpu.dot_dimension_numbers<[1], [0], [0], [1], [0, 0, 1, 1], [], []>} : vector<143x3xf32>, vector<3x24xf32>, vector<143x24xf32> -> vector<143x24xf32>
    %27 = arith.addf %24, %26 : vector<143x24xf32>
    %c9 = arith.constant 9 : index
    %c0_17 = arith.constant 0 : index
    %28 = vector.load %arg3[%c9, %c0_17] : memref<28x24xf32, #tpu.memory_space<vmem>>, vector<3x24xf32>
    %c12 = arith.constant 12 : index
    %c0_18 = arith.constant 0 : index
    %29 = vector.load %arg3[%c12, %c0_18] : memref<28x24xf32, #tpu.memory_space<vmem>>, vector<3x24xf32>
    %c15 = arith.constant 15 : index
    %c0_19 = arith.constant 0 : index
    %30 = vector.load %arg3[%c15, %c0_19] : memref<28x24xf32, #tpu.memory_space<vmem>>, vector<3x24xf32>
    %31 = vector.extract_strided_slice %3 {offsets = [9, 0], sizes = [143, 3], strides = [1, 1]} : vector<162x3xf32> to vector<143x3xf32>
    %cst_20 = arith.constant dense<0.000000e+00> : vector<143x24xf32>
    %32 = tpu.matmul %31, %28, %cst_20 {dimension_numbers = #tpu.dot_dimension_numbers<[1], [0], [0], [1], [0, 0, 1, 1], [], []>} : vector<143x3xf32>, vector<3x24xf32>, vector<143x24xf32> -> vector<143x24xf32>
    %33 = arith.addf %18, %32 : vector<143x24xf32>
    %34 = vector.extract_strided_slice %1 {offsets = [10, 0], sizes = [143, 3], strides = [1, 1]} : vector<162x3xf32> to vector<143x3xf32>
    %cst_21 = arith.constant dense<0.000000e+00> : vector<143x24xf32>
    %35 = tpu.matmul %34, %29, %cst_21 {dimension_numbers = #tpu.dot_dimension_numbers<[1], [0], [0], [1], [0, 0, 1, 1], [], []>} : vector<143x3xf32>, vector<3x24xf32>, vector<143x24xf32> -> vector<143x24xf32>
    %36 = arith.addf %33, %35 : vector<143x24xf32>
    %37 = vector.extract_strided_slice %3 {offsets = [10, 0], sizes = [143, 3], strides = [1, 1]} : vector<162x3xf32> to vector<143x3xf32>
    %cst_22 = arith.constant dense<0.000000e+00> : vector<143x24xf32>
    %38 = tpu.matmul %37, %30, %cst_22 {dimension_numbers = #tpu.dot_dimension_numbers<[1], [0], [0], [1], [0, 0, 1, 1], [], []>} : vector<143x3xf32>, vector<3x24xf32>, vector<143x24xf32> -> vector<143x24xf32>
    %39 = arith.addf %36, %38 : vector<143x24xf32>
    %40 = vector.extract_strided_slice %1 {offsets = [9, 0], sizes = [143, 3], strides = [1, 1]} : vector<162x3xf32> to vector<143x3xf32>
    %cst_23 = arith.constant dense<0.000000e+00> : vector<143x24xf32>
    %41 = tpu.matmul %40, %28, %cst_23 {dimension_numbers = #tpu.dot_dimension_numbers<[1], [0], [0], [1], [0, 0, 1, 1], [], []>} : vector<143x3xf32>, vector<3x24xf32>, vector<143x24xf32> -> vector<143x24xf32>
    %42 = arith.addf %27, %41 : vector<143x24xf32>
    %43 = vector.extract_strided_slice %3 {offsets = [9, 0], sizes = [143, 3], strides = [1, 1]} : vector<162x3xf32> to vector<143x3xf32>
    %cst_24 = arith.constant dense<0.000000e+00> : vector<143x24xf32>
    %44 = tpu.matmul %43, %29, %cst_24 {dimension_numbers = #tpu.dot_dimension_numbers<[1], [0], [0], [1], [0, 0, 1, 1], [], []>} : vector<143x3xf32>, vector<3x24xf32>, vector<143x24xf32> -> vector<143x24xf32>
    %45 = arith.addf %42, %44 : vector<143x24xf32>
    %46 = vector.extract_strided_slice %1 {offsets = [10, 0], sizes = [143, 3], strides = [1, 1]} : vector<162x3xf32> to vector<143x3xf32>
    %cst_25 = arith.constant dense<0.000000e+00> : vector<143x24xf32>
    %47 = tpu.matmul %46, %30, %cst_25 {dimension_numbers = #tpu.dot_dimension_numbers<[1], [0], [0], [1], [0, 0, 1, 1], [], []>} : vector<143x3xf32>, vector<3x24xf32>, vector<143x24xf32> -> vector<143x24xf32>
    %48 = arith.addf %45, %47 : vector<143x24xf32>
    %c18 = arith.constant 18 : index
    %c0_26 = arith.constant 0 : index
    %49 = vector.load %arg3[%c18, %c0_26] : memref<28x24xf32, #tpu.memory_space<vmem>>, vector<3x24xf32>
    %c21 = arith.constant 21 : index
    %c0_27 = arith.constant 0 : index
    %50 = vector.load %arg3[%c21, %c0_27] : memref<28x24xf32, #tpu.memory_space<vmem>>, vector<3x24xf32>
    %c24 = arith.constant 24 : index
    %c0_28 = arith.constant 0 : index
    %51 = vector.load %arg3[%c24, %c0_28] : memref<28x24xf32, #tpu.memory_space<vmem>>, vector<3x24xf32>
    %52 = vector.extract_strided_slice %3 {offsets = [18, 0], sizes = [143, 3], strides = [1, 1]} : vector<162x3xf32> to vector<143x3xf32>
    %cst_29 = arith.constant dense<0.000000e+00> : vector<143x24xf32>
    %53 = tpu.matmul %52, %49, %cst_29 {dimension_numbers = #tpu.dot_dimension_numbers<[1], [0], [0], [1], [0, 0, 1, 1], [], []>} : vector<143x3xf32>, vector<3x24xf32>, vector<143x24xf32> -> vector<143x24xf32>
    %54 = arith.addf %39, %53 : vector<143x24xf32>
    %55 = vector.extract_strided_slice %1 {offsets = [19, 0], sizes = [143, 3], strides = [1, 1]} : vector<162x3xf32> to vector<143x3xf32>
    %cst_30 = arith.constant dense<0.000000e+00> : vector<143x24xf32>
    %56 = tpu.matmul %55, %50, %cst_30 {dimension_numbers = #tpu.dot_dimension_numbers<[1], [0], [0], [1], [0, 0, 1, 1], [], []>} : vector<143x3xf32>, vector<3x24xf32>, vector<143x24xf32> -> vector<143x24xf32>
    %57 = arith.addf %54, %56 : vector<143x24xf32>
    %58 = vector.extract_strided_slice %3 {offsets = [19, 0], sizes = [143, 3], strides = [1, 1]} : vector<162x3xf32> to vector<143x3xf32>
    %cst_31 = arith.constant dense<0.000000e+00> : vector<143x24xf32>
    %59 = tpu.matmul %58, %51, %cst_31 {dimension_numbers = #tpu.dot_dimension_numbers<[1], [0], [0], [1], [0, 0, 1, 1], [], []>} : vector<143x3xf32>, vector<3x24xf32>, vector<143x24xf32> -> vector<143x24xf32>
    %60 = arith.addf %57, %59 : vector<143x24xf32>
    %61 = vector.extract_strided_slice %1 {offsets = [18, 0], sizes = [143, 3], strides = [1, 1]} : vector<162x3xf32> to vector<143x3xf32>
    %cst_32 = arith.constant dense<0.000000e+00> : vector<143x24xf32>
    %62 = tpu.matmul %61, %49, %cst_32 {dimension_numbers = #tpu.dot_dimension_numbers<[1], [0], [0], [1], [0, 0, 1, 1], [], []>} : vector<143x3xf32>, vector<3x24xf32>, vector<143x24xf32> -> vector<143x24xf32>
    %63 = arith.addf %48, %62 : vector<143x24xf32>
    %64 = vector.extract_strided_slice %3 {offsets = [18, 0], sizes = [143, 3], strides = [1, 1]} : vector<162x3xf32> to vector<143x3xf32>
    %cst_33 = arith.constant dense<0.000000e+00> : vector<143x24xf32>
    %65 = tpu.matmul %64, %50, %cst_33 {dimension_numbers = #tpu.dot_dimension_numbers<[1], [0], [0], [1], [0, 0, 1, 1], [], []>} : vector<143x3xf32>, vector<3x24xf32>, vector<143x24xf32> -> vector<143x24xf32>
    %66 = arith.addf %63, %65 : vector<143x24xf32>
    %67 = vector.extract_strided_slice %1 {offsets = [19, 0], sizes = [143, 3], strides = [1, 1]} : vector<162x3xf32> to vector<143x3xf32>
    %cst_34 = arith.constant dense<0.000000e+00> : vector<143x24xf32>
    %68 = tpu.matmul %67, %51, %cst_34 {dimension_numbers = #tpu.dot_dimension_numbers<[1], [0], [0], [1], [0, 0, 1, 1], [], []>} : vector<143x3xf32>, vector<3x24xf32>, vector<143x24xf32> -> vector<143x24xf32>
    %69 = arith.addf %66, %68 : vector<143x24xf32>
    %70 = vector.broadcast %4 : vector<1x24xf32> to vector<143x24xf32>
    %71 = arith.addf %60, %70 : vector<143x24xf32>
    %cst_35 = arith.constant 0.000000e+00 : f32
    %72 = vector.broadcast %cst_35 : f32 to vector<143x24xf32>
    %73 = arith.maximumf %71, %72 : vector<143x24xf32>
    %74 = vector.broadcast %4 : vector<1x24xf32> to vector<143x24xf32>
    %75 = arith.addf %69, %74 : vector<143x24xf32>
    %cst_36 = arith.constant 0.000000e+00 : f32
    %76 = vector.broadcast %cst_36 : f32 to vector<143x24xf32>
    %77 = arith.maximumf %75, %76 : vector<143x24xf32>
    %78 = tpu.iota {dimensions = array<i32: 0>} : vector<143x1xi32>
    %c10_i32 = arith.constant 10 : i32
    %79 = vector.broadcast %c10_i32 : i32 to vector<143x1xi32>
    %80 = arith.addi %78, %79 : vector<143x1xi32>
    %c9_i32 = arith.constant 9 : i32
    %c0_i32 = arith.constant 0 : i32
    %81 = arith.cmpi eq, %c9_i32, %c0_i32 : i32
    %c1_i32 = arith.constant 1 : i32
    %82 = arith.select %81, %c1_i32, %c9_i32 : i32
    %83 = vector.broadcast %82 : i32 to vector<143x1xi32>
    %84 = arith.remsi %80, %83 : vector<143x1xi32>
    %c0_i32_37 = arith.constant 0 : i32
    %85 = vector.broadcast %c0_i32_37 : i32 to vector<143x1xi32>
    %86 = arith.cmpi ne, %84, %85 : vector<143x1xi32>
    %c0_i32_38 = arith.constant 0 : i32
    %87 = vector.broadcast %c0_i32_38 : i32 to vector<143x1xi32>
    %88 = arith.cmpi slt, %84, %87 : vector<143x1xi32>
    %c0_i32_39 = arith.constant 0 : i32
    %89 = arith.cmpi slt, %82, %c0_i32_39 : i32
    %90 = vector.broadcast %89 : i1 to vector<143x1xi1>
    %91 = vector.broadcast %90 : vector<143x1xi1> to vector<143x1xi1>
    %92 = arith.xori %88, %91 : vector<143x1xi1>
    %93 = arith.andi %92, %86 : vector<143x1xi1>
    %94 = vector.broadcast %82 : i32 to vector<143x1xi32>
    %95 = arith.addi %84, %94 : vector<143x1xi32>
    %96 = arith.select %93, %95, %84 : vector<143x1xi1>, vector<143x1xi32>
    %97 = tpu.iota {dimensions = array<i32: 0>} : vector<143x1xi32>
    %c9_i32_40 = arith.constant 9 : i32
    %98 = vector.broadcast %c9_i32_40 : i32 to vector<143x1xi32>
    %99 = arith.addi %97, %98 : vector<143x1xi32>
    %c9_i32_41 = arith.constant 9 : i32
    %c0_i32_42 = arith.constant 0 : i32
    %100 = arith.cmpi eq, %c9_i32_41, %c0_i32_42 : i32
    %c1_i32_43 = arith.constant 1 : i32
    %101 = arith.select %100, %c1_i32_43, %c9_i32_41 : i32
    %102 = vector.broadcast %101 : i32 to vector<143x1xi32>
    %103 = arith.remsi %99, %102 : vector<143x1xi32>
    %c0_i32_44 = arith.constant 0 : i32
    %104 = vector.broadcast %c0_i32_44 : i32 to vector<143x1xi32>
    %105 = arith.cmpi ne, %103, %104 : vector<143x1xi32>
    %c0_i32_45 = arith.constant 0 : i32
    %106 = vector.broadcast %c0_i32_45 : i32 to vector<143x1xi32>
    %107 = arith.cmpi slt, %103, %106 : vector<143x1xi32>
    %c0_i32_46 = arith.constant 0 : i32
    %108 = arith.cmpi slt, %101, %c0_i32_46 : i32
    %109 = vector.broadcast %108 : i1 to vector<143x1xi1>
    %110 = vector.broadcast %109 : vector<143x1xi1> to vector<143x1xi1>
    %111 = arith.xori %107, %110 : vector<143x1xi1>
    %112 = arith.andi %111, %105 : vector<143x1xi1>
    %113 = vector.broadcast %101 : i32 to vector<143x1xi32>
    %114 = arith.addi %103, %113 : vector<143x1xi32>
    %115 = arith.select %112, %114, %103 : vector<143x1xi1>, vector<143x1xi32>
    %c0_i32_47 = arith.constant 0 : i32
    %116 = vector.broadcast %c0_i32_47 : i32 to vector<143x1xi32>
    %117 = arith.cmpi ne, %96, %116 : vector<143x1xi32>
    %cst_48 = arith.constant 0.000000e+00 : f32
    %118 = vector.shape_cast %117 : vector<143x1xi1> to vector<143x1xi1>
    %119 = vector.broadcast %118 : vector<143x1xi1> to vector<143x24xi1>
    %120 = vector.broadcast %cst_48 : f32 to vector<143x24xf32>
    %121 = arith.select %119, %73, %120 : vector<143x24xi1>, vector<143x24xf32>
    %c8_i32 = arith.constant 8 : i32
    %122 = vector.broadcast %c8_i32 : i32 to vector<143x1xi32>
    %123 = arith.cmpi ne, %115, %122 : vector<143x1xi32>
    %cst_49 = arith.constant 0.000000e+00 : f32
    %124 = vector.shape_cast %123 : vector<143x1xi1> to vector<143x1xi1>
    %125 = vector.broadcast %124 : vector<143x1xi1> to vector<143x24xi1>
    %126 = vector.broadcast %cst_49 : f32 to vector<143x24xf32>
    %127 = arith.select %125, %77, %126 : vector<143x24xi1>, vector<143x24xf32>
    %cst_50 = arith.constant 0.000000e+00 : f32
    %128 = vector.broadcast %cst_50 : f32 to vector<162x24xf32>
    %c0_51 = arith.constant 0 : index
    %c0_52 = arith.constant 0 : index
    %129 = vector.load %arg8[%c0_51, %c0_52] : memref<162x24xf32, #tpu.memory_space<vmem>>, vector<162x24xf32>
    tpu.vector_store %arg8[%c0_51, %c0_52], %128 {strides = array<i32>} : memref<162x24xf32, #tpu.memory_space<vmem>>, vector<162x24xf32>,
    %cst_53 = arith.constant 0.000000e+00 : f32
    %130 = vector.broadcast %cst_53 : f32 to vector<162x24xf32>
    %c0_54 = arith.constant 0 : index
    %c0_55 = arith.constant 0 : index
    %131 = vector.load %arg9[%c0_54, %c0_55] : memref<162x24xf32, #tpu.memory_space<vmem>>, vector<162x24xf32>
    tpu.vector_store %arg9[%c0_54, %c0_55], %130 {strides = array<i32>} : memref<162x24xf32, #tpu.memory_space<vmem>>, vector<162x24xf32>,
    %c10 = arith.constant 10 : index
    %c0_56 = arith.constant 0 : index
    %132 = vector.load %arg8[%c10, %c0_56] : memref<162x24xf32, #tpu.memory_space<vmem>>, vector<143x24xf32>
    tpu.vector_store %arg8[%c10, %c0_56], %121 {strides = array<i32>} : memref<162x24xf32, #tpu.memory_space<vmem>>, vector<143x24xf32>,
    %c9_57 = arith.constant 9 : index
    %c0_58 = arith.constant 0 : index
    %133 = vector.load %arg9[%c9_57, %c0_58] : memref<162x24xf32, #tpu.memory_space<vmem>>, vector<143x24xf32>
    tpu.vector_store %arg9[%c9_57, %c0_58], %127 {strides = array<i32>} : memref<162x24xf32, #tpu.memory_space<vmem>>, vector<143x24xf32>,
    %c9_59 = arith.constant 9 : index
    %c0_60 = arith.constant 0 : index
    %134 = vector.load %arg6[%c9_59, %c0_60] : memref<14x48xf32, #tpu.memory_space<vmem>>, vector<1x48xf32>
    %cst_61 = arith.constant 0.000000e+00 : f32
    %135 = vector.broadcast %cst_61 : f32 to vector<134x48xf32>
    %c0_62 = arith.constant 0 : index
    %c0_63 = arith.constant 0 : index
    %136 = vector.load %arg4[%c0_62, %c0_63] : memref<216x48xf32, #tpu.memory_space<vmem>>, vector<24x48xf32>
    %c24_64 = arith.constant 24 : index
    %c0_65 = arith.constant 0 : index
    %137 = vector.load %arg4[%c24_64, %c0_65] : memref<216x48xf32, #tpu.memory_space<vmem>>, vector<24x48xf32>
    %c48 = arith.constant 48 : index
    %c0_66 = arith.constant 0 : index
    %138 = vector.load %arg4[%c48, %c0_66] : memref<216x48xf32, #tpu.memory_space<vmem>>, vector<24x48xf32>
    %c0_67 = arith.constant 0 : index
    %c0_68 = arith.constant 0 : index
    %139 = vector.load %arg8[%c0_67, %c0_68] : memref<162x24xf32, #tpu.memory_space<vmem>>, vector<134x24xf32>
    %cst_69 = arith.constant dense<0.000000e+00> : vector<134x48xf32>
    %140 = tpu.matmul %139, %136, %cst_69 {dimension_numbers = #tpu.dot_dimension_numbers<[1], [0], [0], [1], [0, 0, 1, 1], [], []>} : vector<134x24xf32>, vector<24x48xf32>, vector<134x48xf32> -> vector<134x48xf32>
    %141 = arith.addf %135, %140 : vector<134x48xf32>
    %c0_70 = arith.constant 0 : index
    %c0_71 = arith.constant 0 : index
    %142 = vector.load %arg9[%c0_70, %c0_71] : memref<162x24xf32, #tpu.memory_space<vmem>>, vector<134x24xf32>
    %cst_72 = arith.constant dense<0.000000e+00> : vector<134x48xf32>
    %143 = tpu.matmul %142, %137, %cst_72 {dimension_numbers = #tpu.dot_dimension_numbers<[1], [0], [0], [1], [0, 0, 1, 1], [], []>} : vector<134x24xf32>, vector<24x48xf32>, vector<134x48xf32> -> vector<134x48xf32>
    %144 = arith.addf %141, %143 : vector<134x48xf32>
    %c1 = arith.constant 1 : index
    %c0_73 = arith.constant 0 : index
    %145 = vector.load %arg8[%c1, %c0_73] : memref<162x24xf32, #tpu.memory_space<vmem>>, vector<134x24xf32>
    %cst_74 = arith.constant dense<0.000000e+00> : vector<134x48xf32>
    %146 = tpu.matmul %145, %138, %cst_74 {dimension_numbers = #tpu.dot_dimension_numbers<[1], [0], [0], [1], [0, 0, 1, 1], [], []>} : vector<134x24xf32>, vector<24x48xf32>, vector<134x48xf32> -> vector<134x48xf32>
    %147 = arith.addf %144, %146 : vector<134x48xf32>
    %c72 = arith.constant 72 : index
    %c0_75 = arith.constant 0 : index
    %148 = vector.load %arg4[%c72, %c0_75] : memref<216x48xf32, #tpu.memory_space<vmem>>, vector<24x48xf32>
    %c96 = arith.constant 96 : index
    %c0_76 = arith.constant 0 : index
    %149 = vector.load %arg4[%c96, %c0_76] : memref<216x48xf32, #tpu.memory_space<vmem>>, vector<24x48xf32>
    %c120 = arith.constant 120 : index
    %c0_77 = arith.constant 0 : index
    %150 = vector.load %arg4[%c120, %c0_77] : memref<216x48xf32, #tpu.memory_space<vmem>>, vector<24x48xf32>
    %c9_78 = arith.constant 9 : index
    %c0_79 = arith.constant 0 : index
    %151 = vector.load %arg8[%c9_78, %c0_79] : memref<162x24xf32, #tpu.memory_space<vmem>>, vector<134x24xf32>
    %cst_80 = arith.constant dense<0.000000e+00> : vector<134x48xf32>
    %152 = tpu.matmul %151, %148, %cst_80 {dimension_numbers = #tpu.dot_dimension_numbers<[1], [0], [0], [1], [0, 0, 1, 1], [], []>} : vector<134x24xf32>, vector<24x48xf32>, vector<134x48xf32> -> vector<134x48xf32>
    %153 = arith.addf %147, %152 : vector<134x48xf32>
    %c9_81 = arith.constant 9 : index
    %c0_82 = arith.constant 0 : index
    %154 = vector.load %arg9[%c9_81, %c0_82] : memref<162x24xf32, #tpu.memory_space<vmem>>, vector<134x24xf32>
    %cst_83 = arith.constant dense<0.000000e+00> : vector<134x48xf32>
    %155 = tpu.matmul %154, %149, %cst_83 {dimension_numbers = #tpu.dot_dimension_numbers<[1], [0], [0], [1], [0, 0, 1, 1], [], []>} : vector<134x24xf32>, vector<24x48xf32>, vector<134x48xf32> -> vector<134x48xf32>
    %156 = arith.addf %153, %155 : vector<134x48xf32>
    %c10_84 = arith.constant 10 : index
    %c0_85 = arith.constant 0 : index
    %157 = vector.load %arg8[%c10_84, %c0_85] : memref<162x24xf32, #tpu.memory_space<vmem>>, vector<134x24xf32>
    %cst_86 = arith.constant dense<0.000000e+00> : vector<134x48xf32>
    %158 = tpu.matmul %157, %150, %cst_86 {dimension_numbers = #tpu.dot_dimension_numbers<[1], [0], [0], [1], [0, 0, 1, 1], [], []>} : vector<134x24xf32>, vector<24x48xf32>, vector<134x48xf32> -> vector<134x48xf32>
    %159 = arith.addf %156, %158 : vector<134x48xf32>
    %c144 = arith.constant 144 : index
    %c0_87 = arith.constant 0 : index
    %160 = vector.load %arg4[%c144, %c0_87] : memref<216x48xf32, #tpu.memory_space<vmem>>, vector<24x48xf32>
    %c168 = arith.constant 168 : index
    %c0_88 = arith.constant 0 : index
    %161 = vector.load %arg4[%c168, %c0_88] : memref<216x48xf32, #tpu.memory_space<vmem>>, vector<24x48xf32>
    %c192 = arith.constant 192 : index
    %c0_89 = arith.constant 0 : index
    %162 = vector.load %arg4[%c192, %c0_89] : memref<216x48xf32, #tpu.memory_space<vmem>>, vector<24x48xf32>
    %c18_90 = arith.constant 18 : index
    %c0_91 = arith.constant 0 : index
    %163 = vector.load %arg8[%c18_90, %c0_91] : memref<162x24xf32, #tpu.memory_space<vmem>>, vector<134x24xf32>
    %cst_92 = arith.constant dense<0.000000e+00> : vector<134x48xf32>
    %164 = tpu.matmul %163, %160, %cst_92 {dimension_numbers = #tpu.dot_dimension_numbers<[1], [0], [0], [1], [0, 0, 1, 1], [], []>} : vector<134x24xf32>, vector<24x48xf32>, vector<134x48xf32> -> vector<134x48xf32>
    %165 = arith.addf %159, %164 : vector<134x48xf32>
    %c18_93 = arith.constant 18 : index
    %c0_94 = arith.constant 0 : index
    %166 = vector.load %arg9[%c18_93, %c0_94] : memref<162x24xf32, #tpu.memory_space<vmem>>, vector<134x24xf32>
    %cst_95 = arith.constant dense<0.000000e+00> : vector<134x48xf32>
    %167 = tpu.matmul %166, %161, %cst_95 {dimension_numbers = #tpu.dot_dimension_numbers<[1], [0], [0], [1], [0, 0, 1, 1], [], []>} : vector<134x24xf32>, vector<24x48xf32>, vector<134x48xf32> -> vector<134x48xf32>
    %168 = arith.addf %165, %167 : vector<134x48xf32>
    %c19 = arith.constant 19 : index
    %c0_96 = arith.constant 0 : index
    %169 = vector.load %arg8[%c19, %c0_96] : memref<162x24xf32, #tpu.memory_space<vmem>>, vector<134x24xf32>
    %cst_97 = arith.constant dense<0.000000e+00> : vector<134x48xf32>
    %170 = tpu.matmul %169, %162, %cst_97 {dimension_numbers = #tpu.dot_dimension_numbers<[1], [0], [0], [1], [0, 0, 1, 1], [], []>} : vector<134x24xf32>, vector<24x48xf32>, vector<134x48xf32> -> vector<134x48xf32>
    %171 = arith.addf %168, %170 : vector<134x48xf32>
    %172 = vector.broadcast %134 : vector<1x48xf32> to vector<134x48xf32>
    %173 = arith.addf %171, %172 : vector<134x48xf32>
    %cst_98 = arith.constant 0.000000e+00 : f32
    %174 = vector.broadcast %cst_98 : f32 to vector<134x48xf32>
    %175 = arith.maximumf %173, %174 : vector<134x48xf32>
    %c0_99 = arith.constant 0 : index
    %c0_100 = arith.constant 0 : index
    %176 = vector.load %arg5[%c0_99, %c0_100] : memref<48x48xf32, #tpu.memory_space<vmem>>, vector<48x48xf32>
    %cst_101 = arith.constant dense<0.000000e+00> : vector<134x48xf32>
    %177 = tpu.matmul %175, %176, %cst_101 {dimension_numbers = #tpu.dot_dimension_numbers<[1], [0], [0], [1], [0, 0, 1, 1], [], []>} : vector<134x48xf32>, vector<48x48xf32>, vector<134x48xf32> -> vector<134x48xf32>
    %c10_102 = arith.constant 10 : index
    %c0_103 = arith.constant 0 : index
    %178 = vector.load %arg6[%c10_102, %c0_103] : memref<14x48xf32, #tpu.memory_space<vmem>>, vector<1x48xf32>
    %179 = vector.broadcast %178 : vector<1x48xf32> to vector<134x48xf32>
    %180 = arith.addf %177, %179 : vector<134x48xf32>
    %181 = tpu.iota {dimensions = array<i32: 0>} : vector<134x1xi32>
    %c18_i32 = arith.constant 18 : i32
    %c0_i32_104 = arith.constant 0 : i32
    %182 = arith.cmpi eq, %c18_i32, %c0_i32_104 : i32
    %c1_i32_105 = arith.constant 1 : i32
    %183 = arith.select %182, %c1_i32_105, %c18_i32 : i32
    %184 = vector.broadcast %183 : i32 to vector<134x1xi32>
    %185 = arith.remsi %181, %184 : vector<134x1xi32>
    %c0_i32_106 = arith.constant 0 : i32
    %186 = vector.broadcast %c0_i32_106 : i32 to vector<134x1xi32>
    %187 = arith.cmpi ne, %185, %186 : vector<134x1xi32>
    %c0_i32_107 = arith.constant 0 : i32
    %188 = vector.broadcast %c0_i32_107 : i32 to vector<134x1xi32>
    %189 = arith.cmpi slt, %185, %188 : vector<134x1xi32>
    %c0_i32_108 = arith.constant 0 : i32
    %190 = arith.cmpi slt, %183, %c0_i32_108 : i32
    %191 = vector.broadcast %190 : i1 to vector<134x1xi1>
    %192 = vector.broadcast %191 : vector<134x1xi1> to vector<134x1xi1>
    %193 = arith.xori %189, %192 : vector<134x1xi1>
    %194 = arith.andi %193, %187 : vector<134x1xi1>
    %195 = vector.broadcast %183 : i32 to vector<134x1xi32>
    %196 = arith.addi %185, %195 : vector<134x1xi32>
    %197 = arith.select %194, %196, %185 : vector<134x1xi1>, vector<134x1xi32>
    %c8_i32_109 = arith.constant 8 : i32
    %198 = vector.broadcast %c8_i32_109 : i32 to vector<134x1xi32>
    %199 = arith.cmpi slt, %197, %198 : vector<134x1xi32>
    %cst_110 = arith.constant 0.000000e+00 : f32
    %200 = vector.shape_cast %199 : vector<134x1xi1> to vector<134x1xi1>
    %201 = vector.broadcast %200 : vector<134x1xi1> to vector<134x48xi1>
    %202 = vector.broadcast %cst_110 : f32 to vector<134x48xf32>
    %203 = arith.select %201, %180, %202 : vector<134x48xi1>, vector<134x48xf32>
    %cst_111 = arith.constant 0.000000e+00 : f32
    %204 = vector.broadcast %cst_111 : f32 to vector<172x48xf32>
    %c0_112 = arith.constant 0 : index
    %c0_113 = arith.constant 0 : index
    %205 = vector.load %arg10[%c0_112, %c0_113] : memref<172x48xf32, #tpu.memory_space<vmem>>, vector<172x48xf32>
    tpu.vector_store %arg10[%c0_112, %c0_113], %204 {strides = array<i32>} : memref<172x48xf32, #tpu.memory_space<vmem>>, vector<172x48xf32>,
    %c19_114 = arith.constant 19 : index
    %c0_115 = arith.constant 0 : index
    %206 = vector.load %arg10[%c19_114, %c0_115] : memref<172x48xf32, #tpu.memory_space<vmem>>, vector<134x48xf32>
    tpu.vector_store %arg10[%c19_114, %c0_115], %203 {strides = array<i32>} : memref<172x48xf32, #tpu.memory_space<vmem>>, vector<134x48xf32>,
    %cst_116 = arith.constant 0.000000e+00 : f32
    %207 = vector.broadcast %cst_116 : f32 to vector<134x48xf32>
    %c0_117 = arith.constant 0 : index
    %c0_118 = arith.constant 0 : index
    %208 = vector.load %arg10[%c0_117, %c0_118] : memref<172x48xf32, #tpu.memory_space<vmem>>, vector<134x48xf32>
    %c0_119 = arith.constant 0 : index
    %c0_120 = arith.constant 0 : index
    %209 = vector.load %arg6[%c0_119, %c0_120] : memref<14x48xf32, #tpu.memory_space<vmem>>, vector<1x48xf32>
    %210 = vector.broadcast %209 : vector<1x48xf32> to vector<134x48xf32>
    %211 = arith.mulf %208, %210 : vector<134x48xf32>
    %212 = arith.addf %207, %211 : vector<134x48xf32>
    %c1_121 = arith.constant 1 : index
    %c0_122 = arith.constant 0 : index
    %213 = vector.load %arg10[%c1_121, %c0_122] : memref<172x48xf32, #tpu.memory_space<vmem>>, vector<134x48xf32>
    %c1_123 = arith.constant 1 : index
    %c0_124 = arith.constant 0 : index
    %214 = vector.load %arg6[%c1_123, %c0_124] : memref<14x48xf32, #tpu.memory_space<vmem>>, vector<1x48xf32>
    %215 = vector.broadcast %214 : vector<1x48xf32> to vector<134x48xf32>
    %216 = arith.mulf %213, %215 : vector<134x48xf32>
    %217 = arith.addf %212, %216 : vector<134x48xf32>
    %c2 = arith.constant 2 : index
    %c0_125 = arith.constant 0 : index
    %218 = vector.load %arg10[%c2, %c0_125] : memref<172x48xf32, #tpu.memory_space<vmem>>, vector<134x48xf32>
    %c2_126 = arith.constant 2 : index
    %c0_127 = arith.constant 0 : index
    %219 = vector.load %arg6[%c2_126, %c0_127] : memref<14x48xf32, #tpu.memory_space<vmem>>, vector<1x48xf32>
    %220 = vector.broadcast %219 : vector<1x48xf32> to vector<134x48xf32>
    %221 = arith.mulf %218, %220 : vector<134x48xf32>
    %222 = arith.addf %217, %221 : vector<134x48xf32>
    %c18_128 = arith.constant 18 : index
    %c0_129 = arith.constant 0 : index
    %223 = vector.load %arg10[%c18_128, %c0_129] : memref<172x48xf32, #tpu.memory_space<vmem>>, vector<134x48xf32>
    %c3_130 = arith.constant 3 : index
    %c0_131 = arith.constant 0 : index
    %224 = vector.load %arg6[%c3_130, %c0_131] : memref<14x48xf32, #tpu.memory_space<vmem>>, vector<1x48xf32>
    %225 = vector.broadcast %224 : vector<1x48xf32> to vector<134x48xf32>
    %226 = arith.mulf %223, %225 : vector<134x48xf32>
    %227 = arith.addf %222, %226 : vector<134x48xf32>
    %c19_132 = arith.constant 19 : index
    %c0_133 = arith.constant 0 : index
    %228 = vector.load %arg10[%c19_132, %c0_133] : memref<172x48xf32, #tpu.memory_space<vmem>>, vector<134x48xf32>
    %c4 = arith.constant 4 : index
    %c0_134 = arith.constant 0 : index
    %229 = vector.load %arg6[%c4, %c0_134] : memref<14x48xf32, #tpu.memory_space<vmem>>, vector<1x48xf32>
    %230 = vector.broadcast %229 : vector<1x48xf32> to vector<134x48xf32>
    %231 = arith.mulf %228, %230 : vector<134x48xf32>
    %232 = arith.addf %227, %231 : vector<134x48xf32>
    %c20 = arith.constant 20 : index
    %c0_135 = arith.constant 0 : index
    %233 = vector.load %arg10[%c20, %c0_135] : memref<172x48xf32, #tpu.memory_space<vmem>>, vector<134x48xf32>
    %c5 = arith.constant 5 : index
    %c0_136 = arith.constant 0 : index
    %234 = vector.load %arg6[%c5, %c0_136] : memref<14x48xf32, #tpu.memory_space<vmem>>, vector<1x48xf32>
    %235 = vector.broadcast %234 : vector<1x48xf32> to vector<134x48xf32>
    %236 = arith.mulf %233, %235 : vector<134x48xf32>
    %237 = arith.addf %232, %236 : vector<134x48xf32>
    %c36 = arith.constant 36 : index
    %c0_137 = arith.constant 0 : index
    %238 = vector.load %arg10[%c36, %c0_137] : memref<172x48xf32, #tpu.memory_space<vmem>>, vector<134x48xf32>
    %c6_138 = arith.constant 6 : index
    %c0_139 = arith.constant 0 : index
    %239 = vector.load %arg6[%c6_138, %c0_139] : memref<14x48xf32, #tpu.memory_space<vmem>>, vector<1x48xf32>
    %240 = vector.broadcast %239 : vector<1x48xf32> to vector<134x48xf32>
    %241 = arith.mulf %238, %240 : vector<134x48xf32>
    %242 = arith.addf %237, %241 : vector<134x48xf32>
    %c37 = arith.constant 37 : index
    %c0_140 = arith.constant 0 : index
    %243 = vector.load %arg10[%c37, %c0_140] : memref<172x48xf32, #tpu.memory_space<vmem>>, vector<134x48xf32>
    %c7 = arith.constant 7 : index
    %c0_141 = arith.constant 0 : index
    %244 = vector.load %arg6[%c7, %c0_141] : memref<14x48xf32, #tpu.memory_space<vmem>>, vector<1x48xf32>
    %245 = vector.broadcast %244 : vector<1x48xf32> to vector<134x48xf32>
    %246 = arith.mulf %243, %245 : vector<134x48xf32>
    %247 = arith.addf %242, %246 : vector<134x48xf32>
    %c38 = arith.constant 38 : index
    %c0_142 = arith.constant 0 : index
    %248 = vector.load %arg10[%c38, %c0_142] : memref<172x48xf32, #tpu.memory_space<vmem>>, vector<134x48xf32>
    %c8 = arith.constant 8 : index
    %c0_143 = arith.constant 0 : index
    %249 = vector.load %arg6[%c8, %c0_143] : memref<14x48xf32, #tpu.memory_space<vmem>>, vector<1x48xf32>
    %250 = vector.broadcast %249 : vector<1x48xf32> to vector<134x48xf32>
    %251 = arith.mulf %248, %250 : vector<134x48xf32>
    %252 = arith.addf %247, %251 : vector<134x48xf32>
    %c11 = arith.constant 11 : index
    %c0_144 = arith.constant 0 : index
    %253 = vector.load %arg6[%c11, %c0_144] : memref<14x48xf32, #tpu.memory_space<vmem>>, vector<1x48xf32>
    %254 = vector.broadcast %253 : vector<1x48xf32> to vector<134x48xf32>
    %255 = arith.addf %252, %254 : vector<134x48xf32>
    %cst_145 = arith.constant 0.000000e+00 : f32
    %256 = vector.broadcast %cst_145 : f32 to vector<134x48xf32>
    %257 = arith.subf %256, %255 : vector<134x48xf32>
    %258 = math.exp %257 : vector<134x48xf32>
    %cst_146 = arith.constant 1.000000e+00 : f32
    %259 = vector.broadcast %cst_146 : f32 to vector<134x48xf32>
    %260 = arith.addf %259, %258 : vector<134x48xf32>
    %cst_147 = arith.constant 1.000000e+00 : f32
    %261 = vector.broadcast %cst_147 : f32 to vector<134x48xf32>
    %262 = arith.divf %261, %260 : vector<134x48xf32>
    %263 = arith.mulf %203, %262 : vector<134x48xf32>
    %cst_148 = arith.constant dense<0.000000e+00> : vector<134xf32>
    %264 = vector.multi_reduction <add>, %263, %cst_148 [1] : vector<134x48xf32> to vector<134xf32>
    %265 = vector.shape_cast %264 : vector<134xf32> to vector<134x1xf32>
    %cst_149 = arith.constant 4.800000e+01 : f32
    %266 = vector.broadcast %cst_149 : f32 to vector<134x1xf32>
    %267 = arith.divf %265, %266 : vector<134x1xf32>
    %268 = vector.broadcast %267 : vector<134x1xf32> to vector<134x48xf32>
    %269 = arith.subf %263, %268 : vector<134x48xf32>
    %270 = arith.mulf %269, %269 : vector<134x48xf32>
    %cst_150 = arith.constant dense<0.000000e+00> : vector<134xf32>
    %271 = vector.multi_reduction <add>, %270, %cst_150 [1] : vector<134x48xf32> to vector<134xf32>
    %272 = vector.shape_cast %271 : vector<134xf32> to vector<134x1xf32>
    %cst_151 = arith.constant 4.800000e+01 : f32
    %273 = vector.broadcast %cst_151 : f32 to vector<134x1xf32>
    %274 = arith.divf %272, %273 : vector<134x1xf32>
    %cst_152 = arith.constant 9.99999997E-7 : f32
    %275 = vector.broadcast %cst_152 : f32 to vector<134x1xf32>
    %276 = arith.addf %274, %275 : vector<134x1xf32>
    %277 = math.rsqrt %276 : vector<134x1xf32>
    %278 = vector.broadcast %277 : vector<134x1xf32> to vector<134x48xf32>
    %279 = arith.mulf %269, %278 : vector<134x48xf32>
    %c12_153 = arith.constant 12 : index
    %c0_154 = arith.constant 0 : index
    %280 = vector.load %arg6[%c12_153, %c0_154] : memref<14x48xf32, #tpu.memory_space<vmem>>, vector<1x48xf32>
    %281 = vector.broadcast %280 : vector<1x48xf32> to vector<134x48xf32>
    %282 = arith.mulf %279, %281 : vector<134x48xf32>
    %c13 = arith.constant 13 : index
    %c0_155 = arith.constant 0 : index
    %283 = vector.load %arg6[%c13, %c0_155] : memref<14x48xf32, #tpu.memory_space<vmem>>, vector<1x48xf32>
    %284 = vector.broadcast %283 : vector<1x48xf32> to vector<134x48xf32>
    %285 = arith.addf %282, %284 : vector<134x48xf32>
    %c0_156 = arith.constant 0 : index
    %c0_157 = arith.constant 0 : index
    %286 = vector.load %arg11[%c0_156, %c0_157] : memref<134x48xf32, #tpu.memory_space<vmem>>, vector<134x48xf32>
    tpu.vector_store %arg11[%c0_156, %c0_157], %285 {strides = array<i32>} : memref<134x48xf32, #tpu.memory_space<vmem>>, vector<134x48xf32>,
    %c0_i32_158 = arith.constant 0 : i32
    %c8_i32_159 = arith.constant 8 : i32
    %287 = arith.addi %c0_i32_158, %c8_i32_159 : i32
    %c1_i32_160 = arith.constant 1 : i32
    scf.for %arg12 = %c0_i32_158 to %287 step %c1_i32_160  : i32 {
      %c2_i32 = arith.constant 2 : i32
      %288 = arith.muli %c2_i32, %arg12 : i32
      %c9_i32_162 = arith.constant 9 : i32
      %289 = arith.muli %288, %c9_i32_162 : i32
      %290 = arith.index_cast %289 : i32 to index
      %c0_163 = arith.constant 0 : index
      %291 = vector.load %arg11[%290, %c0_163] : memref<134x48xf32, #tpu.memory_space<vmem>>, vector<8x48xf32>
      %c0_164 = arith.constant 0 : index
      %292 = arith.index_cast %arg12 : i32 to index
      %c0_165 = arith.constant 0 : index
      %c0_166 = arith.constant 0 : index
      %293 = vector.load %arg7[%c0_164, %292, %c0_165, %c0_166] : memref<1x8x8x48xf32, #tpu.memory_space<vmem>>, vector<1x1x8x48xf32>
      %294 = vector.shape_cast %293 : vector<1x1x8x48xf32> to vector<8x48xf32>
      %295 = vector.shape_cast %291 : vector<8x48xf32> to vector<1x1x8x48xf32>
      tpu.vector_store %arg7[%c0_164, %292, %c0_165, %c0_166], %295 {strides = array<i32>} : memref<1x8x8x48xf32, #tpu.memory_space<vmem>>, vector<1x1x8x48xf32>,
    }
    %c8_i32_161 = arith.constant 8 : i32
    return
  }
  func.func @transform_0(%arg0: i32) -> (i32, i32, i32) {
    %c0_i32 = arith.constant 0 : i32
    %c0_i32_0 = arith.constant 0 : i32
    %c0_i32_1 = arith.constant 0 : i32
    return %arg0, %c0_i32, %c0_i32_0 : i32, i32, i32
  }
  func.func @transform_1(%arg0: i32) -> (i32, i32, i32) {
    %c0_i32 = arith.constant 0 : i32
    %c0_i32_0 = arith.constant 0 : i32
    %c0_i32_1 = arith.constant 0 : i32
    return %arg0, %c0_i32, %c0_i32_0 : i32, i32, i32
  }
  func.func @transform_2(%arg0: i32) -> (i32, i32) {
    %c0_i32 = arith.constant 0 : i32
    %c0_i32_0 = arith.constant 0 : i32
    %c0_i32_1 = arith.constant 0 : i32
    return %c0_i32, %c0_i32_0 : i32, i32
  }
  func.func @transform_3(%arg0: i32) -> (i32, i32) {
    %c0_i32 = arith.constant 0 : i32
    %c0_i32_0 = arith.constant 0 : i32
    %c0_i32_1 = arith.constant 0 : i32
    return %c0_i32, %c0_i32_0 : i32, i32
  }
  func.func @transform_4(%arg0: i32) -> (i32, i32) {
    %c0_i32 = arith.constant 0 : i32
    %c0_i32_0 = arith.constant 0 : i32
    %c0_i32_1 = arith.constant 0 : i32
    return %c0_i32, %c0_i32_0 : i32, i32
  }
  func.func @transform_5(%arg0: i32) -> (i32, i32) {
    %c0_i32 = arith.constant 0 : i32
    %c0_i32_0 = arith.constant 0 : i32
    %c0_i32_1 = arith.constant 0 : i32
    return %c0_i32, %c0_i32_0 : i32, i32
  }
  func.func @transform_6(%arg0: i32) -> (i32, i32, i32, i32) {
    %c0_i32 = arith.constant 0 : i32
    %c0_i32_0 = arith.constant 0 : i32
    %c0_i32_1 = arith.constant 0 : i32
    %c0_i32_2 = arith.constant 0 : i32
    return %arg0, %c0_i32, %c0_i32_0, %c0_i32_1 : i32, i32, i32, i32
  }
}

</mosaic_0001>

<llo_original>
// kernel: tpu_custom_call.1
$region0: #{tpu_custom_call.1}
  #allocation0 [shape = 'u32[]', space=smem, size = 0x4, offset = 0x4, fixed_abs, tag = 'smem constant byte address 0x4 - core index']
  #allocation1 [shape = 'u32[72,128]{1,0:T(1,128)}', space=vmem, size = 0x9000, scoped, tag = 'internal scratch']
  #allocation2 [shape = 'f32[162,24]{1,0:T(8,128)}', space=vmem, size = 0x15000, scoped, tag = 'scratch operand']
  #allocation3 [shape = 'f32[162,24]{1,0:T(8,128)}', space=vmem, size = 0x15000, scoped, tag = 'scratch operand']
  #allocation4 [shape = 'f32[172,48]{1,0:T(8,128)}', space=vmem, size = 0x16000, scoped, tag = 'scratch operand']
  #allocation5 [shape = 'f32[134,48]{1,0:T(8,128)}', space=vmem, size = 0x11000, scoped, tag = 'scratch operand']
  %s0 = inlined_call_operand.vmem [shape: f32[2,162,3], index: 0, kind: input, shape index: {}]
  %s1 = inlined_call_operand.vmem [shape: f32[2,162,3], index: 1, kind: input, shape index: {}]
  %s2 = inlined_call_operand.vmem [shape: f32[28,24], index: 2, kind: input, shape index: {}]
  %s3 = inlined_call_operand.vmem [shape: f32[216,48], index: 3, kind: input, shape index: {}]
  %s4 = inlined_call_operand.vmem [shape: f32[48,48], index: 4, kind: input, shape index: {}]
  %s5 = inlined_call_operand.vmem [shape: f32[14,48], index: 5, kind: input, shape index: {}]
  %s6 = inlined_call_operand.hbm [shape: f32[2,8,8,48], index: 6, kind: output, shape index: {}]
  %s7 = sld [smem:[#allocation0]]
  $region64: #{tpu_custom_call.1} parent=0
    _
  %s9 = ssub.s32 1, %s7
  %s10 = scalar_select 0, %s9, %s7
  $region1: #{tpu_custom_call.1} parent=0
    #allocation6 [shape = 'u8[65536]{0}', space=vmem, size = 0x10000, scoped, tag = 'output window, operand 0']
    #allocation7 [shape = 's32[2]{0}', space=sflag, size = 0x8, scoped, tag = 'scoped memory for tpu_custom_call.1']
    %11 = vsyncpa [#allocation7], 0
    %s12 = scalar_lea.sflag [#allocation7], 1
    %13 = vsyncpa %s12, 0
    loop: start=0, step=1, limit=4
    $region2: #{tpu_custom_call.1} parent=1 // loop_pre_header
      _
    $region3: #{tpu_custom_call.1} parent=1 // loop_header
      %s15 = sphi 0, %s19
      %p16 = scmp.ge.s32.totalorder %s15, 4
      %s25 = sphi 0, %s27
      %s28 = sphi 0, %s25
      %s29 = sphi 0, %s28
      %s45 = sphi 0, %s29
      %s51 = sphi 0, %s53
      %s54 = sphi 0, %s51
      %s55 = sphi 0, %s54
      %s71 = sphi 0, %s55
      %s75 = sphi 0, %s75
      %s77 = sphi 0, %s75
      %s78 = sphi 0, %s77
      %s92 = sphi 0, %s78
      %s96 = sphi 0, %s96
      %s98 = sphi 0, %s96
      %s99 = sphi 0, %s98
      %s113 = sphi 0, %s99
      %s117 = sphi 0, %s117
      %s119 = sphi 0, %s117
      %s120 = sphi 0, %s119
      %s134 = sphi 0, %s120
      %s138 = sphi 0, %s138
      %s140 = sphi 0, %s138
      %s141 = sphi 0, %s140
      %s155 = sphi 0, %s141
      %s161 = sphi 0, %s163
      %s164 = sphi 0, %s161
      %s165 = sphi 0, %s164
      %s181 = sphi 0, %s165
    $region4: #{tpu_custom_call.1} parent=1 // loop_header_branch
      %18 = sbr.rel (%p16) target = $region8
    $region5: #{tpu_custom_call.1} parent=1 // loop_body
      %s20 = ssub.s32 %s15, 1
      %s21 = ssub.s32 %s15, 2
      %s22 = sadd.s32 %s15, 1
      %s23 = ssub.s32 %s15, %s22
      %p24 = scmp.eq.s32.totalorder %s23, 0
      %s26 = sadd.s32 %s25, 1
      %s27 = scalar_select %p24, %s25, %s26
      %p30 = pneg %p24
      %p31 = scmp.eq.s32.totalorder %s15, 1
      %p32 = por %p30, %p31
      %p33 = scmp.ne.s32.totalorder %s25, %s28
      %p34 = scmp.eq.s32.totalorder %s15, 0
      %p35 = por %p33, %p34
      %p36 = scmp.ne.s32.totalorder %s25, %s28
      %p37 = scmp.eq.s32.totalorder %s20, 1
      %p38 = por %p36, %p37
      %p39 = scmp.ne.s32.totalorder %s28, %s29
      %p40 = scmp.eq.s32.totalorder %s20, 0
      %p41 = por %p39, %p40
      %p42 = scmp.ne.s32.totalorder %s28, %s29
      %p43 = scmp.eq.s32.totalorder %s21, 1
      %p44 = por %p42, %p43
      %p46 = scmp.ne.s32.totalorder %s29, %s45
      %p47 = scmp.eq.s32.totalorder %s21, 0
      %p48 = por %p46, %p47
      %s49 = ssub.s32 %s15, %s22
      %p50 = scmp.eq.s32.totalorder %s49, 0
      %s52 = sadd.s32 %s51, 1
      %s53 = scalar_select %p50, %s51, %s52
      %p56 = pneg %p50
      %p57 = scmp.eq.s32.totalorder %s15, 1
      %p58 = por %p56, %p57
      %p59 = scmp.ne.s32.totalorder %s51, %s54
      %p60 = scmp.eq.s32.totalorder %s15, 0
      %p61 = por %p59, %p60
      %p62 = scmp.ne.s32.totalorder %s51, %s54
      %p63 = scmp.eq.s32.totalorder %s20, 1
      %p64 = por %p62, %p63
      %p65 = scmp.ne.s32.totalorder %s54, %s55
      %p66 = scmp.eq.s32.totalorder %s20, 0
      %p67 = por %p65, %p66
      %p68 = scmp.ne.s32.totalorder %s54, %s55
      %p69 = scmp.eq.s32.totalorder %s21, 1
      %p70 = por %p68, %p69
      %p72 = scmp.ne.s32.totalorder %s55, %s71
      %p73 = scmp.eq.s32.totalorder %s21, 0
      %p74 = por %p72, %p73
      %s76 = sadd.s32 %s75, 1
      %p79 = scmp.eq.s32.totalorder %s15, 1
      %p80 = scmp.ne.s32.totalorder %s75, %s77
      %p81 = scmp.eq.s32.totalorder %s15, 0
      %p82 = por %p80, %p81
      %p83 = scmp.ne.s32.totalorder %s75, %s77
      %p84 = scmp.eq.s32.totalorder %s20, 1
      %p85 = por %p83, %p84
      %p86 = scmp.ne.s32.totalorder %s77, %s78
      %p87 = scmp.eq.s32.totalorder %s20, 0
      %p88 = por %p86, %p87
      %p89 = scmp.ne.s32.totalorder %s77, %s78
      %p90 = scmp.eq.s32.totalorder %s21, 1
      %p91 = por %p89, %p90
      %p93 = scmp.ne.s32.totalorder %s78, %s92
      %p94 = scmp.eq.s32.totalorder %s21, 0
      %p95 = por %p93, %p94
      %s97 = sadd.s32 %s96, 1
      %p100 = scmp.eq.s32.totalorder %s15, 1
      %p101 = scmp.ne.s32.totalorder %s96, %s98
      %p102 = scmp.eq.s32.totalorder %s15, 0
      %p103 = por %p101, %p102
      %p104 = scmp.ne.s32.totalorder %s96, %s98
      %p105 = scmp.eq.s32.totalorder %s20, 1
      %p106 = por %p104, %p105
      %p107 = scmp.ne.s32.totalorder %s98, %s99
      %p108 = scmp.eq.s32.totalorder %s20, 0
      %p109 = por %p107, %p108
      %p110 = scmp.ne.s32.totalorder %s98, %s99
      %p111 = scmp.eq.s32.totalorder %s21, 1
      %p112 = por %p110, %p111
      %p114 = scmp.ne.s32.totalorder %s99, %s113
      %p115 = scmp.eq.s32.totalorder %s21, 0
      %p116 = por %p114, %p115
      %s118 = sadd.s32 %s117, 1
      %p121 = scmp.eq.s32.totalorder %s15, 1
      %p122 = scmp.ne.s32.totalorder %s117, %s119
      %p123 = scmp.eq.s32.totalorder %s15, 0
      %p124 = por %p122, %p123
      %p125 = scmp.ne.s32.totalorder %s117, %s119
      %p126 = scmp.eq.s32.totalorder %s20, 1
      %p127 = por %p125, %p126
      %p128 = scmp.ne.s32.totalorder %s119, %s120
      %p129 = scmp.eq.s32.totalorder %s20, 0
      %p130 = por %p128, %p129
      %p131 = scmp.ne.s32.totalorder %s119, %s120
      %p132 = scmp.eq.s32.totalorder %s21, 1
      %p133 = por %p131, %p132
      %p135 = scmp.ne.s32.totalorder %s120, %s134
      %p136 = scmp.eq.s32.totalorder %s21, 0
      %p137 = por %p135, %p136
      %s139 = sadd.s32 %s138, 1
      %p142 = scmp.eq.s32.totalorder %s15, 1
      %p143 = scmp.ne.s32.totalorder %s138, %s140
      %p144 = scmp.eq.s32.totalorder %s15, 0
      %p145 = por %p143, %p144
      %p146 = scmp.ne.s32.totalorder %s138, %s140
      %p147 = scmp.eq.s32.totalorder %s20, 1
      %p148 = por %p146, %p147
      %p149 = scmp.ne.s32.totalorder %s140, %s141
      %p150 = scmp.eq.s32.totalorder %s20, 0
      %p151 = por %p149, %p150
      %p152 = scmp.ne.s32.totalorder %s140, %s141
      %p153 = scmp.eq.s32.totalorder %s21, 1
      %p154 = por %p152, %p153
      %p156 = scmp.ne.s32.totalorder %s141, %s155
      %p157 = scmp.eq.s32.totalorder %s21, 0
      %p158 = por %p156, %p157
      %s159 = ssub.s32 %s15, %s22
      %p160 = scmp.eq.s32.totalorder %s159, 0
      %s162 = sadd.s32 %s161, 1
      %s163 = scalar_select %p160, %s161, %s162
      %p166 = pneg %p160
      %p167 = scmp.eq.s32.totalorder %s15, 1
      %p168 = por %p166, %p167
      %p169 = scmp.ne.s32.totalorder %s161, %s164
      %p170 = scmp.eq.s32.totalorder %s15, 0
      %p171 = por %p169, %p170
      %p172 = scmp.ne.s32.totalorder %s161, %s164
      %p173 = scmp.eq.s32.totalorder %s20, 1
      %p174 = por %p172, %p173
      %p175 = scmp.ne.s32.totalorder %s164, %s165
      %p176 = scmp.eq.s32.totalorder %s20, 0
      %p177 = por %p175, %p176
      %p178 = scmp.ne.s32.totalorder %s164, %s165
      %p179 = scmp.eq.s32.totalorder %s21, 1
      %p180 = por %p178, %p179
      %p182 = scmp.ne.s32.totalorder %s165, %s181
      %p183 = scmp.eq.s32.totalorder %s21, 0
      %p184 = por %p182, %p183
      %p185 = scmp.le.s32.totalorder 1, %s15
      %p186 = scmp.lt.s32.totalorder %s15, 3
      %p187 = pnand %p185, %p186
      %p188 = pneg %p187
      // Predicated region
      $region9: #{tpu_custom_call.1} parent=5 // pred_check
        _
      $region10: #{tpu_custom_call.1} parent=5 // pred_check_branch
        %190 = sbr.rel (%p187) target = $region12
      $region11: #{tpu_custom_call.1} parent=5 // pred_region
        %s191 = ssub.s32 %s15, 1
        // Predicated region
        $region13: #{tpu_custom_call.1} parent=11 // pred_check
          %p192 = pneg %p88
        $region14: #{tpu_custom_call.1} parent=11 // pred_check_branch
          %194 = sbr.rel (%p192) target = $region16
        $region15: #{tpu_custom_call.1} parent=11 // pred_region
          _
        $region16: #{tpu_custom_call.1} parent=11 // pred_fallthru
          _
        // Predicated region
        $region17: #{tpu_custom_call.1} parent=11 // pred_check
          %p195 = pneg %p109
        $region18: #{tpu_custom_call.1} parent=11 // pred_check_branch
          %197 = sbr.rel (%p195) target = $region20
        $region19: #{tpu_custom_call.1} parent=11 // pred_region
          _
        $region20: #{tpu_custom_call.1} parent=11 // pred_fallthru
          _
        // Predicated region
        $region21: #{tpu_custom_call.1} parent=11 // pred_check
          %p198 = pneg %p130
        $region22: #{tpu_custom_call.1} parent=11 // pred_check_branch
          %200 = sbr.rel (%p198) target = $region24
        $region23: #{tpu_custom_call.1} parent=11 // pred_region
          _
        $region24: #{tpu_custom_call.1} parent=11 // pred_fallthru
          _
        // Predicated region
        $region25: #{tpu_custom_call.1} parent=11 // pred_check
          %p201 = pneg %p151
        $region26: #{tpu_custom_call.1} parent=11 // pred_check_branch
          %203 = sbr.rel (%p201) target = $region28
        $region27: #{tpu_custom_call.1} parent=11 // pred_region
          _
        $region28: #{tpu_custom_call.1} parent=11 // pred_fallthru
          _
      $region12: #{tpu_custom_call.1} parent=5 // pred_fallthru
        _
      %p204 = scmp.lt.s32.totalorder %s15, 2
      // Predicated region
      $region29: #{tpu_custom_call.1} parent=5 // pred_check
        %p205 = pneg %p204
      $region30: #{tpu_custom_call.1} parent=5 // pred_check_branch
        %207 = sbr.rel (%p205) target = $region32
      $region31: #{tpu_custom_call.1} parent=5 // pred_region
        // Predicated region
        $region33: #{tpu_custom_call.1} parent=31 // pred_check
          %p208 = pneg %p35
        $region34: #{tpu_custom_call.1} parent=31 // pred_check_branch
          %210 = sbr.rel (%p208) target = $region36
        $region35: #{tpu_custom_call.1} parent=31 // pred_region
          %p211 = scmp.lt.s32.totalorder %s15, 1
          %s212 = scalar_select %p211, %s15, 1
          %s213 = smul.addr %s212, 21
          %s214 = smul.addr %s213, 8
          %s215 = scalar_lea.vmem %s0, %s214
        $region36: #{tpu_custom_call.1} parent=31 // pred_fallthru
          _
        // Predicated region
        $region37: #{tpu_custom_call.1} parent=31 // pred_check
          %p216 = pneg %p61
        $region38: #{tpu_custom_call.1} parent=31 // pred_check_branch
          %218 = sbr.rel (%p216) target = $region40
        $region39: #{tpu_custom_call.1} parent=31 // pred_region
          %p219 = scmp.lt.s32.totalorder %s15, 1
          %s220 = scalar_select %p219, %s15, 1
          %s221 = smul.addr %s220, 21
          %s222 = smul.addr %s221, 8
          %s223 = scalar_lea.vmem %s1, %s222
        $region40: #{tpu_custom_call.1} parent=31 // pred_fallthru
          _
      $region32: #{tpu_custom_call.1} parent=5 // pred_fallthru
        _
      %p224 = scmp.le.s32.totalorder 1, %s15
      %p225 = scmp.lt.s32.totalorder %s15, 3
      %p226 = pnand %p224, %p225
      %p227 = pneg %p226
      // Predicated region
      $region41: #{tpu_custom_call.1} parent=5 // pred_check
        _
      $region42: #{tpu_custom_call.1} parent=5 // pred_check_branch
        %229 = sbr.rel (%p226) target = $region44
      $region43: #{tpu_custom_call.1} parent=5 // pred_region
        %s230 = ssub.s32 %s15, 1
        %p231 = scmp.lt.s32.totalorder %s20, 1
        %s232 = scalar_select %p231, %s20, 1
        %s233 = smul.addr %s232, 21
        %s234 = smul.addr %s233, 8
        %s235 = scalar_lea.vmem %s0, %s234
        %p236 = pneg %p41
        %p237 = pneg %p38
        %p238 = scmp.lt.s32.totalorder %s20, 1
        %s239 = scalar_select %p238, %s20, 1
        %s240 = smul.addr %s239, 21
        %s241 = smul.addr %s240, 8
        %s242 = scalar_lea.vmem %s1, %s241
        %p243 = pneg %p67
        %p244 = pneg %p64
        %p245 = pneg %p88
        %p246 = pneg %p85
        %p247 = pneg %p109
        %p248 = pneg %p106
        %p249 = pneg %p130
        %p250 = pneg %p127
        %p251 = pneg %p151
        %p252 = pneg %p148
        %p253 = pneg %p177
        %p254 = pneg %p174
        %s255 = sand.u32 %s164, 1
        %s256 = scalar_lea.sflag [#allocation7], %s255
        %s257 = sand.u32 %s164, 1
        %s258 = smul.addr %s257, 64
        %s259 = scalar_lea.vmem [#allocation6], %s258
        %p260 = scmp.lt.s32.totalorder %s20, 1
        %s261 = scalar_select %p260, %s20, 1
        %s262 = smul.addr %s261, 21
        %s263 = smul.addr %s262, 8
        %s264 = scalar_lea.vmem %s0, %s263
        %p265 = scmp.lt.s32.totalorder %s20, 1
        %s266 = scalar_select %p265, %s20, 1
        %s267 = smul.addr %s266, 21
        %s268 = smul.addr %s267, 8
        %s269 = scalar_lea.vmem %s1, %s268
        %v270 = vld [vmem:[%s264] sm:$0xff]
        %v271 = vld [vmem:[%s264 + $0x8] sm:$0xff]
        %v272 = vld [vmem:[%s264 + $0x10] sm:$0xff]
        %v273 = vld [vmem:[%s264 + $0x18] sm:$0xff]
        %v274 = vld [vmem:[%s264 + $0x20] sm:$0xff]
        %v275 = vld [vmem:[%s264 + $0x28] sm:$0xff]
        %v276 = vld [vmem:[%s264 + $0x30] sm:$0xff]
        %v277 = vld [vmem:[%s264 + $0x38] sm:$0xff]
        %v278 = vld [vmem:[%s264 + $0x40] sm:$0xff]
        %v279 = vld [vmem:[%s264 + $0x48] sm:$0xff]
        %v280 = vld [vmem:[%s264 + $0x50] sm:$0xff]
        %v281 = vld [vmem:[%s264 + $0x58] sm:$0xff]
        %v282 = vld [vmem:[%s264 + $0x60] sm:$0xff]
        %v283 = vld [vmem:[%s264 + $0x68] sm:$0xff]
        %v284 = vld [vmem:[%s264 + $0x70] sm:$0xff]
        %v285 = vld [vmem:[%s264 + $0x78] sm:$0xff]
        %v286 = vld [vmem:[%s264 + $0x80] sm:$0xff]
        %v287 = vld [vmem:[%s264 + $0x88] sm:$0xff]
        %v288 = vld [vmem:[%s264 + $0x90] sm:$0xff]
        %v289 = vld [vmem:[%s264 + $0x98] sm:$0xff]
        %v290 = vld [vmem:[%s264 + $0xa0] sm:$0x3]
        %v291 = vld [vmem:[%s269] sm:$0xff]
        %v292 = vld [vmem:[%s269 + $0x8] sm:$0xff]
        %v293 = vld [vmem:[%s269 + $0x10] sm:$0xff]
        %v294 = vld [vmem:[%s269 + $0x18] sm:$0xff]
        %v295 = vld [vmem:[%s269 + $0x20] sm:$0xff]
        %v296 = vld [vmem:[%s269 + $0x28] sm:$0xff]
        %v297 = vld [vmem:[%s269 + $0x30] sm:$0xff]
        %v298 = vld [vmem:[%s269 + $0x38] sm:$0xff]
        %v299 = vld [vmem:[%s269 + $0x40] sm:$0xff]
        %v300 = vld [vmem:[%s269 + $0x48] sm:$0xff]
        %v301 = vld [vmem:[%s269 + $0x50] sm:$0xff]
        %v302 = vld [vmem:[%s269 + $0x58] sm:$0xff]
        %v303 = vld [vmem:[%s269 + $0x60] sm:$0xff]
        %v304 = vld [vmem:[%s269 + $0x68] sm:$0xff]
        %v305 = vld [vmem:[%s269 + $0x70] sm:$0xff]
        %v306 = vld [vmem:[%s269 + $0x78] sm:$0xff]
        %v307 = vld [vmem:[%s269 + $0x80] sm:$0xff]
        %v308 = vld [vmem:[%s269 + $0x88] sm:$0xff]
        %v309 = vld [vmem:[%s269 + $0x90] sm:$0xff]
        %v310 = vld [vmem:[%s269 + $0x98] sm:$0xff]
        %v311 = vld [vmem:[%s269 + $0xa0] sm:$0x3]
        %v312 = vld [vmem:[%s2 + $0x1b] sm:$0x1]
        %v313 = vld [vmem:[%s2] sm:$0x7]
        %v314 = vld [vmem:[%s2 + $0x3] sm:$0x7]
        %v315 = vld [vmem:[%s2 + $0x6] sm:$0x7]
        %vm334 = vcmask 1046528
        %v335 = vrot.slane %v270, 1
        %v336 = vrot.slane %v271, 1
        %v337 = vsel %vm334, %v335, %v336
        %v338 = vrot.slane %v272, 1
        %v339 = vsel %vm334, %v336, %v338
        %v340 = vrot.slane %v273, 1
        %v341 = vsel %vm334, %v338, %v340
        %v342 = vrot.slane %v274, 1
        %v343 = vsel %vm334, %v340, %v342
        %v344 = vrot.slane %v275, 1
        %v345 = vsel %vm334, %v342, %v344
        %v346 = vrot.slane %v276, 1
        %v347 = vsel %vm334, %v344, %v346
        %v348 = vrot.slane %v277, 1
        %v349 = vsel %vm334, %v346, %v348
        %v350 = vrot.slane %v278, 1
        %v351 = vsel %vm334, %v348, %v350
        %v352 = vrot.slane %v279, 1
        %v353 = vsel %vm334, %v350, %v352
        %v354 = vrot.slane %v280, 1
        %v355 = vsel %vm334, %v352, %v354
        %v356 = vrot.slane %v281, 1
        %v357 = vsel %vm334, %v354, %v356
        %v358 = vrot.slane %v282, 1
        %v359 = vsel %vm334, %v356, %v358
        %v360 = vrot.slane %v283, 1
        %v361 = vsel %vm334, %v358, %v360
        %v362 = vrot.slane %v284, 1
        %v363 = vsel %vm334, %v360, %v362
        %v364 = vrot.slane %v285, 1
        %v365 = vsel %vm334, %v362, %v364
        %v366 = vrot.slane %v286, 1
        %v367 = vsel %vm334, %v364, %v366
        %v368 = vrot.slane %v287, 1
        %v369 = vsel %vm334, %v366, %v368
        %vm370 = vcmask 23552
        %v371 = vsel %vm370, %v337, 0
        %v373 = vsel %vm370, %v339, 0
        %v375 = vsel %vm370, %v341, 0
        %v377 = vsel %vm370, %v343, 0
        %v379 = vsel %vm370, %v345, 0
        %v381 = vsel %vm370, %v347, 0
        %v383 = vsel %vm370, %v349, 0
        %v385 = vsel %vm370, %v351, 0
        %v387 = vsel %vm370, %v353, 0
        %v389 = vsel %vm370, %v355, 0
        %v391 = vsel %vm370, %v357, 0
        %v393 = vsel %vm370, %v359, 0
        %v395 = vsel %vm370, %v361, 0
        %v397 = vsel %vm370, %v363, 0
        %v399 = vsel %vm370, %v365, 0
        %v401 = vsel %vm370, %v367, 0
        %v403 = vsel %vm370, %v369, 0
        %v405 = vsel %vm370, %v368, 0
        %vm407 = vcmask 1042432
        %v409 = vsel %vm407, %v314, 0
        %411 = vmatpush.msra.mxu0 0.0
        %412 = vmatpush.msra.mxu0 0.0
        %413 = vmatpush.msra.mxu0 0.0
        %414 = vmatpush.msra.mxu0 0.0
        %415 = vmatpush.msra.mxu0 0.0
        %416 = vmatpush.msra.mxu0 0.0
        %417 = vmatpush.msra.mxu0 0.0
        %418 = vmatpush.msra.mxu0 0.0
        %419 = vmatpush.msra.mxu0 0.0
        %420 = vmatpush.msra.mxu0 0.0
        %421 = vmatpush.msra.mxu0 0.0
        %422 = vmatpush.msra.mxu0 0.0
        %423 = vmatpush.msra.mxu0 0.0
        %424 = vmatpush.msra.mxu0 0.0
        %425 = vmatpush.msra.mxu0 0.0
        %426 = vmatpush.msra.mxu0 %v409
        %427 = vmatmul.f32.gmra.mxu0 %v371
        %v428 = vpop.f32.mrf.mxu0
        %v429 = vadd.f32 0.0, %v428
        %430 = vmatmul.f32.gmra.mxu0 %v373
        %v431 = vpop.f32.mrf.mxu0
        %v432 = vadd.f32 0.0, %v431
        %433 = vmatmul.f32.gmra.mxu0 %v375
        %v434 = vpop.f32.mrf.mxu0
        %v435 = vadd.f32 0.0, %v434
        %436 = vmatmul.f32.gmra.mxu0 %v377
        %v437 = vpop.f32.mrf.mxu0
        %v438 = vadd.f32 0.0, %v437
        %439 = vmatmul.f32.gmra.mxu0 %v379
        %v440 = vpop.f32.mrf.mxu0
        %v441 = vadd.f32 0.0, %v440
        %442 = vmatmul.f32.gmra.mxu0 %v381
        %v443 = vpop.f32.mrf.mxu0
        %v444 = vadd.f32 0.0, %v443
        %445 = vmatmul.f32.gmra.mxu0 %v383
        %v446 = vpop.f32.mrf.mxu0
        %v447 = vadd.f32 0.0, %v446
        %448 = vmatmul.f32.gmra.mxu0 %v385
        %v449 = vpop.f32.mrf.mxu0
        %v450 = vadd.f32 0.0, %v449
        %451 = vmatmul.f32.gmra.mxu0 %v387
        %v452 = vpop.f32.mrf.mxu0
        %v453 = vadd.f32 0.0, %v452
        %454 = vmatmul.f32.gmra.mxu0 %v389
        %v455 = vpop.f32.mrf.mxu0
        %v456 = vadd.f32 0.0, %v455
        %457 = vmatmul.f32.gmra.mxu0 %v391
        %v458 = vpop.f32.mrf.mxu0
        %v459 = vadd.f32 0.0, %v458
        %460 = vmatmul.f32.gmra.mxu0 %v393
        %v461 = vpop.f32.mrf.mxu0
        %v462 = vadd.f32 0.0, %v461
        %463 = vmatmul.f32.gmra.mxu0 %v395
        %v464 = vpop.f32.mrf.mxu0
        %v465 = vadd.f32 0.0, %v464
        %466 = vmatmul.f32.gmra.mxu0 %v397
        %v467 = vpop.f32.mrf.mxu0
        %v468 = vadd.f32 0.0, %v467
        %469 = vmatmul.f32.gmra.mxu0 %v399
        %v470 = vpop.f32.mrf.mxu0
        %v471 = vadd.f32 0.0, %v470
        %472 = vmatmul.f32.gmra.mxu0 %v401
        %v473 = vpop.f32.mrf.mxu0
        %v474 = vadd.f32 0.0, %v473
        %475 = vmatmul.f32.gmra.mxu0 %v403
        %v476 = vpop.f32.mrf.mxu0
        %v477 = vadd.f32 0.0, %v476
        %478 = vmatmul.f32.gmra.mxu0 %v405
        %v479 = vpop.f32.mrf.mxu0
        %v480 = vadd.f32 0.0, %v479
        %481 = vdwg.mxu0
        %v483 = vsel %vm370, %v291, 0
        %v486 = vsel %vm370, %v292, 0
        %v489 = vsel %vm370, %v293, 0
        %v492 = vsel %vm370, %v294, 0
        %v495 = vsel %vm370, %v295, 0
        %v498 = vsel %vm370, %v296, 0
        %v501 = vsel %vm370, %v297, 0
        %v504 = vsel %vm370, %v298, 0
        %v507 = vsel %vm370, %v299, 0
        %v510 = vsel %vm370, %v300, 0
        %v513 = vsel %vm370, %v301, 0
        %v516 = vsel %vm370, %v302, 0
        %v519 = vsel %vm370, %v303, 0
        %v522 = vsel %vm370, %v304, 0
        %v525 = vsel %vm370, %v305, 0
        %v528 = vsel %vm370, %v306, 0
        %v531 = vsel %vm370, %v307, 0
        %v534 = vsel %vm370, %v308, 0
        %v537 = vsel %vm407, %v313, 0
        %539 = vmatpush.msra.mxu0 0.0
        %540 = vmatpush.msra.mxu0 0.0
        %541 = vmatpush.msra.mxu0 0.0
        %542 = vmatpush.msra.mxu0 0.0
        %543 = vmatpush.msra.mxu0 0.0
        %544 = vmatpush.msra.mxu0 0.0
        %545 = vmatpush.msra.mxu0 0.0
        %546 = vmatpush.msra.mxu0 0.0
        %547 = vmatpush.msra.mxu0 0.0
        %548 = vmatpush.msra.mxu0 0.0
        %549 = vmatpush.msra.mxu0 0.0
        %550 = vmatpush.msra.mxu0 0.0
        %551 = vmatpush.msra.mxu0 0.0
        %552 = vmatpush.msra.mxu0 0.0
        %553 = vmatpush.msra.mxu0 0.0
        %554 = vmatpush.msra.mxu0 %v537
        %555 = vmatmul.f32.gmra.mxu0 %v483
        %v556 = vpop.f32.mrf.mxu0
        %v557 = vadd.f32 %v429, %v556
        %558 = vmatmul.f32.gmra.mxu0 %v486
        %v559 = vpop.f32.mrf.mxu0
        %v560 = vadd.f32 %v432, %v559
        %561 = vmatmul.f32.gmra.mxu0 %v489
        %v562 = vpop.f32.mrf.mxu0
        %v563 = vadd.f32 %v435, %v562
        %564 = vmatmul.f32.gmra.mxu0 %v492
        %v565 = vpop.f32.mrf.mxu0
        %v566 = vadd.f32 %v438, %v565
        %567 = vmatmul.f32.gmra.mxu0 %v495
        %v568 = vpop.f32.mrf.mxu0
        %v569 = vadd.f32 %v441, %v568
        %570 = vmatmul.f32.gmra.mxu0 %v498
        %v571 = vpop.f32.mrf.mxu0
        %v572 = vadd.f32 %v444, %v571
        %573 = vmatmul.f32.gmra.mxu0 %v501
        %v574 = vpop.f32.mrf.mxu0
        %v575 = vadd.f32 %v447, %v574
        %576 = vmatmul.f32.gmra.mxu0 %v504
        %v577 = vpop.f32.mrf.mxu0
        %v578 = vadd.f32 %v450, %v577
        %579 = vmatmul.f32.gmra.mxu0 %v507
        %v580 = vpop.f32.mrf.mxu0
        %v581 = vadd.f32 %v453, %v580
        %582 = vmatmul.f32.gmra.mxu0 %v510
        %v583 = vpop.f32.mrf.mxu0
        %v584 = vadd.f32 %v456, %v583
        %585 = vmatmul.f32.gmra.mxu0 %v513
        %v586 = vpop.f32.mrf.mxu0
        %v587 = vadd.f32 %v459, %v586
        %588 = vmatmul.f32.gmra.mxu0 %v516
        %v589 = vpop.f32.mrf.mxu0
        %v590 = vadd.f32 %v462, %v589
        %591 = vmatmul.f32.gmra.mxu0 %v519
        %v592 = vpop.f32.mrf.mxu0
        %v593 = vadd.f32 %v465, %v592
        %594 = vmatmul.f32.gmra.mxu0 %v522
        %v595 = vpop.f32.mrf.mxu0
        %v596 = vadd.f32 %v468, %v595
        %597 = vmatmul.f32.gmra.mxu0 %v525
        %v598 = vpop.f32.mrf.mxu0
        %v599 = vadd.f32 %v471, %v598
        %600 = vmatmul.f32.gmra.mxu0 %v528
        %v601 = vpop.f32.mrf.mxu0
        %v602 = vadd.f32 %v474, %v601
        %603 = vmatmul.f32.gmra.mxu0 %v531
        %v604 = vpop.f32.mrf.mxu0
        %v605 = vadd.f32 %v477, %v604
        %606 = vmatmul.f32.gmra.mxu0 %v534
        %v607 = vpop.f32.mrf.mxu0
        %v608 = vadd.f32 %v480, %v607
        %609 = vdwg.mxu0
        %v610 = vrot.slane %v291, 1
        %v611 = vrot.slane %v292, 1
        %v612 = vsel %vm334, %v610, %v611
        %v613 = vrot.slane %v293, 1
        %v614 = vsel %vm334, %v611, %v613
        %v615 = vrot.slane %v294, 1
        %v616 = vsel %vm334, %v613, %v615
        %v617 = vrot.slane %v295, 1
        %v618 = vsel %vm334, %v615, %v617
        %v619 = vrot.slane %v296, 1
        %v620 = vsel %vm334, %v617, %v619
        %v621 = vrot.slane %v297, 1
        %v622 = vsel %vm334, %v619, %v621
        %v623 = vrot.slane %v298, 1
        %v624 = vsel %vm334, %v621, %v623
        %v625 = vrot.slane %v299, 1
        %v626 = vsel %vm334, %v623, %v625
        %v627 = vrot.slane %v300, 1
        %v628 = vsel %vm334, %v625, %v627
        %v629 = vrot.slane %v301, 1
        %v630 = vsel %vm334, %v627, %v629
        %v631 = vrot.slane %v302, 1
        %v632 = vsel %vm334, %v629, %v631
        %v633 = vrot.slane %v303, 1
        %v634 = vsel %vm334, %v631, %v633
        %v635 = vrot.slane %v304, 1
        %v636 = vsel %vm334, %v633, %v635
        %v637 = vrot.slane %v305, 1
        %v638 = vsel %vm334, %v635, %v637
        %v639 = vrot.slane %v306, 1
        %v640 = vsel %vm334, %v637, %v639
        %v641 = vrot.slane %v307, 1
        %v642 = vsel %vm334, %v639, %v641
        %v643 = vrot.slane %v308, 1
        %v644 = vsel %vm334, %v641, %v643
        %v645 = vsel %vm370, %v612, 0
        %v647 = vsel %vm370, %v614, 0
        %v649 = vsel %vm370, %v616, 0
        %v651 = vsel %vm370, %v618, 0
        %v653 = vsel %vm370, %v620, 0
        %v655 = vsel %vm370, %v622, 0
        %v657 = vsel %vm370, %v624, 0
        %v659 = vsel %vm370, %v626, 0
        %v661 = vsel %vm370, %v628, 0
        %v663 = vsel %vm370, %v630, 0
        %v665 = vsel %vm370, %v632, 0
        %v667 = vsel %vm370, %v634, 0
        %v669 = vsel %vm370, %v636, 0
        %v671 = vsel %vm370, %v638, 0
        %v673 = vsel %vm370, %v640, 0
        %v675 = vsel %vm370, %v642, 0
        %v677 = vsel %vm370, %v644, 0
        %v679 = vsel %vm370, %v643, 0
        %v682 = vsel %vm407, %v315, 0
        %684 = vmatpush.msra.mxu0 0.0
        %685 = vmatpush.msra.mxu0 0.0
        %686 = vmatpush.msra.mxu0 0.0
        %687 = vmatpush.msra.mxu0 0.0
        %688 = vmatpush.msra.mxu0 0.0
        %689 = vmatpush.msra.mxu0 0.0
        %690 = vmatpush.msra.mxu0 0.0
        %691 = vmatpush.msra.mxu0 0.0
        %692 = vmatpush.msra.mxu0 0.0
        %693 = vmatpush.msra.mxu0 0.0
        %694 = vmatpush.msra.mxu0 0.0
        %695 = vmatpush.msra.mxu0 0.0
        %696 = vmatpush.msra.mxu0 0.0
        %697 = vmatpush.msra.mxu0 0.0
        %698 = vmatpush.msra.mxu0 0.0
        %699 = vmatpush.msra.mxu0 %v682
        %700 = vmatmul.f32.gmra.mxu0 %v645
        %v701 = vpop.f32.mrf.mxu0
        %v702 = vadd.f32 0.0, %v701
        %703 = vmatmul.f32.gmra.mxu0 %v647
        %v704 = vpop.f32.mrf.mxu0
        %v705 = vadd.f32 0.0, %v704
        %706 = vmatmul.f32.gmra.mxu0 %v649
        %v707 = vpop.f32.mrf.mxu0
        %v708 = vadd.f32 0.0, %v707
        %709 = vmatmul.f32.gmra.mxu0 %v651
        %v710 = vpop.f32.mrf.mxu0
        %v711 = vadd.f32 0.0, %v710
        %712 = vmatmul.f32.gmra.mxu0 %v653
        %v713 = vpop.f32.mrf.mxu0
        %v714 = vadd.f32 0.0, %v713
        %715 = vmatmul.f32.gmra.mxu0 %v655
        %v716 = vpop.f32.mrf.mxu0
        %v717 = vadd.f32 0.0, %v716
        %718 = vmatmul.f32.gmra.mxu0 %v657
        %v719 = vpop.f32.mrf.mxu0
        %v720 = vadd.f32 0.0, %v719
        %721 = vmatmul.f32.gmra.mxu0 %v659
        %v722 = vpop.f32.mrf.mxu0
        %v723 = vadd.f32 0.0, %v722
        %724 = vmatmul.f32.gmra.mxu0 %v661
        %v725 = vpop.f32.mrf.mxu0
        %v726 = vadd.f32 0.0, %v725
        %727 = vmatmul.f32.gmra.mxu0 %v663
        %v728 = vpop.f32.mrf.mxu0
        %v729 = vadd.f32 0.0, %v728
        %730 = vmatmul.f32.gmra.mxu0 %v665
        %v731 = vpop.f32.mrf.mxu0
        %v732 = vadd.f32 0.0, %v731
        %733 = vmatmul.f32.gmra.mxu0 %v667
        %v734 = vpop.f32.mrf.mxu0
        %v735 = vadd.f32 0.0, %v734
        %736 = vmatmul.f32.gmra.mxu0 %v669
        %v737 = vpop.f32.mrf.mxu0
        %v738 = vadd.f32 0.0, %v737
        %739 = vmatmul.f32.gmra.mxu0 %v671
        %v740 = vpop.f32.mrf.mxu0
        %v741 = vadd.f32 0.0, %v740
        %742 = vmatmul.f32.gmra.mxu0 %v673
        %v743 = vpop.f32.mrf.mxu0
        %v744 = vadd.f32 0.0, %v743
        %745 = vmatmul.f32.gmra.mxu0 %v675
        %v746 = vpop.f32.mrf.mxu0
        %v747 = vadd.f32 0.0, %v746
        %748 = vmatmul.f32.gmra.mxu0 %v677
        %v749 = vpop.f32.mrf.mxu0
        %v750 = vadd.f32 0.0, %v749
        %751 = vmatmul.f32.gmra.mxu0 %v679
        %v752 = vpop.f32.mrf.mxu0
        %v753 = vadd.f32 0.0, %v752
        %754 = vdwg.mxu0
        %v755 = vadd.f32 %v557, %v702
        %v756 = vadd.f32 %v560, %v705
        %v757 = vadd.f32 %v563, %v708
        %v758 = vadd.f32 %v566, %v711
        %v759 = vadd.f32 %v569, %v714
        %v760 = vadd.f32 %v572, %v717
        %v761 = vadd.f32 %v575, %v720
        %v762 = vadd.f32 %v578, %v723
        %v763 = vadd.f32 %v581, %v726
        %v764 = vadd.f32 %v584, %v729
        %v765 = vadd.f32 %v587, %v732
        %v766 = vadd.f32 %v590, %v735
        %v767 = vadd.f32 %v593, %v738
        %v768 = vadd.f32 %v596, %v741
        %v769 = vadd.f32 %v599, %v744
        %v770 = vadd.f32 %v602, %v747
        %v771 = vadd.f32 %v605, %v750
        %v772 = vadd.f32 %v608, %v753
        %773 = vmatpush.msra.mxu0 0.0
        %774 = vmatpush.msra.mxu0 0.0
        %775 = vmatpush.msra.mxu0 0.0
        %776 = vmatpush.msra.mxu0 0.0
        %777 = vmatpush.msra.mxu0 0.0
        %778 = vmatpush.msra.mxu0 0.0
        %779 = vmatpush.msra.mxu0 0.0
        %780 = vmatpush.msra.mxu0 0.0
        %781 = vmatpush.msra.mxu0 0.0
        %782 = vmatpush.msra.mxu0 0.0
        %783 = vmatpush.msra.mxu0 0.0
        %784 = vmatpush.msra.mxu0 0.0
        %785 = vmatpush.msra.mxu0 0.0
        %786 = vmatpush.msra.mxu0 0.0
        %787 = vmatpush.msra.mxu0 0.0
        %788 = vmatpush.msra.mxu0 %v409
        %789 = vmatmul.f32.gmra.mxu0 %v483
        %v790 = vpop.f32.mrf.mxu0
        %v791 = vadd.f32 0.0, %v790
        %792 = vmatmul.f32.gmra.mxu0 %v486
        %v793 = vpop.f32.mrf.mxu0
        %v794 = vadd.f32 0.0, %v793
        %795 = vmatmul.f32.gmra.mxu0 %v489
        %v796 = vpop.f32.mrf.mxu0
        %v797 = vadd.f32 0.0, %v796
        %798 = vmatmul.f32.gmra.mxu0 %v492
        %v799 = vpop.f32.mrf.mxu0
        %v800 = vadd.f32 0.0, %v799
        %801 = vmatmul.f32.gmra.mxu0 %v495
        %v802 = vpop.f32.mrf.mxu0
        %v803 = vadd.f32 0.0, %v802
        %804 = vmatmul.f32.gmra.mxu0 %v498
        %v805 = vpop.f32.mrf.mxu0
        %v806 = vadd.f32 0.0, %v805
        %807 = vmatmul.f32.gmra.mxu0 %v501
        %v808 = vpop.f32.mrf.mxu0
        %v809 = vadd.f32 0.0, %v808
        %810 = vmatmul.f32.gmra.mxu0 %v504
        %v811 = vpop.f32.mrf.mxu0
        %v812 = vadd.f32 0.0, %v811
        %813 = vmatmul.f32.gmra.mxu0 %v507
        %v814 = vpop.f32.mrf.mxu0
        %v815 = vadd.f32 0.0, %v814
        %816 = vmatmul.f32.gmra.mxu0 %v510
        %v817 = vpop.f32.mrf.mxu0
        %v818 = vadd.f32 0.0, %v817
        %819 = vmatmul.f32.gmra.mxu0 %v513
        %v820 = vpop.f32.mrf.mxu0
        %v821 = vadd.f32 0.0, %v820
        %822 = vmatmul.f32.gmra.mxu0 %v516
        %v823 = vpop.f32.mrf.mxu0
        %v824 = vadd.f32 0.0, %v823
        %825 = vmatmul.f32.gmra.mxu0 %v519
        %v826 = vpop.f32.mrf.mxu0
        %v827 = vadd.f32 0.0, %v826
        %828 = vmatmul.f32.gmra.mxu0 %v522
        %v829 = vpop.f32.mrf.mxu0
        %v830 = vadd.f32 0.0, %v829
        %831 = vmatmul.f32.gmra.mxu0 %v525
        %v832 = vpop.f32.mrf.mxu0
        %v833 = vadd.f32 0.0, %v832
        %834 = vmatmul.f32.gmra.mxu0 %v528
        %v835 = vpop.f32.mrf.mxu0
        %v836 = vadd.f32 0.0, %v835
        %837 = vmatmul.f32.gmra.mxu0 %v531
        %v838 = vpop.f32.mrf.mxu0
        %v839 = vadd.f32 0.0, %v838
        %840 = vmatmul.f32.gmra.mxu0 %v534
        %v841 = vpop.f32.mrf.mxu0
        %v842 = vadd.f32 0.0, %v841
        %843 = vdwg.mxu0
        %v844 = vsel %vm370, %v270, 0
        %v846 = vsel %vm370, %v271, 0
        %v848 = vsel %vm370, %v272, 0
        %v850 = vsel %vm370, %v273, 0
        %v852 = vsel %vm370, %v274, 0
        %v854 = vsel %vm370, %v275, 0
        %v856 = vsel %vm370, %v276, 0
        %v858 = vsel %vm370, %v277, 0
        %v860 = vsel %vm370, %v278, 0
        %v862 = vsel %vm370, %v279, 0
        %v864 = vsel %vm370, %v280, 0
        %v866 = vsel %vm370, %v281, 0
        %v868 = vsel %vm370, %v282, 0
        %v870 = vsel %vm370, %v283, 0
        %v872 = vsel %vm370, %v284, 0
        %v874 = vsel %vm370, %v285, 0
        %v876 = vsel %vm370, %v286, 0
        %v878 = vsel %vm370, %v287, 0
        %880 = vmatpush.msra.mxu0 0.0
        %881 = vmatpush.msra.mxu0 0.0
        %882 = vmatpush.msra.mxu0 0.0
        %883 = vmatpush.msra.mxu0 0.0
        %884 = vmatpush.msra.mxu0 0.0
        %885 = vmatpush.msra.mxu0 0.0
        %886 = vmatpush.msra.mxu0 0.0
        %887 = vmatpush.msra.mxu0 0.0
        %888 = vmatpush.msra.mxu0 0.0
        %889 = vmatpush.msra.mxu0 0.0
        %890 = vmatpush.msra.mxu0 0.0
        %891 = vmatpush.msra.mxu0 0.0
        %892 = vmatpush.msra.mxu0 0.0
        %893 = vmatpush.msra.mxu0 0.0
        %894 = vmatpush.msra.mxu0 0.0
        %895 = vmatpush.msra.mxu0 %v537
        %896 = vmatmul.f32.gmra.mxu0 %v844
        %v897 = vpop.f32.mrf.mxu0
        %v898 = vadd.f32 %v791, %v897
        %899 = vmatmul.f32.gmra.mxu0 %v846
        %v900 = vpop.f32.mrf.mxu0
        %v901 = vadd.f32 %v794, %v900
        %902 = vmatmul.f32.gmra.mxu0 %v848
        %v903 = vpop.f32.mrf.mxu0
        %v904 = vadd.f32 %v797, %v903
        %905 = vmatmul.f32.gmra.mxu0 %v850
        %v906 = vpop.f32.mrf.mxu0
        %v907 = vadd.f32 %v800, %v906
        %908 = vmatmul.f32.gmra.mxu0 %v852
        %v909 = vpop.f32.mrf.mxu0
        %v910 = vadd.f32 %v803, %v909
        %911 = vmatmul.f32.gmra.mxu0 %v854
        %v912 = vpop.f32.mrf.mxu0
        %v913 = vadd.f32 %v806, %v912
        %914 = vmatmul.f32.gmra.mxu0 %v856
        %v915 = vpop.f32.mrf.mxu0
        %v916 = vadd.f32 %v809, %v915
        %917 = vmatmul.f32.gmra.mxu0 %v858
        %v918 = vpop.f32.mrf.mxu0
        %v919 = vadd.f32 %v812, %v918
        %920 = vmatmul.f32.gmra.mxu0 %v860
        %v921 = vpop.f32.mrf.mxu0
        %v922 = vadd.f32 %v815, %v921
        %923 = vmatmul.f32.gmra.mxu0 %v862
        %v924 = vpop.f32.mrf.mxu0
        %v925 = vadd.f32 %v818, %v924
        %926 = vmatmul.f32.gmra.mxu0 %v864
        %v927 = vpop.f32.mrf.mxu0
        %v928 = vadd.f32 %v821, %v927
        %929 = vmatmul.f32.gmra.mxu0 %v866
        %v930 = vpop.f32.mrf.mxu0
        %v931 = vadd.f32 %v824, %v930
        %932 = vmatmul.f32.gmra.mxu0 %v868
        %v933 = vpop.f32.mrf.mxu0
        %v934 = vadd.f32 %v827, %v933
        %935 = vmatmul.f32.gmra.mxu0 %v870
        %v936 = vpop.f32.mrf.mxu0
        %v937 = vadd.f32 %v830, %v936
        %938 = vmatmul.f32.gmra.mxu0 %v872
        %v939 = vpop.f32.mrf.mxu0
        %v940 = vadd.f32 %v833, %v939
        %941 = vmatmul.f32.gmra.mxu0 %v874
        %v942 = vpop.f32.mrf.mxu0
        %v943 = vadd.f32 %v836, %v942
        %944 = vmatmul.f32.gmra.mxu0 %v876
        %v945 = vpop.f32.mrf.mxu0
        %v946 = vadd.f32 %v839, %v945
        %947 = vmatmul.f32.gmra.mxu0 %v878
        %v948 = vpop.f32.mrf.mxu0
        %v949 = vadd.f32 %v842, %v948
        %950 = vdwg.mxu0
        %951 = vmatpush.msra.mxu0 0.0
        %952 = vmatpush.msra.mxu0 0.0
        %953 = vmatpush.msra.mxu0 0.0
        %954 = vmatpush.msra.mxu0 0.0
        %955 = vmatpush.msra.mxu0 0.0
        %956 = vmatpush.msra.mxu0 0.0
        %957 = vmatpush.msra.mxu0 0.0
        %958 = vmatpush.msra.mxu0 0.0
        %959 = vmatpush.msra.mxu0 0.0
        %960 = vmatpush.msra.mxu0 0.0
        %961 = vmatpush.msra.mxu0 0.0
        %962 = vmatpush.msra.mxu0 0.0
        %963 = vmatpush.msra.mxu0 0.0
        %964 = vmatpush.msra.mxu0 0.0
        %965 = vmatpush.msra.mxu0 0.0
        %966 = vmatpush.msra.mxu0 %v682
        %967 = vmatmul.f32.gmra.mxu0 %v371
        %v968 = vpop.f32.mrf.mxu0
        %v969 = vadd.f32 0.0, %v968
        %970 = vmatmul.f32.gmra.mxu0 %v373
        %v971 = vpop.f32.mrf.mxu0
        %v972 = vadd.f32 0.0, %v971
        %973 = vmatmul.f32.gmra.mxu0 %v375
        %v974 = vpop.f32.mrf.mxu0
        %v975 = vadd.f32 0.0, %v974
        %976 = vmatmul.f32.gmra.mxu0 %v377
        %v977 = vpop.f32.mrf.mxu0
        %v978 = vadd.f32 0.0, %v977
        %979 = vmatmul.f32.gmra.mxu0 %v379
        %v980 = vpop.f32.mrf.mxu0
        %v981 = vadd.f32 0.0, %v980
        %982 = vmatmul.f32.gmra.mxu0 %v381
        %v983 = vpop.f32.mrf.mxu0
        %v984 = vadd.f32 0.0, %v983
        %985 = vmatmul.f32.gmra.mxu0 %v383
        %v986 = vpop.f32.mrf.mxu0
        %v987 = vadd.f32 0.0, %v986
        %988 = vmatmul.f32.gmra.mxu0 %v385
        %v989 = vpop.f32.mrf.mxu0
        %v990 = vadd.f32 0.0, %v989
        %991 = vmatmul.f32.gmra.mxu0 %v387
        %v992 = vpop.f32.mrf.mxu0
        %v993 = vadd.f32 0.0, %v992
        %994 = vmatmul.f32.gmra.mxu0 %v389
        %v995 = vpop.f32.mrf.mxu0
        %v996 = vadd.f32 0.0, %v995
        %997 = vmatmul.f32.gmra.mxu0 %v391
        %v998 = vpop.f32.mrf.mxu0
        %v999 = vadd.f32 0.0, %v998
        %1000 = vmatmul.f32.gmra.mxu0 %v393
        %v1001 = vpop.f32.mrf.mxu0
        %v1002 = vadd.f32 0.0, %v1001
        %1003 = vmatmul.f32.gmra.mxu0 %v395
        %v1004 = vpop.f32.mrf.mxu0
        %v1005 = vadd.f32 0.0, %v1004
        %1006 = vmatmul.f32.gmra.mxu0 %v397
        %v1007 = vpop.f32.mrf.mxu0
        %v1008 = vadd.f32 0.0, %v1007
        %1009 = vmatmul.f32.gmra.mxu0 %v399
        %v1010 = vpop.f32.mrf.mxu0
        %v1011 = vadd.f32 0.0, %v1010
        %1012 = vmatmul.f32.gmra.mxu0 %v401
        %v1013 = vpop.f32.mrf.mxu0
        %v1014 = vadd.f32 0.0, %v1013
        %1015 = vmatmul.f32.gmra.mxu0 %v403
        %v1016 = vpop.f32.mrf.mxu0
        %v1017 = vadd.f32 0.0, %v1016
        %1018 = vmatmul.f32.gmra.mxu0 %v405
        %v1019 = vpop.f32.mrf.mxu0
        %v1020 = vadd.f32 0.0, %v1019
        %1021 = vdwg.mxu0
        %v1022 = vadd.f32 %v898, %v969
        %v1023 = vadd.f32 %v901, %v972
        %v1024 = vadd.f32 %v904, %v975
        %v1025 = vadd.f32 %v907, %v978
        %v1026 = vadd.f32 %v910, %v981
        %v1027 = vadd.f32 %v913, %v984
        %v1028 = vadd.f32 %v916, %v987
        %v1029 = vadd.f32 %v919, %v990
        %v1030 = vadd.f32 %v922, %v993
        %v1031 = vadd.f32 %v925, %v996
        %v1032 = vadd.f32 %v928, %v999
        %v1033 = vadd.f32 %v931, %v1002
        %v1034 = vadd.f32 %v934, %v1005
        %v1035 = vadd.f32 %v937, %v1008
        %v1036 = vadd.f32 %v940, %v1011
        %v1037 = vadd.f32 %v943, %v1014
        %v1038 = vadd.f32 %v946, %v1017
        %v1039 = vadd.f32 %v949, %v1020
        %v1040 = vld [vmem:[%s2 + $0x9] sm:$0x7]
        %v1041 = vld [vmem:[%s2 + $0xc] sm:$0x7]
        %v1042 = vld [vmem:[%s2 + $0xf] sm:$0x7]
        %v1044 = vrot.slane %v309, 1
        %v1045 = vsel %vm334, %v643, %v1044
        %v1046 = vsel %vm370, %v1045, 0
        %v1048 = vsel %vm370, %v1044, 0
        %v1051 = vsel %vm407, %v1040, 0
        %1053 = vmatpush.msra.mxu0 0.0
        %1054 = vmatpush.msra.mxu0 0.0
        %1055 = vmatpush.msra.mxu0 0.0
        %1056 = vmatpush.msra.mxu0 0.0
        %1057 = vmatpush.msra.mxu0 0.0
        %1058 = vmatpush.msra.mxu0 0.0
        %1059 = vmatpush.msra.mxu0 0.0
        %1060 = vmatpush.msra.mxu0 0.0
        %1061 = vmatpush.msra.mxu0 0.0
        %1062 = vmatpush.msra.mxu0 0.0
        %1063 = vmatpush.msra.mxu0 0.0
        %1064 = vmatpush.msra.mxu0 0.0
        %1065 = vmatpush.msra.mxu0 0.0
        %1066 = vmatpush.msra.mxu0 0.0
        %1067 = vmatpush.msra.mxu0 0.0
        %1068 = vmatpush.msra.mxu0 %v1051
        %1069 = vmatmul.f32.gmra.mxu0 %v647
        %v1070 = vpop.f32.mrf.mxu0
        %v1071 = vadd.f32 0.0, %v1070
        %1072 = vmatmul.f32.gmra.mxu0 %v649
        %v1073 = vpop.f32.mrf.mxu0
        %v1074 = vadd.f32 0.0, %v1073
        %1075 = vmatmul.f32.gmra.mxu0 %v651
        %v1076 = vpop.f32.mrf.mxu0
        %v1077 = vadd.f32 0.0, %v1076
        %1078 = vmatmul.f32.gmra.mxu0 %v653
        %v1079 = vpop.f32.mrf.mxu0
        %v1080 = vadd.f32 0.0, %v1079
        %1081 = vmatmul.f32.gmra.mxu0 %v655
        %v1082 = vpop.f32.mrf.mxu0
        %v1083 = vadd.f32 0.0, %v1082
        %1084 = vmatmul.f32.gmra.mxu0 %v657
        %v1085 = vpop.f32.mrf.mxu0
        %v1086 = vadd.f32 0.0, %v1085
        %1087 = vmatmul.f32.gmra.mxu0 %v659
        %v1088 = vpop.f32.mrf.mxu0
        %v1089 = vadd.f32 0.0, %v1088
        %1090 = vmatmul.f32.gmra.mxu0 %v661
        %v1091 = vpop.f32.mrf.mxu0
        %v1092 = vadd.f32 0.0, %v1091
        %1093 = vmatmul.f32.gmra.mxu0 %v663
        %v1094 = vpop.f32.mrf.mxu0
        %v1095 = vadd.f32 0.0, %v1094
        %1096 = vmatmul.f32.gmra.mxu0 %v665
        %v1097 = vpop.f32.mrf.mxu0
        %v1098 = vadd.f32 0.0, %v1097
        %1099 = vmatmul.f32.gmra.mxu0 %v667
        %v1100 = vpop.f32.mrf.mxu0
        %v1101 = vadd.f32 0.0, %v1100
        %1102 = vmatmul.f32.gmra.mxu0 %v669
        %v1103 = vpop.f32.mrf.mxu0
        %v1104 = vadd.f32 0.0, %v1103
        %1105 = vmatmul.f32.gmra.mxu0 %v671
        %v1106 = vpop.f32.mrf.mxu0
        %v1107 = vadd.f32 0.0, %v1106
        %1108 = vmatmul.f32.gmra.mxu0 %v673
        %v1109 = vpop.f32.mrf.mxu0
        %v1110 = vadd.f32 0.0, %v1109
        %1111 = vmatmul.f32.gmra.mxu0 %v675
        %v1112 = vpop.f32.mrf.mxu0
        %v1113 = vadd.f32 0.0, %v1112
        %1114 = vmatmul.f32.gmra.mxu0 %v677
        %v1115 = vpop.f32.mrf.mxu0
        %v1116 = vadd.f32 0.0, %v1115
        %1117 = vmatmul.f32.gmra.mxu0 %v1046
        %v1118 = vpop.f32.mrf.mxu0
        %v1119 = vadd.f32 0.0, %v1118
        %1120 = vmatmul.f32.gmra.mxu0 %v1048
        %v1121 = vpop.f32.mrf.mxu0
        %v1122 = vadd.f32 0.0, %v1121
        %1123 = vdwg.mxu0
        %v1124 = vadd.f32 %v755, %v1071
        %v1125 = vadd.f32 %v756, %v1074
        %v1126 = vadd.f32 %v757, %v1077
        %v1127 = vadd.f32 %v758, %v1080
        %v1128 = vadd.f32 %v759, %v1083
        %v1129 = vadd.f32 %v760, %v1086
        %v1130 = vadd.f32 %v761, %v1089
        %v1131 = vadd.f32 %v762, %v1092
        %v1132 = vadd.f32 %v763, %v1095
        %v1133 = vadd.f32 %v764, %v1098
        %v1134 = vadd.f32 %v765, %v1101
        %v1135 = vadd.f32 %v766, %v1104
        %v1136 = vadd.f32 %v767, %v1107
        %v1137 = vadd.f32 %v768, %v1110
        %v1138 = vadd.f32 %v769, %v1113
        %v1139 = vadd.f32 %v770, %v1116
        %v1140 = vadd.f32 %v771, %v1119
        %v1141 = vadd.f32 %v772, %v1122
        %vm1144 = vcmask 1045504
        %v1145 = vrot.slane %v271, 2
        %v1146 = vrot.slane %v272, 2
        %v1147 = vsel %vm1144, %v1145, %v1146
        %v1148 = vrot.slane %v273, 2
        %v1149 = vsel %vm1144, %v1146, %v1148
        %v1150 = vrot.slane %v274, 2
        %v1151 = vsel %vm1144, %v1148, %v1150
        %v1152 = vrot.slane %v275, 2
        %v1153 = vsel %vm1144, %v1150, %v1152
        %v1154 = vrot.slane %v276, 2
        %v1155 = vsel %vm1144, %v1152, %v1154
        %v1156 = vrot.slane %v277, 2
        %v1157 = vsel %vm1144, %v1154, %v1156
        %v1158 = vrot.slane %v278, 2
        %v1159 = vsel %vm1144, %v1156, %v1158
        %v1160 = vrot.slane %v279, 2
        %v1161 = vsel %vm1144, %v1158, %v1160
        %v1162 = vrot.slane %v280, 2
        %v1163 = vsel %vm1144, %v1160, %v1162
        %v1164 = vrot.slane %v281, 2
        %v1165 = vsel %vm1144, %v1162, %v1164
        %v1166 = vrot.slane %v282, 2
        %v1167 = vsel %vm1144, %v1164, %v1166
        %v1168 = vrot.slane %v283, 2
        %v1169 = vsel %vm1144, %v1166, %v1168
        %v1170 = vrot.slane %v284, 2
        %v1171 = vsel %vm1144, %v1168, %v1170
        %v1172 = vrot.slane %v285, 2
        %v1173 = vsel %vm1144, %v1170, %v1172
        %v1174 = vrot.slane %v286, 2
        %v1175 = vsel %vm1144, %v1172, %v1174
        %v1176 = vrot.slane %v287, 2
        %v1177 = vsel %vm1144, %v1174, %v1176
        %v1178 = vrot.slane %v288, 2
        %v1179 = vsel %vm1144, %v1176, %v1178
        %v1180 = vrot.slane %v289, 2
        %v1181 = vsel %vm1144, %v1178, %v1180
        %v1182 = vsel %vm370, %v1147, 0
        %v1184 = vsel %vm370, %v1149, 0
        %v1186 = vsel %vm370, %v1151, 0
        %v1188 = vsel %vm370, %v1153, 0
        %v1190 = vsel %vm370, %v1155, 0
        %v1192 = vsel %vm370, %v1157, 0
        %v1194 = vsel %vm370, %v1159, 0
        %v1196 = vsel %vm370, %v1161, 0
        %v1198 = vsel %vm370, %v1163, 0
        %v1200 = vsel %vm370, %v1165, 0
        %v1202 = vsel %vm370, %v1167, 0
        %v1204 = vsel %vm370, %v1169, 0
        %v1206 = vsel %vm370, %v1171, 0
        %v1208 = vsel %vm370, %v1173, 0
        %v1210 = vsel %vm370, %v1175, 0
        %v1212 = vsel %vm370, %v1177, 0
        %v1214 = vsel %vm370, %v1179, 0
        %v1216 = vsel %vm370, %v1181, 0
        %v1219 = vsel %vm407, %v1041, 0
        %1221 = vmatpush.msra.mxu0 0.0
        %1222 = vmatpush.msra.mxu0 0.0
        %1223 = vmatpush.msra.mxu0 0.0
        %1224 = vmatpush.msra.mxu0 0.0
        %1225 = vmatpush.msra.mxu0 0.0
        %1226 = vmatpush.msra.mxu0 0.0
        %1227 = vmatpush.msra.mxu0 0.0
        %1228 = vmatpush.msra.mxu0 0.0
        %1229 = vmatpush.msra.mxu0 0.0
        %1230 = vmatpush.msra.mxu0 0.0
        %1231 = vmatpush.msra.mxu0 0.0
        %1232 = vmatpush.msra.mxu0 0.0
        %1233 = vmatpush.msra.mxu0 0.0
        %1234 = vmatpush.msra.mxu0 0.0
        %1235 = vmatpush.msra.mxu0 0.0
        %1236 = vmatpush.msra.mxu0 %v1219
        %1237 = vmatmul.f32.gmra.mxu0 %v1182
        %v1238 = vpop.f32.mrf.mxu0
        %v1239 = vadd.f32 0.0, %v1238
        %1240 = vmatmul.f32.gmra.mxu0 %v1184
        %v1241 = vpop.f32.mrf.mxu0
        %v1242 = vadd.f32 0.0, %v1241
        %1243 = vmatmul.f32.gmra.mxu0 %v1186
        %v1244 = vpop.f32.mrf.mxu0
        %v1245 = vadd.f32 0.0, %v1244
        %1246 = vmatmul.f32.gmra.mxu0 %v1188
        %v1247 = vpop.f32.mrf.mxu0
        %v1248 = vadd.f32 0.0, %v1247
        %1249 = vmatmul.f32.gmra.mxu0 %v1190
        %v1250 = vpop.f32.mrf.mxu0
        %v1251 = vadd.f32 0.0, %v1250
        %1252 = vmatmul.f32.gmra.mxu0 %v1192
        %v1253 = vpop.f32.mrf.mxu0
        %v1254 = vadd.f32 0.0, %v1253
        %1255 = vmatmul.f32.gmra.mxu0 %v1194
        %v1256 = vpop.f32.mrf.mxu0
        %v1257 = vadd.f32 0.0, %v1256
        %1258 = vmatmul.f32.gmra.mxu0 %v1196
        %v1259 = vpop.f32.mrf.mxu0
        %v1260 = vadd.f32 0.0, %v1259
        %1261 = vmatmul.f32.gmra.mxu0 %v1198
        %v1262 = vpop.f32.mrf.mxu0
        %v1263 = vadd.f32 0.0, %v1262
        %1264 = vmatmul.f32.gmra.mxu0 %v1200
        %v1265 = vpop.f32.mrf.mxu0
        %v1266 = vadd.f32 0.0, %v1265
        %1267 = vmatmul.f32.gmra.mxu0 %v1202
        %v1268 = vpop.f32.mrf.mxu0
        %v1269 = vadd.f32 0.0, %v1268
        %1270 = vmatmul.f32.gmra.mxu0 %v1204
        %v1271 = vpop.f32.mrf.mxu0
        %v1272 = vadd.f32 0.0, %v1271
        %1273 = vmatmul.f32.gmra.mxu0 %v1206
        %v1274 = vpop.f32.mrf.mxu0
        %v1275 = vadd.f32 0.0, %v1274
        %1276 = vmatmul.f32.gmra.mxu0 %v1208
        %v1277 = vpop.f32.mrf.mxu0
        %v1278 = vadd.f32 0.0, %v1277
        %1279 = vmatmul.f32.gmra.mxu0 %v1210
        %v1280 = vpop.f32.mrf.mxu0
        %v1281 = vadd.f32 0.0, %v1280
        %1282 = vmatmul.f32.gmra.mxu0 %v1212
        %v1283 = vpop.f32.mrf.mxu0
        %v1284 = vadd.f32 0.0, %v1283
        %1285 = vmatmul.f32.gmra.mxu0 %v1214
        %v1286 = vpop.f32.mrf.mxu0
        %v1287 = vadd.f32 0.0, %v1286
        %1288 = vmatmul.f32.gmra.mxu0 %v1216
        %v1289 = vpop.f32.mrf.mxu0
        %v1290 = vadd.f32 0.0, %v1289
        %1291 = vdwg.mxu0
        %v1292 = vadd.f32 %v1124, %v1239
        %v1293 = vadd.f32 %v1125, %v1242
        %v1294 = vadd.f32 %v1126, %v1245
        %v1295 = vadd.f32 %v1127, %v1248
        %v1296 = vadd.f32 %v1128, %v1251
        %v1297 = vadd.f32 %v1129, %v1254
        %v1298 = vadd.f32 %v1130, %v1257
        %v1299 = vadd.f32 %v1131, %v1260
        %v1300 = vadd.f32 %v1132, %v1263
        %v1301 = vadd.f32 %v1133, %v1266
        %v1302 = vadd.f32 %v1134, %v1269
        %v1303 = vadd.f32 %v1135, %v1272
        %v1304 = vadd.f32 %v1136, %v1275
        %v1305 = vadd.f32 %v1137, %v1278
        %v1306 = vadd.f32 %v1138, %v1281
        %v1307 = vadd.f32 %v1139, %v1284
        %v1308 = vadd.f32 %v1140, %v1287
        %v1309 = vadd.f32 %v1141, %v1290
        %v1311 = vrot.slane %v292, 2
        %v1312 = vrot.slane %v293, 2
        %v1313 = vsel %vm1144, %v1311, %v1312
        %v1314 = vrot.slane %v294, 2
        %v1315 = vsel %vm1144, %v1312, %v1314
        %v1316 = vrot.slane %v295, 2
        %v1317 = vsel %vm1144, %v1314, %v1316
        %v1318 = vrot.slane %v296, 2
        %v1319 = vsel %vm1144, %v1316, %v1318
        %v1320 = vrot.slane %v297, 2
        %v1321 = vsel %vm1144, %v1318, %v1320
        %v1322 = vrot.slane %v298, 2
        %v1323 = vsel %vm1144, %v1320, %v1322
        %v1324 = vrot.slane %v299, 2
        %v1325 = vsel %vm1144, %v1322, %v1324
        %v1326 = vrot.slane %v300, 2
        %v1327 = vsel %vm1144, %v1324, %v1326
        %v1328 = vrot.slane %v301, 2
        %v1329 = vsel %vm1144, %v1326, %v1328
        %v1330 = vrot.slane %v302, 2
        %v1331 = vsel %vm1144, %v1328, %v1330
        %v1332 = vrot.slane %v303, 2
        %v1333 = vsel %vm1144, %v1330, %v1332
        %v1334 = vrot.slane %v304, 2
        %v1335 = vsel %vm1144, %v1332, %v1334
        %v1336 = vrot.slane %v305, 2
        %v1337 = vsel %vm1144, %v1334, %v1336
        %v1338 = vrot.slane %v306, 2
        %v1339 = vsel %vm1144, %v1336, %v1338
        %v1340 = vrot.slane %v307, 2
        %v1341 = vsel %vm1144, %v1338, %v1340
        %v1342 = vrot.slane %v308, 2
        %v1343 = vsel %vm1144, %v1340, %v1342
        %v1344 = vrot.slane %v309, 2
        %v1345 = vsel %vm1144, %v1342, %v1344
        %v1346 = vrot.slane %v310, 2
        %v1347 = vsel %vm1144, %v1344, %v1346
        %v1348 = vsel %vm370, %v1313, 0
        %v1350 = vsel %vm370, %v1315, 0
        %v1352 = vsel %vm370, %v1317, 0
        %v1354 = vsel %vm370, %v1319, 0
        %v1356 = vsel %vm370, %v1321, 0
        %v1358 = vsel %vm370, %v1323, 0
        %v1360 = vsel %vm370, %v1325, 0
        %v1362 = vsel %vm370, %v1327, 0
        %v1364 = vsel %vm370, %v1329, 0
        %v1366 = vsel %vm370, %v1331, 0
        %v1368 = vsel %vm370, %v1333, 0
        %v1370 = vsel %vm370, %v1335, 0
        %v1372 = vsel %vm370, %v1337, 0
        %v1374 = vsel %vm370, %v1339, 0
        %v1376 = vsel %vm370, %v1341, 0
        %v1378 = vsel %vm370, %v1343, 0
        %v1380 = vsel %vm370, %v1345, 0
        %v1382 = vsel %vm370, %v1347, 0
        %v1385 = vsel %vm407, %v1042, 0
        %1387 = vmatpush.msra.mxu0 0.0
        %1388 = vmatpush.msra.mxu0 0.0
        %1389 = vmatpush.msra.mxu0 0.0
        %1390 = vmatpush.msra.mxu0 0.0
        %1391 = vmatpush.msra.mxu0 0.0
        %1392 = vmatpush.msra.mxu0 0.0
        %1393 = vmatpush.msra.mxu0 0.0
        %1394 = vmatpush.msra.mxu0 0.0
        %1395 = vmatpush.msra.mxu0 0.0
        %1396 = vmatpush.msra.mxu0 0.0
        %1397 = vmatpush.msra.mxu0 0.0
        %1398 = vmatpush.msra.mxu0 0.0
        %1399 = vmatpush.msra.mxu0 0.0
        %1400 = vmatpush.msra.mxu0 0.0
        %1401 = vmatpush.msra.mxu0 0.0
        %1402 = vmatpush.msra.mxu0 %v1385
        %1403 = vmatmul.f32.gmra.mxu0 %v1348
        %v1404 = vpop.f32.mrf.mxu0
        %v1405 = vadd.f32 0.0, %v1404
        %1406 = vmatmul.f32.gmra.mxu0 %v1350
        %v1407 = vpop.f32.mrf.mxu0
        %v1408 = vadd.f32 0.0, %v1407
        %1409 = vmatmul.f32.gmra.mxu0 %v1352
        %v1410 = vpop.f32.mrf.mxu0
        %v1411 = vadd.f32 0.0, %v1410
        %1412 = vmatmul.f32.gmra.mxu0 %v1354
        %v1413 = vpop.f32.mrf.mxu0
        %v1414 = vadd.f32 0.0, %v1413
        %1415 = vmatmul.f32.gmra.mxu0 %v1356
        %v1416 = vpop.f32.mrf.mxu0
        %v1417 = vadd.f32 0.0, %v1416
        %1418 = vmatmul.f32.gmra.mxu0 %v1358
        %v1419 = vpop.f32.mrf.mxu0
        %v1420 = vadd.f32 0.0, %v1419
        %1421 = vmatmul.f32.gmra.mxu0 %v1360
        %v1422 = vpop.f32.mrf.mxu0
        %v1423 = vadd.f32 0.0, %v1422
        %1424 = vmatmul.f32.gmra.mxu0 %v1362
        %v1425 = vpop.f32.mrf.mxu0
        %v1426 = vadd.f32 0.0, %v1425
        %1427 = vmatmul.f32.gmra.mxu0 %v1364
        %v1428 = vpop.f32.mrf.mxu0
        %v1429 = vadd.f32 0.0, %v1428
        %1430 = vmatmul.f32.gmra.mxu0 %v1366
        %v1431 = vpop.f32.mrf.mxu0
        %v1432 = vadd.f32 0.0, %v1431
        %1433 = vmatmul.f32.gmra.mxu0 %v1368
        %v1434 = vpop.f32.mrf.mxu0
        %v1435 = vadd.f32 0.0, %v1434
        %1436 = vmatmul.f32.gmra.mxu0 %v1370
        %v1437 = vpop.f32.mrf.mxu0
        %v1438 = vadd.f32 0.0, %v1437
        %1439 = vmatmul.f32.gmra.mxu0 %v1372
        %v1440 = vpop.f32.mrf.mxu0
        %v1441 = vadd.f32 0.0, %v1440
        %1442 = vmatmul.f32.gmra.mxu0 %v1374
        %v1443 = vpop.f32.mrf.mxu0
        %v1444 = vadd.f32 0.0, %v1443
        %1445 = vmatmul.f32.gmra.mxu0 %v1376
        %v1446 = vpop.f32.mrf.mxu0
        %v1447 = vadd.f32 0.0, %v1446
        %1448 = vmatmul.f32.gmra.mxu0 %v1378
        %v1449 = vpop.f32.mrf.mxu0
        %v1450 = vadd.f32 0.0, %v1449
        %1451 = vmatmul.f32.gmra.mxu0 %v1380
        %v1452 = vpop.f32.mrf.mxu0
        %v1453 = vadd.f32 0.0, %v1452
        %1454 = vmatmul.f32.gmra.mxu0 %v1382
        %v1455 = vpop.f32.mrf.mxu0
        %v1456 = vadd.f32 0.0, %v1455
        %1457 = vdwg.mxu0
        %v1458 = vadd.f32 %v1292, %v1405
        %v1459 = vadd.f32 %v1293, %v1408
        %v1460 = vadd.f32 %v1294, %v1411
        %v1461 = vadd.f32 %v1295, %v1414
        %v1462 = vadd.f32 %v1296, %v1417
        %v1463 = vadd.f32 %v1297, %v1420
        %v1464 = vadd.f32 %v1298, %v1423
        %v1465 = vadd.f32 %v1299, %v1426
        %v1466 = vadd.f32 %v1300, %v1429
        %v1467 = vadd.f32 %v1301, %v1432
        %v1468 = vadd.f32 %v1302, %v1435
        %v1469 = vadd.f32 %v1303, %v1438
        %v1470 = vadd.f32 %v1304, %v1441
        %v1471 = vadd.f32 %v1305, %v1444
        %v1472 = vadd.f32 %v1306, %v1447
        %v1473 = vadd.f32 %v1307, %v1450
        %v1474 = vadd.f32 %v1308, %v1453
        %v1475 = vadd.f32 %v1309, %v1456
        %v1476 = vrot.slane %v288, 1
        %v1477 = vsel %vm334, %v368, %v1476
        %v1478 = vsel %vm370, %v1477, 0
        %v1480 = vsel %vm370, %v1476, 0
        %1482 = vmatpush.msra.mxu0 0.0
        %1483 = vmatpush.msra.mxu0 0.0
        %1484 = vmatpush.msra.mxu0 0.0
        %1485 = vmatpush.msra.mxu0 0.0
        %1486 = vmatpush.msra.mxu0 0.0
        %1487 = vmatpush.msra.mxu0 0.0
        %1488 = vmatpush.msra.mxu0 0.0
        %1489 = vmatpush.msra.mxu0 0.0
        %1490 = vmatpush.msra.mxu0 0.0
        %1491 = vmatpush.msra.mxu0 0.0
        %1492 = vmatpush.msra.mxu0 0.0
        %1493 = vmatpush.msra.mxu0 0.0
        %1494 = vmatpush.msra.mxu0 0.0
        %1495 = vmatpush.msra.mxu0 0.0
        %1496 = vmatpush.msra.mxu0 0.0
        %1497 = vmatpush.msra.mxu0 %v1051
        %1498 = vmatmul.f32.gmra.mxu0 %v373
        %v1499 = vpop.f32.mrf.mxu0
        %v1500 = vadd.f32 0.0, %v1499
        %1501 = vmatmul.f32.gmra.mxu0 %v375
        %v1502 = vpop.f32.mrf.mxu0
        %v1503 = vadd.f32 0.0, %v1502
        %1504 = vmatmul.f32.gmra.mxu0 %v377
        %v1505 = vpop.f32.mrf.mxu0
        %v1506 = vadd.f32 0.0, %v1505
        %1507 = vmatmul.f32.gmra.mxu0 %v379
        %v1508 = vpop.f32.mrf.mxu0
        %v1509 = vadd.f32 0.0, %v1508
        %1510 = vmatmul.f32.gmra.mxu0 %v381
        %v1511 = vpop.f32.mrf.mxu0
        %v1512 = vadd.f32 0.0, %v1511
        %1513 = vmatmul.f32.gmra.mxu0 %v383
        %v1514 = vpop.f32.mrf.mxu0
        %v1515 = vadd.f32 0.0, %v1514
        %1516 = vmatmul.f32.gmra.mxu0 %v385
        %v1517 = vpop.f32.mrf.mxu0
        %v1518 = vadd.f32 0.0, %v1517
        %1519 = vmatmul.f32.gmra.mxu0 %v387
        %v1520 = vpop.f32.mrf.mxu0
        %v1521 = vadd.f32 0.0, %v1520
        %1522 = vmatmul.f32.gmra.mxu0 %v389
        %v1523 = vpop.f32.mrf.mxu0
        %v1524 = vadd.f32 0.0, %v1523
        %1525 = vmatmul.f32.gmra.mxu0 %v391
        %v1526 = vpop.f32.mrf.mxu0
        %v1527 = vadd.f32 0.0, %v1526
        %1528 = vmatmul.f32.gmra.mxu0 %v393
        %v1529 = vpop.f32.mrf.mxu0
        %v1530 = vadd.f32 0.0, %v1529
        %1531 = vmatmul.f32.gmra.mxu0 %v395
        %v1532 = vpop.f32.mrf.mxu0
        %v1533 = vadd.f32 0.0, %v1532
        %1534 = vmatmul.f32.gmra.mxu0 %v397
        %v1535 = vpop.f32.mrf.mxu0
        %v1536 = vadd.f32 0.0, %v1535
        %1537 = vmatmul.f32.gmra.mxu0 %v399
        %v1538 = vpop.f32.mrf.mxu0
        %v1539 = vadd.f32 0.0, %v1538
        %1540 = vmatmul.f32.gmra.mxu0 %v401
        %v1541 = vpop.f32.mrf.mxu0
        %v1542 = vadd.f32 0.0, %v1541
        %1543 = vmatmul.f32.gmra.mxu0 %v403
        %v1544 = vpop.f32.mrf.mxu0
        %v1545 = vadd.f32 0.0, %v1544
        %1546 = vmatmul.f32.gmra.mxu0 %v1478
        %v1547 = vpop.f32.mrf.mxu0
        %v1548 = vadd.f32 0.0, %v1547
        %1549 = vmatmul.f32.gmra.mxu0 %v1480
        %v1550 = vpop.f32.mrf.mxu0
        %v1551 = vadd.f32 0.0, %v1550
        %1552 = vdwg.mxu0
        %v1553 = vadd.f32 %v1022, %v1500
        %v1554 = vadd.f32 %v1023, %v1503
        %v1555 = vadd.f32 %v1024, %v1506
        %v1556 = vadd.f32 %v1025, %v1509
        %v1557 = vadd.f32 %v1026, %v1512
        %v1558 = vadd.f32 %v1027, %v1515
        %v1559 = vadd.f32 %v1028, %v1518
        %v1560 = vadd.f32 %v1029, %v1521
        %v1561 = vadd.f32 %v1030, %v1524
        %v1562 = vadd.f32 %v1031, %v1527
        %v1563 = vadd.f32 %v1032, %v1530
        %v1564 = vadd.f32 %v1033, %v1533
        %v1565 = vadd.f32 %v1034, %v1536
        %v1566 = vadd.f32 %v1035, %v1539
        %v1567 = vadd.f32 %v1036, %v1542
        %v1568 = vadd.f32 %v1037, %v1545
        %v1569 = vadd.f32 %v1038, %v1548
        %v1570 = vadd.f32 %v1039, %v1551
        %1571 = vmatpush.msra.mxu0 0.0
        %1572 = vmatpush.msra.mxu0 0.0
        %1573 = vmatpush.msra.mxu0 0.0
        %1574 = vmatpush.msra.mxu0 0.0
        %1575 = vmatpush.msra.mxu0 0.0
        %1576 = vmatpush.msra.mxu0 0.0
        %1577 = vmatpush.msra.mxu0 0.0
        %1578 = vmatpush.msra.mxu0 0.0
        %1579 = vmatpush.msra.mxu0 0.0
        %1580 = vmatpush.msra.mxu0 0.0
        %1581 = vmatpush.msra.mxu0 0.0
        %1582 = vmatpush.msra.mxu0 0.0
        %1583 = vmatpush.msra.mxu0 0.0
        %1584 = vmatpush.msra.mxu0 0.0
        %1585 = vmatpush.msra.mxu0 0.0
        %1586 = vmatpush.msra.mxu0 %v1219
        %1587 = vmatmul.f32.gmra.mxu0 %v647
        %v1588 = vpop.f32.mrf.mxu0
        %v1589 = vadd.f32 0.0, %v1588
        %1590 = vmatmul.f32.gmra.mxu0 %v649
        %v1591 = vpop.f32.mrf.mxu0
        %v1592 = vadd.f32 0.0, %v1591
        %1593 = vmatmul.f32.gmra.mxu0 %v651
        %v1594 = vpop.f32.mrf.mxu0
        %v1595 = vadd.f32 0.0, %v1594
        %1596 = vmatmul.f32.gmra.mxu0 %v653
        %v1597 = vpop.f32.mrf.mxu0
        %v1598 = vadd.f32 0.0, %v1597
        %1599 = vmatmul.f32.gmra.mxu0 %v655
        %v1600 = vpop.f32.mrf.mxu0
        %v1601 = vadd.f32 0.0, %v1600
        %1602 = vmatmul.f32.gmra.mxu0 %v657
        %v1603 = vpop.f32.mrf.mxu0
        %v1604 = vadd.f32 0.0, %v1603
        %1605 = vmatmul.f32.gmra.mxu0 %v659
        %v1606 = vpop.f32.mrf.mxu0
        %v1607 = vadd.f32 0.0, %v1606
        %1608 = vmatmul.f32.gmra.mxu0 %v661
        %v1609 = vpop.f32.mrf.mxu0
        %v1610 = vadd.f32 0.0, %v1609
        %1611 = vmatmul.f32.gmra.mxu0 %v663
        %v1612 = vpop.f32.mrf.mxu0
        %v1613 = vadd.f32 0.0, %v1612
        %1614 = vmatmul.f32.gmra.mxu0 %v665
        %v1615 = vpop.f32.mrf.mxu0
        %v1616 = vadd.f32 0.0, %v1615
        %1617 = vmatmul.f32.gmra.mxu0 %v667
        %v1618 = vpop.f32.mrf.mxu0
        %v1619 = vadd.f32 0.0, %v1618
        %1620 = vmatmul.f32.gmra.mxu0 %v669
        %v1621 = vpop.f32.mrf.mxu0
        %v1622 = vadd.f32 0.0, %v1621
        %1623 = vmatmul.f32.gmra.mxu0 %v671
        %v1624 = vpop.f32.mrf.mxu0
        %v1625 = vadd.f32 0.0, %v1624
        %1626 = vmatmul.f32.gmra.mxu0 %v673
        %v1627 = vpop.f32.mrf.mxu0
        %v1628 = vadd.f32 0.0, %v1627
        %1629 = vmatmul.f32.gmra.mxu0 %v675
        %v1630 = vpop.f32.mrf.mxu0
        %v1631 = vadd.f32 0.0, %v1630
        %1632 = vmatmul.f32.gmra.mxu0 %v677
        %v1633 = vpop.f32.mrf.mxu0
        %v1634 = vadd.f32 0.0, %v1633
        %1635 = vmatmul.f32.gmra.mxu0 %v1046
        %v1636 = vpop.f32.mrf.mxu0
        %v1637 = vadd.f32 0.0, %v1636
        %1638 = vmatmul.f32.gmra.mxu0 %v1048
        %v1639 = vpop.f32.mrf.mxu0
        %v1640 = vadd.f32 0.0, %v1639
        %1641 = vdwg.mxu0
        %v1642 = vadd.f32 %v1553, %v1589
        %v1643 = vadd.f32 %v1554, %v1592
        %v1644 = vadd.f32 %v1555, %v1595
        %v1645 = vadd.f32 %v1556, %v1598
        %v1646 = vadd.f32 %v1557, %v1601
        %v1647 = vadd.f32 %v1558, %v1604
        %v1648 = vadd.f32 %v1559, %v1607
        %v1649 = vadd.f32 %v1560, %v1610
        %v1650 = vadd.f32 %v1561, %v1613
        %v1651 = vadd.f32 %v1562, %v1616
        %v1652 = vadd.f32 %v1563, %v1619
        %v1653 = vadd.f32 %v1564, %v1622
        %v1654 = vadd.f32 %v1565, %v1625
        %v1655 = vadd.f32 %v1566, %v1628
        %v1656 = vadd.f32 %v1567, %v1631
        %v1657 = vadd.f32 %v1568, %v1634
        %v1658 = vadd.f32 %v1569, %v1637
        %v1659 = vadd.f32 %v1570, %v1640
        %1660 = vmatpush.msra.mxu0 0.0
        %1661 = vmatpush.msra.mxu0 0.0
        %1662 = vmatpush.msra.mxu0 0.0
        %1663 = vmatpush.msra.mxu0 0.0
        %1664 = vmatpush.msra.mxu0 0.0
        %1665 = vmatpush.msra.mxu0 0.0
        %1666 = vmatpush.msra.mxu0 0.0
        %1667 = vmatpush.msra.mxu0 0.0
        %1668 = vmatpush.msra.mxu0 0.0
        %1669 = vmatpush.msra.mxu0 0.0
        %1670 = vmatpush.msra.mxu0 0.0
        %1671 = vmatpush.msra.mxu0 0.0
        %1672 = vmatpush.msra.mxu0 0.0
        %1673 = vmatpush.msra.mxu0 0.0
        %1674 = vmatpush.msra.mxu0 0.0
        %1675 = vmatpush.msra.mxu0 %v1385
        %1676 = vmatmul.f32.gmra.mxu0 %v1182
        %v1677 = vpop.f32.mrf.mxu0
        %v1678 = vadd.f32 0.0, %v1677
        %1679 = vmatmul.f32.gmra.mxu0 %v1184
        %v1680 = vpop.f32.mrf.mxu0
        %v1681 = vadd.f32 0.0, %v1680
        %1682 = vmatmul.f32.gmra.mxu0 %v1186
        %v1683 = vpop.f32.mrf.mxu0
        %v1684 = vadd.f32 0.0, %v1683
        %1685 = vmatmul.f32.gmra.mxu0 %v1188
        %v1686 = vpop.f32.mrf.mxu0
        %v1687 = vadd.f32 0.0, %v1686
        %1688 = vmatmul.f32.gmra.mxu0 %v1190
        %v1689 = vpop.f32.mrf.mxu0
        %v1690 = vadd.f32 0.0, %v1689
        %1691 = vmatmul.f32.gmra.mxu0 %v1192
        %v1692 = vpop.f32.mrf.mxu0
        %v1693 = vadd.f32 0.0, %v1692
        %1694 = vmatmul.f32.gmra.mxu0 %v1194
        %v1695 = vpop.f32.mrf.mxu0
        %v1696 = vadd.f32 0.0, %v1695
        %1697 = vmatmul.f32.gmra.mxu0 %v1196
        %v1698 = vpop.f32.mrf.mxu0
        %v1699 = vadd.f32 0.0, %v1698
        %1700 = vmatmul.f32.gmra.mxu0 %v1198
        %v1701 = vpop.f32.mrf.mxu0
        %v1702 = vadd.f32 0.0, %v1701
        %1703 = vmatmul.f32.gmra.mxu0 %v1200
        %v1704 = vpop.f32.mrf.mxu0
        %v1705 = vadd.f32 0.0, %v1704
        %1706 = vmatmul.f32.gmra.mxu0 %v1202
        %v1707 = vpop.f32.mrf.mxu0
        %v1708 = vadd.f32 0.0, %v1707
        %1709 = vmatmul.f32.gmra.mxu0 %v1204
        %v1710 = vpop.f32.mrf.mxu0
        %v1711 = vadd.f32 0.0, %v1710
        %1712 = vmatmul.f32.gmra.mxu0 %v1206
        %v1713 = vpop.f32.mrf.mxu0
        %v1714 = vadd.f32 0.0, %v1713
        %1715 = vmatmul.f32.gmra.mxu0 %v1208
        %v1716 = vpop.f32.mrf.mxu0
        %v1717 = vadd.f32 0.0, %v1716
        %1718 = vmatmul.f32.gmra.mxu0 %v1210
        %v1719 = vpop.f32.mrf.mxu0
        %v1720 = vadd.f32 0.0, %v1719
        %1721 = vmatmul.f32.gmra.mxu0 %v1212
        %v1722 = vpop.f32.mrf.mxu0
        %v1723 = vadd.f32 0.0, %v1722
        %1724 = vmatmul.f32.gmra.mxu0 %v1214
        %v1725 = vpop.f32.mrf.mxu0
        %v1726 = vadd.f32 0.0, %v1725
        %1727 = vmatmul.f32.gmra.mxu0 %v1216
        %v1728 = vpop.f32.mrf.mxu0
        %v1729 = vadd.f32 0.0, %v1728
        %1730 = vdwg.mxu0
        %v1731 = vadd.f32 %v1642, %v1678
        %v1732 = vadd.f32 %v1643, %v1681
        %v1733 = vadd.f32 %v1644, %v1684
        %v1734 = vadd.f32 %v1645, %v1687
        %v1735 = vadd.f32 %v1646, %v1690
        %v1736 = vadd.f32 %v1647, %v1693
        %v1737 = vadd.f32 %v1648, %v1696
        %v1738 = vadd.f32 %v1649, %v1699
        %v1739 = vadd.f32 %v1650, %v1702
        %v1740 = vadd.f32 %v1651, %v1705
        %v1741 = vadd.f32 %v1652, %v1708
        %v1742 = vadd.f32 %v1653, %v1711
        %v1743 = vadd.f32 %v1654, %v1714
        %v1744 = vadd.f32 %v1655, %v1717
        %v1745 = vadd.f32 %v1656, %v1720
        %v1746 = vadd.f32 %v1657, %v1723
        %v1747 = vadd.f32 %v1658, %v1726
        %v1748 = vadd.f32 %v1659, %v1729
        %v1749 = vld [vmem:[%s2 + $0x12] sm:$0x7]
        %v1750 = vld [vmem:[%s2 + $0x15] sm:$0x7]
        %v1751 = vld [vmem:[%s2 + $0x18] sm:$0x7]
        %v1753 = vrot.slane %v311, 2
        %v1754 = vsel %vm1144, %v1346, %v1753
        %v1755 = vsel %vm370, %v1754, 0
        %v1758 = vsel %vm407, %v1749, 0
        %1760 = vmatpush.msra.mxu0 0.0
        %1761 = vmatpush.msra.mxu0 0.0
        %1762 = vmatpush.msra.mxu0 0.0
        %1763 = vmatpush.msra.mxu0 0.0
        %1764 = vmatpush.msra.mxu0 0.0
        %1765 = vmatpush.msra.mxu0 0.0
        %1766 = vmatpush.msra.mxu0 0.0
        %1767 = vmatpush.msra.mxu0 0.0
        %1768 = vmatpush.msra.mxu0 0.0
        %1769 = vmatpush.msra.mxu0 0.0
        %1770 = vmatpush.msra.mxu0 0.0
        %1771 = vmatpush.msra.mxu0 0.0
        %1772 = vmatpush.msra.mxu0 0.0
        %1773 = vmatpush.msra.mxu0 0.0
        %1774 = vmatpush.msra.mxu0 0.0
        %1775 = vmatpush.msra.mxu0 %v1758
        %1776 = vmatmul.f32.gmra.mxu0 %v1350
        %v1777 = vpop.f32.mrf.mxu0
        %v1778 = vadd.f32 0.0, %v1777
        %1779 = vmatmul.f32.gmra.mxu0 %v1352
        %v1780 = vpop.f32.mrf.mxu0
        %v1781 = vadd.f32 0.0, %v1780
        %1782 = vmatmul.f32.gmra.mxu0 %v1354
        %v1783 = vpop.f32.mrf.mxu0
        %v1784 = vadd.f32 0.0, %v1783
        %1785 = vmatmul.f32.gmra.mxu0 %v1356
        %v1786 = vpop.f32.mrf.mxu0
        %v1787 = vadd.f32 0.0, %v1786
        %1788 = vmatmul.f32.gmra.mxu0 %v1358
        %v1789 = vpop.f32.mrf.mxu0
        %v1790 = vadd.f32 0.0, %v1789
        %1791 = vmatmul.f32.gmra.mxu0 %v1360
        %v1792 = vpop.f32.mrf.mxu0
        %v1793 = vadd.f32 0.0, %v1792
        %1794 = vmatmul.f32.gmra.mxu0 %v1362
        %v1795 = vpop.f32.mrf.mxu0
        %v1796 = vadd.f32 0.0, %v1795
        %1797 = vmatmul.f32.gmra.mxu0 %v1364
        %v1798 = vpop.f32.mrf.mxu0
        %v1799 = vadd.f32 0.0, %v1798
        %1800 = vmatmul.f32.gmra.mxu0 %v1366
        %v1801 = vpop.f32.mrf.mxu0
        %v1802 = vadd.f32 0.0, %v1801
        %1803 = vmatmul.f32.gmra.mxu0 %v1368
        %v1804 = vpop.f32.mrf.mxu0
        %v1805 = vadd.f32 0.0, %v1804
        %1806 = vmatmul.f32.gmra.mxu0 %v1370
        %v1807 = vpop.f32.mrf.mxu0
        %v1808 = vadd.f32 0.0, %v1807
        %1809 = vmatmul.f32.gmra.mxu0 %v1372
        %v1810 = vpop.f32.mrf.mxu0
        %v1811 = vadd.f32 0.0, %v1810
        %1812 = vmatmul.f32.gmra.mxu0 %v1374
        %v1813 = vpop.f32.mrf.mxu0
        %v1814 = vadd.f32 0.0, %v1813
        %1815 = vmatmul.f32.gmra.mxu0 %v1376
        %v1816 = vpop.f32.mrf.mxu0
        %v1817 = vadd.f32 0.0, %v1816
        %1818 = vmatmul.f32.gmra.mxu0 %v1378
        %v1819 = vpop.f32.mrf.mxu0
        %v1820 = vadd.f32 0.0, %v1819
        %1821 = vmatmul.f32.gmra.mxu0 %v1380
        %v1822 = vpop.f32.mrf.mxu0
        %v1823 = vadd.f32 0.0, %v1822
        %1824 = vmatmul.f32.gmra.mxu0 %v1382
        %v1825 = vpop.f32.mrf.mxu0
        %v1826 = vadd.f32 0.0, %v1825
        %1827 = vmatmul.f32.gmra.mxu0 %v1755
        %v1828 = vpop.f32.mrf.mxu0
        %v1829 = vadd.f32 0.0, %v1828
        %1830 = vdwg.mxu0
        %v1831 = vadd.f32 %v1458, %v1778
        %v1832 = vadd.f32 %v1459, %v1781
        %v1833 = vadd.f32 %v1460, %v1784
        %v1834 = vadd.f32 %v1461, %v1787
        %v1835 = vadd.f32 %v1462, %v1790
        %v1836 = vadd.f32 %v1463, %v1793
        %v1837 = vadd.f32 %v1464, %v1796
        %v1838 = vadd.f32 %v1465, %v1799
        %v1839 = vadd.f32 %v1466, %v1802
        %v1840 = vadd.f32 %v1467, %v1805
        %v1841 = vadd.f32 %v1468, %v1808
        %v1842 = vadd.f32 %v1469, %v1811
        %v1843 = vadd.f32 %v1470, %v1814
        %v1844 = vadd.f32 %v1471, %v1817
        %v1845 = vadd.f32 %v1472, %v1820
        %v1846 = vadd.f32 %v1473, %v1823
        %v1847 = vadd.f32 %v1474, %v1826
        %v1848 = vadd.f32 %v1475, %v1829
        %vm1850 = vcmask 1044480
        %v1851 = vrot.slane %v272, 3
        %v1852 = vrot.slane %v273, 3
        %v1853 = vsel %vm1850, %v1851, %v1852
        %v1854 = vrot.slane %v274, 3
        %v1855 = vsel %vm1850, %v1852, %v1854
        %v1856 = vrot.slane %v275, 3
        %v1857 = vsel %vm1850, %v1854, %v1856
        %v1858 = vrot.slane %v276, 3
        %v1859 = vsel %vm1850, %v1856, %v1858
        %v1860 = vrot.slane %v277, 3
        %v1861 = vsel %vm1850, %v1858, %v1860
        %v1862 = vrot.slane %v278, 3
        %v1863 = vsel %vm1850, %v1860, %v1862
        %v1864 = vrot.slane %v279, 3
        %v1865 = vsel %vm1850, %v1862, %v1864
        %v1866 = vrot.slane %v280, 3
        %v1867 = vsel %vm1850, %v1864, %v1866
        %v1868 = vrot.slane %v281, 3
        %v1869 = vsel %vm1850, %v1866, %v1868
        %v1870 = vrot.slane %v282, 3
        %v1871 = vsel %vm1850, %v1868, %v1870
        %v1872 = vrot.slane %v283, 3
        %v1873 = vsel %vm1850, %v1870, %v1872
        %v1874 = vrot.slane %v284, 3
        %v1875 = vsel %vm1850, %v1872, %v1874
        %v1876 = vrot.slane %v285, 3
        %v1877 = vsel %vm1850, %v1874, %v1876
        %v1878 = vrot.slane %v286, 3
        %v1879 = vsel %vm1850, %v1876, %v1878
        %v1880 = vrot.slane %v287, 3
        %v1881 = vsel %vm1850, %v1878, %v1880
        %v1882 = vrot.slane %v288, 3
        %v1883 = vsel %vm1850, %v1880, %v1882
        %v1884 = vrot.slane %v289, 3
        %v1885 = vsel %vm1850, %v1882, %v1884
        %v1886 = vrot.slane %v290, 3
        %v1887 = vsel %vm1850, %v1884, %v1886
        %v1888 = vsel %vm370, %v1853, 0
        %v1890 = vsel %vm370, %v1855, 0
        %v1892 = vsel %vm370, %v1857, 0
        %v1894 = vsel %vm370, %v1859, 0
        %v1896 = vsel %vm370, %v1861, 0
        %v1898 = vsel %vm370, %v1863, 0
        %v1900 = vsel %vm370, %v1865, 0
        %v1902 = vsel %vm370, %v1867, 0
        %v1904 = vsel %vm370, %v1869, 0
        %v1906 = vsel %vm370, %v1871, 0
        %v1908 = vsel %vm370, %v1873, 0
        %v1910 = vsel %vm370, %v1875, 0
        %v1912 = vsel %vm370, %v1877, 0
        %v1914 = vsel %vm370, %v1879, 0
        %v1916 = vsel %vm370, %v1881, 0
        %v1918 = vsel %vm370, %v1883, 0
        %v1920 = vsel %vm370, %v1885, 0
        %v1922 = vsel %vm370, %v1887, 0
        %v1925 = vsel %vm407, %v1750, 0
        %1927 = vmatpush.msra.mxu0 0.0
        %1928 = vmatpush.msra.mxu0 0.0
        %1929 = vmatpush.msra.mxu0 0.0
        %1930 = vmatpush.msra.mxu0 0.0
        %1931 = vmatpush.msra.mxu0 0.0
        %1932 = vmatpush.msra.mxu0 0.0
        %1933 = vmatpush.msra.mxu0 0.0
        %1934 = vmatpush.msra.mxu0 0.0
        %1935 = vmatpush.msra.mxu0 0.0
        %1936 = vmatpush.msra.mxu0 0.0
        %1937 = vmatpush.msra.mxu0 0.0
        %1938 = vmatpush.msra.mxu0 0.0
        %1939 = vmatpush.msra.mxu0 0.0
        %1940 = vmatpush.msra.mxu0 0.0
        %1941 = vmatpush.msra.mxu0 0.0
        %1942 = vmatpush.msra.mxu0 %v1925
        %1943 = vmatmul.f32.gmra.mxu0 %v1888
        %v1944 = vpop.f32.mrf.mxu0
        %v1945 = vadd.f32 0.0, %v1944
        %1946 = vmatmul.f32.gmra.mxu0 %v1890
        %v1947 = vpop.f32.mrf.mxu0
        %v1948 = vadd.f32 0.0, %v1947
        %1949 = vmatmul.f32.gmra.mxu0 %v1892
        %v1950 = vpop.f32.mrf.mxu0
        %v1951 = vadd.f32 0.0, %v1950
        %1952 = vmatmul.f32.gmra.mxu0 %v1894
        %v1953 = vpop.f32.mrf.mxu0
        %v1954 = vadd.f32 0.0, %v1953
        %1955 = vmatmul.f32.gmra.mxu0 %v1896
        %v1956 = vpop.f32.mrf.mxu0
        %v1957 = vadd.f32 0.0, %v1956
        %1958 = vmatmul.f32.gmra.mxu0 %v1898
        %v1959 = vpop.f32.mrf.mxu0
        %v1960 = vadd.f32 0.0, %v1959
        %1961 = vmatmul.f32.gmra.mxu0 %v1900
        %v1962 = vpop.f32.mrf.mxu0
        %v1963 = vadd.f32 0.0, %v1962
        %1964 = vmatmul.f32.gmra.mxu0 %v1902
        %v1965 = vpop.f32.mrf.mxu0
        %v1966 = vadd.f32 0.0, %v1965
        %1967 = vmatmul.f32.gmra.mxu0 %v1904
        %v1968 = vpop.f32.mrf.mxu0
        %v1969 = vadd.f32 0.0, %v1968
        %1970 = vmatmul.f32.gmra.mxu0 %v1906
        %v1971 = vpop.f32.mrf.mxu0
        %v1972 = vadd.f32 0.0, %v1971
        %1973 = vmatmul.f32.gmra.mxu0 %v1908
        %v1974 = vpop.f32.mrf.mxu0
        %v1975 = vadd.f32 0.0, %v1974
        %1976 = vmatmul.f32.gmra.mxu0 %v1910
        %v1977 = vpop.f32.mrf.mxu0
        %v1978 = vadd.f32 0.0, %v1977
        %1979 = vmatmul.f32.gmra.mxu0 %v1912
        %v1980 = vpop.f32.mrf.mxu0
        %v1981 = vadd.f32 0.0, %v1980
        %1982 = vmatmul.f32.gmra.mxu0 %v1914
        %v1983 = vpop.f32.mrf.mxu0
        %v1984 = vadd.f32 0.0, %v1983
        %1985 = vmatmul.f32.gmra.mxu0 %v1916
        %v1986 = vpop.f32.mrf.mxu0
        %v1987 = vadd.f32 0.0, %v1986
        %1988 = vmatmul.f32.gmra.mxu0 %v1918
        %v1989 = vpop.f32.mrf.mxu0
        %v1990 = vadd.f32 0.0, %v1989
        %1991 = vmatmul.f32.gmra.mxu0 %v1920
        %v1992 = vpop.f32.mrf.mxu0
        %v1993 = vadd.f32 0.0, %v1992
        %1994 = vmatmul.f32.gmra.mxu0 %v1922
        %v1995 = vpop.f32.mrf.mxu0
        %v1996 = vadd.f32 0.0, %v1995
        %1997 = vdwg.mxu0
        %v1998 = vadd.f32 %v1831, %v1945
        %v1999 = vadd.f32 %v1832, %v1948
        %v2000 = vadd.f32 %v1833, %v1951
        %v2001 = vadd.f32 %v1834, %v1954
        %v2002 = vadd.f32 %v1835, %v1957
        %v2003 = vadd.f32 %v1836, %v1960
        %v2004 = vadd.f32 %v1837, %v1963
        %v2005 = vadd.f32 %v1838, %v1966
        %v2006 = vadd.f32 %v1839, %v1969
        %v2007 = vadd.f32 %v1840, %v1972
        %v2008 = vadd.f32 %v1841, %v1975
        %v2009 = vadd.f32 %v1842, %v1978
        %v2010 = vadd.f32 %v1843, %v1981
        %v2011 = vadd.f32 %v1844, %v1984
        %v2012 = vadd.f32 %v1845, %v1987
        %v2013 = vadd.f32 %v1846, %v1990
        %v2014 = vadd.f32 %v1847, %v1993
        %v2015 = vadd.f32 %v1848, %v1996
        %v2016 = vrot.slane %v293, 3
        %v2017 = vrot.slane %v294, 3
        %v2018 = vsel %vm1850, %v2016, %v2017
        %v2019 = vrot.slane %v295, 3
        %v2020 = vsel %vm1850, %v2017, %v2019
        %v2021 = vrot.slane %v296, 3
        %v2022 = vsel %vm1850, %v2019, %v2021
        %v2023 = vrot.slane %v297, 3
        %v2024 = vsel %vm1850, %v2021, %v2023
        %v2025 = vrot.slane %v298, 3
        %v2026 = vsel %vm1850, %v2023, %v2025
        %v2027 = vrot.slane %v299, 3
        %v2028 = vsel %vm1850, %v2025, %v2027
        %v2029 = vrot.slane %v300, 3
        %v2030 = vsel %vm1850, %v2027, %v2029
        %v2031 = vrot.slane %v301, 3
        %v2032 = vsel %vm1850, %v2029, %v2031
        %v2033 = vrot.slane %v302, 3
        %v2034 = vsel %vm1850, %v2031, %v2033
        %v2035 = vrot.slane %v303, 3
        %v2036 = vsel %vm1850, %v2033, %v2035
        %v2037 = vrot.slane %v304, 3
        %v2038 = vsel %vm1850, %v2035, %v2037
        %v2039 = vrot.slane %v305, 3
        %v2040 = vsel %vm1850, %v2037, %v2039
        %v2041 = vrot.slane %v306, 3
        %v2042 = vsel %vm1850, %v2039, %v2041
        %v2043 = vrot.slane %v307, 3
        %v2044 = vsel %vm1850, %v2041, %v2043
        %v2045 = vrot.slane %v308, 3
        %v2046 = vsel %vm1850, %v2043, %v2045
        %v2047 = vrot.slane %v309, 3
        %v2048 = vsel %vm1850, %v2045, %v2047
        %v2049 = vrot.slane %v310, 3
        %v2050 = vsel %vm1850, %v2047, %v2049
        %v2051 = vrot.slane %v311, 3
        %v2052 = vsel %vm1850, %v2049, %v2051
        %v2053 = vsel %vm370, %v2018, 0
        %v2055 = vsel %vm370, %v2020, 0
        %v2057 = vsel %vm370, %v2022, 0
        %v2059 = vsel %vm370, %v2024, 0
        %v2061 = vsel %vm370, %v2026, 0
        %v2063 = vsel %vm370, %v2028, 0
        %v2065 = vsel %vm370, %v2030, 0
        %v2067 = vsel %vm370, %v2032, 0
        %v2069 = vsel %vm370, %v2034, 0
        %v2071 = vsel %vm370, %v2036, 0
        %v2073 = vsel %vm370, %v2038, 0
        %v2075 = vsel %vm370, %v2040, 0
        %v2077 = vsel %vm370, %v2042, 0
        %v2079 = vsel %vm370, %v2044, 0
        %v2081 = vsel %vm370, %v2046, 0
        %v2083 = vsel %vm370, %v2048, 0
        %v2085 = vsel %vm370, %v2050, 0
        %v2087 = vsel %vm370, %v2052, 0
        %v2090 = vsel %vm407, %v1751, 0
        %2092 = vmatpush.msra.mxu0 0.0
        %2093 = vmatpush.msra.mxu0 0.0
        %2094 = vmatpush.msra.mxu0 0.0
        %2095 = vmatpush.msra.mxu0 0.0
        %2096 = vmatpush.msra.mxu0 0.0
        %2097 = vmatpush.msra.mxu0 0.0
        %2098 = vmatpush.msra.mxu0 0.0
        %2099 = vmatpush.msra.mxu0 0.0
        %2100 = vmatpush.msra.mxu0 0.0
        %2101 = vmatpush.msra.mxu0 0.0
        %2102 = vmatpush.msra.mxu0 0.0
        %2103 = vmatpush.msra.mxu0 0.0
        %2104 = vmatpush.msra.mxu0 0.0
        %2105 = vmatpush.msra.mxu0 0.0
        %2106 = vmatpush.msra.mxu0 0.0
        %2107 = vmatpush.msra.mxu0 %v2090
        %2108 = vmatmul.f32.gmra.mxu0 %v2053
        %v2109 = vpop.f32.mrf.mxu0
        %v2110 = vadd.f32 0.0, %v2109
        %2111 = vmatmul.f32.gmra.mxu0 %v2055
        %v2112 = vpop.f32.mrf.mxu0
        %v2113 = vadd.f32 0.0, %v2112
        %2114 = vmatmul.f32.gmra.mxu0 %v2057
        %v2115 = vpop.f32.mrf.mxu0
        %v2116 = vadd.f32 0.0, %v2115
        %2117 = vmatmul.f32.gmra.mxu0 %v2059
        %v2118 = vpop.f32.mrf.mxu0
        %v2119 = vadd.f32 0.0, %v2118
        %2120 = vmatmul.f32.gmra.mxu0 %v2061
        %v2121 = vpop.f32.mrf.mxu0
        %v2122 = vadd.f32 0.0, %v2121
        %2123 = vmatmul.f32.gmra.mxu0 %v2063
        %v2124 = vpop.f32.mrf.mxu0
        %v2125 = vadd.f32 0.0, %v2124
        %2126 = vmatmul.f32.gmra.mxu0 %v2065
        %v2127 = vpop.f32.mrf.mxu0
        %v2128 = vadd.f32 0.0, %v2127
        %2129 = vmatmul.f32.gmra.mxu0 %v2067
        %v2130 = vpop.f32.mrf.mxu0
        %v2131 = vadd.f32 0.0, %v2130
        %2132 = vmatmul.f32.gmra.mxu0 %v2069
        %v2133 = vpop.f32.mrf.mxu0
        %v2134 = vadd.f32 0.0, %v2133
        %2135 = vmatmul.f32.gmra.mxu0 %v2071
        %v2136 = vpop.f32.mrf.mxu0
        %v2137 = vadd.f32 0.0, %v2136
        %2138 = vmatmul.f32.gmra.mxu0 %v2073
        %v2139 = vpop.f32.mrf.mxu0
        %v2140 = vadd.f32 0.0, %v2139
        %2141 = vmatmul.f32.gmra.mxu0 %v2075
        %v2142 = vpop.f32.mrf.mxu0
        %v2143 = vadd.f32 0.0, %v2142
        %2144 = vmatmul.f32.gmra.mxu0 %v2077
        %v2145 = vpop.f32.mrf.mxu0
        %v2146 = vadd.f32 0.0, %v2145
        %2147 = vmatmul.f32.gmra.mxu0 %v2079
        %v2148 = vpop.f32.mrf.mxu0
        %v2149 = vadd.f32 0.0, %v2148
        %2150 = vmatmul.f32.gmra.mxu0 %v2081
        %v2151 = vpop.f32.mrf.mxu0
        %v2152 = vadd.f32 0.0, %v2151
        %2153 = vmatmul.f32.gmra.mxu0 %v2083
        %v2154 = vpop.f32.mrf.mxu0
        %v2155 = vadd.f32 0.0, %v2154
        %2156 = vmatmul.f32.gmra.mxu0 %v2085
        %v2157 = vpop.f32.mrf.mxu0
        %v2158 = vadd.f32 0.0, %v2157
        %2159 = vmatmul.f32.gmra.mxu0 %v2087
        %v2160 = vpop.f32.mrf.mxu0
        %v2161 = vadd.f32 0.0, %v2160
        %2162 = vdwg.mxu0
        %v2163 = vadd.f32 %v1998, %v2110
        %v2164 = vadd.f32 %v1999, %v2113
        %v2165 = vadd.f32 %v2000, %v2116
        %v2166 = vadd.f32 %v2001, %v2119
        %v2167 = vadd.f32 %v2002, %v2122
        %v2168 = vadd.f32 %v2003, %v2125
        %v2169 = vadd.f32 %v2004, %v2128
        %v2170 = vadd.f32 %v2005, %v2131
        %v2171 = vadd.f32 %v2006, %v2134
        %v2172 = vadd.f32 %v2007, %v2137
        %v2173 = vadd.f32 %v2008, %v2140
        %v2174 = vadd.f32 %v2009, %v2143
        %v2175 = vadd.f32 %v2010, %v2146
        %v2176 = vadd.f32 %v2011, %v2149
        %v2177 = vadd.f32 %v2012, %v2152
        %v2178 = vadd.f32 %v2013, %v2155
        %v2179 = vadd.f32 %v2014, %v2158
        %v2180 = vadd.f32 %v2015, %v2161
        %v2181 = vrot.slane %v290, 2
        %v2182 = vsel %vm1144, %v1180, %v2181
        %v2183 = vsel %vm370, %v2182, 0
        %2185 = vmatpush.msra.mxu0 0.0
        %2186 = vmatpush.msra.mxu0 0.0
        %2187 = vmatpush.msra.mxu0 0.0
        %2188 = vmatpush.msra.mxu0 0.0
        %2189 = vmatpush.msra.mxu0 0.0
        %2190 = vmatpush.msra.mxu0 0.0
        %2191 = vmatpush.msra.mxu0 0.0
        %2192 = vmatpush.msra.mxu0 0.0
        %2193 = vmatpush.msra.mxu0 0.0
        %2194 = vmatpush.msra.mxu0 0.0
        %2195 = vmatpush.msra.mxu0 0.0
        %2196 = vmatpush.msra.mxu0 0.0
        %2197 = vmatpush.msra.mxu0 0.0
        %2198 = vmatpush.msra.mxu0 0.0
        %2199 = vmatpush.msra.mxu0 0.0
        %2200 = vmatpush.msra.mxu0 %v1758
        %2201 = vmatmul.f32.gmra.mxu0 %v1184
        %v2202 = vpop.f32.mrf.mxu0
        %v2203 = vadd.f32 0.0, %v2202
        %2204 = vmatmul.f32.gmra.mxu0 %v1186
        %v2205 = vpop.f32.mrf.mxu0
        %v2206 = vadd.f32 0.0, %v2205
        %2207 = vmatmul.f32.gmra.mxu0 %v1188
        %v2208 = vpop.f32.mrf.mxu0
        %v2209 = vadd.f32 0.0, %v2208
        %2210 = vmatmul.f32.gmra.mxu0 %v1190
        %v2211 = vpop.f32.mrf.mxu0
        %v2212 = vadd.f32 0.0, %v2211
        %2213 = vmatmul.f32.gmra.mxu0 %v1192
        %v2214 = vpop.f32.mrf.mxu0
        %v2215 = vadd.f32 0.0, %v2214
        %2216 = vmatmul.f32.gmra.mxu0 %v1194
        %v2217 = vpop.f32.mrf.mxu0
        %v2218 = vadd.f32 0.0, %v2217
        %2219 = vmatmul.f32.gmra.mxu0 %v1196
        %v2220 = vpop.f32.mrf.mxu0
        %v2221 = vadd.f32 0.0, %v2220
        %2222 = vmatmul.f32.gmra.mxu0 %v1198
        %v2223 = vpop.f32.mrf.mxu0
        %v2224 = vadd.f32 0.0, %v2223
        %2225 = vmatmul.f32.gmra.mxu0 %v1200
        %v2226 = vpop.f32.mrf.mxu0
        %v2227 = vadd.f32 0.0, %v2226
        %2228 = vmatmul.f32.gmra.mxu0 %v1202
        %v2229 = vpop.f32.mrf.mxu0
        %v2230 = vadd.f32 0.0, %v2229
        %2231 = vmatmul.f32.gmra.mxu0 %v1204
        %v2232 = vpop.f32.mrf.mxu0
        %v2233 = vadd.f32 0.0, %v2232
        %2234 = vmatmul.f32.gmra.mxu0 %v1206
        %v2235 = vpop.f32.mrf.mxu0
        %v2236 = vadd.f32 0.0, %v2235
        %2237 = vmatmul.f32.gmra.mxu0 %v1208
        %v2238 = vpop.f32.mrf.mxu0
        %v2239 = vadd.f32 0.0, %v2238
        %2240 = vmatmul.f32.gmra.mxu0 %v1210
        %v2241 = vpop.f32.mrf.mxu0
        %v2242 = vadd.f32 0.0, %v2241
        %2243 = vmatmul.f32.gmra.mxu0 %v1212
        %v2244 = vpop.f32.mrf.mxu0
        %v2245 = vadd.f32 0.0, %v2244
        %2246 = vmatmul.f32.gmra.mxu0 %v1214
        %v2247 = vpop.f32.mrf.mxu0
        %v2248 = vadd.f32 0.0, %v2247
        %2249 = vmatmul.f32.gmra.mxu0 %v1216
        %v2250 = vpop.f32.mrf.mxu0
        %v2251 = vadd.f32 0.0, %v2250
        %2252 = vmatmul.f32.gmra.mxu0 %v2183
        %v2253 = vpop.f32.mrf.mxu0
        %v2254 = vadd.f32 0.0, %v2253
        %2255 = vdwg.mxu0
        %v2256 = vadd.f32 %v1731, %v2203
        %v2257 = vadd.f32 %v1732, %v2206
        %v2258 = vadd.f32 %v1733, %v2209
        %v2259 = vadd.f32 %v1734, %v2212
        %v2260 = vadd.f32 %v1735, %v2215
        %v2261 = vadd.f32 %v1736, %v2218
        %v2262 = vadd.f32 %v1737, %v2221
        %v2263 = vadd.f32 %v1738, %v2224
        %v2264 = vadd.f32 %v1739, %v2227
        %v2265 = vadd.f32 %v1740, %v2230
        %v2266 = vadd.f32 %v1741, %v2233
        %v2267 = vadd.f32 %v1742, %v2236
        %v2268 = vadd.f32 %v1743, %v2239
        %v2269 = vadd.f32 %v1744, %v2242
        %v2270 = vadd.f32 %v1745, %v2245
        %v2271 = vadd.f32 %v1746, %v2248
        %v2272 = vadd.f32 %v1747, %v2251
        %v2273 = vadd.f32 %v1748, %v2254
        %2274 = vmatpush.msra.mxu0 0.0
        %2275 = vmatpush.msra.mxu0 0.0
        %2276 = vmatpush.msra.mxu0 0.0
        %2277 = vmatpush.msra.mxu0 0.0
        %2278 = vmatpush.msra.mxu0 0.0
        %2279 = vmatpush.msra.mxu0 0.0
        %2280 = vmatpush.msra.mxu0 0.0
        %2281 = vmatpush.msra.mxu0 0.0
        %2282 = vmatpush.msra.mxu0 0.0
        %2283 = vmatpush.msra.mxu0 0.0
        %2284 = vmatpush.msra.mxu0 0.0
        %2285 = vmatpush.msra.mxu0 0.0
        %2286 = vmatpush.msra.mxu0 0.0
        %2287 = vmatpush.msra.mxu0 0.0
        %2288 = vmatpush.msra.mxu0 0.0
        %2289 = vmatpush.msra.mxu0 %v1925
        %2290 = vmatmul.f32.gmra.mxu0 %v1350
        %v2291 = vpop.f32.mrf.mxu0
        %v2292 = vadd.f32 0.0, %v2291
        %2293 = vmatmul.f32.gmra.mxu0 %v1352
        %v2294 = vpop.f32.mrf.mxu0
        %v2295 = vadd.f32 0.0, %v2294
        %2296 = vmatmul.f32.gmra.mxu0 %v1354
        %v2297 = vpop.f32.mrf.mxu0
        %v2298 = vadd.f32 0.0, %v2297
        %2299 = vmatmul.f32.gmra.mxu0 %v1356
        %v2300 = vpop.f32.mrf.mxu0
        %v2301 = vadd.f32 0.0, %v2300
        %2302 = vmatmul.f32.gmra.mxu0 %v1358
        %v2303 = vpop.f32.mrf.mxu0
        %v2304 = vadd.f32 0.0, %v2303
        %2305 = vmatmul.f32.gmra.mxu0 %v1360
        %v2306 = vpop.f32.mrf.mxu0
        %v2307 = vadd.f32 0.0, %v2306
        %2308 = vmatmul.f32.gmra.mxu0 %v1362
        %v2309 = vpop.f32.mrf.mxu0
        %v2310 = vadd.f32 0.0, %v2309
        %2311 = vmatmul.f32.gmra.mxu0 %v1364
        %v2312 = vpop.f32.mrf.mxu0
        %v2313 = vadd.f32 0.0, %v2312
        %2314 = vmatmul.f32.gmra.mxu0 %v1366
        %v2315 = vpop.f32.mrf.mxu0
        %v2316 = vadd.f32 0.0, %v2315
        %2317 = vmatmul.f32.gmra.mxu0 %v1368
        %v2318 = vpop.f32.mrf.mxu0
        %v2319 = vadd.f32 0.0, %v2318
        %2320 = vmatmul.f32.gmra.mxu0 %v1370
        %v2321 = vpop.f32.mrf.mxu0
        %v2322 = vadd.f32 0.0, %v2321
        %2323 = vmatmul.f32.gmra.mxu0 %v1372
        %v2324 = vpop.f32.mrf.mxu0
        %v2325 = vadd.f32 0.0, %v2324
        %2326 = vmatmul.f32.gmra.mxu0 %v1374
        %v2327 = vpop.f32.mrf.mxu0
        %v2328 = vadd.f32 0.0, %v2327
        %2329 = vmatmul.f32.gmra.mxu0 %v1376
        %v2330 = vpop.f32.mrf.mxu0
        %v2331 = vadd.f32 0.0, %v2330
        %2332 = vmatmul.f32.gmra.mxu0 %v1378
        %v2333 = vpop.f32.mrf.mxu0
        %v2334 = vadd.f32 0.0, %v2333
        %2335 = vmatmul.f32.gmra.mxu0 %v1380
        %v2336 = vpop.f32.mrf.mxu0
        %v2337 = vadd.f32 0.0, %v2336
        %2338 = vmatmul.f32.gmra.mxu0 %v1382
        %v2339 = vpop.f32.mrf.mxu0
        %v2340 = vadd.f32 0.0, %v2339
        %2341 = vmatmul.f32.gmra.mxu0 %v1755
        %v2342 = vpop.f32.mrf.mxu0
        %v2343 = vadd.f32 0.0, %v2342
        %2344 = vdwg.mxu0
        %v2345 = vadd.f32 %v2256, %v2292
        %v2346 = vadd.f32 %v2257, %v2295
        %v2347 = vadd.f32 %v2258, %v2298
        %v2348 = vadd.f32 %v2259, %v2301
        %v2349 = vadd.f32 %v2260, %v2304
        %v2350 = vadd.f32 %v2261, %v2307
        %v2351 = vadd.f32 %v2262, %v2310
        %v2352 = vadd.f32 %v2263, %v2313
        %v2353 = vadd.f32 %v2264, %v2316
        %v2354 = vadd.f32 %v2265, %v2319
        %v2355 = vadd.f32 %v2266, %v2322
        %v2356 = vadd.f32 %v2267, %v2325
        %v2357 = vadd.f32 %v2268, %v2328
        %v2358 = vadd.f32 %v2269, %v2331
        %v2359 = vadd.f32 %v2270, %v2334
        %v2360 = vadd.f32 %v2271, %v2337
        %v2361 = vadd.f32 %v2272, %v2340
        %v2362 = vadd.f32 %v2273, %v2343
        %2363 = vmatpush.msra.mxu0 0.0
        %2364 = vmatpush.msra.mxu0 0.0
        %2365 = vmatpush.msra.mxu0 0.0
        %2366 = vmatpush.msra.mxu0 0.0
        %2367 = vmatpush.msra.mxu0 0.0
        %2368 = vmatpush.msra.mxu0 0.0
        %2369 = vmatpush.msra.mxu0 0.0
        %2370 = vmatpush.msra.mxu0 0.0
        %2371 = vmatpush.msra.mxu0 0.0
        %2372 = vmatpush.msra.mxu0 0.0
        %2373 = vmatpush.msra.mxu0 0.0
        %2374 = vmatpush.msra.mxu0 0.0
        %2375 = vmatpush.msra.mxu0 0.0
        %2376 = vmatpush.msra.mxu0 0.0
        %2377 = vmatpush.msra.mxu0 0.0
        %2378 = vmatpush.msra.mxu0 %v2090
        %2379 = vmatmul.f32.gmra.mxu0 %v1888
        %v2380 = vpop.f32.mrf.mxu0
        %v2381 = vadd.f32 0.0, %v2380
        %2382 = vmatmul.f32.gmra.mxu0 %v1890
        %v2383 = vpop.f32.mrf.mxu0
        %v2384 = vadd.f32 0.0, %v2383
        %2385 = vmatmul.f32.gmra.mxu0 %v1892
        %v2386 = vpop.f32.mrf.mxu0
        %v2387 = vadd.f32 0.0, %v2386
        %2388 = vmatmul.f32.gmra.mxu0 %v1894
        %v2389 = vpop.f32.mrf.mxu0
        %v2390 = vadd.f32 0.0, %v2389
        %2391 = vmatmul.f32.gmra.mxu0 %v1896
        %v2392 = vpop.f32.mrf.mxu0
        %v2393 = vadd.f32 0.0, %v2392
        %2394 = vmatmul.f32.gmra.mxu0 %v1898
        %v2395 = vpop.f32.mrf.mxu0
        %v2396 = vadd.f32 0.0, %v2395
        %2397 = vmatmul.f32.gmra.mxu0 %v1900
        %v2398 = vpop.f32.mrf.mxu0
        %v2399 = vadd.f32 0.0, %v2398
        %2400 = vmatmul.f32.gmra.mxu0 %v1902
        %v2401 = vpop.f32.mrf.mxu0
        %v2402 = vadd.f32 0.0, %v2401
        %2403 = vmatmul.f32.gmra.mxu0 %v1904
        %v2404 = vpop.f32.mrf.mxu0
        %v2405 = vadd.f32 0.0, %v2404
        %2406 = vmatmul.f32.gmra.mxu0 %v1906
        %v2407 = vpop.f32.mrf.mxu0
        %v2408 = vadd.f32 0.0, %v2407
        %2409 = vmatmul.f32.gmra.mxu0 %v1908
        %v2410 = vpop.f32.mrf.mxu0
        %v2411 = vadd.f32 0.0, %v2410
        %2412 = vmatmul.f32.gmra.mxu0 %v1910
        %v2413 = vpop.f32.mrf.mxu0
        %v2414 = vadd.f32 0.0, %v2413
        %2415 = vmatmul.f32.gmra.mxu0 %v1912
        %v2416 = vpop.f32.mrf.mxu0
        %v2417 = vadd.f32 0.0, %v2416
        %2418 = vmatmul.f32.gmra.mxu0 %v1914
        %v2419 = vpop.f32.mrf.mxu0
        %v2420 = vadd.f32 0.0, %v2419
        %2421 = vmatmul.f32.gmra.mxu0 %v1916
        %v2422 = vpop.f32.mrf.mxu0
        %v2423 = vadd.f32 0.0, %v2422
        %2424 = vmatmul.f32.gmra.mxu0 %v1918
        %v2425 = vpop.f32.mrf.mxu0
        %v2426 = vadd.f32 0.0, %v2425
        %2427 = vmatmul.f32.gmra.mxu0 %v1920
        %v2428 = vpop.f32.mrf.mxu0
        %v2429 = vadd.f32 0.0, %v2428
        %2430 = vmatmul.f32.gmra.mxu0 %v1922
        %v2431 = vpop.f32.mrf.mxu0
        %v2432 = vadd.f32 0.0, %v2431
        %2433 = vdwg.mxu0
        %v2434 = vadd.f32 %v2345, %v2381
        %v2435 = vadd.f32 %v2346, %v2384
        %v2436 = vadd.f32 %v2347, %v2387
        %v2437 = vadd.f32 %v2348, %v2390
        %v2438 = vadd.f32 %v2349, %v2393
        %v2439 = vadd.f32 %v2350, %v2396
        %v2440 = vadd.f32 %v2351, %v2399
        %v2441 = vadd.f32 %v2352, %v2402
        %v2442 = vadd.f32 %v2353, %v2405
        %v2443 = vadd.f32 %v2354, %v2408
        %v2444 = vadd.f32 %v2355, %v2411
        %v2445 = vadd.f32 %v2356, %v2414
        %v2446 = vadd.f32 %v2357, %v2417
        %v2447 = vadd.f32 %v2358, %v2420
        %v2448 = vadd.f32 %v2359, %v2423
        %v2449 = vadd.f32 %v2360, %v2426
        %v2450 = vadd.f32 %v2361, %v2429
        %v2451 = vadd.f32 %v2362, %v2432
        %v2452 = vperm.slane %v312, 0
        %v2453 = vadd.f32 %v2163, %v2452
        %v2454 = vadd.f32 %v2164, %v2452
        %v2455 = vadd.f32 %v2165, %v2452
        %v2456 = vadd.f32 %v2166, %v2452
        %v2457 = vadd.f32 %v2167, %v2452
        %v2458 = vadd.f32 %v2168, %v2452
        %v2459 = vadd.f32 %v2169, %v2452
        %v2460 = vadd.f32 %v2170, %v2452
        %v2461 = vadd.f32 %v2171, %v2452
        %v2462 = vadd.f32 %v2172, %v2452
        %v2463 = vadd.f32 %v2173, %v2452
        %v2464 = vadd.f32 %v2174, %v2452
        %v2465 = vadd.f32 %v2175, %v2452
        %v2466 = vadd.f32 %v2176, %v2452
        %v2467 = vadd.f32 %v2177, %v2452
        %v2468 = vadd.f32 %v2178, %v2452
        %v2469 = vadd.f32 %v2179, %v2452
        %v2470 = vadd.f32 %v2180, %v2452
        %v2471 = vmax.f32 %v2453, 0.0
        %v2472 = vmax.f32 %v2454, 0.0
        %v2473 = vmax.f32 %v2455, 0.0
        %v2474 = vmax.f32 %v2456, 0.0
        %v2475 = vmax.f32 %v2457, 0.0
        %v2476 = vmax.f32 %v2458, 0.0
        %v2477 = vmax.f32 %v2459, 0.0
        %v2478 = vmax.f32 %v2460, 0.0
        %v2479 = vmax.f32 %v2461, 0.0
        %v2480 = vmax.f32 %v2462, 0.0
        %v2481 = vmax.f32 %v2463, 0.0
        %v2482 = vmax.f32 %v2464, 0.0
        %v2483 = vmax.f32 %v2465, 0.0
        %v2484 = vmax.f32 %v2466, 0.0
        %v2485 = vmax.f32 %v2467, 0.0
        %v2486 = vmax.f32 %v2468, 0.0
        %v2487 = vmax.f32 %v2469, 0.0
        %v2488 = vmax.f32 %v2470, 0.0
        %v2489 = vadd.f32 %v2434, %v2452
        %v2490 = vadd.f32 %v2435, %v2452
        %v2491 = vadd.f32 %v2436, %v2452
        %v2492 = vadd.f32 %v2437, %v2452
        %v2493 = vadd.f32 %v2438, %v2452
        %v2494 = vadd.f32 %v2439, %v2452
        %v2495 = vadd.f32 %v2440, %v2452
        %v2496 = vadd.f32 %v2441, %v2452
        %v2497 = vadd.f32 %v2442, %v2452
        %v2498 = vadd.f32 %v2443, %v2452
        %v2499 = vadd.f32 %v2444, %v2452
        %v2500 = vadd.f32 %v2445, %v2452
        %v2501 = vadd.f32 %v2446, %v2452
        %v2502 = vadd.f32 %v2447, %v2452
        %v2503 = vadd.f32 %v2448, %v2452
        %v2504 = vadd.f32 %v2449, %v2452
        %v2505 = vadd.f32 %v2450, %v2452
        %v2506 = vadd.f32 %v2451, %v2452
        %v2507 = vmax.f32 %v2489, 0.0
        %v2508 = vmax.f32 %v2490, 0.0
        %v2509 = vmax.f32 %v2491, 0.0
        %v2510 = vmax.f32 %v2492, 0.0
        %v2511 = vmax.f32 %v2493, 0.0
        %v2512 = vmax.f32 %v2494, 0.0
        %v2513 = vmax.f32 %v2495, 0.0
        %v2514 = vmax.f32 %v2496, 0.0
        %v2515 = vmax.f32 %v2497, 0.0
        %v2516 = vmax.f32 %v2498, 0.0
        %v2517 = vmax.f32 %v2499, 0.0
        %v2518 = vmax.f32 %v2500, 0.0
        %v2519 = vmax.f32 %v2501, 0.0
        %v2520 = vmax.f32 %v2502, 0.0
        %v2521 = vmax.f32 %v2503, 0.0
        %v2522 = vmax.f32 %v2504, 0.0
        %v2523 = vmax.f32 %v2505, 0.0
        %v2524 = vmax.f32 %v2506, 0.0
        %v2525 = vlaneseq
        %v2526 = vshrl.u32 %v2525, 7
        %v2527 = vadd.s32 %v2526, 8
        %v2528 = vadd.s32 %v2526, 16
        %v2529 = vadd.s32 %v2526, 24
        %v2530 = vadd.s32 %v2526, 32
        %v2531 = vadd.s32 %v2526, 40
        %v2532 = vadd.s32 %v2526, 48
        %v2533 = vadd.s32 %v2526, 56
        %v2534 = vadd.s32 %v2526, 64
        %v2535 = vadd.s32 %v2526, 72
        %v2536 = vadd.s32 %v2526, 80
        %v2537 = vadd.s32 %v2526, 88
        %v2538 = vadd.s32 %v2526, 96
        %v2539 = vadd.s32 %v2526, 104
        %v2540 = vadd.s32 %v2526, 112
        %v2541 = vadd.s32 %v2526, 120
        %v2542 = vadd.s32 %v2526, 128
        %v2543 = vadd.s32 %v2526, 136
        %v2544 = vadd.s32 %v2526, 10
        %v2545 = vadd.s32 %v2527, 10
        %v2546 = vadd.s32 %v2528, 10
        %v2547 = vadd.s32 %v2529, 10
        %v2548 = vadd.s32 %v2530, 10
        %v2549 = vadd.s32 %v2531, 10
        %v2550 = vadd.s32 %v2532, 10
        %v2551 = vadd.s32 %v2533, 10
        %v2552 = vadd.s32 %v2534, 10
        %v2553 = vadd.s32 %v2535, 10
        %v2554 = vadd.s32 %v2536, 10
        %v2555 = vadd.s32 %v2537, 10
        %v2556 = vadd.s32 %v2538, 10
        %v2557 = vadd.s32 %v2539, 10
        %v2558 = vadd.s32 %v2540, 10
        %v2559 = vadd.s32 %v2541, 10
        %v2560 = vadd.s32 %v2542, 10
        %v2561 = vadd.s32 %v2543, 10
        %vm2562 = vcmp.lt.s32.totalorder %v2544, 0
        %v2563 = vsub.s32 0, %v2544
        %v2564 = vsel %vm2562, %v2563, %v2544
        %v2565 = vand.u32 %v2564, 65535
        %v2566 = vshrl.u32 %v2564, 16
        %v2568 = vmul.u32 %v2565, 14564
        %v2569 = vmul.u32 %v2565, 58254
        %v2570 = vmul.u32 %v2566, 14564
        %v2571 = vmul.u32 %v2566, 58254
        %v2572 = vshll.u32 %v2569, 16
        %v2573 = vshrl.u32 %v2569, 16
        %v2574 = vshll.u32 %v2570, 16
        %v2575 = vshrl.u32 %v2570, 16
        %vm2576 = vc.u32 %v2568, %v2572
        %v2577 = vsel %vm2576, 1, 0
        %v2578 = vadd.s32 %v2568, %v2572
        %v2579 = vadd.s32 %v2571, %v2577
        %vm2580 = vc.u32 %v2578, %v2574
        %v2581 = vsel %vm2580, 1, 0
        %v2582 = vadd.s32 %v2578, %v2574
        %v2583 = vadd.s32 %v2579, %v2581
        %v2584 = vadd.s32 %v2583, %v2573
        %v2585 = vadd.s32 %v2584, %v2575
        %v2586 = vshrl.u32 %v2585, 3
        %v2587 = vmul.u32 %v2586, 9
        %v2588 = vsub.s32 %v2564, %v2587
        %v2589 = vsub.s32 0, %v2588
        %v2590 = vsel %vm2562, %v2589, %v2588
        %vm2591 = vcmp.lt.s32.totalorder %v2545, 0
        %v2592 = vsub.s32 0, %v2545
        %v2593 = vsel %vm2591, %v2592, %v2545
        %v2594 = vand.u32 %v2593, 65535
        %v2595 = vshrl.u32 %v2593, 16
        %v2597 = vmul.u32 %v2594, 14564
        %v2598 = vmul.u32 %v2594, 58254
        %v2599 = vmul.u32 %v2595, 14564
        %v2600 = vmul.u32 %v2595, 58254
        %v2601 = vshll.u32 %v2598, 16
        %v2602 = vshrl.u32 %v2598, 16
        %v2603 = vshll.u32 %v2599, 16
        %v2604 = vshrl.u32 %v2599, 16
        %vm2605 = vc.u32 %v2597, %v2601
        %v2606 = vsel %vm2605, 1, 0
        %v2607 = vadd.s32 %v2597, %v2601
        %v2608 = vadd.s32 %v2600, %v2606
        %vm2609 = vc.u32 %v2607, %v2603
        %v2610 = vsel %vm2609, 1, 0
        %v2611 = vadd.s32 %v2607, %v2603
        %v2612 = vadd.s32 %v2608, %v2610
        %v2613 = vadd.s32 %v2612, %v2602
        %v2614 = vadd.s32 %v2613, %v2604
        %v2615 = vshrl.u32 %v2614, 3
        %v2616 = vmul.u32 %v2615, 9
        %v2617 = vsub.s32 %v2593, %v2616
        %v2618 = vsub.s32 0, %v2617
        %v2619 = vsel %vm2591, %v2618, %v2617
        %vm2620 = vcmp.lt.s32.totalorder %v2546, 0
        %v2621 = vsub.s32 0, %v2546
        %v2622 = vsel %vm2620, %v2621, %v2546
        %v2623 = vand.u32 %v2622, 65535
        %v2624 = vshrl.u32 %v2622, 16
        %v2626 = vmul.u32 %v2623, 14564
        %v2627 = vmul.u32 %v2623, 58254
        %v2628 = vmul.u32 %v2624, 14564
        %v2629 = vmul.u32 %v2624, 58254
        %v2630 = vshll.u32 %v2627, 16
        %v2631 = vshrl.u32 %v2627, 16
        %v2632 = vshll.u32 %v2628, 16
        %v2633 = vshrl.u32 %v2628, 16
        %vm2634 = vc.u32 %v2626, %v2630
        %v2635 = vsel %vm2634, 1, 0
        %v2636 = vadd.s32 %v2626, %v2630
        %v2637 = vadd.s32 %v2629, %v2635
        %vm2638 = vc.u32 %v2636, %v2632
        %v2639 = vsel %vm2638, 1, 0
        %v2640 = vadd.s32 %v2636, %v2632
        %v2641 = vadd.s32 %v2637, %v2639
        %v2642 = vadd.s32 %v2641, %v2631
        %v2643 = vadd.s32 %v2642, %v2633
        %v2644 = vshrl.u32 %v2643, 3
        %v2645 = vmul.u32 %v2644, 9
        %v2646 = vsub.s32 %v2622, %v2645
        %v2647 = vsub.s32 0, %v2646
        %v2648 = vsel %vm2620, %v2647, %v2646
        %vm2649 = vcmp.lt.s32.totalorder %v2547, 0
        %v2650 = vsub.s32 0, %v2547
        %v2651 = vsel %vm2649, %v2650, %v2547
        %v2652 = vand.u32 %v2651, 65535
        %v2653 = vshrl.u32 %v2651, 16
        %v2655 = vmul.u32 %v2652, 14564
        %v2656 = vmul.u32 %v2652, 58254
        %v2657 = vmul.u32 %v2653, 14564
        %v2658 = vmul.u32 %v2653, 58254
        %v2659 = vshll.u32 %v2656, 16
        %v2660 = vshrl.u32 %v2656, 16
        %v2661 = vshll.u32 %v2657, 16
        %v2662 = vshrl.u32 %v2657, 16
        %vm2663 = vc.u32 %v2655, %v2659
        %v2664 = vsel %vm2663, 1, 0
        %v2665 = vadd.s32 %v2655, %v2659
        %v2666 = vadd.s32 %v2658, %v2664
        %vm2667 = vc.u32 %v2665, %v2661
        %v2668 = vsel %vm2667, 1, 0
        %v2669 = vadd.s32 %v2665, %v2661
        %v2670 = vadd.s32 %v2666, %v2668
        %v2671 = vadd.s32 %v2670, %v2660
        %v2672 = vadd.s32 %v2671, %v2662
        %v2673 = vshrl.u32 %v2672, 3
        %v2674 = vmul.u32 %v2673, 9
        %v2675 = vsub.s32 %v2651, %v2674
        %v2676 = vsub.s32 0, %v2675
        %v2677 = vsel %vm2649, %v2676, %v2675
        %vm2678 = vcmp.lt.s32.totalorder %v2548, 0
        %v2679 = vsub.s32 0, %v2548
        %v2680 = vsel %vm2678, %v2679, %v2548
        %v2681 = vand.u32 %v2680, 65535
        %v2682 = vshrl.u32 %v2680, 16
        %v2684 = vmul.u32 %v2681, 14564
        %v2685 = vmul.u32 %v2681, 58254
        %v2686 = vmul.u32 %v2682, 14564
        %v2687 = vmul.u32 %v2682, 58254
        %v2688 = vshll.u32 %v2685, 16
        %v2689 = vshrl.u32 %v2685, 16
        %v2690 = vshll.u32 %v2686, 16
        %v2691 = vshrl.u32 %v2686, 16
        %vm2692 = vc.u32 %v2684, %v2688
        %v2693 = vsel %vm2692, 1, 0
        %v2694 = vadd.s32 %v2684, %v2688
        %v2695 = vadd.s32 %v2687, %v2693
        %vm2696 = vc.u32 %v2694, %v2690
        %v2697 = vsel %vm2696, 1, 0
        %v2698 = vadd.s32 %v2694, %v2690
        %v2699 = vadd.s32 %v2695, %v2697
        %v2700 = vadd.s32 %v2699, %v2689
        %v2701 = vadd.s32 %v2700, %v2691
        %v2702 = vshrl.u32 %v2701, 3
        %v2703 = vmul.u32 %v2702, 9
        %v2704 = vsub.s32 %v2680, %v2703
        %v2705 = vsub.s32 0, %v2704
        %v2706 = vsel %vm2678, %v2705, %v2704
        %vm2707 = vcmp.lt.s32.totalorder %v2549, 0
        %v2708 = vsub.s32 0, %v2549
        %v2709 = vsel %vm2707, %v2708, %v2549
        %v2710 = vand.u32 %v2709, 65535
        %v2711 = vshrl.u32 %v2709, 16
        %v2713 = vmul.u32 %v2710, 14564
        %v2714 = vmul.u32 %v2710, 58254
        %v2715 = vmul.u32 %v2711, 14564
        %v2716 = vmul.u32 %v2711, 58254
        %v2717 = vshll.u32 %v2714, 16
        %v2718 = vshrl.u32 %v2714, 16
        %v2719 = vshll.u32 %v2715, 16
        %v2720 = vshrl.u32 %v2715, 16
        %vm2721 = vc.u32 %v2713, %v2717
        %v2722 = vsel %vm2721, 1, 0
        %v2723 = vadd.s32 %v2713, %v2717
        %v2724 = vadd.s32 %v2716, %v2722
        %vm2725 = vc.u32 %v2723, %v2719
        %v2726 = vsel %vm2725, 1, 0
        %v2727 = vadd.s32 %v2723, %v2719
        %v2728 = vadd.s32 %v2724, %v2726
        %v2729 = vadd.s32 %v2728, %v2718
        %v2730 = vadd.s32 %v2729, %v2720
        %v2731 = vshrl.u32 %v2730, 3
        %v2732 = vmul.u32 %v2731, 9
        %v2733 = vsub.s32 %v2709, %v2732
        %v2734 = vsub.s32 0, %v2733
        %v2735 = vsel %vm2707, %v2734, %v2733
        %vm2736 = vcmp.lt.s32.totalorder %v2550, 0
        %v2737 = vsub.s32 0, %v2550
        %v2738 = vsel %vm2736, %v2737, %v2550
        %v2739 = vand.u32 %v2738, 65535
        %v2740 = vshrl.u32 %v2738, 16
        %v2742 = vmul.u32 %v2739, 14564
        %v2743 = vmul.u32 %v2739, 58254
        %v2744 = vmul.u32 %v2740, 14564
        %v2745 = vmul.u32 %v2740, 58254
        %v2746 = vshll.u32 %v2743, 16
        %v2747 = vshrl.u32 %v2743, 16
        %v2748 = vshll.u32 %v2744, 16
        %v2749 = vshrl.u32 %v2744, 16
        %vm2750 = vc.u32 %v2742, %v2746
        %v2751 = vsel %vm2750, 1, 0
        %v2752 = vadd.s32 %v2742, %v2746
        %v2753 = vadd.s32 %v2745, %v2751
        %vm2754 = vc.u32 %v2752, %v2748
        %v2755 = vsel %vm2754, 1, 0
        %v2756 = vadd.s32 %v2752, %v2748
        %v2757 = vadd.s32 %v2753, %v2755
        %v2758 = vadd.s32 %v2757, %v2747
        %v2759 = vadd.s32 %v2758, %v2749
        %v2760 = vshrl.u32 %v2759, 3
        %v2761 = vmul.u32 %v2760, 9
        %v2762 = vsub.s32 %v2738, %v2761
        %v2763 = vsub.s32 0, %v2762
        %v2764 = vsel %vm2736, %v2763, %v2762
        %vm2765 = vcmp.lt.s32.totalorder %v2551, 0
        %v2766 = vsub.s32 0, %v2551
        %v2767 = vsel %vm2765, %v2766, %v2551
        %v2768 = vand.u32 %v2767, 65535
        %v2769 = vshrl.u32 %v2767, 16
        %v2771 = vmul.u32 %v2768, 14564
        %v2772 = vmul.u32 %v2768, 58254
        %v2773 = vmul.u32 %v2769, 14564
        %v2774 = vmul.u32 %v2769, 58254
        %v2775 = vshll.u32 %v2772, 16
        %v2776 = vshrl.u32 %v2772, 16
        %v2777 = vshll.u32 %v2773, 16
        %v2778 = vshrl.u32 %v2773, 16
        %vm2779 = vc.u32 %v2771, %v2775
        %v2780 = vsel %vm2779, 1, 0
        %v2781 = vadd.s32 %v2771, %v2775
        %v2782 = vadd.s32 %v2774, %v2780
        %vm2783 = vc.u32 %v2781, %v2777
        %v2784 = vsel %vm2783, 1, 0
        %v2785 = vadd.s32 %v2781, %v2777
        %v2786 = vadd.s32 %v2782, %v2784
        %v2787 = vadd.s32 %v2786, %v2776
        %v2788 = vadd.s32 %v2787, %v2778
        %v2789 = vshrl.u32 %v2788, 3
        %v2790 = vmul.u32 %v2789, 9
        %v2791 = vsub.s32 %v2767, %v2790
        %v2792 = vsub.s32 0, %v2791
        %v2793 = vsel %vm2765, %v2792, %v2791
        %vm2794 = vcmp.lt.s32.totalorder %v2552, 0
        %v2795 = vsub.s32 0, %v2552
        %v2796 = vsel %vm2794, %v2795, %v2552
        %v2797 = vand.u32 %v2796, 65535
        %v2798 = vshrl.u32 %v2796, 16
        %v2800 = vmul.u32 %v2797, 14564
        %v2801 = vmul.u32 %v2797, 58254
        %v2802 = vmul.u32 %v2798, 14564
        %v2803 = vmul.u32 %v2798, 58254
        %v2804 = vshll.u32 %v2801, 16
        %v2805 = vshrl.u32 %v2801, 16
        %v2806 = vshll.u32 %v2802, 16
        %v2807 = vshrl.u32 %v2802, 16
        %vm2808 = vc.u32 %v2800, %v2804
        %v2809 = vsel %vm2808, 1, 0
        %v2810 = vadd.s32 %v2800, %v2804
        %v2811 = vadd.s32 %v2803, %v2809
        %vm2812 = vc.u32 %v2810, %v2806
        %v2813 = vsel %vm2812, 1, 0
        %v2814 = vadd.s32 %v2810, %v2806
        %v2815 = vadd.s32 %v2811, %v2813
        %v2816 = vadd.s32 %v2815, %v2805
        %v2817 = vadd.s32 %v2816, %v2807
        %v2818 = vshrl.u32 %v2817, 3
        %v2819 = vmul.u32 %v2818, 9
        %v2820 = vsub.s32 %v2796, %v2819
        %v2821 = vsub.s32 0, %v2820
        %v2822 = vsel %vm2794, %v2821, %v2820
        %vm2823 = vcmp.lt.s32.totalorder %v2553, 0
        %v2824 = vsub.s32 0, %v2553
        %v2825 = vsel %vm2823, %v2824, %v2553
        %v2826 = vand.u32 %v2825, 65535
        %v2827 = vshrl.u32 %v2825, 16
        %v2829 = vmul.u32 %v2826, 14564
        %v2830 = vmul.u32 %v2826, 58254
        %v2831 = vmul.u32 %v2827, 14564
        %v2832 = vmul.u32 %v2827, 58254
        %v2833 = vshll.u32 %v2830, 16
        %v2834 = vshrl.u32 %v2830, 16
        %v2835 = vshll.u32 %v2831, 16
        %v2836 = vshrl.u32 %v2831, 16
        %vm2837 = vc.u32 %v2829, %v2833
        %v2838 = vsel %vm2837, 1, 0
        %v2839 = vadd.s32 %v2829, %v2833
        %v2840 = vadd.s32 %v2832, %v2838
        %vm2841 = vc.u32 %v2839, %v2835
        %v2842 = vsel %vm2841, 1, 0
        %v2843 = vadd.s32 %v2839, %v2835
        %v2844 = vadd.s32 %v2840, %v2842
        %v2845 = vadd.s32 %v2844, %v2834
        %v2846 = vadd.s32 %v2845, %v2836
        %v2847 = vshrl.u32 %v2846, 3
        %v2848 = vmul.u32 %v2847, 9
        %v2849 = vsub.s32 %v2825, %v2848
        %v2850 = vsub.s32 0, %v2849
        %v2851 = vsel %vm2823, %v2850, %v2849
        %vm2852 = vcmp.lt.s32.totalorder %v2554, 0
        %v2853 = vsub.s32 0, %v2554
        %v2854 = vsel %vm2852, %v2853, %v2554
        %v2855 = vand.u32 %v2854, 65535
        %v2856 = vshrl.u32 %v2854, 16
        %v2858 = vmul.u32 %v2855, 14564
        %v2859 = vmul.u32 %v2855, 58254
        %v2860 = vmul.u32 %v2856, 14564
        %v2861 = vmul.u32 %v2856, 58254
        %v2862 = vshll.u32 %v2859, 16
        %v2863 = vshrl.u32 %v2859, 16
        %v2864 = vshll.u32 %v2860, 16
        %v2865 = vshrl.u32 %v2860, 16
        %vm2866 = vc.u32 %v2858, %v2862
        %v2867 = vsel %vm2866, 1, 0
        %v2868 = vadd.s32 %v2858, %v2862
        %v2869 = vadd.s32 %v2861, %v2867
        %vm2870 = vc.u32 %v2868, %v2864
        %v2871 = vsel %vm2870, 1, 0
        %v2872 = vadd.s32 %v2868, %v2864
        %v2873 = vadd.s32 %v2869, %v2871
        %v2874 = vadd.s32 %v2873, %v2863
        %v2875 = vadd.s32 %v2874, %v2865
        %v2876 = vshrl.u32 %v2875, 3
        %v2877 = vmul.u32 %v2876, 9
        %v2878 = vsub.s32 %v2854, %v2877
        %v2879 = vsub.s32 0, %v2878
        %v2880 = vsel %vm2852, %v2879, %v2878
        %vm2881 = vcmp.lt.s32.totalorder %v2555, 0
        %v2882 = vsub.s32 0, %v2555
        %v2883 = vsel %vm2881, %v2882, %v2555
        %v2884 = vand.u32 %v2883, 65535
        %v2885 = vshrl.u32 %v2883, 16
        %v2887 = vmul.u32 %v2884, 14564
        %v2888 = vmul.u32 %v2884, 58254
        %v2889 = vmul.u32 %v2885, 14564
        %v2890 = vmul.u32 %v2885, 58254
        %v2891 = vshll.u32 %v2888, 16
        %v2892 = vshrl.u32 %v2888, 16
        %v2893 = vshll.u32 %v2889, 16
        %v2894 = vshrl.u32 %v2889, 16
        %vm2895 = vc.u32 %v2887, %v2891
        %v2896 = vsel %vm2895, 1, 0
        %v2897 = vadd.s32 %v2887, %v2891
        %v2898 = vadd.s32 %v2890, %v2896
        %vm2899 = vc.u32 %v2897, %v2893
        %v2900 = vsel %vm2899, 1, 0
        %v2901 = vadd.s32 %v2897, %v2893
        %v2902 = vadd.s32 %v2898, %v2900
        %v2903 = vadd.s32 %v2902, %v2892
        %v2904 = vadd.s32 %v2903, %v2894
        %v2905 = vshrl.u32 %v2904, 3
        %v2906 = vmul.u32 %v2905, 9
        %v2907 = vsub.s32 %v2883, %v2906
        %v2908 = vsub.s32 0, %v2907
        %v2909 = vsel %vm2881, %v2908, %v2907
        %vm2910 = vcmp.lt.s32.totalorder %v2556, 0
        %v2911 = vsub.s32 0, %v2556
        %v2912 = vsel %vm2910, %v2911, %v2556
        %v2913 = vand.u32 %v2912, 65535
        %v2914 = vshrl.u32 %v2912, 16
        %v2916 = vmul.u32 %v2913, 14564
        %v2917 = vmul.u32 %v2913, 58254
        %v2918 = vmul.u32 %v2914, 14564
        %v2919 = vmul.u32 %v2914, 58254
        %v2920 = vshll.u32 %v2917, 16
        %v2921 = vshrl.u32 %v2917, 16
        %v2922 = vshll.u32 %v2918, 16
        %v2923 = vshrl.u32 %v2918, 16
        %vm2924 = vc.u32 %v2916, %v2920
        %v2925 = vsel %vm2924, 1, 0
        %v2926 = vadd.s32 %v2916, %v2920
        %v2927 = vadd.s32 %v2919, %v2925
        %vm2928 = vc.u32 %v2926, %v2922
        %v2929 = vsel %vm2928, 1, 0
        %v2930 = vadd.s32 %v2926, %v2922
        %v2931 = vadd.s32 %v2927, %v2929
        %v2932 = vadd.s32 %v2931, %v2921
        %v2933 = vadd.s32 %v2932, %v2923
        %v2934 = vshrl.u32 %v2933, 3
        %v2935 = vmul.u32 %v2934, 9
        %v2936 = vsub.s32 %v2912, %v2935
        %v2937 = vsub.s32 0, %v2936
        %v2938 = vsel %vm2910, %v2937, %v2936
        %vm2939 = vcmp.lt.s32.totalorder %v2557, 0
        %v2940 = vsub.s32 0, %v2557
        %v2941 = vsel %vm2939, %v2940, %v2557
        %v2942 = vand.u32 %v2941, 65535
        %v2943 = vshrl.u32 %v2941, 16
        %v2945 = vmul.u32 %v2942, 14564
        %v2946 = vmul.u32 %v2942, 58254
        %v2947 = vmul.u32 %v2943, 14564
        %v2948 = vmul.u32 %v2943, 58254
        %v2949 = vshll.u32 %v2946, 16
        %v2950 = vshrl.u32 %v2946, 16
        %v2951 = vshll.u32 %v2947, 16
        %v2952 = vshrl.u32 %v2947, 16
        %vm2953 = vc.u32 %v2945, %v2949
        %v2954 = vsel %vm2953, 1, 0
        %v2955 = vadd.s32 %v2945, %v2949
        %v2956 = vadd.s32 %v2948, %v2954
        %vm2957 = vc.u32 %v2955, %v2951
        %v2958 = vsel %vm2957, 1, 0
        %v2959 = vadd.s32 %v2955, %v2951
        %v2960 = vadd.s32 %v2956, %v2958
        %v2961 = vadd.s32 %v2960, %v2950
        %v2962 = vadd.s32 %v2961, %v2952
        %v2963 = vshrl.u32 %v2962, 3
        %v2964 = vmul.u32 %v2963, 9
        %v2965 = vsub.s32 %v2941, %v2964
        %v2966 = vsub.s32 0, %v2965
        %v2967 = vsel %vm2939, %v2966, %v2965
        %vm2968 = vcmp.lt.s32.totalorder %v2558, 0
        %v2969 = vsub.s32 0, %v2558
        %v2970 = vsel %vm2968, %v2969, %v2558
        %v2971 = vand.u32 %v2970, 65535
        %v2972 = vshrl.u32 %v2970, 16
        %v2974 = vmul.u32 %v2971, 14564
        %v2975 = vmul.u32 %v2971, 58254
        %v2976 = vmul.u32 %v2972, 14564
        %v2977 = vmul.u32 %v2972, 58254
        %v2978 = vshll.u32 %v2975, 16
        %v2979 = vshrl.u32 %v2975, 16
        %v2980 = vshll.u32 %v2976, 16
        %v2981 = vshrl.u32 %v2976, 16
        %vm2982 = vc.u32 %v2974, %v2978
        %v2983 = vsel %vm2982, 1, 0
        %v2984 = vadd.s32 %v2974, %v2978
        %v2985 = vadd.s32 %v2977, %v2983
        %vm2986 = vc.u32 %v2984, %v2980
        %v2987 = vsel %vm2986, 1, 0
        %v2988 = vadd.s32 %v2984, %v2980
        %v2989 = vadd.s32 %v2985, %v2987
        %v2990 = vadd.s32 %v2989, %v2979
        %v2991 = vadd.s32 %v2990, %v2981
        %v2992 = vshrl.u32 %v2991, 3
        %v2993 = vmul.u32 %v2992, 9
        %v2994 = vsub.s32 %v2970, %v2993
        %v2995 = vsub.s32 0, %v2994
        %v2996 = vsel %vm2968, %v2995, %v2994
        %vm2997 = vcmp.lt.s32.totalorder %v2559, 0
        %v2998 = vsub.s32 0, %v2559
        %v2999 = vsel %vm2997, %v2998, %v2559
        %v3000 = vand.u32 %v2999, 65535
        %v3001 = vshrl.u32 %v2999, 16
        %v3003 = vmul.u32 %v3000, 14564
        %v3004 = vmul.u32 %v3000, 58254
        %v3005 = vmul.u32 %v3001, 14564
        %v3006 = vmul.u32 %v3001, 58254
        %v3007 = vshll.u32 %v3004, 16
        %v3008 = vshrl.u32 %v3004, 16
        %v3009 = vshll.u32 %v3005, 16
        %v3010 = vshrl.u32 %v3005, 16
        %vm3011 = vc.u32 %v3003, %v3007
        %v3012 = vsel %vm3011, 1, 0
        %v3013 = vadd.s32 %v3003, %v3007
        %v3014 = vadd.s32 %v3006, %v3012
        %vm3015 = vc.u32 %v3013, %v3009
        %v3016 = vsel %vm3015, 1, 0
        %v3017 = vadd.s32 %v3013, %v3009
        %v3018 = vadd.s32 %v3014, %v3016
        %v3019 = vadd.s32 %v3018, %v3008
        %v3020 = vadd.s32 %v3019, %v3010
        %v3021 = vshrl.u32 %v3020, 3
        %v3022 = vmul.u32 %v3021, 9
        %v3023 = vsub.s32 %v2999, %v3022
        %v3024 = vsub.s32 0, %v3023
        %v3025 = vsel %vm2997, %v3024, %v3023
        %vm3026 = vcmp.lt.s32.totalorder %v2560, 0
        %v3027 = vsub.s32 0, %v2560
        %v3028 = vsel %vm3026, %v3027, %v2560
        %v3029 = vand.u32 %v3028, 65535
        %v3030 = vshrl.u32 %v3028, 16
        %v3032 = vmul.u32 %v3029, 14564
        %v3033 = vmul.u32 %v3029, 58254
        %v3034 = vmul.u32 %v3030, 14564
        %v3035 = vmul.u32 %v3030, 58254
        %v3036 = vshll.u32 %v3033, 16
        %v3037 = vshrl.u32 %v3033, 16
        %v3038 = vshll.u32 %v3034, 16
        %v3039 = vshrl.u32 %v3034, 16
        %vm3040 = vc.u32 %v3032, %v3036
        %v3041 = vsel %vm3040, 1, 0
        %v3042 = vadd.s32 %v3032, %v3036
        %v3043 = vadd.s32 %v3035, %v3041
        %vm3044 = vc.u32 %v3042, %v3038
        %v3045 = vsel %vm3044, 1, 0
        %v3046 = vadd.s32 %v3042, %v3038
        %v3047 = vadd.s32 %v3043, %v3045
        %v3048 = vadd.s32 %v3047, %v3037
        %v3049 = vadd.s32 %v3048, %v3039
        %v3050 = vshrl.u32 %v3049, 3
        %v3051 = vmul.u32 %v3050, 9
        %v3052 = vsub.s32 %v3028, %v3051
        %v3053 = vsub.s32 0, %v3052
        %v3054 = vsel %vm3026, %v3053, %v3052
        %vm3055 = vcmp.lt.s32.totalorder %v2561, 0
        %v3056 = vsub.s32 0, %v2561
        %v3057 = vsel %vm3055, %v3056, %v2561
        %v3058 = vand.u32 %v3057, 65535
        %v3059 = vshrl.u32 %v3057, 16
        %v3061 = vmul.u32 %v3058, 14564
        %v3062 = vmul.u32 %v3058, 58254
        %v3063 = vmul.u32 %v3059, 14564
        %v3064 = vmul.u32 %v3059, 58254
        %v3065 = vshll.u32 %v3062, 16
        %v3066 = vshrl.u32 %v3062, 16
        %v3067 = vshll.u32 %v3063, 16
        %v3068 = vshrl.u32 %v3063, 16
        %vm3069 = vc.u32 %v3061, %v3065
        %v3070 = vsel %vm3069, 1, 0
        %v3071 = vadd.s32 %v3061, %v3065
        %v3072 = vadd.s32 %v3064, %v3070
        %vm3073 = vc.u32 %v3071, %v3067
        %v3074 = vsel %vm3073, 1, 0
        %v3075 = vadd.s32 %v3071, %v3067
        %v3076 = vadd.s32 %v3072, %v3074
        %v3077 = vadd.s32 %v3076, %v3066
        %v3078 = vadd.s32 %v3077, %v3068
        %v3079 = vshrl.u32 %v3078, 3
        %v3080 = vmul.u32 %v3079, 9
        %v3081 = vsub.s32 %v3057, %v3080
        %v3082 = vsub.s32 0, %v3081
        %v3083 = vsel %vm3055, %v3082, %v3081
        %vm3084 = vcmp.ne.s32.totalorder %v2590, 0
        %vm3085 = vcmp.ne.s32.totalorder %v2619, 0
        %vm3086 = vcmp.ne.s32.totalorder %v2648, 0
        %vm3087 = vcmp.ne.s32.totalorder %v2677, 0
        %vm3088 = vcmp.ne.s32.totalorder %v2706, 0
        %vm3089 = vcmp.ne.s32.totalorder %v2735, 0
        %vm3090 = vcmp.ne.s32.totalorder %v2764, 0
        %vm3091 = vcmp.ne.s32.totalorder %v2793, 0
        %vm3092 = vcmp.ne.s32.totalorder %v2822, 0
        %vm3093 = vcmp.ne.s32.totalorder %v2851, 0
        %vm3094 = vcmp.ne.s32.totalorder %v2880, 0
        %vm3095 = vcmp.ne.s32.totalorder %v2909, 0
        %vm3096 = vcmp.ne.s32.totalorder %v2938, 0
        %vm3097 = vcmp.ne.s32.totalorder %v2967, 0
        %vm3098 = vcmp.ne.s32.totalorder %v2996, 0
        %vm3099 = vcmp.ne.s32.totalorder %v3025, 0
        %vm3100 = vcmp.ne.s32.totalorder %v3054, 0
        %vm3101 = vcmp.ne.s32.totalorder %v3083, 0
        %vm3102 = vcmp.lt.s32.totalorder %v2590, 0
        %vm3103 = vcmp.lt.s32.totalorder %v2619, 0
        %vm3104 = vcmp.lt.s32.totalorder %v2648, 0
        %vm3105 = vcmp.lt.s32.totalorder %v2677, 0
        %vm3106 = vcmp.lt.s32.totalorder %v2706, 0
        %vm3107 = vcmp.lt.s32.totalorder %v2735, 0
        %vm3108 = vcmp.lt.s32.totalorder %v2764, 0
        %vm3109 = vcmp.lt.s32.totalorder %v2793, 0
        %vm3110 = vcmp.lt.s32.totalorder %v2822, 0
        %vm3111 = vcmp.lt.s32.totalorder %v2851, 0
        %vm3112 = vcmp.lt.s32.totalorder %v2880, 0
        %vm3113 = vcmp.lt.s32.totalorder %v2909, 0
        %vm3114 = vcmp.lt.s32.totalorder %v2938, 0
        %vm3115 = vcmp.lt.s32.totalorder %v2967, 0
        %vm3116 = vcmp.lt.s32.totalorder %v2996, 0
        %vm3117 = vcmp.lt.s32.totalorder %v3025, 0
        %vm3118 = vcmp.lt.s32.totalorder %v3054, 0
        %vm3119 = vcmp.lt.s32.totalorder %v3083, 0
        %vm3120 = vmand %vm3102, %vm3084
        %vm3121 = vmand %vm3103, %vm3085
        %vm3122 = vmand %vm3104, %vm3086
        %vm3123 = vmand %vm3105, %vm3087
        %vm3124 = vmand %vm3106, %vm3088
        %vm3125 = vmand %vm3107, %vm3089
        %vm3126 = vmand %vm3108, %vm3090
        %vm3127 = vmand %vm3109, %vm3091
        %vm3128 = vmand %vm3110, %vm3092
        %vm3129 = vmand %vm3111, %vm3093
        %vm3130 = vmand %vm3112, %vm3094
        %vm3131 = vmand %vm3113, %vm3095
        %vm3132 = vmand %vm3114, %vm3096
        %vm3133 = vmand %vm3115, %vm3097
        %vm3134 = vmand %vm3116, %vm3098
        %vm3135 = vmand %vm3117, %vm3099
        %vm3136 = vmand %vm3118, %vm3100
        %vm3137 = vmand %vm3119, %vm3101
        %v3138 = vadd.s32 %v2590, 9
        %v3139 = vadd.s32 %v2619, 9
        %v3140 = vadd.s32 %v2648, 9
        %v3141 = vadd.s32 %v2677, 9
        %v3142 = vadd.s32 %v2706, 9
        %v3143 = vadd.s32 %v2735, 9
        %v3144 = vadd.s32 %v2764, 9
        %v3145 = vadd.s32 %v2793, 9
        %v3146 = vadd.s32 %v2822, 9
        %v3147 = vadd.s32 %v2851, 9
        %v3148 = vadd.s32 %v2880, 9
        %v3149 = vadd.s32 %v2909, 9
        %v3150 = vadd.s32 %v2938, 9
        %v3151 = vadd.s32 %v2967, 9
        %v3152 = vadd.s32 %v2996, 9
        %v3153 = vadd.s32 %v3025, 9
        %v3154 = vadd.s32 %v3054, 9
        %v3155 = vadd.s32 %v3083, 9
        %v3156 = vsel %vm3120, %v3138, %v2590
        %v3157 = vsel %vm3121, %v3139, %v2619
        %v3158 = vsel %vm3122, %v3140, %v2648
        %v3159 = vsel %vm3123, %v3141, %v2677
        %v3160 = vsel %vm3124, %v3142, %v2706
        %v3161 = vsel %vm3125, %v3143, %v2735
        %v3162 = vsel %vm3126, %v3144, %v2764
        %v3163 = vsel %vm3127, %v3145, %v2793
        %v3164 = vsel %vm3128, %v3146, %v2822
        %v3165 = vsel %vm3129, %v3147, %v2851
        %v3166 = vsel %vm3130, %v3148, %v2880
        %v3167 = vsel %vm3131, %v3149, %v2909
        %v3168 = vsel %vm3132, %v3150, %v2938
        %v3169 = vsel %vm3133, %v3151, %v2967
        %v3170 = vsel %vm3134, %v3152, %v2996
        %v3171 = vsel %vm3135, %v3153, %v3025
        %v3172 = vsel %vm3136, %v3154, %v3054
        %v3173 = vsel %vm3137, %v3155, %v3083
        %v3174 = vadd.s32 %v2526, 9
        %v3175 = vadd.s32 %v2527, 9
        %v3176 = vadd.s32 %v2528, 9
        %v3177 = vadd.s32 %v2529, 9
        %v3178 = vadd.s32 %v2530, 9
        %v3179 = vadd.s32 %v2531, 9
        %v3180 = vadd.s32 %v2532, 9
        %v3181 = vadd.s32 %v2533, 9
        %v3182 = vadd.s32 %v2534, 9
        %v3183 = vadd.s32 %v2535, 9
        %v3184 = vadd.s32 %v2536, 9
        %v3185 = vadd.s32 %v2537, 9
        %v3186 = vadd.s32 %v2538, 9
        %v3187 = vadd.s32 %v2539, 9
        %v3188 = vadd.s32 %v2540, 9
        %v3189 = vadd.s32 %v2541, 9
        %v3190 = vadd.s32 %v2542, 9
        %v3191 = vadd.s32 %v2543, 9
        %vm3192 = vcmp.lt.s32.totalorder %v3174, 0
        %v3193 = vsub.s32 0, %v3174
        %v3194 = vsel %vm3192, %v3193, %v3174
        %v3195 = vand.u32 %v3194, 65535
        %v3196 = vshrl.u32 %v3194, 16
        %v3198 = vmul.u32 %v3195, 14564
        %v3199 = vmul.u32 %v3195, 58254
        %v3200 = vmul.u32 %v3196, 14564
        %v3201 = vmul.u32 %v3196, 58254
        %v3202 = vshll.u32 %v3199, 16
        %v3203 = vshrl.u32 %v3199, 16
        %v3204 = vshll.u32 %v3200, 16
        %v3205 = vshrl.u32 %v3200, 16
        %vm3206 = vc.u32 %v3198, %v3202
        %v3207 = vsel %vm3206, 1, 0
        %v3208 = vadd.s32 %v3198, %v3202
        %v3209 = vadd.s32 %v3201, %v3207
        %vm3210 = vc.u32 %v3208, %v3204
        %v3211 = vsel %vm3210, 1, 0
        %v3212 = vadd.s32 %v3208, %v3204
        %v3213 = vadd.s32 %v3209, %v3211
        %v3214 = vadd.s32 %v3213, %v3203
        %v3215 = vadd.s32 %v3214, %v3205
        %v3216 = vshrl.u32 %v3215, 3
        %v3217 = vmul.u32 %v3216, 9
        %v3218 = vsub.s32 %v3194, %v3217
        %v3219 = vsub.s32 0, %v3218
        %v3220 = vsel %vm3192, %v3219, %v3218
        %vm3221 = vcmp.lt.s32.totalorder %v3175, 0
        %v3222 = vsub.s32 0, %v3175
        %v3223 = vsel %vm3221, %v3222, %v3175
        %v3224 = vand.u32 %v3223, 65535
        %v3225 = vshrl.u32 %v3223, 16
        %v3227 = vmul.u32 %v3224, 14564
        %v3228 = vmul.u32 %v3224, 58254
        %v3229 = vmul.u32 %v3225, 14564
        %v3230 = vmul.u32 %v3225, 58254
        %v3231 = vshll.u32 %v3228, 16
        %v3232 = vshrl.u32 %v3228, 16
        %v3233 = vshll.u32 %v3229, 16
        %v3234 = vshrl.u32 %v3229, 16
        %vm3235 = vc.u32 %v3227, %v3231
        %v3236 = vsel %vm3235, 1, 0
        %v3237 = vadd.s32 %v3227, %v3231
        %v3238 = vadd.s32 %v3230, %v3236
        %vm3239 = vc.u32 %v3237, %v3233
        %v3240 = vsel %vm3239, 1, 0
        %v3241 = vadd.s32 %v3237, %v3233
        %v3242 = vadd.s32 %v3238, %v3240
        %v3243 = vadd.s32 %v3242, %v3232
        %v3244 = vadd.s32 %v3243, %v3234
        %v3245 = vshrl.u32 %v3244, 3
        %v3246 = vmul.u32 %v3245, 9
        %v3247 = vsub.s32 %v3223, %v3246
        %v3248 = vsub.s32 0, %v3247
        %v3249 = vsel %vm3221, %v3248, %v3247
        %vm3250 = vcmp.lt.s32.totalorder %v3176, 0
        %v3251 = vsub.s32 0, %v3176
        %v3252 = vsel %vm3250, %v3251, %v3176
        %v3253 = vand.u32 %v3252, 65535
        %v3254 = vshrl.u32 %v3252, 16
        %v3256 = vmul.u32 %v3253, 14564
        %v3257 = vmul.u32 %v3253, 58254
        %v3258 = vmul.u32 %v3254, 14564
        %v3259 = vmul.u32 %v3254, 58254
        %v3260 = vshll.u32 %v3257, 16
        %v3261 = vshrl.u32 %v3257, 16
        %v3262 = vshll.u32 %v3258, 16
        %v3263 = vshrl.u32 %v3258, 16
        %vm3264 = vc.u32 %v3256, %v3260
        %v3265 = vsel %vm3264, 1, 0
        %v3266 = vadd.s32 %v3256, %v3260
        %v3267 = vadd.s32 %v3259, %v3265
        %vm3268 = vc.u32 %v3266, %v3262
        %v3269 = vsel %vm3268, 1, 0
        %v3270 = vadd.s32 %v3266, %v3262
        %v3271 = vadd.s32 %v3267, %v3269
        %v3272 = vadd.s32 %v3271, %v3261
        %v3273 = vadd.s32 %v3272, %v3263
        %v3274 = vshrl.u32 %v3273, 3
        %v3275 = vmul.u32 %v3274, 9
        %v3276 = vsub.s32 %v3252, %v3275
        %v3277 = vsub.s32 0, %v3276
        %v3278 = vsel %vm3250, %v3277, %v3276
        %vm3279 = vcmp.lt.s32.totalorder %v3177, 0
        %v3280 = vsub.s32 0, %v3177
        %v3281 = vsel %vm3279, %v3280, %v3177
        %v3282 = vand.u32 %v3281, 65535
        %v3283 = vshrl.u32 %v3281, 16
        %v3285 = vmul.u32 %v3282, 14564
        %v3286 = vmul.u32 %v3282, 58254
        %v3287 = vmul.u32 %v3283, 14564
        %v3288 = vmul.u32 %v3283, 58254
        %v3289 = vshll.u32 %v3286, 16
        %v3290 = vshrl.u32 %v3286, 16
        %v3291 = vshll.u32 %v3287, 16
        %v3292 = vshrl.u32 %v3287, 16
        %vm3293 = vc.u32 %v3285, %v3289
        %v3294 = vsel %vm3293, 1, 0
        %v3295 = vadd.s32 %v3285, %v3289
        %v3296 = vadd.s32 %v3288, %v3294
        %vm3297 = vc.u32 %v3295, %v3291
        %v3298 = vsel %vm3297, 1, 0
        %v3299 = vadd.s32 %v3295, %v3291
        %v3300 = vadd.s32 %v3296, %v3298
        %v3301 = vadd.s32 %v3300, %v3290
        %v3302 = vadd.s32 %v3301, %v3292
        %v3303 = vshrl.u32 %v3302, 3
        %v3304 = vmul.u32 %v3303, 9
        %v3305 = vsub.s32 %v3281, %v3304
        %v3306 = vsub.s32 0, %v3305
        %v3307 = vsel %vm3279, %v3306, %v3305
        %vm3308 = vcmp.lt.s32.totalorder %v3178, 0
        %v3309 = vsub.s32 0, %v3178
        %v3310 = vsel %vm3308, %v3309, %v3178
        %v3311 = vand.u32 %v3310, 65535
        %v3312 = vshrl.u32 %v3310, 16
        %v3314 = vmul.u32 %v3311, 14564
        %v3315 = vmul.u32 %v3311, 58254
        %v3316 = vmul.u32 %v3312, 14564
        %v3317 = vmul.u32 %v3312, 58254
        %v3318 = vshll.u32 %v3315, 16
        %v3319 = vshrl.u32 %v3315, 16
        %v3320 = vshll.u32 %v3316, 16
        %v3321 = vshrl.u32 %v3316, 16
        %vm3322 = vc.u32 %v3314, %v3318
        %v3323 = vsel %vm3322, 1, 0
        %v3324 = vadd.s32 %v3314, %v3318
        %v3325 = vadd.s32 %v3317, %v3323
        %vm3326 = vc.u32 %v3324, %v3320
        %v3327 = vsel %vm3326, 1, 0
        %v3328 = vadd.s32 %v3324, %v3320
        %v3329 = vadd.s32 %v3325, %v3327
        %v3330 = vadd.s32 %v3329, %v3319
        %v3331 = vadd.s32 %v3330, %v3321
        %v3332 = vshrl.u32 %v3331, 3
        %v3333 = vmul.u32 %v3332, 9
        %v3334 = vsub.s32 %v3310, %v3333
        %v3335 = vsub.s32 0, %v3334
        %v3336 = vsel %vm3308, %v3335, %v3334
        %vm3337 = vcmp.lt.s32.totalorder %v3179, 0
        %v3338 = vsub.s32 0, %v3179
        %v3339 = vsel %vm3337, %v3338, %v3179
        %v3340 = vand.u32 %v3339, 65535
        %v3341 = vshrl.u32 %v3339, 16
        %v3343 = vmul.u32 %v3340, 14564
        %v3344 = vmul.u32 %v3340, 58254
        %v3345 = vmul.u32 %v3341, 14564
        %v3346 = vmul.u32 %v3341, 58254
        %v3347 = vshll.u32 %v3344, 16
        %v3348 = vshrl.u32 %v3344, 16
        %v3349 = vshll.u32 %v3345, 16
        %v3350 = vshrl.u32 %v3345, 16
        %vm3351 = vc.u32 %v3343, %v3347
        %v3352 = vsel %vm3351, 1, 0
        %v3353 = vadd.s32 %v3343, %v3347
        %v3354 = vadd.s32 %v3346, %v3352
        %vm3355 = vc.u32 %v3353, %v3349
        %v3356 = vsel %vm3355, 1, 0
        %v3357 = vadd.s32 %v3353, %v3349
        %v3358 = vadd.s32 %v3354, %v3356
        %v3359 = vadd.s32 %v3358, %v3348
        %v3360 = vadd.s32 %v3359, %v3350
        %v3361 = vshrl.u32 %v3360, 3
        %v3362 = vmul.u32 %v3361, 9
        %v3363 = vsub.s32 %v3339, %v3362
        %v3364 = vsub.s32 0, %v3363
        %v3365 = vsel %vm3337, %v3364, %v3363
        %vm3366 = vcmp.lt.s32.totalorder %v3180, 0
        %v3367 = vsub.s32 0, %v3180
        %v3368 = vsel %vm3366, %v3367, %v3180
        %v3369 = vand.u32 %v3368, 65535
        %v3370 = vshrl.u32 %v3368, 16
        %v3372 = vmul.u32 %v3369, 14564
        %v3373 = vmul.u32 %v3369, 58254
        %v3374 = vmul.u32 %v3370, 14564
        %v3375 = vmul.u32 %v3370, 58254
        %v3376 = vshll.u32 %v3373, 16
        %v3377 = vshrl.u32 %v3373, 16
        %v3378 = vshll.u32 %v3374, 16
        %v3379 = vshrl.u32 %v3374, 16
        %vm3380 = vc.u32 %v3372, %v3376
        %v3381 = vsel %vm3380, 1, 0
        %v3382 = vadd.s32 %v3372, %v3376
        %v3383 = vadd.s32 %v3375, %v3381
        %vm3384 = vc.u32 %v3382, %v3378
        %v3385 = vsel %vm3384, 1, 0
        %v3386 = vadd.s32 %v3382, %v3378
        %v3387 = vadd.s32 %v3383, %v3385
        %v3388 = vadd.s32 %v3387, %v3377
        %v3389 = vadd.s32 %v3388, %v3379
        %v3390 = vshrl.u32 %v3389, 3
        %v3391 = vmul.u32 %v3390, 9
        %v3392 = vsub.s32 %v3368, %v3391
        %v3393 = vsub.s32 0, %v3392
        %v3394 = vsel %vm3366, %v3393, %v3392
        %vm3395 = vcmp.lt.s32.totalorder %v3181, 0
        %v3396 = vsub.s32 0, %v3181
        %v3397 = vsel %vm3395, %v3396, %v3181
        %v3398 = vand.u32 %v3397, 65535
        %v3399 = vshrl.u32 %v3397, 16
        %v3401 = vmul.u32 %v3398, 14564
        %v3402 = vmul.u32 %v3398, 58254
        %v3403 = vmul.u32 %v3399, 14564
        %v3404 = vmul.u32 %v3399, 58254
        %v3405 = vshll.u32 %v3402, 16
        %v3406 = vshrl.u32 %v3402, 16
        %v3407 = vshll.u32 %v3403, 16
        %v3408 = vshrl.u32 %v3403, 16
        %vm3409 = vc.u32 %v3401, %v3405
        %v3410 = vsel %vm3409, 1, 0
        %v3411 = vadd.s32 %v3401, %v3405
        %v3412 = vadd.s32 %v3404, %v3410
        %vm3413 = vc.u32 %v3411, %v3407
        %v3414 = vsel %vm3413, 1, 0
        %v3415 = vadd.s32 %v3411, %v3407
        %v3416 = vadd.s32 %v3412, %v3414
        %v3417 = vadd.s32 %v3416, %v3406
        %v3418 = vadd.s32 %v3417, %v3408
        %v3419 = vshrl.u32 %v3418, 3
        %v3420 = vmul.u32 %v3419, 9
        %v3421 = vsub.s32 %v3397, %v3420
        %v3422 = vsub.s32 0, %v3421
        %v3423 = vsel %vm3395, %v3422, %v3421
        %vm3424 = vcmp.lt.s32.totalorder %v3182, 0
        %v3425 = vsub.s32 0, %v3182
        %v3426 = vsel %vm3424, %v3425, %v3182
        %v3427 = vand.u32 %v3426, 65535
        %v3428 = vshrl.u32 %v3426, 16
        %v3430 = vmul.u32 %v3427, 14564
        %v3431 = vmul.u32 %v3427, 58254
        %v3432 = vmul.u32 %v3428, 14564
        %v3433 = vmul.u32 %v3428, 58254
        %v3434 = vshll.u32 %v3431, 16
        %v3435 = vshrl.u32 %v3431, 16
        %v3436 = vshll.u32 %v3432, 16
        %v3437 = vshrl.u32 %v3432, 16
        %vm3438 = vc.u32 %v3430, %v3434
        %v3439 = vsel %vm3438, 1, 0
        %v3440 = vadd.s32 %v3430, %v3434
        %v3441 = vadd.s32 %v3433, %v3439
        %vm3442 = vc.u32 %v3440, %v3436
        %v3443 = vsel %vm3442, 1, 0
        %v3444 = vadd.s32 %v3440, %v3436
        %v3445 = vadd.s32 %v3441, %v3443
        %v3446 = vadd.s32 %v3445, %v3435
        %v3447 = vadd.s32 %v3446, %v3437
        %v3448 = vshrl.u32 %v3447, 3
        %v3449 = vmul.u32 %v3448, 9
        %v3450 = vsub.s32 %v3426, %v3449
        %v3451 = vsub.s32 0, %v3450
        %v3452 = vsel %vm3424, %v3451, %v3450
        %vm3453 = vcmp.lt.s32.totalorder %v3183, 0
        %v3454 = vsub.s32 0, %v3183
        %v3455 = vsel %vm3453, %v3454, %v3183
        %v3456 = vand.u32 %v3455, 65535
        %v3457 = vshrl.u32 %v3455, 16
        %v3459 = vmul.u32 %v3456, 14564
        %v3460 = vmul.u32 %v3456, 58254
        %v3461 = vmul.u32 %v3457, 14564
        %v3462 = vmul.u32 %v3457, 58254
        %v3463 = vshll.u32 %v3460, 16
        %v3464 = vshrl.u32 %v3460, 16
        %v3465 = vshll.u32 %v3461, 16
        %v3466 = vshrl.u32 %v3461, 16
        %vm3467 = vc.u32 %v3459, %v3463
        %v3468 = vsel %vm3467, 1, 0
        %v3469 = vadd.s32 %v3459, %v3463
        %v3470 = vadd.s32 %v3462, %v3468
        %vm3471 = vc.u32 %v3469, %v3465
        %v3472 = vsel %vm3471, 1, 0
        %v3473 = vadd.s32 %v3469, %v3465
        %v3474 = vadd.s32 %v3470, %v3472
        %v3475 = vadd.s32 %v3474, %v3464
        %v3476 = vadd.s32 %v3475, %v3466
        %v3477 = vshrl.u32 %v3476, 3
        %v3478 = vmul.u32 %v3477, 9
        %v3479 = vsub.s32 %v3455, %v3478
        %v3480 = vsub.s32 0, %v3479
        %v3481 = vsel %vm3453, %v3480, %v3479
        %vm3482 = vcmp.lt.s32.totalorder %v3184, 0
        %v3483 = vsub.s32 0, %v3184
        %v3484 = vsel %vm3482, %v3483, %v3184
        %v3485 = vand.u32 %v3484, 65535
        %v3486 = vshrl.u32 %v3484, 16
        %v3488 = vmul.u32 %v3485, 14564
        %v3489 = vmul.u32 %v3485, 58254
        %v3490 = vmul.u32 %v3486, 14564
        %v3491 = vmul.u32 %v3486, 58254
        %v3492 = vshll.u32 %v3489, 16
        %v3493 = vshrl.u32 %v3489, 16
        %v3494 = vshll.u32 %v3490, 16
        %v3495 = vshrl.u32 %v3490, 16
        %vm3496 = vc.u32 %v3488, %v3492
        %v3497 = vsel %vm3496, 1, 0
        %v3498 = vadd.s32 %v3488, %v3492
        %v3499 = vadd.s32 %v3491, %v3497
        %vm3500 = vc.u32 %v3498, %v3494
        %v3501 = vsel %vm3500, 1, 0
        %v3502 = vadd.s32 %v3498, %v3494
        %v3503 = vadd.s32 %v3499, %v3501
        %v3504 = vadd.s32 %v3503, %v3493
        %v3505 = vadd.s32 %v3504, %v3495
        %v3506 = vshrl.u32 %v3505, 3
        %v3507 = vmul.u32 %v3506, 9
        %v3508 = vsub.s32 %v3484, %v3507
        %v3509 = vsub.s32 0, %v3508
        %v3510 = vsel %vm3482, %v3509, %v3508
        %vm3511 = vcmp.lt.s32.totalorder %v3185, 0
        %v3512 = vsub.s32 0, %v3185
        %v3513 = vsel %vm3511, %v3512, %v3185
        %v3514 = vand.u32 %v3513, 65535
        %v3515 = vshrl.u32 %v3513, 16
        %v3517 = vmul.u32 %v3514, 14564
        %v3518 = vmul.u32 %v3514, 58254
        %v3519 = vmul.u32 %v3515, 14564
        %v3520 = vmul.u32 %v3515, 58254
        %v3521 = vshll.u32 %v3518, 16
        %v3522 = vshrl.u32 %v3518, 16
        %v3523 = vshll.u32 %v3519, 16
        %v3524 = vshrl.u32 %v3519, 16
        %vm3525 = vc.u32 %v3517, %v3521
        %v3526 = vsel %vm3525, 1, 0
        %v3527 = vadd.s32 %v3517, %v3521
        %v3528 = vadd.s32 %v3520, %v3526
        %vm3529 = vc.u32 %v3527, %v3523
        %v3530 = vsel %vm3529, 1, 0
        %v3531 = vadd.s32 %v3527, %v3523
        %v3532 = vadd.s32 %v3528, %v3530
        %v3533 = vadd.s32 %v3532, %v3522
        %v3534 = vadd.s32 %v3533, %v3524
        %v3535 = vshrl.u32 %v3534, 3
        %v3536 = vmul.u32 %v3535, 9
        %v3537 = vsub.s32 %v3513, %v3536
        %v3538 = vsub.s32 0, %v3537
        %v3539 = vsel %vm3511, %v3538, %v3537
        %vm3540 = vcmp.lt.s32.totalorder %v3186, 0
        %v3541 = vsub.s32 0, %v3186
        %v3542 = vsel %vm3540, %v3541, %v3186
        %v3543 = vand.u32 %v3542, 65535
        %v3544 = vshrl.u32 %v3542, 16
        %v3546 = vmul.u32 %v3543, 14564
        %v3547 = vmul.u32 %v3543, 58254
        %v3548 = vmul.u32 %v3544, 14564
        %v3549 = vmul.u32 %v3544, 58254
        %v3550 = vshll.u32 %v3547, 16
        %v3551 = vshrl.u32 %v3547, 16
        %v3552 = vshll.u32 %v3548, 16
        %v3553 = vshrl.u32 %v3548, 16
        %vm3554 = vc.u32 %v3546, %v3550
        %v3555 = vsel %vm3554, 1, 0
        %v3556 = vadd.s32 %v3546, %v3550
        %v3557 = vadd.s32 %v3549, %v3555
        %vm3558 = vc.u32 %v3556, %v3552
        %v3559 = vsel %vm3558, 1, 0
        %v3560 = vadd.s32 %v3556, %v3552
        %v3561 = vadd.s32 %v3557, %v3559
        %v3562 = vadd.s32 %v3561, %v3551
        %v3563 = vadd.s32 %v3562, %v3553
        %v3564 = vshrl.u32 %v3563, 3
        %v3565 = vmul.u32 %v3564, 9
        %v3566 = vsub.s32 %v3542, %v3565
        %v3567 = vsub.s32 0, %v3566
        %v3568 = vsel %vm3540, %v3567, %v3566
        %vm3569 = vcmp.lt.s32.totalorder %v3187, 0
        %v3570 = vsub.s32 0, %v3187
        %v3571 = vsel %vm3569, %v3570, %v3187
        %v3572 = vand.u32 %v3571, 65535
        %v3573 = vshrl.u32 %v3571, 16
        %v3575 = vmul.u32 %v3572, 14564
        %v3576 = vmul.u32 %v3572, 58254
        %v3577 = vmul.u32 %v3573, 14564
        %v3578 = vmul.u32 %v3573, 58254
        %v3579 = vshll.u32 %v3576, 16
        %v3580 = vshrl.u32 %v3576, 16
        %v3581 = vshll.u32 %v3577, 16
        %v3582 = vshrl.u32 %v3577, 16
        %vm3583 = vc.u32 %v3575, %v3579
        %v3584 = vsel %vm3583, 1, 0
        %v3585 = vadd.s32 %v3575, %v3579
        %v3586 = vadd.s32 %v3578, %v3584
        %vm3587 = vc.u32 %v3585, %v3581
        %v3588 = vsel %vm3587, 1, 0
        %v3589 = vadd.s32 %v3585, %v3581
        %v3590 = vadd.s32 %v3586, %v3588
        %v3591 = vadd.s32 %v3590, %v3580
        %v3592 = vadd.s32 %v3591, %v3582
        %v3593 = vshrl.u32 %v3592, 3
        %v3594 = vmul.u32 %v3593, 9
        %v3595 = vsub.s32 %v3571, %v3594
        %v3596 = vsub.s32 0, %v3595
        %v3597 = vsel %vm3569, %v3596, %v3595
        %vm3598 = vcmp.lt.s32.totalorder %v3188, 0
        %v3599 = vsub.s32 0, %v3188
        %v3600 = vsel %vm3598, %v3599, %v3188
        %v3601 = vand.u32 %v3600, 65535
        %v3602 = vshrl.u32 %v3600, 16
        %v3604 = vmul.u32 %v3601, 14564
        %v3605 = vmul.u32 %v3601, 58254
        %v3606 = vmul.u32 %v3602, 14564
        %v3607 = vmul.u32 %v3602, 58254
        %v3608 = vshll.u32 %v3605, 16
        %v3609 = vshrl.u32 %v3605, 16
        %v3610 = vshll.u32 %v3606, 16
        %v3611 = vshrl.u32 %v3606, 16
        %vm3612 = vc.u32 %v3604, %v3608
        %v3613 = vsel %vm3612, 1, 0
        %v3614 = vadd.s32 %v3604, %v3608
        %v3615 = vadd.s32 %v3607, %v3613
        %vm3616 = vc.u32 %v3614, %v3610
        %v3617 = vsel %vm3616, 1, 0
        %v3618 = vadd.s32 %v3614, %v3610
        %v3619 = vadd.s32 %v3615, %v3617
        %v3620 = vadd.s32 %v3619, %v3609
        %v3621 = vadd.s32 %v3620, %v3611
        %v3622 = vshrl.u32 %v3621, 3
        %v3623 = vmul.u32 %v3622, 9
        %v3624 = vsub.s32 %v3600, %v3623
        %v3625 = vsub.s32 0, %v3624
        %v3626 = vsel %vm3598, %v3625, %v3624
        %vm3627 = vcmp.lt.s32.totalorder %v3189, 0
        %v3628 = vsub.s32 0, %v3189
        %v3629 = vsel %vm3627, %v3628, %v3189
        %v3630 = vand.u32 %v3629, 65535
        %v3631 = vshrl.u32 %v3629, 16
        %v3633 = vmul.u32 %v3630, 14564
        %v3634 = vmul.u32 %v3630, 58254
        %v3635 = vmul.u32 %v3631, 14564
        %v3636 = vmul.u32 %v3631, 58254
        %v3637 = vshll.u32 %v3634, 16
        %v3638 = vshrl.u32 %v3634, 16
        %v3639 = vshll.u32 %v3635, 16
        %v3640 = vshrl.u32 %v3635, 16
        %vm3641 = vc.u32 %v3633, %v3637
        %v3642 = vsel %vm3641, 1, 0
        %v3643 = vadd.s32 %v3633, %v3637
        %v3644 = vadd.s32 %v3636, %v3642
        %vm3645 = vc.u32 %v3643, %v3639
        %v3646 = vsel %vm3645, 1, 0
        %v3647 = vadd.s32 %v3643, %v3639
        %v3648 = vadd.s32 %v3644, %v3646
        %v3649 = vadd.s32 %v3648, %v3638
        %v3650 = vadd.s32 %v3649, %v3640
        %v3651 = vshrl.u32 %v3650, 3
        %v3652 = vmul.u32 %v3651, 9
        %v3653 = vsub.s32 %v3629, %v3652
        %v3654 = vsub.s32 0, %v3653
        %v3655 = vsel %vm3627, %v3654, %v3653
        %vm3656 = vcmp.lt.s32.totalorder %v3190, 0
        %v3657 = vsub.s32 0, %v3190
        %v3658 = vsel %vm3656, %v3657, %v3190
        %v3659 = vand.u32 %v3658, 65535
        %v3660 = vshrl.u32 %v3658, 16
        %v3662 = vmul.u32 %v3659, 14564
        %v3663 = vmul.u32 %v3659, 58254
        %v3664 = vmul.u32 %v3660, 14564
        %v3665 = vmul.u32 %v3660, 58254
        %v3666 = vshll.u32 %v3663, 16
        %v3667 = vshrl.u32 %v3663, 16
        %v3668 = vshll.u32 %v3664, 16
        %v3669 = vshrl.u32 %v3664, 16
        %vm3670 = vc.u32 %v3662, %v3666
        %v3671 = vsel %vm3670, 1, 0
        %v3672 = vadd.s32 %v3662, %v3666
        %v3673 = vadd.s32 %v3665, %v3671
        %vm3674 = vc.u32 %v3672, %v3668
        %v3675 = vsel %vm3674, 1, 0
        %v3676 = vadd.s32 %v3672, %v3668
        %v3677 = vadd.s32 %v3673, %v3675
        %v3678 = vadd.s32 %v3677, %v3667
        %v3679 = vadd.s32 %v3678, %v3669
        %v3680 = vshrl.u32 %v3679, 3
        %v3681 = vmul.u32 %v3680, 9
        %v3682 = vsub.s32 %v3658, %v3681
        %v3683 = vsub.s32 0, %v3682
        %v3684 = vsel %vm3656, %v3683, %v3682
        %vm3685 = vcmp.lt.s32.totalorder %v3191, 0
        %v3686 = vsub.s32 0, %v3191
        %v3687 = vsel %vm3685, %v3686, %v3191
        %v3688 = vand.u32 %v3687, 65535
        %v3689 = vshrl.u32 %v3687, 16
        %v3691 = vmul.u32 %v3688, 14564
        %v3692 = vmul.u32 %v3688, 58254
        %v3693 = vmul.u32 %v3689, 14564
        %v3694 = vmul.u32 %v3689, 58254
        %v3695 = vshll.u32 %v3692, 16
        %v3696 = vshrl.u32 %v3692, 16
        %v3697 = vshll.u32 %v3693, 16
        %v3698 = vshrl.u32 %v3693, 16
        %vm3699 = vc.u32 %v3691, %v3695
        %v3700 = vsel %vm3699, 1, 0
        %v3701 = vadd.s32 %v3691, %v3695
        %v3702 = vadd.s32 %v3694, %v3700
        %vm3703 = vc.u32 %v3701, %v3697
        %v3704 = vsel %vm3703, 1, 0
        %v3705 = vadd.s32 %v3701, %v3697
        %v3706 = vadd.s32 %v3702, %v3704
        %v3707 = vadd.s32 %v3706, %v3696
        %v3708 = vadd.s32 %v3707, %v3698
        %v3709 = vshrl.u32 %v3708, 3
        %v3710 = vmul.u32 %v3709, 9
        %v3711 = vsub.s32 %v3687, %v3710
        %v3712 = vsub.s32 0, %v3711
        %v3713 = vsel %vm3685, %v3712, %v3711
        %vm3714 = vcmp.ne.s32.totalorder %v3220, 0
        %vm3715 = vcmp.ne.s32.totalorder %v3249, 0
        %vm3716 = vcmp.ne.s32.totalorder %v3278, 0
        %vm3717 = vcmp.ne.s32.totalorder %v3307, 0
        %vm3718 = vcmp.ne.s32.totalorder %v3336, 0
        %vm3719 = vcmp.ne.s32.totalorder %v3365, 0
        %vm3720 = vcmp.ne.s32.totalorder %v3394, 0
        %vm3721 = vcmp.ne.s32.totalorder %v3423, 0
        %vm3722 = vcmp.ne.s32.totalorder %v3452, 0
        %vm3723 = vcmp.ne.s32.totalorder %v3481, 0
        %vm3724 = vcmp.ne.s32.totalorder %v3510, 0
        %vm3725 = vcmp.ne.s32.totalorder %v3539, 0
        %vm3726 = vcmp.ne.s32.totalorder %v3568, 0
        %vm3727 = vcmp.ne.s32.totalorder %v3597, 0
        %vm3728 = vcmp.ne.s32.totalorder %v3626, 0
        %vm3729 = vcmp.ne.s32.totalorder %v3655, 0
        %vm3730 = vcmp.ne.s32.totalorder %v3684, 0
        %vm3731 = vcmp.ne.s32.totalorder %v3713, 0
        %vm3732 = vcmp.lt.s32.totalorder %v3220, 0
        %vm3733 = vcmp.lt.s32.totalorder %v3249, 0
        %vm3734 = vcmp.lt.s32.totalorder %v3278, 0
        %vm3735 = vcmp.lt.s32.totalorder %v3307, 0
        %vm3736 = vcmp.lt.s32.totalorder %v3336, 0
        %vm3737 = vcmp.lt.s32.totalorder %v3365, 0
        %vm3738 = vcmp.lt.s32.totalorder %v3394, 0
        %vm3739 = vcmp.lt.s32.totalorder %v3423, 0
        %vm3740 = vcmp.lt.s32.totalorder %v3452, 0
        %vm3741 = vcmp.lt.s32.totalorder %v3481, 0
        %vm3742 = vcmp.lt.s32.totalorder %v3510, 0
        %vm3743 = vcmp.lt.s32.totalorder %v3539, 0
        %vm3744 = vcmp.lt.s32.totalorder %v3568, 0
        %vm3745 = vcmp.lt.s32.totalorder %v3597, 0
        %vm3746 = vcmp.lt.s32.totalorder %v3626, 0
        %vm3747 = vcmp.lt.s32.totalorder %v3655, 0
        %vm3748 = vcmp.lt.s32.totalorder %v3684, 0
        %vm3749 = vcmp.lt.s32.totalorder %v3713, 0
        %vm3750 = vmand %vm3732, %vm3714
        %vm3751 = vmand %vm3733, %vm3715
        %vm3752 = vmand %vm3734, %vm3716
        %vm3753 = vmand %vm3735, %vm3717
        %vm3754 = vmand %vm3736, %vm3718
        %vm3755 = vmand %vm3737, %vm3719
        %vm3756 = vmand %vm3738, %vm3720
        %vm3757 = vmand %vm3739, %vm3721
        %vm3758 = vmand %vm3740, %vm3722
        %vm3759 = vmand %vm3741, %vm3723
        %vm3760 = vmand %vm3742, %vm3724
        %vm3761 = vmand %vm3743, %vm3725
        %vm3762 = vmand %vm3744, %vm3726
        %vm3763 = vmand %vm3745, %vm3727
        %vm3764 = vmand %vm3746, %vm3728
        %vm3765 = vmand %vm3747, %vm3729
        %vm3766 = vmand %vm3748, %vm3730
        %vm3767 = vmand %vm3749, %vm3731
        %v3768 = vadd.s32 %v3220, 9
        %v3769 = vadd.s32 %v3249, 9
        %v3770 = vadd.s32 %v3278, 9
        %v3771 = vadd.s32 %v3307, 9
        %v3772 = vadd.s32 %v3336, 9
        %v3773 = vadd.s32 %v3365, 9
        %v3774 = vadd.s32 %v3394, 9
        %v3775 = vadd.s32 %v3423, 9
        %v3776 = vadd.s32 %v3452, 9
        %v3777 = vadd.s32 %v3481, 9
        %v3778 = vadd.s32 %v3510, 9
        %v3779 = vadd.s32 %v3539, 9
        %v3780 = vadd.s32 %v3568, 9
        %v3781 = vadd.s32 %v3597, 9
        %v3782 = vadd.s32 %v3626, 9
        %v3783 = vadd.s32 %v3655, 9
        %v3784 = vadd.s32 %v3684, 9
        %v3785 = vadd.s32 %v3713, 9
        %v3786 = vsel %vm3750, %v3768, %v3220
        %v3787 = vsel %vm3751, %v3769, %v3249
        %v3788 = vsel %vm3752, %v3770, %v3278
        %v3789 = vsel %vm3753, %v3771, %v3307
        %v3790 = vsel %vm3754, %v3772, %v3336
        %v3791 = vsel %vm3755, %v3773, %v3365
        %v3792 = vsel %vm3756, %v3774, %v3394
        %v3793 = vsel %vm3757, %v3775, %v3423
        %v3794 = vsel %vm3758, %v3776, %v3452
        %v3795 = vsel %vm3759, %v3777, %v3481
        %v3796 = vsel %vm3760, %v3778, %v3510
        %v3797 = vsel %vm3761, %v3779, %v3539
        %v3798 = vsel %vm3762, %v3780, %v3568
        %v3799 = vsel %vm3763, %v3781, %v3597
        %v3800 = vsel %vm3764, %v3782, %v3626
        %v3801 = vsel %vm3765, %v3783, %v3655
        %v3802 = vsel %vm3766, %v3784, %v3684
        %v3803 = vsel %vm3767, %v3785, %v3713
        %vm3804 = vcmp.ne.s32.totalorder %v3156, 0
        %vm3805 = vcmp.ne.s32.totalorder %v3157, 0
        %vm3806 = vcmp.ne.s32.totalorder %v3158, 0
        %vm3807 = vcmp.ne.s32.totalorder %v3159, 0
        %vm3808 = vcmp.ne.s32.totalorder %v3160, 0
        %vm3809 = vcmp.ne.s32.totalorder %v3161, 0
        %vm3810 = vcmp.ne.s32.totalorder %v3162, 0
        %vm3811 = vcmp.ne.s32.totalorder %v3163, 0
        %vm3812 = vcmp.ne.s32.totalorder %v3164, 0
        %vm3813 = vcmp.ne.s32.totalorder %v3165, 0
        %vm3814 = vcmp.ne.s32.totalorder %v3166, 0
        %vm3815 = vcmp.ne.s32.totalorder %v3167, 0
        %vm3816 = vcmp.ne.s32.totalorder %v3168, 0
        %vm3817 = vcmp.ne.s32.totalorder %v3169, 0
        %vm3818 = vcmp.ne.s32.totalorder %v3170, 0
        %vm3819 = vcmp.ne.s32.totalorder %v3171, 0
        %vm3820 = vcmp.ne.s32.totalorder %v3172, 0
        %vm3821 = vcmp.ne.s32.totalorder %v3173, 0
        %v3822 = vsel %vm3804, 1, 0
        %v3823 = vsel %vm3805, 1, 0
        %v3824 = vsel %vm3806, 1, 0
        %v3825 = vsel %vm3807, 1, 0
        %v3826 = vsel %vm3808, 1, 0
        %v3827 = vsel %vm3809, 1, 0
        %v3828 = vsel %vm3810, 1, 0
        %v3829 = vsel %vm3811, 1, 0
        %v3830 = vsel %vm3812, 1, 0
        %v3831 = vsel %vm3813, 1, 0
        %v3832 = vsel %vm3814, 1, 0
        %v3833 = vsel %vm3815, 1, 0
        %v3834 = vsel %vm3816, 1, 0
        %v3835 = vsel %vm3817, 1, 0
        %v3836 = vsel %vm3818, 1, 0
        %v3837 = vsel %vm3819, 1, 0
        %v3838 = vsel %vm3820, 1, 0
        %v3839 = vsel %vm3821, 1, 0
        %vm3840 = vcmp.eq.s32.totalorder %v3822, 1
        %vm3841 = vcmp.eq.s32.totalorder %v3823, 1
        %vm3842 = vcmp.eq.s32.totalorder %v3824, 1
        %vm3843 = vcmp.eq.s32.totalorder %v3825, 1
        %vm3844 = vcmp.eq.s32.totalorder %v3826, 1
        %vm3845 = vcmp.eq.s32.totalorder %v3827, 1
        %vm3846 = vcmp.eq.s32.totalorder %v3828, 1
        %vm3847 = vcmp.eq.s32.totalorder %v3829, 1
        %vm3848 = vcmp.eq.s32.totalorder %v3830, 1
        %vm3849 = vcmp.eq.s32.totalorder %v3831, 1
        %vm3850 = vcmp.eq.s32.totalorder %v3832, 1
        %vm3851 = vcmp.eq.s32.totalorder %v3833, 1
        %vm3852 = vcmp.eq.s32.totalorder %v3834, 1
        %vm3853 = vcmp.eq.s32.totalorder %v3835, 1
        %vm3854 = vcmp.eq.s32.totalorder %v3836, 1
        %vm3855 = vcmp.eq.s32.totalorder %v3837, 1
        %vm3856 = vcmp.eq.s32.totalorder %v3838, 1
        %vm3857 = vcmp.eq.s32.totalorder %v3839, 1
        %v3858 = vsel %vm3840, %v2471, 0.0
        %v3859 = vsel %vm3841, %v2472, 0.0
        %v3860 = vsel %vm3842, %v2473, 0.0
        %v3861 = vsel %vm3843, %v2474, 0.0
        %v3862 = vsel %vm3844, %v2475, 0.0
        %v3863 = vsel %vm3845, %v2476, 0.0
        %v3864 = vsel %vm3846, %v2477, 0.0
        %v3865 = vsel %vm3847, %v2478, 0.0
        %v3866 = vsel %vm3848, %v2479, 0.0
        %v3867 = vsel %vm3849, %v2480, 0.0
        %v3868 = vsel %vm3850, %v2481, 0.0
        %v3869 = vsel %vm3851, %v2482, 0.0
        %v3870 = vsel %vm3852, %v2483, 0.0
        %v3871 = vsel %vm3853, %v2484, 0.0
        %v3872 = vsel %vm3854, %v2485, 0.0
        %v3873 = vsel %vm3855, %v2486, 0.0
        %v3874 = vsel %vm3856, %v2487, 0.0
        %v3875 = vsel %vm3857, %v2488, 0.0
        %vm3876 = vcmp.ne.s32.totalorder %v3786, 8
        %vm3877 = vcmp.ne.s32.totalorder %v3787, 8
        %vm3878 = vcmp.ne.s32.totalorder %v3788, 8
        %vm3879 = vcmp.ne.s32.totalorder %v3789, 8
        %vm3880 = vcmp.ne.s32.totalorder %v3790, 8
        %vm3881 = vcmp.ne.s32.totalorder %v3791, 8
        %vm3882 = vcmp.ne.s32.totalorder %v3792, 8
        %vm3883 = vcmp.ne.s32.totalorder %v3793, 8
        %vm3884 = vcmp.ne.s32.totalorder %v3794, 8
        %vm3885 = vcmp.ne.s32.totalorder %v3795, 8
        %vm3886 = vcmp.ne.s32.totalorder %v3796, 8
        %vm3887 = vcmp.ne.s32.totalorder %v3797, 8
        %vm3888 = vcmp.ne.s32.totalorder %v3798, 8
        %vm3889 = vcmp.ne.s32.totalorder %v3799, 8
        %vm3890 = vcmp.ne.s32.totalorder %v3800, 8
        %vm3891 = vcmp.ne.s32.totalorder %v3801, 8
        %vm3892 = vcmp.ne.s32.totalorder %v3802, 8
        %vm3893 = vcmp.ne.s32.totalorder %v3803, 8
        %v3894 = vsel %vm3876, 1, 0
        %v3895 = vsel %vm3877, 1, 0
        %v3896 = vsel %vm3878, 1, 0
        %v3897 = vsel %vm3879, 1, 0
        %v3898 = vsel %vm3880, 1, 0
        %v3899 = vsel %vm3881, 1, 0
        %v3900 = vsel %vm3882, 1, 0
        %v3901 = vsel %vm3883, 1, 0
        %v3902 = vsel %vm3884, 1, 0
        %v3903 = vsel %vm3885, 1, 0
        %v3904 = vsel %vm3886, 1, 0
        %v3905 = vsel %vm3887, 1, 0
        %v3906 = vsel %vm3888, 1, 0
        %v3907 = vsel %vm3889, 1, 0
        %v3908 = vsel %vm3890, 1, 0
        %v3909 = vsel %vm3891, 1, 0
        %v3910 = vsel %vm3892, 1, 0
        %v3911 = vsel %vm3893, 1, 0
        %vm3912 = vcmp.eq.s32.totalorder %v3894, 1
        %vm3913 = vcmp.eq.s32.totalorder %v3895, 1
        %vm3914 = vcmp.eq.s32.totalorder %v3896, 1
        %vm3915 = vcmp.eq.s32.totalorder %v3897, 1
        %vm3916 = vcmp.eq.s32.totalorder %v3898, 1
        %vm3917 = vcmp.eq.s32.totalorder %v3899, 1
        %vm3918 = vcmp.eq.s32.totalorder %v3900, 1
        %vm3919 = vcmp.eq.s32.totalorder %v3901, 1
        %vm3920 = vcmp.eq.s32.totalorder %v3902, 1
        %vm3921 = vcmp.eq.s32.totalorder %v3903, 1
        %vm3922 = vcmp.eq.s32.totalorder %v3904, 1
        %vm3923 = vcmp.eq.s32.totalorder %v3905, 1
        %vm3924 = vcmp.eq.s32.totalorder %v3906, 1
        %vm3925 = vcmp.eq.s32.totalorder %v3907, 1
        %vm3926 = vcmp.eq.s32.totalorder %v3908, 1
        %vm3927 = vcmp.eq.s32.totalorder %v3909, 1
        %vm3928 = vcmp.eq.s32.totalorder %v3910, 1
        %vm3929 = vcmp.eq.s32.totalorder %v3911, 1
        %v3930 = vsel %vm3912, %v2507, 0.0
        %v3931 = vsel %vm3913, %v2508, 0.0
        %v3932 = vsel %vm3914, %v2509, 0.0
        %v3933 = vsel %vm3915, %v2510, 0.0
        %v3934 = vsel %vm3916, %v2511, 0.0
        %v3935 = vsel %vm3917, %v2512, 0.0
        %v3936 = vsel %vm3918, %v2513, 0.0
        %v3937 = vsel %vm3919, %v2514, 0.0
        %v3938 = vsel %vm3920, %v2515, 0.0
        %v3939 = vsel %vm3921, %v2516, 0.0
        %v3940 = vsel %vm3922, %v2517, 0.0
        %v3941 = vsel %vm3923, %v2518, 0.0
        %v3942 = vsel %vm3924, %v2519, 0.0
        %v3943 = vsel %vm3925, %v2520, 0.0
        %v3944 = vsel %vm3926, %v2521, 0.0
        %v3945 = vsel %vm3927, %v2522, 0.0
        %v3946 = vsel %vm3928, %v2523, 0.0
        %v3947 = vsel %vm3929, %v2524, 0.0
        %vm3948 = vcmask 195584
        %3949 = vst.msk [vmem:[#allocation2] sm:$0xff] %vm3948, 0.0
        %3950 = vst.msk [vmem:[#allocation2 + $0x8] sm:$0xff] %vm3948, 0.0
        %3951 = vst.msk [vmem:[#allocation2 + $0x10] sm:$0xff] %vm3948, 0.0
        %3952 = vst.msk [vmem:[#allocation2 + $0x18] sm:$0xff] %vm3948, 0.0
        %3953 = vst.msk [vmem:[#allocation2 + $0x20] sm:$0xff] %vm3948, 0.0
        %3954 = vst.msk [vmem:[#allocation2 + $0x28] sm:$0xff] %vm3948, 0.0
        %3955 = vst.msk [vmem:[#allocation2 + $0x30] sm:$0xff] %vm3948, 0.0
        %3956 = vst.msk [vmem:[#allocation2 + $0x38] sm:$0xff] %vm3948, 0.0
        %3957 = vst.msk [vmem:[#allocation2 + $0x40] sm:$0xff] %vm3948, 0.0
        %3958 = vst.msk [vmem:[#allocation2 + $0x48] sm:$0xff] %vm3948, 0.0
        %3959 = vst.msk [vmem:[#allocation2 + $0x50] sm:$0xff] %vm3948, 0.0
        %3960 = vst.msk [vmem:[#allocation2 + $0x58] sm:$0xff] %vm3948, 0.0
        %3961 = vst.msk [vmem:[#allocation2 + $0x60] sm:$0xff] %vm3948, 0.0
        %3962 = vst.msk [vmem:[#allocation2 + $0x68] sm:$0xff] %vm3948, 0.0
        %3963 = vst.msk [vmem:[#allocation2 + $0x70] sm:$0xff] %vm3948, 0.0
        %3964 = vst.msk [vmem:[#allocation2 + $0x78] sm:$0xff] %vm3948, 0.0
        %3965 = vst.msk [vmem:[#allocation2 + $0x80] sm:$0xff] %vm3948, 0.0
        %3966 = vst.msk [vmem:[#allocation2 + $0x88] sm:$0xff] %vm3948, 0.0
        %3967 = vst.msk [vmem:[#allocation2 + $0x90] sm:$0xff] %vm3948, 0.0
        %3968 = vst.msk [vmem:[#allocation2 + $0x98] sm:$0xff] %vm3948, 0.0
        %vm3969 = vcmask 189440
        %3970 = vst.msk [vmem:[#allocation2 + $0xa0] sm:$0x3] %vm3969, 0.0
        %3971 = vst.msk [vmem:[#allocation3] sm:$0xff] %vm3948, 0.0
        %3972 = vst.msk [vmem:[#allocation3 + $0x8] sm:$0xff] %vm3948, 0.0
        %3973 = vst.msk [vmem:[#allocation3 + $0x10] sm:$0xff] %vm3948, 0.0
        %3974 = vst.msk [vmem:[#allocation3 + $0x18] sm:$0xff] %vm3948, 0.0
        %3975 = vst.msk [vmem:[#allocation3 + $0x20] sm:$0xff] %vm3948, 0.0
        %3976 = vst.msk [vmem:[#allocation3 + $0x28] sm:$0xff] %vm3948, 0.0
        %3977 = vst.msk [vmem:[#allocation3 + $0x30] sm:$0xff] %vm3948, 0.0
        %3978 = vst.msk [vmem:[#allocation3 + $0x38] sm:$0xff] %vm3948, 0.0
        %3979 = vst.msk [vmem:[#allocation3 + $0x40] sm:$0xff] %vm3948, 0.0
        %3980 = vst.msk [vmem:[#allocation3 + $0x48] sm:$0xff] %vm3948, 0.0
        %3981 = vst.msk [vmem:[#allocation3 + $0x50] sm:$0xff] %vm3948, 0.0
        %3982 = vst.msk [vmem:[#allocation3 + $0x58] sm:$0xff] %vm3948, 0.0
        %3983 = vst.msk [vmem:[#allocation3 + $0x60] sm:$0xff] %vm3948, 0.0
        %3984 = vst.msk [vmem:[#allocation3 + $0x68] sm:$0xff] %vm3948, 0.0
        %3985 = vst.msk [vmem:[#allocation3 + $0x70] sm:$0xff] %vm3948, 0.0
        %3986 = vst.msk [vmem:[#allocation3 + $0x78] sm:$0xff] %vm3948, 0.0
        %3987 = vst.msk [vmem:[#allocation3 + $0x80] sm:$0xff] %vm3948, 0.0
        %3988 = vst.msk [vmem:[#allocation3 + $0x88] sm:$0xff] %vm3948, 0.0
        %3989 = vst.msk [vmem:[#allocation3 + $0x90] sm:$0xff] %vm3948, 0.0
        %3990 = vst.msk [vmem:[#allocation3 + $0x98] sm:$0xff] %vm3948, 0.0
        %3991 = vst.msk [vmem:[#allocation3 + $0xa0] sm:$0x3] %vm3969, 0.0
        %3992 = vst.msk [vmem:[#allocation2 + $0xa] sm:$0xff] %vm3948, %v3858
        %3993 = vst.msk [vmem:[#allocation2 + $0x12] sm:$0xff] %vm3948, %v3859
        %3994 = vst.msk [vmem:[#allocation2 + $0x1a] sm:$0xff] %vm3948, %v3860
        %3995 = vst.msk [vmem:[#allocation2 + $0x22] sm:$0xff] %vm3948, %v3861
        %3996 = vst.msk [vmem:[#allocation2 + $0x2a] sm:$0xff] %vm3948, %v3862
        %3997 = vst.msk [vmem:[#allocation2 + $0x32] sm:$0xff] %vm3948, %v3863
        %3998 = vst.msk [vmem:[#allocation2 + $0x3a] sm:$0xff] %vm3948, %v3864
        %3999 = vst.msk [vmem:[#allocation2 + $0x42] sm:$0xff] %vm3948, %v3865
        %4000 = vst.msk [vmem:[#allocation2 + $0x4a] sm:$0xff] %vm3948, %v3866
        %4001 = vst.msk [vmem:[#allocation2 + $0x52] sm:$0xff] %vm3948, %v3867
        %4002 = vst.msk [vmem:[#allocation2 + $0x5a] sm:$0xff] %vm3948, %v3868
        %4003 = vst.msk [vmem:[#allocation2 + $0x62] sm:$0xff] %vm3948, %v3869
        %4004 = vst.msk [vmem:[#allocation2 + $0x6a] sm:$0xff] %vm3948, %v3870
        %4005 = vst.msk [vmem:[#allocation2 + $0x72] sm:$0xff] %vm3948, %v3871
        %4006 = vst.msk [vmem:[#allocation2 + $0x7a] sm:$0xff] %vm3948, %v3872
        %4007 = vst.msk [vmem:[#allocation2 + $0x82] sm:$0xff] %vm3948, %v3873
        %4008 = vst.msk [vmem:[#allocation2 + $0x8a] sm:$0xff] %vm3948, %v3874
        %vm4009 = vcmask 194560
        %4010 = vst.msk [vmem:[#allocation2 + $0x92] sm:$0x7f] %vm4009, %v3875
        %4011 = vst.msk [vmem:[#allocation3 + $0x9] sm:$0xff] %vm3948, %v3930
        %4012 = vst.msk [vmem:[#allocation3 + $0x11] sm:$0xff] %vm3948, %v3931
        %4013 = vst.msk [vmem:[#allocation3 + $0x19] sm:$0xff] %vm3948, %v3932
        %4014 = vst.msk [vmem:[#allocation3 + $0x21] sm:$0xff] %vm3948, %v3933
        %4015 = vst.msk [vmem:[#allocation3 + $0x29] sm:$0xff] %vm3948, %v3934
        %4016 = vst.msk [vmem:[#allocation3 + $0x31] sm:$0xff] %vm3948, %v3935
        %4017 = vst.msk [vmem:[#allocation3 + $0x39] sm:$0xff] %vm3948, %v3936
        %4018 = vst.msk [vmem:[#allocation3 + $0x41] sm:$0xff] %vm3948, %v3937
        %4019 = vst.msk [vmem:[#allocation3 + $0x49] sm:$0xff] %vm3948, %v3938
        %4020 = vst.msk [vmem:[#allocation3 + $0x51] sm:$0xff] %vm3948, %v3939
        %4021 = vst.msk [vmem:[#allocation3 + $0x59] sm:$0xff] %vm3948, %v3940
        %4022 = vst.msk [vmem:[#allocation3 + $0x61] sm:$0xff] %vm3948, %v3941
        %4023 = vst.msk [vmem:[#allocation3 + $0x69] sm:$0xff] %vm3948, %v3942
        %4024 = vst.msk [vmem:[#allocation3 + $0x71] sm:$0xff] %vm3948, %v3943
        %4025 = vst.msk [vmem:[#allocation3 + $0x79] sm:$0xff] %vm3948, %v3944
        %4026 = vst.msk [vmem:[#allocation3 + $0x81] sm:$0xff] %vm3948, %v3945
        %4027 = vst.msk [vmem:[#allocation3 + $0x89] sm:$0xff] %vm3948, %v3946
        %4028 = vst.msk [vmem:[#allocation3 + $0x91] sm:$0x7f] %vm4009, %v3947
        %v4029 = vld [vmem:[%s5 + $0x9] sm:$0x1]
        %v4030 = vld [vmem:[%s3] sm:$0xff]
        %v4031 = vld [vmem:[%s3 + $0x8] sm:$0xff]
        %v4032 = vld [vmem:[%s3 + $0x10] sm:$0xff]
        %v4033 = vld [vmem:[%s3 + $0x18] sm:$0xff]
        %v4034 = vld [vmem:[%s3 + $0x20] sm:$0xff]
        %v4035 = vld [vmem:[%s3 + $0x28] sm:$0xff]
        %v4036 = vld [vmem:[%s3 + $0x30] sm:$0xff]
        %v4037 = vld [vmem:[%s3 + $0x38] sm:$0xff]
        %v4038 = vld [vmem:[%s3 + $0x40] sm:$0xff]
        %v4039 = vld [vmem:[#allocation2] sm:$0xff]
        %v4040 = vld [vmem:[#allocation2 + $0x8] sm:$0xff]
        %v4041 = vld [vmem:[#allocation2 + $0x10] sm:$0xff]
        %v4042 = vld [vmem:[#allocation2 + $0x18] sm:$0xff]
        %v4043 = vld [vmem:[#allocation2 + $0x20] sm:$0xff]
        %v4044 = vld [vmem:[#allocation2 + $0x28] sm:$0xff]
        %v4045 = vld [vmem:[#allocation2 + $0x30] sm:$0xff]
        %v4046 = vld [vmem:[#allocation2 + $0x38] sm:$0xff]
        %v4047 = vld [vmem:[#allocation2 + $0x40] sm:$0xff]
        %v4048 = vld [vmem:[#allocation2 + $0x48] sm:$0xff]
        %v4049 = vld [vmem:[#allocation2 + $0x50] sm:$0xff]
        %v4050 = vld [vmem:[#allocation2 + $0x58] sm:$0xff]
        %v4051 = vld [vmem:[#allocation2 + $0x60] sm:$0xff]
        %v4052 = vld [vmem:[#allocation2 + $0x68] sm:$0xff]
        %v4053 = vld [vmem:[#allocation2 + $0x70] sm:$0xff]
        %v4054 = vld [vmem:[#allocation2 + $0x78] sm:$0xff]
        %v4055 = vld [vmem:[#allocation2 + $0x80] sm:$0x3f]
        %v4056 = vld [vmem:[#allocation3] sm:$0xff]
        %v4057 = vld [vmem:[#allocation3 + $0x8] sm:$0xff]
        %v4058 = vld [vmem:[#allocation3 + $0x10] sm:$0xff]
        %v4059 = vld [vmem:[#allocation3 + $0x18] sm:$0xff]
        %v4060 = vld [vmem:[#allocation3 + $0x20] sm:$0xff]
        %v4061 = vld [vmem:[#allocation3 + $0x28] sm:$0xff]
        %v4062 = vld [vmem:[#allocation3 + $0x30] sm:$0xff]
        %v4063 = vld [vmem:[#allocation3 + $0x38] sm:$0xff]
        %v4064 = vld [vmem:[#allocation3 + $0x40] sm:$0xff]
        %v4065 = vld [vmem:[#allocation3 + $0x48] sm:$0xff]
        %v4066 = vld [vmem:[#allocation3 + $0x50] sm:$0xff]
        %v4067 = vld [vmem:[#allocation3 + $0x58] sm:$0xff]
        %v4068 = vld [vmem:[#allocation3 + $0x60] sm:$0xff]
        %v4069 = vld [vmem:[#allocation3 + $0x68] sm:$0xff]
        %v4070 = vld [vmem:[#allocation3 + $0x70] sm:$0xff]
        %v4071 = vld [vmem:[#allocation3 + $0x78] sm:$0xff]
        %v4072 = vld [vmem:[#allocation3 + $0x80] sm:$0x3f]
        %v4074 = vsel %vm3948, %v4056, 0
        %v4077 = vsel %vm3948, %v4057, 0
        %v4080 = vsel %vm3948, %v4058, 0
        %v4083 = vsel %vm3948, %v4059, 0
        %v4086 = vsel %vm3948, %v4060, 0
        %v4089 = vsel %vm3948, %v4061, 0
        %v4092 = vsel %vm3948, %v4062, 0
        %v4095 = vsel %vm3948, %v4063, 0
        %v4098 = vsel %vm3948, %v4064, 0
        %v4101 = vsel %vm3948, %v4065, 0
        %v4104 = vsel %vm3948, %v4066, 0
        %v4107 = vsel %vm3948, %v4067, 0
        %v4110 = vsel %vm3948, %v4068, 0
        %v4113 = vsel %vm3948, %v4069, 0
        %v4116 = vsel %vm3948, %v4070, 0
        %v4119 = vsel %vm3948, %v4071, 0
        %v4122 = vsel %vm3948, %v4072, 0
        %4124 = vmatpush.msra.mxu0 0.0
        %4125 = vmatpush.msra.mxu0 0.0
        %4126 = vmatpush.msra.mxu0 0.0
        %4127 = vmatpush.msra.mxu0 0.0
        %4128 = vmatpush.msra.mxu0 0.0
        %4129 = vmatpush.msra.mxu0 0.0
        %4130 = vmatpush.msra.mxu0 0.0
        %4131 = vmatpush.msra.mxu0 0.0
        %4132 = vmatpush.msra.mxu0 0.0
        %4133 = vmatpush.msra.mxu0 0.0
        %4134 = vmatpush.msra.mxu0 0.0
        %4135 = vmatpush.msra.mxu0 0.0
        %4136 = vmatpush.msra.mxu0 0.0
        %4137 = vmatpush.msra.mxu0 %v4035
        %4138 = vmatpush.msra.mxu0 %v4034
        %4139 = vmatpush.msra.mxu0 %v4033
        %4140 = vmatmul.f32.gmra.mxu0 %v4074
        %v4141 = vpop.f32.mrf.mxu0
        %v4142 = vadd.f32 0.0, %v4141
        %4143 = vmatmul.f32.gmra.mxu0 %v4077
        %v4144 = vpop.f32.mrf.mxu0
        %v4145 = vadd.f32 0.0, %v4144
        %4146 = vmatmul.f32.gmra.mxu0 %v4080
        %v4147 = vpop.f32.mrf.mxu0
        %v4148 = vadd.f32 0.0, %v4147
        %4149 = vmatmul.f32.gmra.mxu0 %v4083
        %v4150 = vpop.f32.mrf.mxu0
        %v4151 = vadd.f32 0.0, %v4150
        %4152 = vmatmul.f32.gmra.mxu0 %v4086
        %v4153 = vpop.f32.mrf.mxu0
        %v4154 = vadd.f32 0.0, %v4153
        %4155 = vmatmul.f32.gmra.mxu0 %v4089
        %v4156 = vpop.f32.mrf.mxu0
        %v4157 = vadd.f32 0.0, %v4156
        %4158 = vmatmul.f32.gmra.mxu0 %v4092
        %v4159 = vpop.f32.mrf.mxu0
        %v4160 = vadd.f32 0.0, %v4159
        %4161 = vmatmul.f32.gmra.mxu0 %v4095
        %v4162 = vpop.f32.mrf.mxu0
        %v4163 = vadd.f32 0.0, %v4162
        %4164 = vmatmul.f32.gmra.mxu0 %v4098
        %v4165 = vpop.f32.mrf.mxu0
        %v4166 = vadd.f32 0.0, %v4165
        %4167 = vmatmul.f32.gmra.mxu0 %v4101
        %v4168 = vpop.f32.mrf.mxu0
        %v4169 = vadd.f32 0.0, %v4168
        %4170 = vmatmul.f32.gmra.mxu0 %v4104
        %v4171 = vpop.f32.mrf.mxu0
        %v4172 = vadd.f32 0.0, %v4171
        %4173 = vmatmul.f32.gmra.mxu0 %v4107
        %v4174 = vpop.f32.mrf.mxu0
        %v4175 = vadd.f32 0.0, %v4174
        %4176 = vmatmul.f32.gmra.mxu0 %v4110
        %v4177 = vpop.f32.mrf.mxu0
        %v4178 = vadd.f32 0.0, %v4177
        %4179 = vmatmul.f32.gmra.mxu0 %v4113
        %v4180 = vpop.f32.mrf.mxu0
        %v4181 = vadd.f32 0.0, %v4180
        %4182 = vmatmul.f32.gmra.mxu0 %v4116
        %v4183 = vpop.f32.mrf.mxu0
        %v4184 = vadd.f32 0.0, %v4183
        %4185 = vmatmul.f32.gmra.mxu0 %v4119
        %v4186 = vpop.f32.mrf.mxu0
        %v4187 = vadd.f32 0.0, %v4186
        %4188 = vmatmul.f32.gmra.mxu0 %v4122
        %v4189 = vpop.f32.mrf.mxu0
        %v4190 = vadd.f32 0.0, %v4189
        %4191 = vdwg.mxu0
        %v4193 = vsel %vm3948, %v4039, 0
        %v4196 = vsel %vm3948, %v4040, 0
        %v4199 = vsel %vm3948, %v4041, 0
        %v4202 = vsel %vm3948, %v4042, 0
        %v4205 = vsel %vm3948, %v4043, 0
        %v4208 = vsel %vm3948, %v4044, 0
        %v4211 = vsel %vm3948, %v4045, 0
        %v4214 = vsel %vm3948, %v4046, 0
        %v4217 = vsel %vm3948, %v4047, 0
        %v4220 = vsel %vm3948, %v4048, 0
        %v4223 = vsel %vm3948, %v4049, 0
        %v4226 = vsel %vm3948, %v4050, 0
        %v4229 = vsel %vm3948, %v4051, 0
        %v4232 = vsel %vm3948, %v4052, 0
        %v4235 = vsel %vm3948, %v4053, 0
        %v4238 = vsel %vm3948, %v4054, 0
        %v4241 = vsel %vm3948, %v4055, 0
        %4243 = vmatpush.msra.mxu0 0.0
        %4244 = vmatpush.msra.mxu0 0.0
        %4245 = vmatpush.msra.mxu0 0.0
        %4246 = vmatpush.msra.mxu0 0.0
        %4247 = vmatpush.msra.mxu0 0.0
        %4248 = vmatpush.msra.mxu0 0.0
        %4249 = vmatpush.msra.mxu0 0.0
        %4250 = vmatpush.msra.mxu0 0.0
        %4251 = vmatpush.msra.mxu0 0.0
        %4252 = vmatpush.msra.mxu0 0.0
        %4253 = vmatpush.msra.mxu0 0.0
        %4254 = vmatpush.msra.mxu0 0.0
        %4255 = vmatpush.msra.mxu0 0.0
        %4256 = vmatpush.msra.mxu0 %v4032
        %4257 = vmatpush.msra.mxu0 %v4031
        %4258 = vmatpush.msra.mxu0 %v4030
        %4259 = vmatmul.f32.gmra.mxu0 %v4193
        %v4260 = vpop.f32.mrf.mxu0
        %v4261 = vadd.f32 %v4142, %v4260
        %4262 = vmatmul.f32.gmra.mxu0 %v4196
        %v4263 = vpop.f32.mrf.mxu0
        %v4264 = vadd.f32 %v4145, %v4263
        %4265 = vmatmul.f32.gmra.mxu0 %v4199
        %v4266 = vpop.f32.mrf.mxu0
        %v4267 = vadd.f32 %v4148, %v4266
        %4268 = vmatmul.f32.gmra.mxu0 %v4202
        %v4269 = vpop.f32.mrf.mxu0
        %v4270 = vadd.f32 %v4151, %v4269
        %4271 = vmatmul.f32.gmra.mxu0 %v4205
        %v4272 = vpop.f32.mrf.mxu0
        %v4273 = vadd.f32 %v4154, %v4272
        %4274 = vmatmul.f32.gmra.mxu0 %v4208
        %v4275 = vpop.f32.mrf.mxu0
        %v4276 = vadd.f32 %v4157, %v4275
        %4277 = vmatmul.f32.gmra.mxu0 %v4211
        %v4278 = vpop.f32.mrf.mxu0
        %v4279 = vadd.f32 %v4160, %v4278
        %4280 = vmatmul.f32.gmra.mxu0 %v4214
        %v4281 = vpop.f32.mrf.mxu0
        %v4282 = vadd.f32 %v4163, %v4281
        %4283 = vmatmul.f32.gmra.mxu0 %v4217
        %v4284 = vpop.f32.mrf.mxu0
        %v4285 = vadd.f32 %v4166, %v4284
        %4286 = vmatmul.f32.gmra.mxu0 %v4220
        %v4287 = vpop.f32.mrf.mxu0
        %v4288 = vadd.f32 %v4169, %v4287
        %4289 = vmatmul.f32.gmra.mxu0 %v4223
        %v4290 = vpop.f32.mrf.mxu0
        %v4291 = vadd.f32 %v4172, %v4290
        %4292 = vmatmul.f32.gmra.mxu0 %v4226
        %v4293 = vpop.f32.mrf.mxu0
        %v4294 = vadd.f32 %v4175, %v4293
        %4295 = vmatmul.f32.gmra.mxu0 %v4229
        %v4296 = vpop.f32.mrf.mxu0
        %v4297 = vadd.f32 %v4178, %v4296
        %4298 = vmatmul.f32.gmra.mxu0 %v4232
        %v4299 = vpop.f32.mrf.mxu0
        %v4300 = vadd.f32 %v4181, %v4299
        %4301 = vmatmul.f32.gmra.mxu0 %v4235
        %v4302 = vpop.f32.mrf.mxu0
        %v4303 = vadd.f32 %v4184, %v4302
        %4304 = vmatmul.f32.gmra.mxu0 %v4238
        %v4305 = vpop.f32.mrf.mxu0
        %v4306 = vadd.f32 %v4187, %v4305
        %4307 = vmatmul.f32.gmra.mxu0 %v4241
        %v4308 = vpop.f32.mrf.mxu0
        %v4309 = vadd.f32 %v4190, %v4308
        %4310 = vdwg.mxu0
        %v4311 = vld [vmem:[#allocation2 + $0x1] sm:$0xff]
        %v4312 = vld [vmem:[#allocation2 + $0x9] sm:$0xff]
        %v4313 = vld [vmem:[#allocation2 + $0x11] sm:$0xff]
        %v4314 = vld [vmem:[#allocation2 + $0x19] sm:$0xff]
        %v4315 = vld [vmem:[#allocation2 + $0x21] sm:$0xff]
        %v4316 = vld [vmem:[#allocation2 + $0x29] sm:$0xff]
        %v4317 = vld [vmem:[#allocation2 + $0x31] sm:$0xff]
        %v4318 = vld [vmem:[#allocation2 + $0x39] sm:$0xff]
        %v4319 = vld [vmem:[#allocation2 + $0x41] sm:$0xff]
        %v4320 = vld [vmem:[#allocation2 + $0x49] sm:$0xff]
        %v4321 = vld [vmem:[#allocation2 + $0x51] sm:$0xff]
        %v4322 = vld [vmem:[#allocation2 + $0x59] sm:$0xff]
        %v4323 = vld [vmem:[#allocation2 + $0x61] sm:$0xff]
        %v4324 = vld [vmem:[#allocation2 + $0x69] sm:$0xff]
        %v4325 = vld [vmem:[#allocation2 + $0x71] sm:$0xff]
        %v4326 = vld [vmem:[#allocation2 + $0x79] sm:$0xff]
        %v4327 = vld [vmem:[#allocation2 + $0x81] sm:$0x3f]
        %v4329 = vsel %vm3948, %v4311, 0
        %v4332 = vsel %vm3948, %v4312, 0
        %v4335 = vsel %vm3948, %v4313, 0
        %v4338 = vsel %vm3948, %v4314, 0
        %v4341 = vsel %vm3948, %v4315, 0
        %v4344 = vsel %vm3948, %v4316, 0
        %v4347 = vsel %vm3948, %v4317, 0
        %v4350 = vsel %vm3948, %v4318, 0
        %v4353 = vsel %vm3948, %v4319, 0
        %v4356 = vsel %vm3948, %v4320, 0
        %v4359 = vsel %vm3948, %v4321, 0
        %v4362 = vsel %vm3948, %v4322, 0
        %v4365 = vsel %vm3948, %v4323, 0
        %v4368 = vsel %vm3948, %v4324, 0
        %v4371 = vsel %vm3948, %v4325, 0
        %v4374 = vsel %vm3948, %v4326, 0
        %v4377 = vsel %vm3948, %v4327, 0
        %4379 = vmatpush.msra.mxu0 0.0
        %4380 = vmatpush.msra.mxu0 0.0
        %4381 = vmatpush.msra.mxu0 0.0
        %4382 = vmatpush.msra.mxu0 0.0
        %4383 = vmatpush.msra.mxu0 0.0
        %4384 = vmatpush.msra.mxu0 0.0
        %4385 = vmatpush.msra.mxu0 0.0
        %4386 = vmatpush.msra.mxu0 0.0
        %4387 = vmatpush.msra.mxu0 0.0
        %4388 = vmatpush.msra.mxu0 0.0
        %4389 = vmatpush.msra.mxu0 0.0
        %4390 = vmatpush.msra.mxu0 0.0
        %4391 = vmatpush.msra.mxu0 0.0
        %4392 = vmatpush.msra.mxu0 %v4038
        %4393 = vmatpush.msra.mxu0 %v4037
        %4394 = vmatpush.msra.mxu0 %v4036
        %4395 = vmatmul.f32.gmra.mxu0 %v4329
        %v4396 = vpop.f32.mrf.mxu0
        %v4397 = vadd.f32 0.0, %v4396
        %4398 = vmatmul.f32.gmra.mxu0 %v4332
        %v4399 = vpop.f32.mrf.mxu0
        %v4400 = vadd.f32 0.0, %v4399
        %4401 = vmatmul.f32.gmra.mxu0 %v4335
        %v4402 = vpop.f32.mrf.mxu0
        %v4403 = vadd.f32 0.0, %v4402
        %4404 = vmatmul.f32.gmra.mxu0 %v4338
        %v4405 = vpop.f32.mrf.mxu0
        %v4406 = vadd.f32 0.0, %v4405
        %4407 = vmatmul.f32.gmra.mxu0 %v4341
        %v4408 = vpop.f32.mrf.mxu0
        %v4409 = vadd.f32 0.0, %v4408
        %4410 = vmatmul.f32.gmra.mxu0 %v4344
        %v4411 = vpop.f32.mrf.mxu0
        %v4412 = vadd.f32 0.0, %v4411
        %4413 = vmatmul.f32.gmra.mxu0 %v4347
        %v4414 = vpop.f32.mrf.mxu0
        %v4415 = vadd.f32 0.0, %v4414
        %4416 = vmatmul.f32.gmra.mxu0 %v4350
        %v4417 = vpop.f32.mrf.mxu0
        %v4418 = vadd.f32 0.0, %v4417
        %4419 = vmatmul.f32.gmra.mxu0 %v4353
        %v4420 = vpop.f32.mrf.mxu0
        %v4421 = vadd.f32 0.0, %v4420
        %4422 = vmatmul.f32.gmra.mxu0 %v4356
        %v4423 = vpop.f32.mrf.mxu0
        %v4424 = vadd.f32 0.0, %v4423
        %4425 = vmatmul.f32.gmra.mxu0 %v4359
        %v4426 = vpop.f32.mrf.mxu0
        %v4427 = vadd.f32 0.0, %v4426
        %4428 = vmatmul.f32.gmra.mxu0 %v4362
        %v4429 = vpop.f32.mrf.mxu0
        %v4430 = vadd.f32 0.0, %v4429
        %4431 = vmatmul.f32.gmra.mxu0 %v4365
        %v4432 = vpop.f32.mrf.mxu0
        %v4433 = vadd.f32 0.0, %v4432
        %4434 = vmatmul.f32.gmra.mxu0 %v4368
        %v4435 = vpop.f32.mrf.mxu0
        %v4436 = vadd.f32 0.0, %v4435
        %4437 = vmatmul.f32.gmra.mxu0 %v4371
        %v4438 = vpop.f32.mrf.mxu0
        %v4439 = vadd.f32 0.0, %v4438
        %4440 = vmatmul.f32.gmra.mxu0 %v4374
        %v4441 = vpop.f32.mrf.mxu0
        %v4442 = vadd.f32 0.0, %v4441
        %4443 = vmatmul.f32.gmra.mxu0 %v4377
        %v4444 = vpop.f32.mrf.mxu0
        %v4445 = vadd.f32 0.0, %v4444
        %4446 = vdwg.mxu0
        %v4447 = vadd.f32 %v4261, %v4397
        %v4448 = vadd.f32 %v4264, %v4400
        %v4449 = vadd.f32 %v4267, %v4403
        %v4450 = vadd.f32 %v4270, %v4406
        %v4451 = vadd.f32 %v4273, %v4409
        %v4452 = vadd.f32 %v4276, %v4412
        %v4453 = vadd.f32 %v4279, %v4415
        %v4454 = vadd.f32 %v4282, %v4418
        %v4455 = vadd.f32 %v4285, %v4421
        %v4456 = vadd.f32 %v4288, %v4424
        %v4457 = vadd.f32 %v4291, %v4427
        %v4458 = vadd.f32 %v4294, %v4430
        %v4459 = vadd.f32 %v4297, %v4433
        %v4460 = vadd.f32 %v4300, %v4436
        %v4461 = vadd.f32 %v4303, %v4439
        %v4462 = vadd.f32 %v4306, %v4442
        %v4463 = vadd.f32 %v4309, %v4445
        %v4464 = vld [vmem:[%s3 + $0x48] sm:$0xff]
        %v4465 = vld [vmem:[%s3 + $0x50] sm:$0xff]
        %v4466 = vld [vmem:[%s3 + $0x58] sm:$0xff]
        %v4467 = vld [vmem:[%s3 + $0x60] sm:$0xff]
        %v4468 = vld [vmem:[%s3 + $0x68] sm:$0xff]
        %v4469 = vld [vmem:[%s3 + $0x70] sm:$0xff]
        %v4470 = vld [vmem:[%s3 + $0x78] sm:$0xff]
        %v4471 = vld [vmem:[%s3 + $0x80] sm:$0xff]
        %v4472 = vld [vmem:[%s3 + $0x88] sm:$0xff]
        %v4473 = vld [vmem:[#allocation2 + $0x9] sm:$0xff]
        %v4474 = vld [vmem:[#allocation2 + $0x11] sm:$0xff]
        %v4475 = vld [vmem:[#allocation2 + $0x19] sm:$0xff]
        %v4476 = vld [vmem:[#allocation2 + $0x21] sm:$0xff]
        %v4477 = vld [vmem:[#allocation2 + $0x29] sm:$0xff]
        %v4478 = vld [vmem:[#allocation2 + $0x31] sm:$0xff]
        %v4479 = vld [vmem:[#allocation2 + $0x39] sm:$0xff]
        %v4480 = vld [vmem:[#allocation2 + $0x41] sm:$0xff]
        %v4481 = vld [vmem:[#allocation2 + $0x49] sm:$0xff]
        %v4482 = vld [vmem:[#allocation2 + $0x51] sm:$0xff]
        %v4483 = vld [vmem:[#allocation2 + $0x59] sm:$0xff]
        %v4484 = vld [vmem:[#allocation2 + $0x61] sm:$0xff]
        %v4485 = vld [vmem:[#allocation2 + $0x69] sm:$0xff]
        %v4486 = vld [vmem:[#allocation2 + $0x71] sm:$0xff]
        %v4487 = vld [vmem:[#allocation2 + $0x79] sm:$0xff]
        %v4488 = vld [vmem:[#allocation2 + $0x81] sm:$0xff]
        %v4489 = vld [vmem:[#allocation2 + $0x89] sm:$0x3f]
        %v4491 = vsel %vm3948, %v4473, 0
        %v4494 = vsel %vm3948, %v4474, 0
        %v4497 = vsel %vm3948, %v4475, 0
        %v4500 = vsel %vm3948, %v4476, 0
        %v4503 = vsel %vm3948, %v4477, 0
        %v4506 = vsel %vm3948, %v4478, 0
        %v4509 = vsel %vm3948, %v4479, 0
        %v4512 = vsel %vm3948, %v4480, 0
        %v4515 = vsel %vm3948, %v4481, 0
        %v4518 = vsel %vm3948, %v4482, 0
        %v4521 = vsel %vm3948, %v4483, 0
        %v4524 = vsel %vm3948, %v4484, 0
        %v4527 = vsel %vm3948, %v4485, 0
        %v4530 = vsel %vm3948, %v4486, 0
        %v4533 = vsel %vm3948, %v4487, 0
        %v4536 = vsel %vm3948, %v4488, 0
        %v4539 = vsel %vm3948, %v4489, 0
        %4541 = vmatpush.msra.mxu0 0.0
        %4542 = vmatpush.msra.mxu0 0.0
        %4543 = vmatpush.msra.mxu0 0.0
        %4544 = vmatpush.msra.mxu0 0.0
        %4545 = vmatpush.msra.mxu0 0.0
        %4546 = vmatpush.msra.mxu0 0.0
        %4547 = vmatpush.msra.mxu0 0.0
        %4548 = vmatpush.msra.mxu0 0.0
        %4549 = vmatpush.msra.mxu0 0.0
        %4550 = vmatpush.msra.mxu0 0.0
        %4551 = vmatpush.msra.mxu0 0.0
        %4552 = vmatpush.msra.mxu0 0.0
        %4553 = vmatpush.msra.mxu0 0.0
        %4554 = vmatpush.msra.mxu0 %v4466
        %4555 = vmatpush.msra.mxu0 %v4465
        %4556 = vmatpush.msra.mxu0 %v4464
        %4557 = vmatmul.f32.gmra.mxu0 %v4491
        %v4558 = vpop.f32.mrf.mxu0
        %v4559 = vadd.f32 0.0, %v4558
        %4560 = vmatmul.f32.gmra.mxu0 %v4494
        %v4561 = vpop.f32.mrf.mxu0
        %v4562 = vadd.f32 0.0, %v4561
        %4563 = vmatmul.f32.gmra.mxu0 %v4497
        %v4564 = vpop.f32.mrf.mxu0
        %v4565 = vadd.f32 0.0, %v4564
        %4566 = vmatmul.f32.gmra.mxu0 %v4500
        %v4567 = vpop.f32.mrf.mxu0
        %v4568 = vadd.f32 0.0, %v4567
        %4569 = vmatmul.f32.gmra.mxu0 %v4503
        %v4570 = vpop.f32.mrf.mxu0
        %v4571 = vadd.f32 0.0, %v4570
        %4572 = vmatmul.f32.gmra.mxu0 %v4506
        %v4573 = vpop.f32.mrf.mxu0
        %v4574 = vadd.f32 0.0, %v4573
        %4575 = vmatmul.f32.gmra.mxu0 %v4509
        %v4576 = vpop.f32.mrf.mxu0
        %v4577 = vadd.f32 0.0, %v4576
        %4578 = vmatmul.f32.gmra.mxu0 %v4512
        %v4579 = vpop.f32.mrf.mxu0
        %v4580 = vadd.f32 0.0, %v4579
        %4581 = vmatmul.f32.gmra.mxu0 %v4515
        %v4582 = vpop.f32.mrf.mxu0
        %v4583 = vadd.f32 0.0, %v4582
        %4584 = vmatmul.f32.gmra.mxu0 %v4518
        %v4585 = vpop.f32.mrf.mxu0
        %v4586 = vadd.f32 0.0, %v4585
        %4587 = vmatmul.f32.gmra.mxu0 %v4521
        %v4588 = vpop.f32.mrf.mxu0
        %v4589 = vadd.f32 0.0, %v4588
        %4590 = vmatmul.f32.gmra.mxu0 %v4524
        %v4591 = vpop.f32.mrf.mxu0
        %v4592 = vadd.f32 0.0, %v4591
        %4593 = vmatmul.f32.gmra.mxu0 %v4527
        %v4594 = vpop.f32.mrf.mxu0
        %v4595 = vadd.f32 0.0, %v4594
        %4596 = vmatmul.f32.gmra.mxu0 %v4530
        %v4597 = vpop.f32.mrf.mxu0
        %v4598 = vadd.f32 0.0, %v4597
        %4599 = vmatmul.f32.gmra.mxu0 %v4533
        %v4600 = vpop.f32.mrf.mxu0
        %v4601 = vadd.f32 0.0, %v4600
        %4602 = vmatmul.f32.gmra.mxu0 %v4536
        %v4603 = vpop.f32.mrf.mxu0
        %v4604 = vadd.f32 0.0, %v4603
        %4605 = vmatmul.f32.gmra.mxu0 %v4539
        %v4606 = vpop.f32.mrf.mxu0
        %v4607 = vadd.f32 0.0, %v4606
        %4608 = vdwg.mxu0
        %v4609 = vadd.f32 %v4447, %v4559
        %v4610 = vadd.f32 %v4448, %v4562
        %v4611 = vadd.f32 %v4449, %v4565
        %v4612 = vadd.f32 %v4450, %v4568
        %v4613 = vadd.f32 %v4451, %v4571
        %v4614 = vadd.f32 %v4452, %v4574
        %v4615 = vadd.f32 %v4453, %v4577
        %v4616 = vadd.f32 %v4454, %v4580
        %v4617 = vadd.f32 %v4455, %v4583
        %v4618 = vadd.f32 %v4456, %v4586
        %v4619 = vadd.f32 %v4457, %v4589
        %v4620 = vadd.f32 %v4458, %v4592
        %v4621 = vadd.f32 %v4459, %v4595
        %v4622 = vadd.f32 %v4460, %v4598
        %v4623 = vadd.f32 %v4461, %v4601
        %v4624 = vadd.f32 %v4462, %v4604
        %v4625 = vadd.f32 %v4463, %v4607
        %v4626 = vld [vmem:[#allocation3 + $0x9] sm:$0xff]
        %v4627 = vld [vmem:[#allocation3 + $0x11] sm:$0xff]
        %v4628 = vld [vmem:[#allocation3 + $0x19] sm:$0xff]
        %v4629 = vld [vmem:[#allocation3 + $0x21] sm:$0xff]
        %v4630 = vld [vmem:[#allocation3 + $0x29] sm:$0xff]
        %v4631 = vld [vmem:[#allocation3 + $0x31] sm:$0xff]
        %v4632 = vld [vmem:[#allocation3 + $0x39] sm:$0xff]
        %v4633 = vld [vmem:[#allocation3 + $0x41] sm:$0xff]
        %v4634 = vld [vmem:[#allocation3 + $0x49] sm:$0xff]
        %v4635 = vld [vmem:[#allocation3 + $0x51] sm:$0xff]
        %v4636 = vld [vmem:[#allocation3 + $0x59] sm:$0xff]
        %v4637 = vld [vmem:[#allocation3 + $0x61] sm:$0xff]
        %v4638 = vld [vmem:[#allocation3 + $0x69] sm:$0xff]
        %v4639 = vld [vmem:[#allocation3 + $0x71] sm:$0xff]
        %v4640 = vld [vmem:[#allocation3 + $0x79] sm:$0xff]
        %v4641 = vld [vmem:[#allocation3 + $0x81] sm:$0xff]
        %v4642 = vld [vmem:[#allocation3 + $0x89] sm:$0x3f]
        %v4644 = vsel %vm3948, %v4626, 0
        %v4647 = vsel %vm3948, %v4627, 0
        %v4650 = vsel %vm3948, %v4628, 0
        %v4653 = vsel %vm3948, %v4629, 0
        %v4656 = vsel %vm3948, %v4630, 0
        %v4659 = vsel %vm3948, %v4631, 0
        %v4662 = vsel %vm3948, %v4632, 0
        %v4665 = vsel %vm3948, %v4633, 0
        %v4668 = vsel %vm3948, %v4634, 0
        %v4671 = vsel %vm3948, %v4635, 0
        %v4674 = vsel %vm3948, %v4636, 0
        %v4677 = vsel %vm3948, %v4637, 0
        %v4680 = vsel %vm3948, %v4638, 0
        %v4683 = vsel %vm3948, %v4639, 0
        %v4686 = vsel %vm3948, %v4640, 0
        %v4689 = vsel %vm3948, %v4641, 0
        %v4692 = vsel %vm3948, %v4642, 0
        %4694 = vmatpush.msra.mxu0 0.0
        %4695 = vmatpush.msra.mxu0 0.0
        %4696 = vmatpush.msra.mxu0 0.0
        %4697 = vmatpush.msra.mxu0 0.0
        %4698 = vmatpush.msra.mxu0 0.0
        %4699 = vmatpush.msra.mxu0 0.0
        %4700 = vmatpush.msra.mxu0 0.0
        %4701 = vmatpush.msra.mxu0 0.0
        %4702 = vmatpush.msra.mxu0 0.0
        %4703 = vmatpush.msra.mxu0 0.0
        %4704 = vmatpush.msra.mxu0 0.0
        %4705 = vmatpush.msra.mxu0 0.0
        %4706 = vmatpush.msra.mxu0 0.0
        %4707 = vmatpush.msra.mxu0 %v4469
        %4708 = vmatpush.msra.mxu0 %v4468
        %4709 = vmatpush.msra.mxu0 %v4467
        %4710 = vmatmul.f32.gmra.mxu0 %v4644
        %v4711 = vpop.f32.mrf.mxu0
        %v4712 = vadd.f32 0.0, %v4711
        %4713 = vmatmul.f32.gmra.mxu0 %v4647
        %v4714 = vpop.f32.mrf.mxu0
        %v4715 = vadd.f32 0.0, %v4714
        %4716 = vmatmul.f32.gmra.mxu0 %v4650
        %v4717 = vpop.f32.mrf.mxu0
        %v4718 = vadd.f32 0.0, %v4717
        %4719 = vmatmul.f32.gmra.mxu0 %v4653
        %v4720 = vpop.f32.mrf.mxu0
        %v4721 = vadd.f32 0.0, %v4720
        %4722 = vmatmul.f32.gmra.mxu0 %v4656
        %v4723 = vpop.f32.mrf.mxu0
        %v4724 = vadd.f32 0.0, %v4723
        %4725 = vmatmul.f32.gmra.mxu0 %v4659
        %v4726 = vpop.f32.mrf.mxu0
        %v4727 = vadd.f32 0.0, %v4726
        %4728 = vmatmul.f32.gmra.mxu0 %v4662
        %v4729 = vpop.f32.mrf.mxu0
        %v4730 = vadd.f32 0.0, %v4729
        %4731 = vmatmul.f32.gmra.mxu0 %v4665
        %v4732 = vpop.f32.mrf.mxu0
        %v4733 = vadd.f32 0.0, %v4732
        %4734 = vmatmul.f32.gmra.mxu0 %v4668
        %v4735 = vpop.f32.mrf.mxu0
        %v4736 = vadd.f32 0.0, %v4735
        %4737 = vmatmul.f32.gmra.mxu0 %v4671
        %v4738 = vpop.f32.mrf.mxu0
        %v4739 = vadd.f32 0.0, %v4738
        %4740 = vmatmul.f32.gmra.mxu0 %v4674
        %v4741 = vpop.f32.mrf.mxu0
        %v4742 = vadd.f32 0.0, %v4741
        %4743 = vmatmul.f32.gmra.mxu0 %v4677
        %v4744 = vpop.f32.mrf.mxu0
        %v4745 = vadd.f32 0.0, %v4744
        %4746 = vmatmul.f32.gmra.mxu0 %v4680
        %v4747 = vpop.f32.mrf.mxu0
        %v4748 = vadd.f32 0.0, %v4747
        %4749 = vmatmul.f32.gmra.mxu0 %v4683
        %v4750 = vpop.f32.mrf.mxu0
        %v4751 = vadd.f32 0.0, %v4750
        %4752 = vmatmul.f32.gmra.mxu0 %v4686
        %v4753 = vpop.f32.mrf.mxu0
        %v4754 = vadd.f32 0.0, %v4753
        %4755 = vmatmul.f32.gmra.mxu0 %v4689
        %v4756 = vpop.f32.mrf.mxu0
        %v4757 = vadd.f32 0.0, %v4756
        %4758 = vmatmul.f32.gmra.mxu0 %v4692
        %v4759 = vpop.f32.mrf.mxu0
        %v4760 = vadd.f32 0.0, %v4759
        %4761 = vdwg.mxu0
        %v4762 = vadd.f32 %v4609, %v4712
        %v4763 = vadd.f32 %v4610, %v4715
        %v4764 = vadd.f32 %v4611, %v4718
        %v4765 = vadd.f32 %v4612, %v4721
        %v4766 = vadd.f32 %v4613, %v4724
        %v4767 = vadd.f32 %v4614, %v4727
        %v4768 = vadd.f32 %v4615, %v4730
        %v4769 = vadd.f32 %v4616, %v4733
        %v4770 = vadd.f32 %v4617, %v4736
        %v4771 = vadd.f32 %v4618, %v4739
        %v4772 = vadd.f32 %v4619, %v4742
        %v4773 = vadd.f32 %v4620, %v4745
        %v4774 = vadd.f32 %v4621, %v4748
        %v4775 = vadd.f32 %v4622, %v4751
        %v4776 = vadd.f32 %v4623, %v4754
        %v4777 = vadd.f32 %v4624, %v4757
        %v4778 = vadd.f32 %v4625, %v4760
        %v4779 = vld [vmem:[#allocation2 + $0xa] sm:$0xff]
        %v4780 = vld [vmem:[#allocation2 + $0x12] sm:$0xff]
        %v4781 = vld [vmem:[#allocation2 + $0x1a] sm:$0xff]
        %v4782 = vld [vmem:[#allocation2 + $0x22] sm:$0xff]
        %v4783 = vld [vmem:[#allocation2 + $0x2a] sm:$0xff]
        %v4784 = vld [vmem:[#allocation2 + $0x32] sm:$0xff]
        %v4785 = vld [vmem:[#allocation2 + $0x3a] sm:$0xff]
        %v4786 = vld [vmem:[#allocation2 + $0x42] sm:$0xff]
        %v4787 = vld [vmem:[#allocation2 + $0x4a] sm:$0xff]
        %v4788 = vld [vmem:[#allocation2 + $0x52] sm:$0xff]
        %v4789 = vld [vmem:[#allocation2 + $0x5a] sm:$0xff]
        %v4790 = vld [vmem:[#allocation2 + $0x62] sm:$0xff]
        %v4791 = vld [vmem:[#allocation2 + $0x6a] sm:$0xff]
        %v4792 = vld [vmem:[#allocation2 + $0x72] sm:$0xff]
        %v4793 = vld [vmem:[#allocation2 + $0x7a] sm:$0xff]
        %v4794 = vld [vmem:[#allocation2 + $0x82] sm:$0xff]
        %v4795 = vld [vmem:[#allocation2 + $0x8a] sm:$0x3f]
        %v4797 = vsel %vm3948, %v4779, 0
        %v4800 = vsel %vm3948, %v4780, 0
        %v4803 = vsel %vm3948, %v4781, 0
        %v4806 = vsel %vm3948, %v4782, 0
        %v4809 = vsel %vm3948, %v4783, 0
        %v4812 = vsel %vm3948, %v4784, 0
        %v4815 = vsel %vm3948, %v4785, 0
        %v4818 = vsel %vm3948, %v4786, 0
        %v4821 = vsel %vm3948, %v4787, 0
        %v4824 = vsel %vm3948, %v4788, 0
        %v4827 = vsel %vm3948, %v4789, 0
        %v4830 = vsel %vm3948, %v4790, 0
        %v4833 = vsel %vm3948, %v4791, 0
        %v4836 = vsel %vm3948, %v4792, 0
        %v4839 = vsel %vm3948, %v4793, 0
        %v4842 = vsel %vm3948, %v4794, 0
        %v4845 = vsel %vm3948, %v4795, 0
        %4847 = vmatpush.msra.mxu0 0.0
        %4848 = vmatpush.msra.mxu0 0.0
        %4849 = vmatpush.msra.mxu0 0.0
        %4850 = vmatpush.msra.mxu0 0.0
        %4851 = vmatpush.msra.mxu0 0.0
        %4852 = vmatpush.msra.mxu0 0.0
        %4853 = vmatpush.msra.mxu0 0.0
        %4854 = vmatpush.msra.mxu0 0.0
        %4855 = vmatpush.msra.mxu0 0.0
        %4856 = vmatpush.msra.mxu0 0.0
        %4857 = vmatpush.msra.mxu0 0.0
        %4858 = vmatpush.msra.mxu0 0.0
        %4859 = vmatpush.msra.mxu0 0.0
        %4860 = vmatpush.msra.mxu0 %v4472
        %4861 = vmatpush.msra.mxu0 %v4471
        %4862 = vmatpush.msra.mxu0 %v4470
        %4863 = vmatmul.f32.gmra.mxu0 %v4797
        %v4864 = vpop.f32.mrf.mxu0
        %v4865 = vadd.f32 0.0, %v4864
        %4866 = vmatmul.f32.gmra.mxu0 %v4800
        %v4867 = vpop.f32.mrf.mxu0
        %v4868 = vadd.f32 0.0, %v4867
        %4869 = vmatmul.f32.gmra.mxu0 %v4803
        %v4870 = vpop.f32.mrf.mxu0
        %v4871 = vadd.f32 0.0, %v4870
        %4872 = vmatmul.f32.gmra.mxu0 %v4806
        %v4873 = vpop.f32.mrf.mxu0
        %v4874 = vadd.f32 0.0, %v4873
        %4875 = vmatmul.f32.gmra.mxu0 %v4809
        %v4876 = vpop.f32.mrf.mxu0
        %v4877 = vadd.f32 0.0, %v4876
        %4878 = vmatmul.f32.gmra.mxu0 %v4812
        %v4879 = vpop.f32.mrf.mxu0
        %v4880 = vadd.f32 0.0, %v4879
        %4881 = vmatmul.f32.gmra.mxu0 %v4815
        %v4882 = vpop.f32.mrf.mxu0
        %v4883 = vadd.f32 0.0, %v4882
        %4884 = vmatmul.f32.gmra.mxu0 %v4818
        %v4885 = vpop.f32.mrf.mxu0
        %v4886 = vadd.f32 0.0, %v4885
        %4887 = vmatmul.f32.gmra.mxu0 %v4821
        %v4888 = vpop.f32.mrf.mxu0
        %v4889 = vadd.f32 0.0, %v4888
        %4890 = vmatmul.f32.gmra.mxu0 %v4824
        %v4891 = vpop.f32.mrf.mxu0
        %v4892 = vadd.f32 0.0, %v4891
        %4893 = vmatmul.f32.gmra.mxu0 %v4827
        %v4894 = vpop.f32.mrf.mxu0
        %v4895 = vadd.f32 0.0, %v4894
        %4896 = vmatmul.f32.gmra.mxu0 %v4830
        %v4897 = vpop.f32.mrf.mxu0
        %v4898 = vadd.f32 0.0, %v4897
        %4899 = vmatmul.f32.gmra.mxu0 %v4833
        %v4900 = vpop.f32.mrf.mxu0
        %v4901 = vadd.f32 0.0, %v4900
        %4902 = vmatmul.f32.gmra.mxu0 %v4836
        %v4903 = vpop.f32.mrf.mxu0
        %v4904 = vadd.f32 0.0, %v4903
        %4905 = vmatmul.f32.gmra.mxu0 %v4839
        %v4906 = vpop.f32.mrf.mxu0
        %v4907 = vadd.f32 0.0, %v4906
        %4908 = vmatmul.f32.gmra.mxu0 %v4842
        %v4909 = vpop.f32.mrf.mxu0
        %v4910 = vadd.f32 0.0, %v4909
        %4911 = vmatmul.f32.gmra.mxu0 %v4845
        %v4912 = vpop.f32.mrf.mxu0
        %v4913 = vadd.f32 0.0, %v4912
        %4914 = vdwg.mxu0
        %v4915 = vadd.f32 %v4762, %v4865
        %v4916 = vadd.f32 %v4763, %v4868
        %v4917 = vadd.f32 %v4764, %v4871
        %v4918 = vadd.f32 %v4765, %v4874
        %v4919 = vadd.f32 %v4766, %v4877
        %v4920 = vadd.f32 %v4767, %v4880
        %v4921 = vadd.f32 %v4768, %v4883
        %v4922 = vadd.f32 %v4769, %v4886
        %v4923 = vadd.f32 %v4770, %v4889
        %v4924 = vadd.f32 %v4771, %v4892
        %v4925 = vadd.f32 %v4772, %v4895
        %v4926 = vadd.f32 %v4773, %v4898
        %v4927 = vadd.f32 %v4774, %v4901
        %v4928 = vadd.f32 %v4775, %v4904
        %v4929 = vadd.f32 %v4776, %v4907
        %v4930 = vadd.f32 %v4777, %v4910
        %v4931 = vadd.f32 %v4778, %v4913
        %v4932 = vld [vmem:[%s3 + $0x90] sm:$0xff]
        %v4933 = vld [vmem:[%s3 + $0x98] sm:$0xff]
        %v4934 = vld [vmem:[%s3 + $0xa0] sm:$0xff]
        %v4935 = vld [vmem:[%s3 + $0xa8] sm:$0xff]
        %v4936 = vld [vmem:[%s3 + $0xb0] sm:$0xff]
        %v4937 = vld [vmem:[%s3 + $0xb8] sm:$0xff]
        %v4938 = vld [vmem:[%s3 + $0xc0] sm:$0xff]
        %v4939 = vld [vmem:[%s3 + $0xc8] sm:$0xff]
        %v4940 = vld [vmem:[%s3 + $0xd0] sm:$0xff]
        %v4941 = vld [vmem:[#allocation2 + $0x12] sm:$0xff]
        %v4942 = vld [vmem:[#allocation2 + $0x1a] sm:$0xff]
        %v4943 = vld [vmem:[#allocation2 + $0x22] sm:$0xff]
        %v4944 = vld [vmem:[#allocation2 + $0x2a] sm:$0xff]
        %v4945 = vld [vmem:[#allocation2 + $0x32] sm:$0xff]
        %v4946 = vld [vmem:[#allocation2 + $0x3a] sm:$0xff]
        %v4947 = vld [vmem:[#allocation2 + $0x42] sm:$0xff]
        %v4948 = vld [vmem:[#allocation2 + $0x4a] sm:$0xff]
        %v4949 = vld [vmem:[#allocation2 + $0x52] sm:$0xff]
        %v4950 = vld [vmem:[#allocation2 + $0x5a] sm:$0xff]
        %v4951 = vld [vmem:[#allocation2 + $0x62] sm:$0xff]
        %v4952 = vld [vmem:[#allocation2 + $0x6a] sm:$0xff]
        %v4953 = vld [vmem:[#allocation2 + $0x72] sm:$0xff]
        %v4954 = vld [vmem:[#allocation2 + $0x7a] sm:$0xff]
        %v4955 = vld [vmem:[#allocation2 + $0x82] sm:$0xff]
        %v4956 = vld [vmem:[#allocation2 + $0x8a] sm:$0xff]
        %v4957 = vld [vmem:[#allocation2 + $0x92] sm:$0x3f]
        %v4959 = vsel %vm3948, %v4941, 0
        %v4962 = vsel %vm3948, %v4942, 0
        %v4965 = vsel %vm3948, %v4943, 0
        %v4968 = vsel %vm3948, %v4944, 0
        %v4971 = vsel %vm3948, %v4945, 0
        %v4974 = vsel %vm3948, %v4946, 0
        %v4977 = vsel %vm3948, %v4947, 0
        %v4980 = vsel %vm3948, %v4948, 0
        %v4983 = vsel %vm3948, %v4949, 0
        %v4986 = vsel %vm3948, %v4950, 0
        %v4989 = vsel %vm3948, %v4951, 0
        %v4992 = vsel %vm3948, %v4952, 0
        %v4995 = vsel %vm3948, %v4953, 0
        %v4998 = vsel %vm3948, %v4954, 0
        %v5001 = vsel %vm3948, %v4955, 0
        %v5004 = vsel %vm3948, %v4956, 0
        %v5007 = vsel %vm3948, %v4957, 0
        %5009 = vmatpush.msra.mxu0 0.0
        %5010 = vmatpush.msra.mxu0 0.0
        %5011 = vmatpush.msra.mxu0 0.0
        %5012 = vmatpush.msra.mxu0 0.0
        %5013 = vmatpush.msra.mxu0 0.0
        %5014 = vmatpush.msra.mxu0 0.0
        %5015 = vmatpush.msra.mxu0 0.0
        %5016 = vmatpush.msra.mxu0 0.0
        %5017 = vmatpush.msra.mxu0 0.0
        %5018 = vmatpush.msra.mxu0 0.0
        %5019 = vmatpush.msra.mxu0 0.0
        %5020 = vmatpush.msra.mxu0 0.0
        %5021 = vmatpush.msra.mxu0 0.0
        %5022 = vmatpush.msra.mxu0 %v4934
        %5023 = vmatpush.msra.mxu0 %v4933
        %5024 = vmatpush.msra.mxu0 %v4932
        %5025 = vmatmul.f32.gmra.mxu0 %v4959
        %v5026 = vpop.f32.mrf.mxu0
        %v5027 = vadd.f32 0.0, %v5026
        %5028 = vmatmul.f32.gmra.mxu0 %v4962
        %v5029 = vpop.f32.mrf.mxu0
        %v5030 = vadd.f32 0.0, %v5029
        %5031 = vmatmul.f32.gmra.mxu0 %v4965
        %v5032 = vpop.f32.mrf.mxu0
        %v5033 = vadd.f32 0.0, %v5032
        %5034 = vmatmul.f32.gmra.mxu0 %v4968
        %v5035 = vpop.f32.mrf.mxu0
        %v5036 = vadd.f32 0.0, %v5035
        %5037 = vmatmul.f32.gmra.mxu0 %v4971
        %v5038 = vpop.f32.mrf.mxu0
        %v5039 = vadd.f32 0.0, %v5038
        %5040 = vmatmul.f32.gmra.mxu0 %v4974
        %v5041 = vpop.f32.mrf.mxu0
        %v5042 = vadd.f32 0.0, %v5041
        %5043 = vmatmul.f32.gmra.mxu0 %v4977
        %v5044 = vpop.f32.mrf.mxu0
        %v5045 = vadd.f32 0.0, %v5044
        %5046 = vmatmul.f32.gmra.mxu0 %v4980
        %v5047 = vpop.f32.mrf.mxu0
        %v5048 = vadd.f32 0.0, %v5047
        %5049 = vmatmul.f32.gmra.mxu0 %v4983
        %v5050 = vpop.f32.mrf.mxu0
        %v5051 = vadd.f32 0.0, %v5050
        %5052 = vmatmul.f32.gmra.mxu0 %v4986
        %v5053 = vpop.f32.mrf.mxu0
        %v5054 = vadd.f32 0.0, %v5053
        %5055 = vmatmul.f32.gmra.mxu0 %v4989
        %v5056 = vpop.f32.mrf.mxu0
        %v5057 = vadd.f32 0.0, %v5056
        %5058 = vmatmul.f32.gmra.mxu0 %v4992
        %v5059 = vpop.f32.mrf.mxu0
        %v5060 = vadd.f32 0.0, %v5059
        %5061 = vmatmul.f32.gmra.mxu0 %v4995
        %v5062 = vpop.f32.mrf.mxu0
        %v5063 = vadd.f32 0.0, %v5062
        %5064 = vmatmul.f32.gmra.mxu0 %v4998
        %v5065 = vpop.f32.mrf.mxu0
        %v5066 = vadd.f32 0.0, %v5065
        %5067 = vmatmul.f32.gmra.mxu0 %v5001
        %v5068 = vpop.f32.mrf.mxu0
        %v5069 = vadd.f32 0.0, %v5068
        %5070 = vmatmul.f32.gmra.mxu0 %v5004
        %v5071 = vpop.f32.mrf.mxu0
        %v5072 = vadd.f32 0.0, %v5071
        %5073 = vmatmul.f32.gmra.mxu0 %v5007
        %v5074 = vpop.f32.mrf.mxu0
        %v5075 = vadd.f32 0.0, %v5074
        %5076 = vdwg.mxu0
        %v5077 = vadd.f32 %v4915, %v5027
        %v5078 = vadd.f32 %v4916, %v5030
        %v5079 = vadd.f32 %v4917, %v5033
        %v5080 = vadd.f32 %v4918, %v5036
        %v5081 = vadd.f32 %v4919, %v5039
        %v5082 = vadd.f32 %v4920, %v5042
        %v5083 = vadd.f32 %v4921, %v5045
        %v5084 = vadd.f32 %v4922, %v5048
        %v5085 = vadd.f32 %v4923, %v5051
        %v5086 = vadd.f32 %v4924, %v5054
        %v5087 = vadd.f32 %v4925, %v5057
        %v5088 = vadd.f32 %v4926, %v5060
        %v5089 = vadd.f32 %v4927, %v5063
        %v5090 = vadd.f32 %v4928, %v5066
        %v5091 = vadd.f32 %v4929, %v5069
        %v5092 = vadd.f32 %v4930, %v5072
        %v5093 = vadd.f32 %v4931, %v5075
        %v5094 = vld [vmem:[#allocation3 + $0x12] sm:$0xff]
        %v5095 = vld [vmem:[#allocation3 + $0x1a] sm:$0xff]
        %v5096 = vld [vmem:[#allocation3 + $0x22] sm:$0xff]
        %v5097 = vld [vmem:[#allocation3 + $0x2a] sm:$0xff]
        %v5098 = vld [vmem:[#allocation3 + $0x32] sm:$0xff]
        %v5099 = vld [vmem:[#allocation3 + $0x3a] sm:$0xff]
        %v5100 = vld [vmem:[#allocation3 + $0x42] sm:$0xff]
        %v5101 = vld [vmem:[#allocation3 + $0x4a] sm:$0xff]
        %v5102 = vld [vmem:[#allocation3 + $0x52] sm:$0xff]
        %v5103 = vld [vmem:[#allocation3 + $0x5a] sm:$0xff]
        %v5104 = vld [vmem:[#allocation3 + $0x62] sm:$0xff]
        %v5105 = vld [vmem:[#allocation3 + $0x6a] sm:$0xff]
        %v5106 = vld [vmem:[#allocation3 + $0x72] sm:$0xff]
        %v5107 = vld [vmem:[#allocation3 + $0x7a] sm:$0xff]
        %v5108 = vld [vmem:[#allocation3 + $0x82] sm:$0xff]
        %v5109 = vld [vmem:[#allocation3 + $0x8a] sm:$0xff]
        %v5110 = vld [vmem:[#allocation3 + $0x92] sm:$0x3f]
        %v5112 = vsel %vm3948, %v5094, 0
        %v5115 = vsel %vm3948, %v5095, 0
        %v5118 = vsel %vm3948, %v5096, 0
        %v5121 = vsel %vm3948, %v5097, 0
        %v5124 = vsel %vm3948, %v5098, 0
        %v5127 = vsel %vm3948, %v5099, 0
        %v5130 = vsel %vm3948, %v5100, 0
        %v5133 = vsel %vm3948, %v5101, 0
        %v5136 = vsel %vm3948, %v5102, 0
        %v5139 = vsel %vm3948, %v5103, 0
        %v5142 = vsel %vm3948, %v5104, 0
        %v5145 = vsel %vm3948, %v5105, 0
        %v5148 = vsel %vm3948, %v5106, 0
        %v5151 = vsel %vm3948, %v5107, 0
        %v5154 = vsel %vm3948, %v5108, 0
        %v5157 = vsel %vm3948, %v5109, 0
        %v5160 = vsel %vm3948, %v5110, 0
        %5162 = vmatpush.msra.mxu0 0.0
        %5163 = vmatpush.msra.mxu0 0.0
        %5164 = vmatpush.msra.mxu0 0.0
        %5165 = vmatpush.msra.mxu0 0.0
        %5166 = vmatpush.msra.mxu0 0.0
        %5167 = vmatpush.msra.mxu0 0.0
        %5168 = vmatpush.msra.mxu0 0.0
        %5169 = vmatpush.msra.mxu0 0.0
        %5170 = vmatpush.msra.mxu0 0.0
        %5171 = vmatpush.msra.mxu0 0.0
        %5172 = vmatpush.msra.mxu0 0.0
        %5173 = vmatpush.msra.mxu0 0.0
        %5174 = vmatpush.msra.mxu0 0.0
        %5175 = vmatpush.msra.mxu0 %v4937
        %5176 = vmatpush.msra.mxu0 %v4936
        %5177 = vmatpush.msra.mxu0 %v4935
        %5178 = vmatmul.f32.gmra.mxu0 %v5112
        %v5179 = vpop.f32.mrf.mxu0
        %v5180 = vadd.f32 0.0, %v5179
        %5181 = vmatmul.f32.gmra.mxu0 %v5115
        %v5182 = vpop.f32.mrf.mxu0
        %v5183 = vadd.f32 0.0, %v5182
        %5184 = vmatmul.f32.gmra.mxu0 %v5118
        %v5185 = vpop.f32.mrf.mxu0
        %v5186 = vadd.f32 0.0, %v5185
        %5187 = vmatmul.f32.gmra.mxu0 %v5121
        %v5188 = vpop.f32.mrf.mxu0
        %v5189 = vadd.f32 0.0, %v5188
        %5190 = vmatmul.f32.gmra.mxu0 %v5124
        %v5191 = vpop.f32.mrf.mxu0
        %v5192 = vadd.f32 0.0, %v5191
        %5193 = vmatmul.f32.gmra.mxu0 %v5127
        %v5194 = vpop.f32.mrf.mxu0
        %v5195 = vadd.f32 0.0, %v5194
        %5196 = vmatmul.f32.gmra.mxu0 %v5130
        %v5197 = vpop.f32.mrf.mxu0
        %v5198 = vadd.f32 0.0, %v5197
        %5199 = vmatmul.f32.gmra.mxu0 %v5133
        %v5200 = vpop.f32.mrf.mxu0
        %v5201 = vadd.f32 0.0, %v5200
        %5202 = vmatmul.f32.gmra.mxu0 %v5136
        %v5203 = vpop.f32.mrf.mxu0
        %v5204 = vadd.f32 0.0, %v5203
        %5205 = vmatmul.f32.gmra.mxu0 %v5139
        %v5206 = vpop.f32.mrf.mxu0
        %v5207 = vadd.f32 0.0, %v5206
        %5208 = vmatmul.f32.gmra.mxu0 %v5142
        %v5209 = vpop.f32.mrf.mxu0
        %v5210 = vadd.f32 0.0, %v5209
        %5211 = vmatmul.f32.gmra.mxu0 %v5145
        %v5212 = vpop.f32.mrf.mxu0
        %v5213 = vadd.f32 0.0, %v5212
        %5214 = vmatmul.f32.gmra.mxu0 %v5148
        %v5215 = vpop.f32.mrf.mxu0
        %v5216 = vadd.f32 0.0, %v5215
        %5217 = vmatmul.f32.gmra.mxu0 %v5151
        %v5218 = vpop.f32.mrf.mxu0
        %v5219 = vadd.f32 0.0, %v5218
        %5220 = vmatmul.f32.gmra.mxu0 %v5154
        %v5221 = vpop.f32.mrf.mxu0
        %v5222 = vadd.f32 0.0, %v5221
        %5223 = vmatmul.f32.gmra.mxu0 %v5157
        %v5224 = vpop.f32.mrf.mxu0
        %v5225 = vadd.f32 0.0, %v5224
        %5226 = vmatmul.f32.gmra.mxu0 %v5160
        %v5227 = vpop.f32.mrf.mxu0
        %v5228 = vadd.f32 0.0, %v5227
        %5229 = vdwg.mxu0
        %v5230 = vadd.f32 %v5077, %v5180
        %v5231 = vadd.f32 %v5078, %v5183
        %v5232 = vadd.f32 %v5079, %v5186
        %v5233 = vadd.f32 %v5080, %v5189
        %v5234 = vadd.f32 %v5081, %v5192
        %v5235 = vadd.f32 %v5082, %v5195
        %v5236 = vadd.f32 %v5083, %v5198
        %v5237 = vadd.f32 %v5084, %v5201
        %v5238 = vadd.f32 %v5085, %v5204
        %v5239 = vadd.f32 %v5086, %v5207
        %v5240 = vadd.f32 %v5087, %v5210
        %v5241 = vadd.f32 %v5088, %v5213
        %v5242 = vadd.f32 %v5089, %v5216
        %v5243 = vadd.f32 %v5090, %v5219
        %v5244 = vadd.f32 %v5091, %v5222
        %v5245 = vadd.f32 %v5092, %v5225
        %v5246 = vadd.f32 %v5093, %v5228
        %v5247 = vld [vmem:[#allocation2 + $0x13] sm:$0xff]
        %v5248 = vld [vmem:[#allocation2 + $0x1b] sm:$0xff]
        %v5249 = vld [vmem:[#allocation2 + $0x23] sm:$0xff]
        %v5250 = vld [vmem:[#allocation2 + $0x2b] sm:$0xff]
        %v5251 = vld [vmem:[#allocation2 + $0x33] sm:$0xff]
        %v5252 = vld [vmem:[#allocation2 + $0x3b] sm:$0xff]
        %v5253 = vld [vmem:[#allocation2 + $0x43] sm:$0xff]
        %v5254 = vld [vmem:[#allocation2 + $0x4b] sm:$0xff]
        %v5255 = vld [vmem:[#allocation2 + $0x53] sm:$0xff]
        %v5256 = vld [vmem:[#allocation2 + $0x5b] sm:$0xff]
        %v5257 = vld [vmem:[#allocation2 + $0x63] sm:$0xff]
        %v5258 = vld [vmem:[#allocation2 + $0x6b] sm:$0xff]
        %v5259 = vld [vmem:[#allocation2 + $0x73] sm:$0xff]
        %v5260 = vld [vmem:[#allocation2 + $0x7b] sm:$0xff]
        %v5261 = vld [vmem:[#allocation2 + $0x83] sm:$0xff]
        %v5262 = vld [vmem:[#allocation2 + $0x8b] sm:$0xff]
        %v5263 = vld [vmem:[#allocation2 + $0x93] sm:$0x3f]
        %v5265 = vsel %vm3948, %v5247, 0
        %v5268 = vsel %vm3948, %v5248, 0
        %v5271 = vsel %vm3948, %v5249, 0
        %v5274 = vsel %vm3948, %v5250, 0
        %v5277 = vsel %vm3948, %v5251, 0
        %v5280 = vsel %vm3948, %v5252, 0
        %v5283 = vsel %vm3948, %v5253, 0
        %v5286 = vsel %vm3948, %v5254, 0
        %v5289 = vsel %vm3948, %v5255, 0
        %v5292 = vsel %vm3948, %v5256, 0
        %v5295 = vsel %vm3948, %v5257, 0
        %v5298 = vsel %vm3948, %v5258, 0
        %v5301 = vsel %vm3948, %v5259, 0
        %v5304 = vsel %vm3948, %v5260, 0
        %v5307 = vsel %vm3948, %v5261, 0
        %v5310 = vsel %vm3948, %v5262, 0
        %v5313 = vsel %vm3948, %v5263, 0
        %5315 = vmatpush.msra.mxu0 0.0
        %5316 = vmatpush.msra.mxu0 0.0
        %5317 = vmatpush.msra.mxu0 0.0
        %5318 = vmatpush.msra.mxu0 0.0
        %5319 = vmatpush.msra.mxu0 0.0
        %5320 = vmatpush.msra.mxu0 0.0
        %5321 = vmatpush.msra.mxu0 0.0
        %5322 = vmatpush.msra.mxu0 0.0
        %5323 = vmatpush.msra.mxu0 0.0
        %5324 = vmatpush.msra.mxu0 0.0
        %5325 = vmatpush.msra.mxu0 0.0
        %5326 = vmatpush.msra.mxu0 0.0
        %5327 = vmatpush.msra.mxu0 0.0
        %5328 = vmatpush.msra.mxu0 %v4940
        %5329 = vmatpush.msra.mxu0 %v4939
        %5330 = vmatpush.msra.mxu0 %v4938
        %5331 = vmatmul.f32.gmra.mxu0 %v5265
        %v5332 = vpop.f32.mrf.mxu0
        %v5333 = vadd.f32 0.0, %v5332
        %5334 = vmatmul.f32.gmra.mxu0 %v5268
        %v5335 = vpop.f32.mrf.mxu0
        %v5336 = vadd.f32 0.0, %v5335
        %5337 = vmatmul.f32.gmra.mxu0 %v5271
        %v5338 = vpop.f32.mrf.mxu0
        %v5339 = vadd.f32 0.0, %v5338
        %5340 = vmatmul.f32.gmra.mxu0 %v5274
        %v5341 = vpop.f32.mrf.mxu0
        %v5342 = vadd.f32 0.0, %v5341
        %5343 = vmatmul.f32.gmra.mxu0 %v5277
        %v5344 = vpop.f32.mrf.mxu0
        %v5345 = vadd.f32 0.0, %v5344
        %5346 = vmatmul.f32.gmra.mxu0 %v5280
        %v5347 = vpop.f32.mrf.mxu0
        %v5348 = vadd.f32 0.0, %v5347
        %5349 = vmatmul.f32.gmra.mxu0 %v5283
        %v5350 = vpop.f32.mrf.mxu0
        %v5351 = vadd.f32 0.0, %v5350
        %5352 = vmatmul.f32.gmra.mxu0 %v5286
        %v5353 = vpop.f32.mrf.mxu0
        %v5354 = vadd.f32 0.0, %v5353
        %5355 = vmatmul.f32.gmra.mxu0 %v5289
        %v5356 = vpop.f32.mrf.mxu0
        %v5357 = vadd.f32 0.0, %v5356
        %5358 = vmatmul.f32.gmra.mxu0 %v5292
        %v5359 = vpop.f32.mrf.mxu0
        %v5360 = vadd.f32 0.0, %v5359
        %5361 = vmatmul.f32.gmra.mxu0 %v5295
        %v5362 = vpop.f32.mrf.mxu0
        %v5363 = vadd.f32 0.0, %v5362
        %5364 = vmatmul.f32.gmra.mxu0 %v5298
        %v5365 = vpop.f32.mrf.mxu0
        %v5366 = vadd.f32 0.0, %v5365
        %5367 = vmatmul.f32.gmra.mxu0 %v5301
        %v5368 = vpop.f32.mrf.mxu0
        %v5369 = vadd.f32 0.0, %v5368
        %5370 = vmatmul.f32.gmra.mxu0 %v5304
        %v5371 = vpop.f32.mrf.mxu0
        %v5372 = vadd.f32 0.0, %v5371
        %5373 = vmatmul.f32.gmra.mxu0 %v5307
        %v5374 = vpop.f32.mrf.mxu0
        %v5375 = vadd.f32 0.0, %v5374
        %5376 = vmatmul.f32.gmra.mxu0 %v5310
        %v5377 = vpop.f32.mrf.mxu0
        %v5378 = vadd.f32 0.0, %v5377
        %5379 = vmatmul.f32.gmra.mxu0 %v5313
        %v5380 = vpop.f32.mrf.mxu0
        %v5381 = vadd.f32 0.0, %v5380
        %5382 = vdwg.mxu0
        %v5383 = vadd.f32 %v5230, %v5333
        %v5384 = vadd.f32 %v5231, %v5336
        %v5385 = vadd.f32 %v5232, %v5339
        %v5386 = vadd.f32 %v5233, %v5342
        %v5387 = vadd.f32 %v5234, %v5345
        %v5388 = vadd.f32 %v5235, %v5348
        %v5389 = vadd.f32 %v5236, %v5351
        %v5390 = vadd.f32 %v5237, %v5354
        %v5391 = vadd.f32 %v5238, %v5357
        %v5392 = vadd.f32 %v5239, %v5360
        %v5393 = vadd.f32 %v5240, %v5363
        %v5394 = vadd.f32 %v5241, %v5366
        %v5395 = vadd.f32 %v5242, %v5369
        %v5396 = vadd.f32 %v5243, %v5372
        %v5397 = vadd.f32 %v5244, %v5375
        %v5398 = vadd.f32 %v5245, %v5378
        %v5399 = vadd.f32 %v5246, %v5381
        %v5400 = vperm.slane %v4029, 0
        %v5401 = vadd.f32 %v5383, %v5400
        %v5402 = vadd.f32 %v5384, %v5400
        %v5403 = vadd.f32 %v5385, %v5400
        %v5404 = vadd.f32 %v5386, %v5400
        %v5405 = vadd.f32 %v5387, %v5400
        %v5406 = vadd.f32 %v5388, %v5400
        %v5407 = vadd.f32 %v5389, %v5400
        %v5408 = vadd.f32 %v5390, %v5400
        %v5409 = vadd.f32 %v5391, %v5400
        %v5410 = vadd.f32 %v5392, %v5400
        %v5411 = vadd.f32 %v5393, %v5400
        %v5412 = vadd.f32 %v5394, %v5400
        %v5413 = vadd.f32 %v5395, %v5400
        %v5414 = vadd.f32 %v5396, %v5400
        %v5415 = vadd.f32 %v5397, %v5400
        %v5416 = vadd.f32 %v5398, %v5400
        %v5417 = vadd.f32 %v5399, %v5400
        %v5418 = vmax.f32 %v5401, 0.0
        %v5419 = vmax.f32 %v5402, 0.0
        %v5420 = vmax.f32 %v5403, 0.0
        %v5421 = vmax.f32 %v5404, 0.0
        %v5422 = vmax.f32 %v5405, 0.0
        %v5423 = vmax.f32 %v5406, 0.0
        %v5424 = vmax.f32 %v5407, 0.0
        %v5425 = vmax.f32 %v5408, 0.0
        %v5426 = vmax.f32 %v5409, 0.0
        %v5427 = vmax.f32 %v5410, 0.0
        %v5428 = vmax.f32 %v5411, 0.0
        %v5429 = vmax.f32 %v5412, 0.0
        %v5430 = vmax.f32 %v5413, 0.0
        %v5431 = vmax.f32 %v5414, 0.0
        %v5432 = vmax.f32 %v5415, 0.0
        %v5433 = vmax.f32 %v5416, 0.0
        %v5434 = vmax.f32 %v5417, 0.0
        %v5435 = vld [vmem:[%s4] sm:$0xff]
        %v5436 = vld [vmem:[%s4 + $0x8] sm:$0xff]
        %v5437 = vld [vmem:[%s4 + $0x10] sm:$0xff]
        %v5438 = vld [vmem:[%s4 + $0x18] sm:$0xff]
        %v5439 = vld [vmem:[%s4 + $0x20] sm:$0xff]
        %v5440 = vld [vmem:[%s4 + $0x28] sm:$0xff]
        %v5441 = vld [vmem:[%s5 + $0xa] sm:$0x1]
        %v5442 = vperm.slane %v5441, 0
        %vm5443 = vcmask 392192
        %v5445 = vsel %vm5443, %v5418, 0
        %v5448 = vsel %vm5443, %v5419, 0
        %v5451 = vsel %vm5443, %v5420, 0
        %v5454 = vsel %vm5443, %v5421, 0
        %v5457 = vsel %vm5443, %v5422, 0
        %v5460 = vsel %vm5443, %v5423, 0
        %v5463 = vsel %vm5443, %v5424, 0
        %v5466 = vsel %vm5443, %v5425, 0
        %v5469 = vsel %vm5443, %v5426, 0
        %v5472 = vsel %vm5443, %v5427, 0
        %v5475 = vsel %vm5443, %v5428, 0
        %v5478 = vsel %vm5443, %v5429, 0
        %v5481 = vsel %vm5443, %v5430, 0
        %v5484 = vsel %vm5443, %v5431, 0
        %v5487 = vsel %vm5443, %v5432, 0
        %v5490 = vsel %vm5443, %v5433, 0
        %v5493 = vsel %vm5443, %v5434, 0
        %5495 = vmatpush.msra.mxu0 0.0
        %5496 = vmatpush.msra.mxu0 0.0
        %5497 = vmatpush.msra.mxu0 0.0
        %5498 = vmatpush.msra.mxu0 0.0
        %5499 = vmatpush.msra.mxu0 0.0
        %5500 = vmatpush.msra.mxu0 0.0
        %5501 = vmatpush.msra.mxu0 0.0
        %5502 = vmatpush.msra.mxu0 0.0
        %5503 = vmatpush.msra.mxu0 0.0
        %5504 = vmatpush.msra.mxu0 0.0
        %5505 = vmatpush.msra.mxu0 %v5440
        %5506 = vmatpush.msra.mxu0 %v5439
        %5507 = vmatpush.msra.mxu0 %v5438
        %5508 = vmatpush.msra.mxu0 %v5437
        %5509 = vmatpush.msra.mxu0 %v5436
        %5510 = vmatpush.msra.mxu0 %v5435
        %5511 = vmatmul.f32.gmra.mxu0 %v5445
        %v5512 = vpop.f32.mrf.mxu0
        %v5513 = vadd.f32 %v5442, %v5512
        %5514 = vmatmul.f32.gmra.mxu0 %v5448
        %v5515 = vpop.f32.mrf.mxu0
        %v5516 = vadd.f32 %v5442, %v5515
        %5517 = vmatmul.f32.gmra.mxu0 %v5451
        %v5518 = vpop.f32.mrf.mxu0
        %v5519 = vadd.f32 %v5442, %v5518
        %5520 = vmatmul.f32.gmra.mxu0 %v5454
        %v5521 = vpop.f32.mrf.mxu0
        %v5522 = vadd.f32 %v5442, %v5521
        %5523 = vmatmul.f32.gmra.mxu0 %v5457
        %v5524 = vpop.f32.mrf.mxu0
        %v5525 = vadd.f32 %v5442, %v5524
        %5526 = vmatmul.f32.gmra.mxu0 %v5460
        %v5527 = vpop.f32.mrf.mxu0
        %v5528 = vadd.f32 %v5442, %v5527
        %5529 = vmatmul.f32.gmra.mxu0 %v5463
        %v5530 = vpop.f32.mrf.mxu0
        %v5531 = vadd.f32 %v5442, %v5530
        %5532 = vmatmul.f32.gmra.mxu0 %v5466
        %v5533 = vpop.f32.mrf.mxu0
        %v5534 = vadd.f32 %v5442, %v5533
        %5535 = vmatmul.f32.gmra.mxu0 %v5469
        %v5536 = vpop.f32.mrf.mxu0
        %v5537 = vadd.f32 %v5442, %v5536
        %5538 = vmatmul.f32.gmra.mxu0 %v5472
        %v5539 = vpop.f32.mrf.mxu0
        %v5540 = vadd.f32 %v5442, %v5539
        %5541 = vmatmul.f32.gmra.mxu0 %v5475
        %v5542 = vpop.f32.mrf.mxu0
        %v5543 = vadd.f32 %v5442, %v5542
        %5544 = vmatmul.f32.gmra.mxu0 %v5478
        %v5545 = vpop.f32.mrf.mxu0
        %v5546 = vadd.f32 %v5442, %v5545
        %5547 = vmatmul.f32.gmra.mxu0 %v5481
        %v5548 = vpop.f32.mrf.mxu0
        %v5549 = vadd.f32 %v5442, %v5548
        %5550 = vmatmul.f32.gmra.mxu0 %v5484
        %v5551 = vpop.f32.mrf.mxu0
        %v5552 = vadd.f32 %v5442, %v5551
        %5553 = vmatmul.f32.gmra.mxu0 %v5487
        %v5554 = vpop.f32.mrf.mxu0
        %v5555 = vadd.f32 %v5442, %v5554
        %5556 = vmatmul.f32.gmra.mxu0 %v5490
        %v5557 = vpop.f32.mrf.mxu0
        %v5558 = vadd.f32 %v5442, %v5557
        %5559 = vmatmul.f32.gmra.mxu0 %v5493
        %v5560 = vpop.f32.mrf.mxu0
        %v5561 = vadd.f32 %v5442, %v5560
        %5562 = vdwg.mxu0
        %vm5563 = vcmp.lt.s32.totalorder %v2526, 0
        %v5564 = vsub.s32 0, %v2526
        %v5565 = vsel %vm5563, %v5564, %v2526
        %v5566 = vand.u32 %v5565, 65535
        %v5567 = vshrl.u32 %v5565, 16
        %v5569 = vmul.u32 %v5566, 14564
        %v5570 = vmul.u32 %v5566, 58254
        %v5571 = vmul.u32 %v5567, 14564
        %v5572 = vmul.u32 %v5567, 58254
        %v5573 = vshll.u32 %v5570, 16
        %v5574 = vshrl.u32 %v5570, 16
        %v5575 = vshll.u32 %v5571, 16
        %v5576 = vshrl.u32 %v5571, 16
        %vm5577 = vc.u32 %v5569, %v5573
        %v5578 = vsel %vm5577, 1, 0
        %v5579 = vadd.s32 %v5569, %v5573
        %v5580 = vadd.s32 %v5572, %v5578
        %vm5581 = vc.u32 %v5579, %v5575
        %v5582 = vsel %vm5581, 1, 0
        %v5583 = vadd.s32 %v5579, %v5575
        %v5584 = vadd.s32 %v5580, %v5582
        %v5585 = vadd.s32 %v5584, %v5574
        %v5586 = vadd.s32 %v5585, %v5576
        %v5587 = vshrl.u32 %v5586, 4
        %v5588 = vmul.u32 %v5587, 18
        %v5589 = vsub.s32 %v5565, %v5588
        %v5590 = vsub.s32 0, %v5589
        %v5591 = vsel %vm5563, %v5590, %v5589
        %vm5592 = vcmp.lt.s32.totalorder %v2527, 0
        %v5593 = vsub.s32 0, %v2527
        %v5594 = vsel %vm5592, %v5593, %v2527
        %v5595 = vand.u32 %v5594, 65535
        %v5596 = vshrl.u32 %v5594, 16
        %v5598 = vmul.u32 %v5595, 14564
        %v5599 = vmul.u32 %v5595, 58254
        %v5600 = vmul.u32 %v5596, 14564
        %v5601 = vmul.u32 %v5596, 58254
        %v5602 = vshll.u32 %v5599, 16
        %v5603 = vshrl.u32 %v5599, 16
        %v5604 = vshll.u32 %v5600, 16
        %v5605 = vshrl.u32 %v5600, 16
        %vm5606 = vc.u32 %v5598, %v5602
        %v5607 = vsel %vm5606, 1, 0
        %v5608 = vadd.s32 %v5598, %v5602
        %v5609 = vadd.s32 %v5601, %v5607
        %vm5610 = vc.u32 %v5608, %v5604
        %v5611 = vsel %vm5610, 1, 0
        %v5612 = vadd.s32 %v5608, %v5604
        %v5613 = vadd.s32 %v5609, %v5611
        %v5614 = vadd.s32 %v5613, %v5603
        %v5615 = vadd.s32 %v5614, %v5605
        %v5616 = vshrl.u32 %v5615, 4
        %v5617 = vmul.u32 %v5616, 18
        %v5618 = vsub.s32 %v5594, %v5617
        %v5619 = vsub.s32 0, %v5618
        %v5620 = vsel %vm5592, %v5619, %v5618
        %vm5621 = vcmp.lt.s32.totalorder %v2528, 0
        %v5622 = vsub.s32 0, %v2528
        %v5623 = vsel %vm5621, %v5622, %v2528
        %v5624 = vand.u32 %v5623, 65535
        %v5625 = vshrl.u32 %v5623, 16
        %v5627 = vmul.u32 %v5624, 14564
        %v5628 = vmul.u32 %v5624, 58254
        %v5629 = vmul.u32 %v5625, 14564
        %v5630 = vmul.u32 %v5625, 58254
        %v5631 = vshll.u32 %v5628, 16
        %v5632 = vshrl.u32 %v5628, 16
        %v5633 = vshll.u32 %v5629, 16
        %v5634 = vshrl.u32 %v5629, 16
        %vm5635 = vc.u32 %v5627, %v5631
        %v5636 = vsel %vm5635, 1, 0
        %v5637 = vadd.s32 %v5627, %v5631
        %v5638 = vadd.s32 %v5630, %v5636
        %vm5639 = vc.u32 %v5637, %v5633
        %v5640 = vsel %vm5639, 1, 0
        %v5641 = vadd.s32 %v5637, %v5633
        %v5642 = vadd.s32 %v5638, %v5640
        %v5643 = vadd.s32 %v5642, %v5632
        %v5644 = vadd.s32 %v5643, %v5634
        %v5645 = vshrl.u32 %v5644, 4
        %v5646 = vmul.u32 %v5645, 18
        %v5647 = vsub.s32 %v5623, %v5646
        %v5648 = vsub.s32 0, %v5647
        %v5649 = vsel %vm5621, %v5648, %v5647
        %vm5650 = vcmp.lt.s32.totalorder %v2529, 0
        %v5651 = vsub.s32 0, %v2529
        %v5652 = vsel %vm5650, %v5651, %v2529
        %v5653 = vand.u32 %v5652, 65535
        %v5654 = vshrl.u32 %v5652, 16
        %v5656 = vmul.u32 %v5653, 14564
        %v5657 = vmul.u32 %v5653, 58254
        %v5658 = vmul.u32 %v5654, 14564
        %v5659 = vmul.u32 %v5654, 58254
        %v5660 = vshll.u32 %v5657, 16
        %v5661 = vshrl.u32 %v5657, 16
        %v5662 = vshll.u32 %v5658, 16
        %v5663 = vshrl.u32 %v5658, 16
        %vm5664 = vc.u32 %v5656, %v5660
        %v5665 = vsel %vm5664, 1, 0
        %v5666 = vadd.s32 %v5656, %v5660
        %v5667 = vadd.s32 %v5659, %v5665
        %vm5668 = vc.u32 %v5666, %v5662
        %v5669 = vsel %vm5668, 1, 0
        %v5670 = vadd.s32 %v5666, %v5662
        %v5671 = vadd.s32 %v5667, %v5669
        %v5672 = vadd.s32 %v5671, %v5661
        %v5673 = vadd.s32 %v5672, %v5663
        %v5674 = vshrl.u32 %v5673, 4
        %v5675 = vmul.u32 %v5674, 18
        %v5676 = vsub.s32 %v5652, %v5675
        %v5677 = vsub.s32 0, %v5676
        %v5678 = vsel %vm5650, %v5677, %v5676
        %vm5679 = vcmp.lt.s32.totalorder %v2530, 0
        %v5680 = vsub.s32 0, %v2530
        %v5681 = vsel %vm5679, %v5680, %v2530
        %v5682 = vand.u32 %v5681, 65535
        %v5683 = vshrl.u32 %v5681, 16
        %v5685 = vmul.u32 %v5682, 14564
        %v5686 = vmul.u32 %v5682, 58254
        %v5687 = vmul.u32 %v5683, 14564
        %v5688 = vmul.u32 %v5683, 58254
        %v5689 = vshll.u32 %v5686, 16
        %v5690 = vshrl.u32 %v5686, 16
        %v5691 = vshll.u32 %v5687, 16
        %v5692 = vshrl.u32 %v5687, 16
        %vm5693 = vc.u32 %v5685, %v5689
        %v5694 = vsel %vm5693, 1, 0
        %v5695 = vadd.s32 %v5685, %v5689
        %v5696 = vadd.s32 %v5688, %v5694
        %vm5697 = vc.u32 %v5695, %v5691
        %v5698 = vsel %vm5697, 1, 0
        %v5699 = vadd.s32 %v5695, %v5691
        %v5700 = vadd.s32 %v5696, %v5698
        %v5701 = vadd.s32 %v5700, %v5690
        %v5702 = vadd.s32 %v5701, %v5692
        %v5703 = vshrl.u32 %v5702, 4
        %v5704 = vmul.u32 %v5703, 18
        %v5705 = vsub.s32 %v5681, %v5704
        %v5706 = vsub.s32 0, %v5705
        %v5707 = vsel %vm5679, %v5706, %v5705
        %vm5708 = vcmp.lt.s32.totalorder %v2531, 0
        %v5709 = vsub.s32 0, %v2531
        %v5710 = vsel %vm5708, %v5709, %v2531
        %v5711 = vand.u32 %v5710, 65535
        %v5712 = vshrl.u32 %v5710, 16
        %v5714 = vmul.u32 %v5711, 14564
        %v5715 = vmul.u32 %v5711, 58254
        %v5716 = vmul.u32 %v5712, 14564
        %v5717 = vmul.u32 %v5712, 58254
        %v5718 = vshll.u32 %v5715, 16
        %v5719 = vshrl.u32 %v5715, 16
        %v5720 = vshll.u32 %v5716, 16
        %v5721 = vshrl.u32 %v5716, 16
        %vm5722 = vc.u32 %v5714, %v5718
        %v5723 = vsel %vm5722, 1, 0
        %v5724 = vadd.s32 %v5714, %v5718
        %v5725 = vadd.s32 %v5717, %v5723
        %vm5726 = vc.u32 %v5724, %v5720
        %v5727 = vsel %vm5726, 1, 0
        %v5728 = vadd.s32 %v5724, %v5720
        %v5729 = vadd.s32 %v5725, %v5727
        %v5730 = vadd.s32 %v5729, %v5719
        %v5731 = vadd.s32 %v5730, %v5721
        %v5732 = vshrl.u32 %v5731, 4
        %v5733 = vmul.u32 %v5732, 18
        %v5734 = vsub.s32 %v5710, %v5733
        %v5735 = vsub.s32 0, %v5734
        %v5736 = vsel %vm5708, %v5735, %v5734
        %vm5737 = vcmp.lt.s32.totalorder %v2532, 0
        %v5738 = vsub.s32 0, %v2532
        %v5739 = vsel %vm5737, %v5738, %v2532
        %v5740 = vand.u32 %v5739, 65535
        %v5741 = vshrl.u32 %v5739, 16
        %v5743 = vmul.u32 %v5740, 14564
        %v5744 = vmul.u32 %v5740, 58254
        %v5745 = vmul.u32 %v5741, 14564
        %v5746 = vmul.u32 %v5741, 58254
        %v5747 = vshll.u32 %v5744, 16
        %v5748 = vshrl.u32 %v5744, 16
        %v5749 = vshll.u32 %v5745, 16
        %v5750 = vshrl.u32 %v5745, 16
        %vm5751 = vc.u32 %v5743, %v5747
        %v5752 = vsel %vm5751, 1, 0
        %v5753 = vadd.s32 %v5743, %v5747
        %v5754 = vadd.s32 %v5746, %v5752
        %vm5755 = vc.u32 %v5753, %v5749
        %v5756 = vsel %vm5755, 1, 0
        %v5757 = vadd.s32 %v5753, %v5749
        %v5758 = vadd.s32 %v5754, %v5756
        %v5759 = vadd.s32 %v5758, %v5748
        %v5760 = vadd.s32 %v5759, %v5750
        %v5761 = vshrl.u32 %v5760, 4
        %v5762 = vmul.u32 %v5761, 18
        %v5763 = vsub.s32 %v5739, %v5762
        %v5764 = vsub.s32 0, %v5763
        %v5765 = vsel %vm5737, %v5764, %v5763
        %vm5766 = vcmp.lt.s32.totalorder %v2533, 0
        %v5767 = vsub.s32 0, %v2533
        %v5768 = vsel %vm5766, %v5767, %v2533
        %v5769 = vand.u32 %v5768, 65535
        %v5770 = vshrl.u32 %v5768, 16
        %v5772 = vmul.u32 %v5769, 14564
        %v5773 = vmul.u32 %v5769, 58254
        %v5774 = vmul.u32 %v5770, 14564
        %v5775 = vmul.u32 %v5770, 58254
        %v5776 = vshll.u32 %v5773, 16
        %v5777 = vshrl.u32 %v5773, 16
        %v5778 = vshll.u32 %v5774, 16
        %v5779 = vshrl.u32 %v5774, 16
        %vm5780 = vc.u32 %v5772, %v5776
        %v5781 = vsel %vm5780, 1, 0
        %v5782 = vadd.s32 %v5772, %v5776
        %v5783 = vadd.s32 %v5775, %v5781
        %vm5784 = vc.u32 %v5782, %v5778
        %v5785 = vsel %vm5784, 1, 0
        %v5786 = vadd.s32 %v5782, %v5778
        %v5787 = vadd.s32 %v5783, %v5785
        %v5788 = vadd.s32 %v5787, %v5777
        %v5789 = vadd.s32 %v5788, %v5779
        %v5790 = vshrl.u32 %v5789, 4
        %v5791 = vmul.u32 %v5790, 18
        %v5792 = vsub.s32 %v5768, %v5791
        %v5793 = vsub.s32 0, %v5792
        %v5794 = vsel %vm5766, %v5793, %v5792
        %vm5795 = vcmp.lt.s32.totalorder %v2534, 0
        %v5796 = vsub.s32 0, %v2534
        %v5797 = vsel %vm5795, %v5796, %v2534
        %v5798 = vand.u32 %v5797, 65535
        %v5799 = vshrl.u32 %v5797, 16
        %v5801 = vmul.u32 %v5798, 14564
        %v5802 = vmul.u32 %v5798, 58254
        %v5803 = vmul.u32 %v5799, 14564
        %v5804 = vmul.u32 %v5799, 58254
        %v5805 = vshll.u32 %v5802, 16
        %v5806 = vshrl.u32 %v5802, 16
        %v5807 = vshll.u32 %v5803, 16
        %v5808 = vshrl.u32 %v5803, 16
        %vm5809 = vc.u32 %v5801, %v5805
        %v5810 = vsel %vm5809, 1, 0
        %v5811 = vadd.s32 %v5801, %v5805
        %v5812 = vadd.s32 %v5804, %v5810
        %vm5813 = vc.u32 %v5811, %v5807
        %v5814 = vsel %vm5813, 1, 0
        %v5815 = vadd.s32 %v5811, %v5807
        %v5816 = vadd.s32 %v5812, %v5814
        %v5817 = vadd.s32 %v5816, %v5806
        %v5818 = vadd.s32 %v5817, %v5808
        %v5819 = vshrl.u32 %v5818, 4
        %v5820 = vmul.u32 %v5819, 18
        %v5821 = vsub.s32 %v5797, %v5820
        %v5822 = vsub.s32 0, %v5821
        %v5823 = vsel %vm5795, %v5822, %v5821
        %vm5824 = vcmp.lt.s32.totalorder %v2535, 0
        %v5825 = vsub.s32 0, %v2535
        %v5826 = vsel %vm5824, %v5825, %v2535
        %v5827 = vand.u32 %v5826, 65535
        %v5828 = vshrl.u32 %v5826, 16
        %v5830 = vmul.u32 %v5827, 14564
        %v5831 = vmul.u32 %v5827, 58254
        %v5832 = vmul.u32 %v5828, 14564
        %v5833 = vmul.u32 %v5828, 58254
        %v5834 = vshll.u32 %v5831, 16
        %v5835 = vshrl.u32 %v5831, 16
        %v5836 = vshll.u32 %v5832, 16
        %v5837 = vshrl.u32 %v5832, 16
        %vm5838 = vc.u32 %v5830, %v5834
        %v5839 = vsel %vm5838, 1, 0
        %v5840 = vadd.s32 %v5830, %v5834
        %v5841 = vadd.s32 %v5833, %v5839
        %vm5842 = vc.u32 %v5840, %v5836
        %v5843 = vsel %vm5842, 1, 0
        %v5844 = vadd.s32 %v5840, %v5836
        %v5845 = vadd.s32 %v5841, %v5843
        %v5846 = vadd.s32 %v5845, %v5835
        %v5847 = vadd.s32 %v5846, %v5837
        %v5848 = vshrl.u32 %v5847, 4
        %v5849 = vmul.u32 %v5848, 18
        %v5850 = vsub.s32 %v5826, %v5849
        %v5851 = vsub.s32 0, %v5850
        %v5852 = vsel %vm5824, %v5851, %v5850
        %vm5853 = vcmp.lt.s32.totalorder %v2536, 0
        %v5854 = vsub.s32 0, %v2536
        %v5855 = vsel %vm5853, %v5854, %v2536
        %v5856 = vand.u32 %v5855, 65535
        %v5857 = vshrl.u32 %v5855, 16
        %v5859 = vmul.u32 %v5856, 14564
        %v5860 = vmul.u32 %v5856, 58254
        %v5861 = vmul.u32 %v5857, 14564
        %v5862 = vmul.u32 %v5857, 58254
        %v5863 = vshll.u32 %v5860, 16
        %v5864 = vshrl.u32 %v5860, 16
        %v5865 = vshll.u32 %v5861, 16
        %v5866 = vshrl.u32 %v5861, 16
        %vm5867 = vc.u32 %v5859, %v5863
        %v5868 = vsel %vm5867, 1, 0
        %v5869 = vadd.s32 %v5859, %v5863
        %v5870 = vadd.s32 %v5862, %v5868
        %vm5871 = vc.u32 %v5869, %v5865
        %v5872 = vsel %vm5871, 1, 0
        %v5873 = vadd.s32 %v5869, %v5865
        %v5874 = vadd.s32 %v5870, %v5872
        %v5875 = vadd.s32 %v5874, %v5864
        %v5876 = vadd.s32 %v5875, %v5866
        %v5877 = vshrl.u32 %v5876, 4
        %v5878 = vmul.u32 %v5877, 18
        %v5879 = vsub.s32 %v5855, %v5878
        %v5880 = vsub.s32 0, %v5879
        %v5881 = vsel %vm5853, %v5880, %v5879
        %vm5882 = vcmp.lt.s32.totalorder %v2537, 0
        %v5883 = vsub.s32 0, %v2537
        %v5884 = vsel %vm5882, %v5883, %v2537
        %v5885 = vand.u32 %v5884, 65535
        %v5886 = vshrl.u32 %v5884, 16
        %v5888 = vmul.u32 %v5885, 14564
        %v5889 = vmul.u32 %v5885, 58254
        %v5890 = vmul.u32 %v5886, 14564
        %v5891 = vmul.u32 %v5886, 58254
        %v5892 = vshll.u32 %v5889, 16
        %v5893 = vshrl.u32 %v5889, 16
        %v5894 = vshll.u32 %v5890, 16
        %v5895 = vshrl.u32 %v5890, 16
        %vm5896 = vc.u32 %v5888, %v5892
        %v5897 = vsel %vm5896, 1, 0
        %v5898 = vadd.s32 %v5888, %v5892
        %v5899 = vadd.s32 %v5891, %v5897
        %vm5900 = vc.u32 %v5898, %v5894
        %v5901 = vsel %vm5900, 1, 0
        %v5902 = vadd.s32 %v5898, %v5894
        %v5903 = vadd.s32 %v5899, %v5901
        %v5904 = vadd.s32 %v5903, %v5893
        %v5905 = vadd.s32 %v5904, %v5895
        %v5906 = vshrl.u32 %v5905, 4
        %v5907 = vmul.u32 %v5906, 18
        %v5908 = vsub.s32 %v5884, %v5907
        %v5909 = vsub.s32 0, %v5908
        %v5910 = vsel %vm5882, %v5909, %v5908
        %vm5911 = vcmp.lt.s32.totalorder %v2538, 0
        %v5912 = vsub.s32 0, %v2538
        %v5913 = vsel %vm5911, %v5912, %v2538
        %v5914 = vand.u32 %v5913, 65535
        %v5915 = vshrl.u32 %v5913, 16
        %v5917 = vmul.u32 %v5914, 14564
        %v5918 = vmul.u32 %v5914, 58254
        %v5919 = vmul.u32 %v5915, 14564
        %v5920 = vmul.u32 %v5915, 58254
        %v5921 = vshll.u32 %v5918, 16
        %v5922 = vshrl.u32 %v5918, 16
        %v5923 = vshll.u32 %v5919, 16
        %v5924 = vshrl.u32 %v5919, 16
        %vm5925 = vc.u32 %v5917, %v5921
        %v5926 = vsel %vm5925, 1, 0
        %v5927 = vadd.s32 %v5917, %v5921
        %v5928 = vadd.s32 %v5920, %v5926
        %vm5929 = vc.u32 %v5927, %v5923
        %v5930 = vsel %vm5929, 1, 0
        %v5931 = vadd.s32 %v5927, %v5923
        %v5932 = vadd.s32 %v5928, %v5930
        %v5933 = vadd.s32 %v5932, %v5922
        %v5934 = vadd.s32 %v5933, %v5924
        %v5935 = vshrl.u32 %v5934, 4
        %v5936 = vmul.u32 %v5935, 18
        %v5937 = vsub.s32 %v5913, %v5936
        %v5938 = vsub.s32 0, %v5937
        %v5939 = vsel %vm5911, %v5938, %v5937
        %vm5940 = vcmp.lt.s32.totalorder %v2539, 0
        %v5941 = vsub.s32 0, %v2539
        %v5942 = vsel %vm5940, %v5941, %v2539
        %v5943 = vand.u32 %v5942, 65535
        %v5944 = vshrl.u32 %v5942, 16
        %v5946 = vmul.u32 %v5943, 14564
        %v5947 = vmul.u32 %v5943, 58254
        %v5948 = vmul.u32 %v5944, 14564
        %v5949 = vmul.u32 %v5944, 58254
        %v5950 = vshll.u32 %v5947, 16
        %v5951 = vshrl.u32 %v5947, 16
        %v5952 = vshll.u32 %v5948, 16
        %v5953 = vshrl.u32 %v5948, 16
        %vm5954 = vc.u32 %v5946, %v5950
        %v5955 = vsel %vm5954, 1, 0
        %v5956 = vadd.s32 %v5946, %v5950
        %v5957 = vadd.s32 %v5949, %v5955
        %vm5958 = vc.u32 %v5956, %v5952
        %v5959 = vsel %vm5958, 1, 0
        %v5960 = vadd.s32 %v5956, %v5952
        %v5961 = vadd.s32 %v5957, %v5959
        %v5962 = vadd.s32 %v5961, %v5951
        %v5963 = vadd.s32 %v5962, %v5953
        %v5964 = vshrl.u32 %v5963, 4
        %v5965 = vmul.u32 %v5964, 18
        %v5966 = vsub.s32 %v5942, %v5965
        %v5967 = vsub.s32 0, %v5966
        %v5968 = vsel %vm5940, %v5967, %v5966
        %vm5969 = vcmp.lt.s32.totalorder %v2540, 0
        %v5970 = vsub.s32 0, %v2540
        %v5971 = vsel %vm5969, %v5970, %v2540
        %v5972 = vand.u32 %v5971, 65535
        %v5973 = vshrl.u32 %v5971, 16
        %v5975 = vmul.u32 %v5972, 14564
        %v5976 = vmul.u32 %v5972, 58254
        %v5977 = vmul.u32 %v5973, 14564
        %v5978 = vmul.u32 %v5973, 58254
        %v5979 = vshll.u32 %v5976, 16
        %v5980 = vshrl.u32 %v5976, 16
        %v5981 = vshll.u32 %v5977, 16
        %v5982 = vshrl.u32 %v5977, 16
        %vm5983 = vc.u32 %v5975, %v5979
        %v5984 = vsel %vm5983, 1, 0
        %v5985 = vadd.s32 %v5975, %v5979
        %v5986 = vadd.s32 %v5978, %v5984
        %vm5987 = vc.u32 %v5985, %v5981
        %v5988 = vsel %vm5987, 1, 0
        %v5989 = vadd.s32 %v5985, %v5981
        %v5990 = vadd.s32 %v5986, %v5988
        %v5991 = vadd.s32 %v5990, %v5980
        %v5992 = vadd.s32 %v5991, %v5982
        %v5993 = vshrl.u32 %v5992, 4
        %v5994 = vmul.u32 %v5993, 18
        %v5995 = vsub.s32 %v5971, %v5994
        %v5996 = vsub.s32 0, %v5995
        %v5997 = vsel %vm5969, %v5996, %v5995
        %vm5998 = vcmp.lt.s32.totalorder %v2541, 0
        %v5999 = vsub.s32 0, %v2541
        %v6000 = vsel %vm5998, %v5999, %v2541
        %v6001 = vand.u32 %v6000, 65535
        %v6002 = vshrl.u32 %v6000, 16
        %v6004 = vmul.u32 %v6001, 14564
        %v6005 = vmul.u32 %v6001, 58254
        %v6006 = vmul.u32 %v6002, 14564
        %v6007 = vmul.u32 %v6002, 58254
        %v6008 = vshll.u32 %v6005, 16
        %v6009 = vshrl.u32 %v6005, 16
        %v6010 = vshll.u32 %v6006, 16
        %v6011 = vshrl.u32 %v6006, 16
        %vm6012 = vc.u32 %v6004, %v6008
        %v6013 = vsel %vm6012, 1, 0
        %v6014 = vadd.s32 %v6004, %v6008
        %v6015 = vadd.s32 %v6007, %v6013
        %vm6016 = vc.u32 %v6014, %v6010
        %v6017 = vsel %vm6016, 1, 0
        %v6018 = vadd.s32 %v6014, %v6010
        %v6019 = vadd.s32 %v6015, %v6017
        %v6020 = vadd.s32 %v6019, %v6009
        %v6021 = vadd.s32 %v6020, %v6011
        %v6022 = vshrl.u32 %v6021, 4
        %v6023 = vmul.u32 %v6022, 18
        %v6024 = vsub.s32 %v6000, %v6023
        %v6025 = vsub.s32 0, %v6024
        %v6026 = vsel %vm5998, %v6025, %v6024
        %vm6027 = vcmp.lt.s32.totalorder %v2542, 0
        %v6028 = vsub.s32 0, %v2542
        %v6029 = vsel %vm6027, %v6028, %v2542
        %v6030 = vand.u32 %v6029, 65535
        %v6031 = vshrl.u32 %v6029, 16
        %v6033 = vmul.u32 %v6030, 14564
        %v6034 = vmul.u32 %v6030, 58254
        %v6035 = vmul.u32 %v6031, 14564
        %v6036 = vmul.u32 %v6031, 58254
        %v6037 = vshll.u32 %v6034, 16
        %v6038 = vshrl.u32 %v6034, 16
        %v6039 = vshll.u32 %v6035, 16
        %v6040 = vshrl.u32 %v6035, 16
        %vm6041 = vc.u32 %v6033, %v6037
        %v6042 = vsel %vm6041, 1, 0
        %v6043 = vadd.s32 %v6033, %v6037
        %v6044 = vadd.s32 %v6036, %v6042
        %vm6045 = vc.u32 %v6043, %v6039
        %v6046 = vsel %vm6045, 1, 0
        %v6047 = vadd.s32 %v6043, %v6039
        %v6048 = vadd.s32 %v6044, %v6046
        %v6049 = vadd.s32 %v6048, %v6038
        %v6050 = vadd.s32 %v6049, %v6040
        %v6051 = vshrl.u32 %v6050, 4
        %v6052 = vmul.u32 %v6051, 18
        %v6053 = vsub.s32 %v6029, %v6052
        %v6054 = vsub.s32 0, %v6053
        %v6055 = vsel %vm6027, %v6054, %v6053
        %vm6056 = vcmp.ne.s32.totalorder %v5591, 0
        %vm6057 = vcmp.ne.s32.totalorder %v5620, 0
        %vm6058 = vcmp.ne.s32.totalorder %v5649, 0
        %vm6059 = vcmp.ne.s32.totalorder %v5678, 0
        %vm6060 = vcmp.ne.s32.totalorder %v5707, 0
        %vm6061 = vcmp.ne.s32.totalorder %v5736, 0
        %vm6062 = vcmp.ne.s32.totalorder %v5765, 0
        %vm6063 = vcmp.ne.s32.totalorder %v5794, 0
        %vm6064 = vcmp.ne.s32.totalorder %v5823, 0
        %vm6065 = vcmp.ne.s32.totalorder %v5852, 0
        %vm6066 = vcmp.ne.s32.totalorder %v5881, 0
        %vm6067 = vcmp.ne.s32.totalorder %v5910, 0
        %vm6068 = vcmp.ne.s32.totalorder %v5939, 0
        %vm6069 = vcmp.ne.s32.totalorder %v5968, 0
        %vm6070 = vcmp.ne.s32.totalorder %v5997, 0
        %vm6071 = vcmp.ne.s32.totalorder %v6026, 0
        %vm6072 = vcmp.ne.s32.totalorder %v6055, 0
        %vm6073 = vcmp.lt.s32.totalorder %v5591, 0
        %vm6074 = vcmp.lt.s32.totalorder %v5620, 0
        %vm6075 = vcmp.lt.s32.totalorder %v5649, 0
        %vm6076 = vcmp.lt.s32.totalorder %v5678, 0
        %vm6077 = vcmp.lt.s32.totalorder %v5707, 0
        %vm6078 = vcmp.lt.s32.totalorder %v5736, 0
        %vm6079 = vcmp.lt.s32.totalorder %v5765, 0
        %vm6080 = vcmp.lt.s32.totalorder %v5794, 0
        %vm6081 = vcmp.lt.s32.totalorder %v5823, 0
        %vm6082 = vcmp.lt.s32.totalorder %v5852, 0
        %vm6083 = vcmp.lt.s32.totalorder %v5881, 0
        %vm6084 = vcmp.lt.s32.totalorder %v5910, 0
        %vm6085 = vcmp.lt.s32.totalorder %v5939, 0
        %vm6086 = vcmp.lt.s32.totalorder %v5968, 0
        %vm6087 = vcmp.lt.s32.totalorder %v5997, 0
        %vm6088 = vcmp.lt.s32.totalorder %v6026, 0
        %vm6089 = vcmp.lt.s32.totalorder %v6055, 0
        %vm6090 = vmand %vm6073, %vm6056
        %vm6091 = vmand %vm6074, %vm6057
        %vm6092 = vmand %vm6075, %vm6058
        %vm6093 = vmand %vm6076, %vm6059
        %vm6094 = vmand %vm6077, %vm6060
        %vm6095 = vmand %vm6078, %vm6061
        %vm6096 = vmand %vm6079, %vm6062
        %vm6097 = vmand %vm6080, %vm6063
        %vm6098 = vmand %vm6081, %vm6064
        %vm6099 = vmand %vm6082, %vm6065
        %vm6100 = vmand %vm6083, %vm6066
        %vm6101 = vmand %vm6084, %vm6067
        %vm6102 = vmand %vm6085, %vm6068
        %vm6103 = vmand %vm6086, %vm6069
        %vm6104 = vmand %vm6087, %vm6070
        %vm6105 = vmand %vm6088, %vm6071
        %vm6106 = vmand %vm6089, %vm6072
        %v6107 = vadd.s32 %v5591, 18
        %v6108 = vadd.s32 %v5620, 18
        %v6109 = vadd.s32 %v5649, 18
        %v6110 = vadd.s32 %v5678, 18
        %v6111 = vadd.s32 %v5707, 18
        %v6112 = vadd.s32 %v5736, 18
        %v6113 = vadd.s32 %v5765, 18
        %v6114 = vadd.s32 %v5794, 18
        %v6115 = vadd.s32 %v5823, 18
        %v6116 = vadd.s32 %v5852, 18
        %v6117 = vadd.s32 %v5881, 18
        %v6118 = vadd.s32 %v5910, 18
        %v6119 = vadd.s32 %v5939, 18
        %v6120 = vadd.s32 %v5968, 18
        %v6121 = vadd.s32 %v5997, 18
        %v6122 = vadd.s32 %v6026, 18
        %v6123 = vadd.s32 %v6055, 18
        %v6124 = vsel %vm6090, %v6107, %v5591
        %v6125 = vsel %vm6091, %v6108, %v5620
        %v6126 = vsel %vm6092, %v6109, %v5649
        %v6127 = vsel %vm6093, %v6110, %v5678
        %v6128 = vsel %vm6094, %v6111, %v5707
        %v6129 = vsel %vm6095, %v6112, %v5736
        %v6130 = vsel %vm6096, %v6113, %v5765
        %v6131 = vsel %vm6097, %v6114, %v5794
        %v6132 = vsel %vm6098, %v6115, %v5823
        %v6133 = vsel %vm6099, %v6116, %v5852
        %v6134 = vsel %vm6100, %v6117, %v5881
        %v6135 = vsel %vm6101, %v6118, %v5910
        %v6136 = vsel %vm6102, %v6119, %v5939
        %v6137 = vsel %vm6103, %v6120, %v5968
        %v6138 = vsel %vm6104, %v6121, %v5997
        %v6139 = vsel %vm6105, %v6122, %v6026
        %v6140 = vsel %vm6106, %v6123, %v6055
        %vm6141 = vcmp.lt.s32.totalorder %v6124, 8
        %vm6142 = vcmp.lt.s32.totalorder %v6125, 8
        %vm6143 = vcmp.lt.s32.totalorder %v6126, 8
        %vm6144 = vcmp.lt.s32.totalorder %v6127, 8
        %vm6145 = vcmp.lt.s32.totalorder %v6128, 8
        %vm6146 = vcmp.lt.s32.totalorder %v6129, 8
        %vm6147 = vcmp.lt.s32.totalorder %v6130, 8
        %vm6148 = vcmp.lt.s32.totalorder %v6131, 8
        %vm6149 = vcmp.lt.s32.totalorder %v6132, 8
        %vm6150 = vcmp.lt.s32.totalorder %v6133, 8
        %vm6151 = vcmp.lt.s32.totalorder %v6134, 8
        %vm6152 = vcmp.lt.s32.totalorder %v6135, 8
        %vm6153 = vcmp.lt.s32.totalorder %v6136, 8
        %vm6154 = vcmp.lt.s32.totalorder %v6137, 8
        %vm6155 = vcmp.lt.s32.totalorder %v6138, 8
        %vm6156 = vcmp.lt.s32.totalorder %v6139, 8
        %vm6157 = vcmp.lt.s32.totalorder %v6140, 8
        %v6158 = vsel %vm6141, 1, 0
        %v6159 = vsel %vm6142, 1, 0
        %v6160 = vsel %vm6143, 1, 0
        %v6161 = vsel %vm6144, 1, 0
        %v6162 = vsel %vm6145, 1, 0
        %v6163 = vsel %vm6146, 1, 0
        %v6164 = vsel %vm6147, 1, 0
        %v6165 = vsel %vm6148, 1, 0
        %v6166 = vsel %vm6149, 1, 0
        %v6167 = vsel %vm6150, 1, 0
        %v6168 = vsel %vm6151, 1, 0
        %v6169 = vsel %vm6152, 1, 0
        %v6170 = vsel %vm6153, 1, 0
        %v6171 = vsel %vm6154, 1, 0
        %v6172 = vsel %vm6155, 1, 0
        %v6173 = vsel %vm6156, 1, 0
        %v6174 = vsel %vm6157, 1, 0
        %vm6175 = vcmp.eq.s32.totalorder %v6158, 1
        %vm6176 = vcmp.eq.s32.totalorder %v6159, 1
        %vm6177 = vcmp.eq.s32.totalorder %v6160, 1
        %vm6178 = vcmp.eq.s32.totalorder %v6161, 1
        %vm6179 = vcmp.eq.s32.totalorder %v6162, 1
        %vm6180 = vcmp.eq.s32.totalorder %v6163, 1
        %vm6181 = vcmp.eq.s32.totalorder %v6164, 1
        %vm6182 = vcmp.eq.s32.totalorder %v6165, 1
        %vm6183 = vcmp.eq.s32.totalorder %v6166, 1
        %vm6184 = vcmp.eq.s32.totalorder %v6167, 1
        %vm6185 = vcmp.eq.s32.totalorder %v6168, 1
        %vm6186 = vcmp.eq.s32.totalorder %v6169, 1
        %vm6187 = vcmp.eq.s32.totalorder %v6170, 1
        %vm6188 = vcmp.eq.s32.totalorder %v6171, 1
        %vm6189 = vcmp.eq.s32.totalorder %v6172, 1
        %vm6190 = vcmp.eq.s32.totalorder %v6173, 1
        %vm6191 = vcmp.eq.s32.totalorder %v6174, 1
        %v6192 = vsel %vm6175, %v5513, 0.0
        %v6193 = vsel %vm6176, %v5516, 0.0
        %v6194 = vsel %vm6177, %v5519, 0.0
        %v6195 = vsel %vm6178, %v5522, 0.0
        %v6196 = vsel %vm6179, %v5525, 0.0
        %v6197 = vsel %vm6180, %v5528, 0.0
        %v6198 = vsel %vm6181, %v5531, 0.0
        %v6199 = vsel %vm6182, %v5534, 0.0
        %v6200 = vsel %vm6183, %v5537, 0.0
        %v6201 = vsel %vm6184, %v5540, 0.0
        %v6202 = vsel %vm6185, %v5543, 0.0
        %v6203 = vsel %vm6186, %v5546, 0.0
        %v6204 = vsel %vm6187, %v5549, 0.0
        %v6205 = vsel %vm6188, %v5552, 0.0
        %v6206 = vsel %vm6189, %v5555, 0.0
        %v6207 = vsel %vm6190, %v5558, 0.0
        %v6208 = vsel %vm6191, %v5561, 0.0
        %6209 = vst.msk [vmem:[#allocation4] sm:$0xff] %vm5443, 0.0
        %6210 = vst.msk [vmem:[#allocation4 + $0x8] sm:$0xff] %vm5443, 0.0
        %6211 = vst.msk [vmem:[#allocation4 + $0x10] sm:$0xff] %vm5443, 0.0
        %6212 = vst.msk [vmem:[#allocation4 + $0x18] sm:$0xff] %vm5443, 0.0
        %6213 = vst.msk [vmem:[#allocation4 + $0x20] sm:$0xff] %vm5443, 0.0
        %6214 = vst.msk [vmem:[#allocation4 + $0x28] sm:$0xff] %vm5443, 0.0
        %6215 = vst.msk [vmem:[#allocation4 + $0x30] sm:$0xff] %vm5443, 0.0
        %6216 = vst.msk [vmem:[#allocation4 + $0x38] sm:$0xff] %vm5443, 0.0
        %6217 = vst.msk [vmem:[#allocation4 + $0x40] sm:$0xff] %vm5443, 0.0
        %6218 = vst.msk [vmem:[#allocation4 + $0x48] sm:$0xff] %vm5443, 0.0
        %6219 = vst.msk [vmem:[#allocation4 + $0x50] sm:$0xff] %vm5443, 0.0
        %6220 = vst.msk [vmem:[#allocation4 + $0x58] sm:$0xff] %vm5443, 0.0
        %6221 = vst.msk [vmem:[#allocation4 + $0x60] sm:$0xff] %vm5443, 0.0
        %6222 = vst.msk [vmem:[#allocation4 + $0x68] sm:$0xff] %vm5443, 0.0
        %6223 = vst.msk [vmem:[#allocation4 + $0x70] sm:$0xff] %vm5443, 0.0
        %6224 = vst.msk [vmem:[#allocation4 + $0x78] sm:$0xff] %vm5443, 0.0
        %6225 = vst.msk [vmem:[#allocation4 + $0x80] sm:$0xff] %vm5443, 0.0
        %6226 = vst.msk [vmem:[#allocation4 + $0x88] sm:$0xff] %vm5443, 0.0
        %6227 = vst.msk [vmem:[#allocation4 + $0x90] sm:$0xff] %vm5443, 0.0
        %6228 = vst.msk [vmem:[#allocation4 + $0x98] sm:$0xff] %vm5443, 0.0
        %6229 = vst.msk [vmem:[#allocation4 + $0xa0] sm:$0xff] %vm5443, 0.0
        %vm6230 = vcmask 388096
        %6231 = vst.msk [vmem:[#allocation4 + $0xa8] sm:$0xf] %vm6230, 0.0
        %6232 = vst.msk [vmem:[#allocation4 + $0x13] sm:$0xff] %vm5443, %v6192
        %6233 = vst.msk [vmem:[#allocation4 + $0x1b] sm:$0xff] %vm5443, %v6193
        %6234 = vst.msk [vmem:[#allocation4 + $0x23] sm:$0xff] %vm5443, %v6194
        %6235 = vst.msk [vmem:[#allocation4 + $0x2b] sm:$0xff] %vm5443, %v6195
        %6236 = vst.msk [vmem:[#allocation4 + $0x33] sm:$0xff] %vm5443, %v6196
        %6237 = vst.msk [vmem:[#allocation4 + $0x3b] sm:$0xff] %vm5443, %v6197
        %6238 = vst.msk [vmem:[#allocation4 + $0x43] sm:$0xff] %vm5443, %v6198
        %6239 = vst.msk [vmem:[#allocation4 + $0x4b] sm:$0xff] %vm5443, %v6199
        %6240 = vst.msk [vmem:[#allocation4 + $0x53] sm:$0xff] %vm5443, %v6200
        %6241 = vst.msk [vmem:[#allocation4 + $0x5b] sm:$0xff] %vm5443, %v6201
        %6242 = vst.msk [vmem:[#allocation4 + $0x63] sm:$0xff] %vm5443, %v6202
        %6243 = vst.msk [vmem:[#allocation4 + $0x6b] sm:$0xff] %vm5443, %v6203
        %6244 = vst.msk [vmem:[#allocation4 + $0x73] sm:$0xff] %vm5443, %v6204
        %6245 = vst.msk [vmem:[#allocation4 + $0x7b] sm:$0xff] %vm5443, %v6205
        %6246 = vst.msk [vmem:[#allocation4 + $0x83] sm:$0xff] %vm5443, %v6206
        %6247 = vst.msk [vmem:[#allocation4 + $0x8b] sm:$0xff] %vm5443, %v6207
        %vm6248 = vcmask 390144
        %6249 = vst.msk [vmem:[#allocation4 + $0x93] sm:$0x3f] %vm6248, %v6208
        %v6250 = vld [vmem:[#allocation4] sm:$0xff]
        %v6251 = vld [vmem:[#allocation4 + $0x8] sm:$0xff]
        %v6252 = vld [vmem:[#allocation4 + $0x10] sm:$0xff]
        %v6253 = vld [vmem:[#allocation4 + $0x18] sm:$0xff]
        %v6254 = vld [vmem:[#allocation4 + $0x20] sm:$0xff]
        %v6255 = vld [vmem:[#allocation4 + $0x28] sm:$0xff]
        %v6256 = vld [vmem:[#allocation4 + $0x30] sm:$0xff]
        %v6257 = vld [vmem:[#allocation4 + $0x38] sm:$0xff]
        %v6258 = vld [vmem:[#allocation4 + $0x40] sm:$0xff]
        %v6259 = vld [vmem:[#allocation4 + $0x48] sm:$0xff]
        %v6260 = vld [vmem:[#allocation4 + $0x50] sm:$0xff]
        %v6261 = vld [vmem:[#allocation4 + $0x58] sm:$0xff]
        %v6262 = vld [vmem:[#allocation4 + $0x60] sm:$0xff]
        %v6263 = vld [vmem:[#allocation4 + $0x68] sm:$0xff]
        %v6264 = vld [vmem:[#allocation4 + $0x70] sm:$0xff]
        %v6265 = vld [vmem:[#allocation4 + $0x78] sm:$0xff]
        %v6266 = vld [vmem:[#allocation4 + $0x80] sm:$0x3f]
        %v6267 = vld [vmem:[%s5] sm:$0x1]
        %v6268 = vperm.slane %v6267, 0
        %v6269 = vmul.f32 %v6250, %v6268
        %v6270 = vmul.f32 %v6251, %v6268
        %v6271 = vmul.f32 %v6252, %v6268
        %v6272 = vmul.f32 %v6253, %v6268
        %v6273 = vmul.f32 %v6254, %v6268
        %v6274 = vmul.f32 %v6255, %v6268
        %v6275 = vmul.f32 %v6256, %v6268
        %v6276 = vmul.f32 %v6257, %v6268
        %v6277 = vmul.f32 %v6258, %v6268
        %v6278 = vmul.f32 %v6259, %v6268
        %v6279 = vmul.f32 %v6260, %v6268
        %v6280 = vmul.f32 %v6261, %v6268
        %v6281 = vmul.f32 %v6262, %v6268
        %v6282 = vmul.f32 %v6263, %v6268
        %v6283 = vmul.f32 %v6264, %v6268
        %v6284 = vmul.f32 %v6265, %v6268
        %v6285 = vmul.f32 %v6266, %v6268
        %v6286 = vadd.f32 %v6269, 0.0
        %v6287 = vadd.f32 %v6270, 0.0
        %v6288 = vadd.f32 %v6271, 0.0
        %v6289 = vadd.f32 %v6272, 0.0
        %v6290 = vadd.f32 %v6273, 0.0
        %v6291 = vadd.f32 %v6274, 0.0
        %v6292 = vadd.f32 %v6275, 0.0
        %v6293 = vadd.f32 %v6276, 0.0
        %v6294 = vadd.f32 %v6277, 0.0
        %v6295 = vadd.f32 %v6278, 0.0
        %v6296 = vadd.f32 %v6279, 0.0
        %v6297 = vadd.f32 %v6280, 0.0
        %v6298 = vadd.f32 %v6281, 0.0
        %v6299 = vadd.f32 %v6282, 0.0
        %v6300 = vadd.f32 %v6283, 0.0
        %v6301 = vadd.f32 %v6284, 0.0
        %v6302 = vadd.f32 %v6285, 0.0
        %v6303 = vld [vmem:[#allocation4 + $0x1] sm:$0xff]
        %v6304 = vld [vmem:[#allocation4 + $0x9] sm:$0xff]
        %v6305 = vld [vmem:[#allocation4 + $0x11] sm:$0xff]
        %v6306 = vld [vmem:[#allocation4 + $0x19] sm:$0xff]
        %v6307 = vld [vmem:[#allocation4 + $0x21] sm:$0xff]
        %v6308 = vld [vmem:[#allocation4 + $0x29] sm:$0xff]
        %v6309 = vld [vmem:[#allocation4 + $0x31] sm:$0xff]
        %v6310 = vld [vmem:[#allocation4 + $0x39] sm:$0xff]
        %v6311 = vld [vmem:[#allocation4 + $0x41] sm:$0xff]
        %v6312 = vld [vmem:[#allocation4 + $0x49] sm:$0xff]
        %v6313 = vld [vmem:[#allocation4 + $0x51] sm:$0xff]
        %v6314 = vld [vmem:[#allocation4 + $0x59] sm:$0xff]
        %v6315 = vld [vmem:[#allocation4 + $0x61] sm:$0xff]
        %v6316 = vld [vmem:[#allocation4 + $0x69] sm:$0xff]
        %v6317 = vld [vmem:[#allocation4 + $0x71] sm:$0xff]
        %v6318 = vld [vmem:[#allocation4 + $0x79] sm:$0xff]
        %v6319 = vld [vmem:[#allocation4 + $0x81] sm:$0x3f]
        %v6320 = vld [vmem:[%s5 + $0x1] sm:$0x1]
        %v6321 = vperm.slane %v6320, 0
        %v6322 = vmul.f32 %v6303, %v6321
        %v6323 = vmul.f32 %v6304, %v6321
        %v6324 = vmul.f32 %v6305, %v6321
        %v6325 = vmul.f32 %v6306, %v6321
        %v6326 = vmul.f32 %v6307, %v6321
        %v6327 = vmul.f32 %v6308, %v6321
        %v6328 = vmul.f32 %v6309, %v6321
        %v6329 = vmul.f32 %v6310, %v6321
        %v6330 = vmul.f32 %v6311, %v6321
        %v6331 = vmul.f32 %v6312, %v6321
        %v6332 = vmul.f32 %v6313, %v6321
        %v6333 = vmul.f32 %v6314, %v6321
        %v6334 = vmul.f32 %v6315, %v6321
        %v6335 = vmul.f32 %v6316, %v6321
        %v6336 = vmul.f32 %v6317, %v6321
        %v6337 = vmul.f32 %v6318, %v6321
        %v6338 = vmul.f32 %v6319, %v6321
        %v6339 = vadd.f32 %v6286, %v6322
        %v6340 = vadd.f32 %v6287, %v6323
        %v6341 = vadd.f32 %v6288, %v6324
        %v6342 = vadd.f32 %v6289, %v6325
        %v6343 = vadd.f32 %v6290, %v6326
        %v6344 = vadd.f32 %v6291, %v6327
        %v6345 = vadd.f32 %v6292, %v6328
        %v6346 = vadd.f32 %v6293, %v6329
        %v6347 = vadd.f32 %v6294, %v6330
        %v6348 = vadd.f32 %v6295, %v6331
        %v6349 = vadd.f32 %v6296, %v6332
        %v6350 = vadd.f32 %v6297, %v6333
        %v6351 = vadd.f32 %v6298, %v6334
        %v6352 = vadd.f32 %v6299, %v6335
        %v6353 = vadd.f32 %v6300, %v6336
        %v6354 = vadd.f32 %v6301, %v6337
        %v6355 = vadd.f32 %v6302, %v6338
        %v6356 = vld [vmem:[#allocation4 + $0x2] sm:$0xff]
        %v6357 = vld [vmem:[#allocation4 + $0xa] sm:$0xff]
        %v6358 = vld [vmem:[#allocation4 + $0x12] sm:$0xff]
        %v6359 = vld [vmem:[#allocation4 + $0x1a] sm:$0xff]
        %v6360 = vld [vmem:[#allocation4 + $0x22] sm:$0xff]
        %v6361 = vld [vmem:[#allocation4 + $0x2a] sm:$0xff]
        %v6362 = vld [vmem:[#allocation4 + $0x32] sm:$0xff]
        %v6363 = vld [vmem:[#allocation4 + $0x3a] sm:$0xff]
        %v6364 = vld [vmem:[#allocation4 + $0x42] sm:$0xff]
        %v6365 = vld [vmem:[#allocation4 + $0x4a] sm:$0xff]
        %v6366 = vld [vmem:[#allocation4 + $0x52] sm:$0xff]
        %v6367 = vld [vmem:[#allocation4 + $0x5a] sm:$0xff]
        %v6368 = vld [vmem:[#allocation4 + $0x62] sm:$0xff]
        %v6369 = vld [vmem:[#allocation4 + $0x6a] sm:$0xff]
        %v6370 = vld [vmem:[#allocation4 + $0x72] sm:$0xff]
        %v6371 = vld [vmem:[#allocation4 + $0x7a] sm:$0xff]
        %v6372 = vld [vmem:[#allocation4 + $0x82] sm:$0x3f]
        %v6373 = vld [vmem:[%s5 + $0x2] sm:$0x1]
        %v6374 = vperm.slane %v6373, 0
        %v6375 = vmul.f32 %v6356, %v6374
        %v6376 = vmul.f32 %v6357, %v6374
        %v6377 = vmul.f32 %v6358, %v6374
        %v6378 = vmul.f32 %v6359, %v6374
        %v6379 = vmul.f32 %v6360, %v6374
        %v6380 = vmul.f32 %v6361, %v6374
        %v6381 = vmul.f32 %v6362, %v6374
        %v6382 = vmul.f32 %v6363, %v6374
        %v6383 = vmul.f32 %v6364, %v6374
        %v6384 = vmul.f32 %v6365, %v6374
        %v6385 = vmul.f32 %v6366, %v6374
        %v6386 = vmul.f32 %v6367, %v6374
        %v6387 = vmul.f32 %v6368, %v6374
        %v6388 = vmul.f32 %v6369, %v6374
        %v6389 = vmul.f32 %v6370, %v6374
        %v6390 = vmul.f32 %v6371, %v6374
        %v6391 = vmul.f32 %v6372, %v6374
        %v6392 = vadd.f32 %v6339, %v6375
        %v6393 = vadd.f32 %v6340, %v6376
        %v6394 = vadd.f32 %v6341, %v6377
        %v6395 = vadd.f32 %v6342, %v6378
        %v6396 = vadd.f32 %v6343, %v6379
        %v6397 = vadd.f32 %v6344, %v6380
        %v6398 = vadd.f32 %v6345, %v6381
        %v6399 = vadd.f32 %v6346, %v6382
        %v6400 = vadd.f32 %v6347, %v6383
        %v6401 = vadd.f32 %v6348, %v6384
        %v6402 = vadd.f32 %v6349, %v6385
        %v6403 = vadd.f32 %v6350, %v6386
        %v6404 = vadd.f32 %v6351, %v6387
        %v6405 = vadd.f32 %v6352, %v6388
        %v6406 = vadd.f32 %v6353, %v6389
        %v6407 = vadd.f32 %v6354, %v6390
        %v6408 = vadd.f32 %v6355, %v6391
        %v6409 = vld [vmem:[#allocation4 + $0x82] sm:$0xff]
        %v6410 = vld [vmem:[#allocation4 + $0x8a] sm:$0xff]
        %v6411 = vld [vmem:[#allocation4 + $0x92] sm:$0x3f]
        %v6412 = vld [vmem:[%s5 + $0x3] sm:$0x1]
        %v6413 = vperm.slane %v6412, 0
        %v6414 = vmul.f32 %v6358, %v6413
        %v6415 = vmul.f32 %v6359, %v6413
        %v6416 = vmul.f32 %v6360, %v6413
        %v6417 = vmul.f32 %v6361, %v6413
        %v6418 = vmul.f32 %v6362, %v6413
        %v6419 = vmul.f32 %v6363, %v6413
        %v6420 = vmul.f32 %v6364, %v6413
        %v6421 = vmul.f32 %v6365, %v6413
        %v6422 = vmul.f32 %v6366, %v6413
        %v6423 = vmul.f32 %v6367, %v6413
        %v6424 = vmul.f32 %v6368, %v6413
        %v6425 = vmul.f32 %v6369, %v6413
        %v6426 = vmul.f32 %v6370, %v6413
        %v6427 = vmul.f32 %v6371, %v6413
        %v6428 = vmul.f32 %v6409, %v6413
        %v6429 = vmul.f32 %v6410, %v6413
        %v6430 = vmul.f32 %v6411, %v6413
        %v6431 = vadd.f32 %v6392, %v6414
        %v6432 = vadd.f32 %v6393, %v6415
        %v6433 = vadd.f32 %v6394, %v6416
        %v6434 = vadd.f32 %v6395, %v6417
        %v6435 = vadd.f32 %v6396, %v6418
        %v6436 = vadd.f32 %v6397, %v6419
        %v6437 = vadd.f32 %v6398, %v6420
        %v6438 = vadd.f32 %v6399, %v6421
        %v6439 = vadd.f32 %v6400, %v6422
        %v6440 = vadd.f32 %v6401, %v6423
        %v6441 = vadd.f32 %v6402, %v6424
        %v6442 = vadd.f32 %v6403, %v6425
        %v6443 = vadd.f32 %v6404, %v6426
        %v6444 = vadd.f32 %v6405, %v6427
        %v6445 = vadd.f32 %v6406, %v6428
        %v6446 = vadd.f32 %v6407, %v6429
        %v6447 = vadd.f32 %v6408, %v6430
        %v6448 = vld [vmem:[#allocation4 + $0x13] sm:$0xff]
        %v6449 = vld [vmem:[#allocation4 + $0x1b] sm:$0xff]
        %v6450 = vld [vmem:[#allocation4 + $0x23] sm:$0xff]
        %v6451 = vld [vmem:[#allocation4 + $0x2b] sm:$0xff]
        %v6452 = vld [vmem:[#allocation4 + $0x33] sm:$0xff]
        %v6453 = vld [vmem:[#allocation4 + $0x3b] sm:$0xff]
        %v6454 = vld [vmem:[#allocation4 + $0x43] sm:$0xff]
        %v6455 = vld [vmem:[#allocation4 + $0x4b] sm:$0xff]
        %v6456 = vld [vmem:[#allocation4 + $0x53] sm:$0xff]
        %v6457 = vld [vmem:[#allocation4 + $0x5b] sm:$0xff]
        %v6458 = vld [vmem:[#allocation4 + $0x63] sm:$0xff]
        %v6459 = vld [vmem:[#allocation4 + $0x6b] sm:$0xff]
        %v6460 = vld [vmem:[#allocation4 + $0x73] sm:$0xff]
        %v6461 = vld [vmem:[#allocation4 + $0x7b] sm:$0xff]
        %v6462 = vld [vmem:[#allocation4 + $0x83] sm:$0xff]
        %v6463 = vld [vmem:[#allocation4 + $0x8b] sm:$0xff]
        %v6464 = vld [vmem:[#allocation4 + $0x93] sm:$0x3f]
        %v6465 = vld [vmem:[%s5 + $0x4] sm:$0x1]
        %v6466 = vperm.slane %v6465, 0
        %v6467 = vmul.f32 %v6448, %v6466
        %v6468 = vmul.f32 %v6449, %v6466
        %v6469 = vmul.f32 %v6450, %v6466
        %v6470 = vmul.f32 %v6451, %v6466
        %v6471 = vmul.f32 %v6452, %v6466
        %v6472 = vmul.f32 %v6453, %v6466
        %v6473 = vmul.f32 %v6454, %v6466
        %v6474 = vmul.f32 %v6455, %v6466
        %v6475 = vmul.f32 %v6456, %v6466
        %v6476 = vmul.f32 %v6457, %v6466
        %v6477 = vmul.f32 %v6458, %v6466
        %v6478 = vmul.f32 %v6459, %v6466
        %v6479 = vmul.f32 %v6460, %v6466
        %v6480 = vmul.f32 %v6461, %v6466
        %v6481 = vmul.f32 %v6462, %v6466
        %v6482 = vmul.f32 %v6463, %v6466
        %v6483 = vmul.f32 %v6464, %v6466
        %v6484 = vadd.f32 %v6431, %v6467
        %v6485 = vadd.f32 %v6432, %v6468
        %v6486 = vadd.f32 %v6433, %v6469
        %v6487 = vadd.f32 %v6434, %v6470
        %v6488 = vadd.f32 %v6435, %v6471
        %v6489 = vadd.f32 %v6436, %v6472
        %v6490 = vadd.f32 %v6437, %v6473
        %v6491 = vadd.f32 %v6438, %v6474
        %v6492 = vadd.f32 %v6439, %v6475
        %v6493 = vadd.f32 %v6440, %v6476
        %v6494 = vadd.f32 %v6441, %v6477
        %v6495 = vadd.f32 %v6442, %v6478
        %v6496 = vadd.f32 %v6443, %v6479
        %v6497 = vadd.f32 %v6444, %v6480
        %v6498 = vadd.f32 %v6445, %v6481
        %v6499 = vadd.f32 %v6446, %v6482
        %v6500 = vadd.f32 %v6447, %v6483
        %v6501 = vld [vmem:[#allocation4 + $0x14] sm:$0xff]
        %v6502 = vld [vmem:[#allocation4 + $0x1c] sm:$0xff]
        %v6503 = vld [vmem:[#allocation4 + $0x24] sm:$0xff]
        %v6504 = vld [vmem:[#allocation4 + $0x2c] sm:$0xff]
        %v6505 = vld [vmem:[#allocation4 + $0x34] sm:$0xff]
        %v6506 = vld [vmem:[#allocation4 + $0x3c] sm:$0xff]
        %v6507 = vld [vmem:[#allocation4 + $0x44] sm:$0xff]
        %v6508 = vld [vmem:[#allocation4 + $0x4c] sm:$0xff]
        %v6509 = vld [vmem:[#allocation4 + $0x54] sm:$0xff]
        %v6510 = vld [vmem:[#allocation4 + $0x5c] sm:$0xff]
        %v6511 = vld [vmem:[#allocation4 + $0x64] sm:$0xff]
        %v6512 = vld [vmem:[#allocation4 + $0x6c] sm:$0xff]
        %v6513 = vld [vmem:[#allocation4 + $0x74] sm:$0xff]
        %v6514 = vld [vmem:[#allocation4 + $0x7c] sm:$0xff]
        %v6515 = vld [vmem:[#allocation4 + $0x84] sm:$0xff]
        %v6516 = vld [vmem:[#allocation4 + $0x8c] sm:$0xff]
        %v6517 = vld [vmem:[#allocation4 + $0x94] sm:$0x3f]
        %v6518 = vld [vmem:[%s5 + $0x5] sm:$0x1]
        %v6519 = vperm.slane %v6518, 0
        %v6520 = vmul.f32 %v6501, %v6519
        %v6521 = vmul.f32 %v6502, %v6519
        %v6522 = vmul.f32 %v6503, %v6519
        %v6523 = vmul.f32 %v6504, %v6519
        %v6524 = vmul.f32 %v6505, %v6519
        %v6525 = vmul.f32 %v6506, %v6519
        %v6526 = vmul.f32 %v6507, %v6519
        %v6527 = vmul.f32 %v6508, %v6519
        %v6528 = vmul.f32 %v6509, %v6519
        %v6529 = vmul.f32 %v6510, %v6519
        %v6530 = vmul.f32 %v6511, %v6519
        %v6531 = vmul.f32 %v6512, %v6519
        %v6532 = vmul.f32 %v6513, %v6519
        %v6533 = vmul.f32 %v6514, %v6519
        %v6534 = vmul.f32 %v6515, %v6519
        %v6535 = vmul.f32 %v6516, %v6519
        %v6536 = vmul.f32 %v6517, %v6519
        %v6537 = vadd.f32 %v6484, %v6520
        %v6538 = vadd.f32 %v6485, %v6521
        %v6539 = vadd.f32 %v6486, %v6522
        %v6540 = vadd.f32 %v6487, %v6523
        %v6541 = vadd.f32 %v6488, %v6524
        %v6542 = vadd.f32 %v6489, %v6525
        %v6543 = vadd.f32 %v6490, %v6526
        %v6544 = vadd.f32 %v6491, %v6527
        %v6545 = vadd.f32 %v6492, %v6528
        %v6546 = vadd.f32 %v6493, %v6529
        %v6547 = vadd.f32 %v6494, %v6530
        %v6548 = vadd.f32 %v6495, %v6531
        %v6549 = vadd.f32 %v6496, %v6532
        %v6550 = vadd.f32 %v6497, %v6533
        %v6551 = vadd.f32 %v6498, %v6534
        %v6552 = vadd.f32 %v6499, %v6535
        %v6553 = vadd.f32 %v6500, %v6536
        %v6554 = vld [vmem:[#allocation4 + $0x94] sm:$0xff]
        %v6555 = vld [vmem:[#allocation4 + $0x9c] sm:$0xff]
        %v6556 = vld [vmem:[#allocation4 + $0xa4] sm:$0x3f]
        %v6557 = vld [vmem:[%s5 + $0x6] sm:$0x1]
        %v6558 = vperm.slane %v6557, 0
        %v6559 = vmul.f32 %v6503, %v6558
        %v6560 = vmul.f32 %v6504, %v6558
        %v6561 = vmul.f32 %v6505, %v6558
        %v6562 = vmul.f32 %v6506, %v6558
        %v6563 = vmul.f32 %v6507, %v6558
        %v6564 = vmul.f32 %v6508, %v6558
        %v6565 = vmul.f32 %v6509, %v6558
        %v6566 = vmul.f32 %v6510, %v6558
        %v6567 = vmul.f32 %v6511, %v6558
        %v6568 = vmul.f32 %v6512, %v6558
        %v6569 = vmul.f32 %v6513, %v6558
        %v6570 = vmul.f32 %v6514, %v6558
        %v6571 = vmul.f32 %v6515, %v6558
        %v6572 = vmul.f32 %v6516, %v6558
        %v6573 = vmul.f32 %v6554, %v6558
        %v6574 = vmul.f32 %v6555, %v6558
        %v6575 = vmul.f32 %v6556, %v6558
        %v6576 = vadd.f32 %v6537, %v6559
        %v6577 = vadd.f32 %v6538, %v6560
        %v6578 = vadd.f32 %v6539, %v6561
        %v6579 = vadd.f32 %v6540, %v6562
        %v6580 = vadd.f32 %v6541, %v6563
        %v6581 = vadd.f32 %v6542, %v6564
        %v6582 = vadd.f32 %v6543, %v6565
        %v6583 = vadd.f32 %v6544, %v6566
        %v6584 = vadd.f32 %v6545, %v6567
        %v6585 = vadd.f32 %v6546, %v6568
        %v6586 = vadd.f32 %v6547, %v6569
        %v6587 = vadd.f32 %v6548, %v6570
        %v6588 = vadd.f32 %v6549, %v6571
        %v6589 = vadd.f32 %v6550, %v6572
        %v6590 = vadd.f32 %v6551, %v6573
        %v6591 = vadd.f32 %v6552, %v6574
        %v6592 = vadd.f32 %v6553, %v6575
        %v6593 = vld [vmem:[#allocation4 + $0x25] sm:$0xff]
        %v6594 = vld [vmem:[#allocation4 + $0x2d] sm:$0xff]
        %v6595 = vld [vmem:[#allocation4 + $0x35] sm:$0xff]
        %v6596 = vld [vmem:[#allocation4 + $0x3d] sm:$0xff]
        %v6597 = vld [vmem:[#allocation4 + $0x45] sm:$0xff]
        %v6598 = vld [vmem:[#allocation4 + $0x4d] sm:$0xff]
        %v6599 = vld [vmem:[#allocation4 + $0x55] sm:$0xff]
        %v6600 = vld [vmem:[#allocation4 + $0x5d] sm:$0xff]
        %v6601 = vld [vmem:[#allocation4 + $0x65] sm:$0xff]
        %v6602 = vld [vmem:[#allocation4 + $0x6d] sm:$0xff]
        %v6603 = vld [vmem:[#allocation4 + $0x75] sm:$0xff]
        %v6604 = vld [vmem:[#allocation4 + $0x7d] sm:$0xff]
        %v6605 = vld [vmem:[#allocation4 + $0x85] sm:$0xff]
        %v6606 = vld [vmem:[#allocation4 + $0x8d] sm:$0xff]
        %v6607 = vld [vmem:[#allocation4 + $0x95] sm:$0xff]
        %v6608 = vld [vmem:[#allocation4 + $0x9d] sm:$0xff]
        %v6609 = vld [vmem:[#allocation4 + $0xa5] sm:$0x3f]
        %v6610 = vld [vmem:[%s5 + $0x7] sm:$0x1]
        %v6611 = vperm.slane %v6610, 0
        %v6612 = vmul.f32 %v6593, %v6611
        %v6613 = vmul.f32 %v6594, %v6611
        %v6614 = vmul.f32 %v6595, %v6611
        %v6615 = vmul.f32 %v6596, %v6611
        %v6616 = vmul.f32 %v6597, %v6611
        %v6617 = vmul.f32 %v6598, %v6611
        %v6618 = vmul.f32 %v6599, %v6611
        %v6619 = vmul.f32 %v6600, %v6611
        %v6620 = vmul.f32 %v6601, %v6611
        %v6621 = vmul.f32 %v6602, %v6611
        %v6622 = vmul.f32 %v6603, %v6611
        %v6623 = vmul.f32 %v6604, %v6611
        %v6624 = vmul.f32 %v6605, %v6611
        %v6625 = vmul.f32 %v6606, %v6611
        %v6626 = vmul.f32 %v6607, %v6611
        %v6627 = vmul.f32 %v6608, %v6611
        %v6628 = vmul.f32 %v6609, %v6611
        %v6629 = vadd.f32 %v6576, %v6612
        %v6630 = vadd.f32 %v6577, %v6613
        %v6631 = vadd.f32 %v6578, %v6614
        %v6632 = vadd.f32 %v6579, %v6615
        %v6633 = vadd.f32 %v6580, %v6616
        %v6634 = vadd.f32 %v6581, %v6617
        %v6635 = vadd.f32 %v6582, %v6618
        %v6636 = vadd.f32 %v6583, %v6619
        %v6637 = vadd.f32 %v6584, %v6620
        %v6638 = vadd.f32 %v6585, %v6621
        %v6639 = vadd.f32 %v6586, %v6622
        %v6640 = vadd.f32 %v6587, %v6623
        %v6641 = vadd.f32 %v6588, %v6624
        %v6642 = vadd.f32 %v6589, %v6625
        %v6643 = vadd.f32 %v6590, %v6626
        %v6644 = vadd.f32 %v6591, %v6627
        %v6645 = vadd.f32 %v6592, %v6628
        %v6646 = vld [vmem:[#allocation4 + $0x26] sm:$0xff]
        %v6647 = vld [vmem:[#allocation4 + $0x2e] sm:$0xff]
        %v6648 = vld [vmem:[#allocation4 + $0x36] sm:$0xff]
        %v6649 = vld [vmem:[#allocation4 + $0x3e] sm:$0xff]
        %v6650 = vld [vmem:[#allocation4 + $0x46] sm:$0xff]
        %v6651 = vld [vmem:[#allocation4 + $0x4e] sm:$0xff]
        %v6652 = vld [vmem:[#allocation4 + $0x56] sm:$0xff]
        %v6653 = vld [vmem:[#allocation4 + $0x5e] sm:$0xff]
        %v6654 = vld [vmem:[#allocation4 + $0x66] sm:$0xff]
        %v6655 = vld [vmem:[#allocation4 + $0x6e] sm:$0xff]
        %v6656 = vld [vmem:[#allocation4 + $0x76] sm:$0xff]
        %v6657 = vld [vmem:[#allocation4 + $0x7e] sm:$0xff]
        %v6658 = vld [vmem:[#allocation4 + $0x86] sm:$0xff]
        %v6659 = vld [vmem:[#allocation4 + $0x8e] sm:$0xff]
        %v6660 = vld [vmem:[#allocation4 + $0x96] sm:$0xff]
        %v6661 = vld [vmem:[#allocation4 + $0x9e] sm:$0xff]
        %v6662 = vld [vmem:[#allocation4 + $0xa6] sm:$0x3f]
        %v6663 = vld [vmem:[%s5 + $0x8] sm:$0x1]
        %v6664 = vperm.slane %v6663, 0
        %v6665 = vmul.f32 %v6646, %v6664
        %v6666 = vmul.f32 %v6647, %v6664
        %v6667 = vmul.f32 %v6648, %v6664
        %v6668 = vmul.f32 %v6649, %v6664
        %v6669 = vmul.f32 %v6650, %v6664
        %v6670 = vmul.f32 %v6651, %v6664
        %v6671 = vmul.f32 %v6652, %v6664
        %v6672 = vmul.f32 %v6653, %v6664
        %v6673 = vmul.f32 %v6654, %v6664
        %v6674 = vmul.f32 %v6655, %v6664
        %v6675 = vmul.f32 %v6656, %v6664
        %v6676 = vmul.f32 %v6657, %v6664
        %v6677 = vmul.f32 %v6658, %v6664
        %v6678 = vmul.f32 %v6659, %v6664
        %v6679 = vmul.f32 %v6660, %v6664
        %v6680 = vmul.f32 %v6661, %v6664
        %v6681 = vmul.f32 %v6662, %v6664
        %v6682 = vadd.f32 %v6629, %v6665
        %v6683 = vadd.f32 %v6630, %v6666
        %v6684 = vadd.f32 %v6631, %v6667
        %v6685 = vadd.f32 %v6632, %v6668
        %v6686 = vadd.f32 %v6633, %v6669
        %v6687 = vadd.f32 %v6634, %v6670
        %v6688 = vadd.f32 %v6635, %v6671
        %v6689 = vadd.f32 %v6636, %v6672
        %v6690 = vadd.f32 %v6637, %v6673
        %v6691 = vadd.f32 %v6638, %v6674
        %v6692 = vadd.f32 %v6639, %v6675
        %v6693 = vadd.f32 %v6640, %v6676
        %v6694 = vadd.f32 %v6641, %v6677
        %v6695 = vadd.f32 %v6642, %v6678
        %v6696 = vadd.f32 %v6643, %v6679
        %v6697 = vadd.f32 %v6644, %v6680
        %v6698 = vadd.f32 %v6645, %v6681
        %v6699 = vld [vmem:[%s5 + $0xb] sm:$0x1]
        %v6700 = vperm.slane %v6699, 0
        %v6701 = vadd.f32 %v6682, %v6700
        %v6702 = vadd.f32 %v6683, %v6700
        %v6703 = vadd.f32 %v6684, %v6700
        %v6704 = vadd.f32 %v6685, %v6700
        %v6705 = vadd.f32 %v6686, %v6700
        %v6706 = vadd.f32 %v6687, %v6700
        %v6707 = vadd.f32 %v6688, %v6700
        %v6708 = vadd.f32 %v6689, %v6700
        %v6709 = vadd.f32 %v6690, %v6700
        %v6710 = vadd.f32 %v6691, %v6700
        %v6711 = vadd.f32 %v6692, %v6700
        %v6712 = vadd.f32 %v6693, %v6700
        %v6713 = vadd.f32 %v6694, %v6700
        %v6714 = vadd.f32 %v6695, %v6700
        %v6715 = vadd.f32 %v6696, %v6700
        %v6716 = vadd.f32 %v6697, %v6700
        %v6717 = vadd.f32 %v6698, %v6700
        %v6718 = vsub.f32 0.0, %v6701
        %v6719 = vsub.f32 0.0, %v6702
        %v6720 = vsub.f32 0.0, %v6703
        %v6721 = vsub.f32 0.0, %v6704
        %v6722 = vsub.f32 0.0, %v6705
        %v6723 = vsub.f32 0.0, %v6706
        %v6724 = vsub.f32 0.0, %v6707
        %v6725 = vsub.f32 0.0, %v6708
        %v6726 = vsub.f32 0.0, %v6709
        %v6727 = vsub.f32 0.0, %v6710
        %v6728 = vsub.f32 0.0, %v6711
        %v6729 = vsub.f32 0.0, %v6712
        %v6730 = vsub.f32 0.0, %v6713
        %v6731 = vsub.f32 0.0, %v6714
        %v6732 = vsub.f32 0.0, %v6715
        %v6733 = vsub.f32 0.0, %v6716
        %v6734 = vsub.f32 0.0, %v6717
        %v6735 = vmul.f32 %v6718, 1.442695
        %v6736 = vpow.pop %v6735
        %v6737 = vmul.f32 %v6719, 1.442695
        %v6738 = vpow.pop %v6737
        %v6739 = vmul.f32 %v6720, 1.442695
        %v6740 = vpow.pop %v6739
        %v6741 = vmul.f32 %v6721, 1.442695
        %v6742 = vpow.pop %v6741
        %v6743 = vmul.f32 %v6722, 1.442695
        %v6744 = vpow.pop %v6743
        %v6745 = vmul.f32 %v6723, 1.442695
        %v6746 = vpow.pop %v6745
        %v6747 = vmul.f32 %v6724, 1.442695
        %v6748 = vpow.pop %v6747
        %v6749 = vmul.f32 %v6725, 1.442695
        %v6750 = vpow.pop %v6749
        %v6751 = vmul.f32 %v6726, 1.442695
        %v6752 = vpow.pop %v6751
        %v6753 = vmul.f32 %v6727, 1.442695
        %v6754 = vpow.pop %v6753
        %v6755 = vmul.f32 %v6728, 1.442695
        %v6756 = vpow.pop %v6755
        %v6757 = vmul.f32 %v6729, 1.442695
        %v6758 = vpow.pop %v6757
        %v6759 = vmul.f32 %v6730, 1.442695
        %v6760 = vpow.pop %v6759
        %v6761 = vmul.f32 %v6731, 1.442695
        %v6762 = vpow.pop %v6761
        %v6763 = vmul.f32 %v6732, 1.442695
        %v6764 = vpow.pop %v6763
        %v6765 = vmul.f32 %v6733, 1.442695
        %v6766 = vpow.pop %v6765
        %v6767 = vmul.f32 %v6734, 1.442695
        %v6768 = vpow.pop %v6767
        %v6769 = vadd.f32 %v6736, 1.0
        %v6770 = vadd.f32 %v6738, 1.0
        %v6771 = vadd.f32 %v6740, 1.0
        %v6772 = vadd.f32 %v6742, 1.0
        %v6773 = vadd.f32 %v6744, 1.0
        %v6774 = vadd.f32 %v6746, 1.0
        %v6775 = vadd.f32 %v6748, 1.0
        %v6776 = vadd.f32 %v6750, 1.0
        %v6777 = vadd.f32 %v6752, 1.0
        %v6778 = vadd.f32 %v6754, 1.0
        %v6779 = vadd.f32 %v6756, 1.0
        %v6780 = vadd.f32 %v6758, 1.0
        %v6781 = vadd.f32 %v6760, 1.0
        %v6782 = vadd.f32 %v6762, 1.0
        %v6783 = vadd.f32 %v6764, 1.0
        %v6784 = vadd.f32 %v6766, 1.0
        %v6785 = vadd.f32 %v6768, 1.0
        %v6786 = vrcp.pop %v6769
        %v6787 = vmul.f32 %v6769, %v6786
        %v6788 = vsub.f32 1.0, %v6787
        %v6789 = vmul.f32 %v6786, %v6788
        %v6790 = vadd.f32 %v6786, %v6789
        %vm6791 = vweird.f32 %v6769
        %vm6792 = vweird.f32 %v6786
        %vm6793 = vmor %vm6791, %vm6792
        %v6794 = vsel %vm6793, %v6786, %v6790
        %v6795 = vand.u32 2147483647, %v6769
        %vm6796 = vcmp.eq.f32.partialorder %v6795, 8.507059e+37
        %v6797 = vand.u32 %v6769, 2147483648
        %v6798 = vor.u32 1.1754944e-38, %v6797
        %v6799 = vsel %vm6796, %v6798, %v6794
        %v6800 = vmul.f32 1.0, %v6799
        %v6801 = vrcp.pop %v6770
        %v6802 = vmul.f32 %v6770, %v6801
        %v6803 = vsub.f32 1.0, %v6802
        %v6804 = vmul.f32 %v6801, %v6803
        %v6805 = vadd.f32 %v6801, %v6804
        %vm6806 = vweird.f32 %v6770
        %vm6807 = vweird.f32 %v6801
        %vm6808 = vmor %vm6806, %vm6807
        %v6809 = vsel %vm6808, %v6801, %v6805
        %v6810 = vand.u32 2147483647, %v6770
        %vm6811 = vcmp.eq.f32.partialorder %v6810, 8.507059e+37
        %v6812 = vand.u32 %v6770, 2147483648
        %v6813 = vor.u32 1.1754944e-38, %v6812
        %v6814 = vsel %vm6811, %v6813, %v6809
        %v6815 = vmul.f32 1.0, %v6814
        %v6816 = vrcp.pop %v6771
        %v6817 = vmul.f32 %v6771, %v6816
        %v6818 = vsub.f32 1.0, %v6817
        %v6819 = vmul.f32 %v6816, %v6818
        %v6820 = vadd.f32 %v6816, %v6819
        %vm6821 = vweird.f32 %v6771
        %vm6822 = vweird.f32 %v6816
        %vm6823 = vmor %vm6821, %vm6822
        %v6824 = vsel %vm6823, %v6816, %v6820
        %v6825 = vand.u32 2147483647, %v6771
        %vm6826 = vcmp.eq.f32.partialorder %v6825, 8.507059e+37
        %v6827 = vand.u32 %v6771, 2147483648
        %v6828 = vor.u32 1.1754944e-38, %v6827
        %v6829 = vsel %vm6826, %v6828, %v6824
        %v6830 = vmul.f32 1.0, %v6829
        %v6831 = vrcp.pop %v6772
        %v6832 = vmul.f32 %v6772, %v6831
        %v6833 = vsub.f32 1.0, %v6832
        %v6834 = vmul.f32 %v6831, %v6833
        %v6835 = vadd.f32 %v6831, %v6834
        %vm6836 = vweird.f32 %v6772
        %vm6837 = vweird.f32 %v6831
        %vm6838 = vmor %vm6836, %vm6837
        %v6839 = vsel %vm6838, %v6831, %v6835
        %v6840 = vand.u32 2147483647, %v6772
        %vm6841 = vcmp.eq.f32.partialorder %v6840, 8.507059e+37
        %v6842 = vand.u32 %v6772, 2147483648
        %v6843 = vor.u32 1.1754944e-38, %v6842
        %v6844 = vsel %vm6841, %v6843, %v6839
        %v6845 = vmul.f32 1.0, %v6844
        %v6846 = vrcp.pop %v6773
        %v6847 = vmul.f32 %v6773, %v6846
        %v6848 = vsub.f32 1.0, %v6847
        %v6849 = vmul.f32 %v6846, %v6848
        %v6850 = vadd.f32 %v6846, %v6849
        %vm6851 = vweird.f32 %v6773
        %vm6852 = vweird.f32 %v6846
        %vm6853 = vmor %vm6851, %vm6852
        %v6854 = vsel %vm6853, %v6846, %v6850
        %v6855 = vand.u32 2147483647, %v6773
        %vm6856 = vcmp.eq.f32.partialorder %v6855, 8.507059e+37
        %v6857 = vand.u32 %v6773, 2147483648
        %v6858 = vor.u32 1.1754944e-38, %v6857
        %v6859 = vsel %vm6856, %v6858, %v6854
        %v6860 = vmul.f32 1.0, %v6859
        %v6861 = vrcp.pop %v6774
        %v6862 = vmul.f32 %v6774, %v6861
        %v6863 = vsub.f32 1.0, %v6862
        %v6864 = vmul.f32 %v6861, %v6863
        %v6865 = vadd.f32 %v6861, %v6864
        %vm6866 = vweird.f32 %v6774
        %vm6867 = vweird.f32 %v6861
        %vm6868 = vmor %vm6866, %vm6867
        %v6869 = vsel %vm6868, %v6861, %v6865
        %v6870 = vand.u32 2147483647, %v6774
        %vm6871 = vcmp.eq.f32.partialorder %v6870, 8.507059e+37
        %v6872 = vand.u32 %v6774, 2147483648
        %v6873 = vor.u32 1.1754944e-38, %v6872
        %v6874 = vsel %vm6871, %v6873, %v6869
        %v6875 = vmul.f32 1.0, %v6874
        %v6876 = vrcp.pop %v6775
        %v6877 = vmul.f32 %v6775, %v6876
        %v6878 = vsub.f32 1.0, %v6877
        %v6879 = vmul.f32 %v6876, %v6878
        %v6880 = vadd.f32 %v6876, %v6879
        %vm6881 = vweird.f32 %v6775
        %vm6882 = vweird.f32 %v6876
        %vm6883 = vmor %vm6881, %vm6882
        %v6884 = vsel %vm6883, %v6876, %v6880
        %v6885 = vand.u32 2147483647, %v6775
        %vm6886 = vcmp.eq.f32.partialorder %v6885, 8.507059e+37
        %v6887 = vand.u32 %v6775, 2147483648
        %v6888 = vor.u32 1.1754944e-38, %v6887
        %v6889 = vsel %vm6886, %v6888, %v6884
        %v6890 = vmul.f32 1.0, %v6889
        %v6891 = vrcp.pop %v6776
        %v6892 = vmul.f32 %v6776, %v6891
        %v6893 = vsub.f32 1.0, %v6892
        %v6894 = vmul.f32 %v6891, %v6893
        %v6895 = vadd.f32 %v6891, %v6894
        %vm6896 = vweird.f32 %v6776
        %vm6897 = vweird.f32 %v6891
        %vm6898 = vmor %vm6896, %vm6897
        %v6899 = vsel %vm6898, %v6891, %v6895
        %v6900 = vand.u32 2147483647, %v6776
        %vm6901 = vcmp.eq.f32.partialorder %v6900, 8.507059e+37
        %v6902 = vand.u32 %v6776, 2147483648
        %v6903 = vor.u32 1.1754944e-38, %v6902
        %v6904 = vsel %vm6901, %v6903, %v6899
        %v6905 = vmul.f32 1.0, %v6904
        %v6906 = vrcp.pop %v6777
        %v6907 = vmul.f32 %v6777, %v6906
        %v6908 = vsub.f32 1.0, %v6907
        %v6909 = vmul.f32 %v6906, %v6908
        %v6910 = vadd.f32 %v6906, %v6909
        %vm6911 = vweird.f32 %v6777
        %vm6912 = vweird.f32 %v6906
        %vm6913 = vmor %vm6911, %vm6912
        %v6914 = vsel %vm6913, %v6906, %v6910
        %v6915 = vand.u32 2147483647, %v6777
        %vm6916 = vcmp.eq.f32.partialorder %v6915, 8.507059e+37
        %v6917 = vand.u32 %v6777, 2147483648
        %v6918 = vor.u32 1.1754944e-38, %v6917
        %v6919 = vsel %vm6916, %v6918, %v6914
        %v6920 = vmul.f32 1.0, %v6919
        %v6921 = vrcp.pop %v6778
        %v6922 = vmul.f32 %v6778, %v6921
        %v6923 = vsub.f32 1.0, %v6922
        %v6924 = vmul.f32 %v6921, %v6923
        %v6925 = vadd.f32 %v6921, %v6924
        %vm6926 = vweird.f32 %v6778
        %vm6927 = vweird.f32 %v6921
        %vm6928 = vmor %vm6926, %vm6927
        %v6929 = vsel %vm6928, %v6921, %v6925
        %v6930 = vand.u32 2147483647, %v6778
        %vm6931 = vcmp.eq.f32.partialorder %v6930, 8.507059e+37
        %v6932 = vand.u32 %v6778, 2147483648
        %v6933 = vor.u32 1.1754944e-38, %v6932
        %v6934 = vsel %vm6931, %v6933, %v6929
        %v6935 = vmul.f32 1.0, %v6934
        %v6936 = vrcp.pop %v6779
        %v6937 = vmul.f32 %v6779, %v6936
        %v6938 = vsub.f32 1.0, %v6937
        %v6939 = vmul.f32 %v6936, %v6938
        %v6940 = vadd.f32 %v6936, %v6939
        %vm6941 = vweird.f32 %v6779
        %vm6942 = vweird.f32 %v6936
        %vm6943 = vmor %vm6941, %vm6942
        %v6944 = vsel %vm6943, %v6936, %v6940
        %v6945 = vand.u32 2147483647, %v6779
        %vm6946 = vcmp.eq.f32.partialorder %v6945, 8.507059e+37
        %v6947 = vand.u32 %v6779, 2147483648
        %v6948 = vor.u32 1.1754944e-38, %v6947
        %v6949 = vsel %vm6946, %v6948, %v6944
        %v6950 = vmul.f32 1.0, %v6949
        %v6951 = vrcp.pop %v6780
        %v6952 = vmul.f32 %v6780, %v6951
        %v6953 = vsub.f32 1.0, %v6952
        %v6954 = vmul.f32 %v6951, %v6953
        %v6955 = vadd.f32 %v6951, %v6954
        %vm6956 = vweird.f32 %v6780
        %vm6957 = vweird.f32 %v6951
        %vm6958 = vmor %vm6956, %vm6957
        %v6959 = vsel %vm6958, %v6951, %v6955
        %v6960 = vand.u32 2147483647, %v6780
        %vm6961 = vcmp.eq.f32.partialorder %v6960, 8.507059e+37
        %v6962 = vand.u32 %v6780, 2147483648
        %v6963 = vor.u32 1.1754944e-38, %v6962
        %v6964 = vsel %vm6961, %v6963, %v6959
        %v6965 = vmul.f32 1.0, %v6964
        %v6966 = vrcp.pop %v6781
        %v6967 = vmul.f32 %v6781, %v6966
        %v6968 = vsub.f32 1.0, %v6967
        %v6969 = vmul.f32 %v6966, %v6968
        %v6970 = vadd.f32 %v6966, %v6969
        %vm6971 = vweird.f32 %v6781
        %vm6972 = vweird.f32 %v6966
        %vm6973 = vmor %vm6971, %vm6972
        %v6974 = vsel %vm6973, %v6966, %v6970
        %v6975 = vand.u32 2147483647, %v6781
        %vm6976 = vcmp.eq.f32.partialorder %v6975, 8.507059e+37
        %v6977 = vand.u32 %v6781, 2147483648
        %v6978 = vor.u32 1.1754944e-38, %v6977
        %v6979 = vsel %vm6976, %v6978, %v6974
        %v6980 = vmul.f32 1.0, %v6979
        %v6981 = vrcp.pop %v6782
        %v6982 = vmul.f32 %v6782, %v6981
        %v6983 = vsub.f32 1.0, %v6982
        %v6984 = vmul.f32 %v6981, %v6983
        %v6985 = vadd.f32 %v6981, %v6984
        %vm6986 = vweird.f32 %v6782
        %vm6987 = vweird.f32 %v6981
        %vm6988 = vmor %vm6986, %vm6987
        %v6989 = vsel %vm6988, %v6981, %v6985
        %v6990 = vand.u32 2147483647, %v6782
        %vm6991 = vcmp.eq.f32.partialorder %v6990, 8.507059e+37
        %v6992 = vand.u32 %v6782, 2147483648
        %v6993 = vor.u32 1.1754944e-38, %v6992
        %v6994 = vsel %vm6991, %v6993, %v6989
        %v6995 = vmul.f32 1.0, %v6994
        %v6996 = vrcp.pop %v6783
        %v6997 = vmul.f32 %v6783, %v6996
        %v6998 = vsub.f32 1.0, %v6997
        %v6999 = vmul.f32 %v6996, %v6998
        %v7000 = vadd.f32 %v6996, %v6999
        %vm7001 = vweird.f32 %v6783
        %vm7002 = vweird.f32 %v6996
        %vm7003 = vmor %vm7001, %vm7002
        %v7004 = vsel %vm7003, %v6996, %v7000
        %v7005 = vand.u32 2147483647, %v6783
        %vm7006 = vcmp.eq.f32.partialorder %v7005, 8.507059e+37
        %v7007 = vand.u32 %v6783, 2147483648
        %v7008 = vor.u32 1.1754944e-38, %v7007
        %v7009 = vsel %vm7006, %v7008, %v7004
        %v7010 = vmul.f32 1.0, %v7009
        %v7011 = vrcp.pop %v6784
        %v7012 = vmul.f32 %v6784, %v7011
        %v7013 = vsub.f32 1.0, %v7012
        %v7014 = vmul.f32 %v7011, %v7013
        %v7015 = vadd.f32 %v7011, %v7014
        %vm7016 = vweird.f32 %v6784
        %vm7017 = vweird.f32 %v7011
        %vm7018 = vmor %vm7016, %vm7017
        %v7019 = vsel %vm7018, %v7011, %v7015
        %v7020 = vand.u32 2147483647, %v6784
        %vm7021 = vcmp.eq.f32.partialorder %v7020, 8.507059e+37
        %v7022 = vand.u32 %v6784, 2147483648
        %v7023 = vor.u32 1.1754944e-38, %v7022
        %v7024 = vsel %vm7021, %v7023, %v7019
        %v7025 = vmul.f32 1.0, %v7024
        %v7026 = vrcp.pop %v6785
        %v7027 = vmul.f32 %v6785, %v7026
        %v7028 = vsub.f32 1.0, %v7027
        %v7029 = vmul.f32 %v7026, %v7028
        %v7030 = vadd.f32 %v7026, %v7029
        %vm7031 = vweird.f32 %v6785
        %vm7032 = vweird.f32 %v7026
        %vm7033 = vmor %vm7031, %vm7032
        %v7034 = vsel %vm7033, %v7026, %v7030
        %v7035 = vand.u32 2147483647, %v6785
        %vm7036 = vcmp.eq.f32.partialorder %v7035, 8.507059e+37
        %v7037 = vand.u32 %v6785, 2147483648
        %v7038 = vor.u32 1.1754944e-38, %v7037
        %v7039 = vsel %vm7036, %v7038, %v7034
        %v7040 = vmul.f32 1.0, %v7039
        %v7041 = vmul.f32 %v6192, %v6800
        %v7042 = vmul.f32 %v6193, %v6815
        %v7043 = vmul.f32 %v6194, %v6830
        %v7044 = vmul.f32 %v6195, %v6845
        %v7045 = vmul.f32 %v6196, %v6860
        %v7046 = vmul.f32 %v6197, %v6875
        %v7047 = vmul.f32 %v6198, %v6890
        %v7048 = vmul.f32 %v6199, %v6905
        %v7049 = vmul.f32 %v6200, %v6920
        %v7050 = vmul.f32 %v6201, %v6935
        %v7051 = vmul.f32 %v6202, %v6950
        %v7052 = vmul.f32 %v6203, %v6965
        %v7053 = vmul.f32 %v6204, %v6980
        %v7054 = vmul.f32 %v6205, %v6995
        %v7055 = vmul.f32 %v6206, %v7010
        %v7056 = vmul.f32 %v6207, %v7025
        %v7057 = vmul.f32 %v6208, %v7040
        %v7058 = vsel %vm5443, %v7041, 0.0
        %7059 = vadd.xlane.f32.xlu0 %v7058
        %v7060 = vpop.xlane.xlu0 %7059
        %v7061 = vsel %vm5443, %v7042, 0.0
        %7062 = vadd.xlane.f32.xlu0 %v7061
        %v7063 = vpop.xlane.xlu0 %7062
        %v7064 = vsel %vm5443, %v7043, 0.0
        %7065 = vadd.xlane.f32.xlu0 %v7064
        %v7066 = vpop.xlane.xlu0 %7065
        %v7067 = vsel %vm5443, %v7044, 0.0
        %7068 = vadd.xlane.f32.xlu0 %v7067
        %v7069 = vpop.xlane.xlu0 %7068
        %v7070 = vsel %vm5443, %v7045, 0.0
        %7071 = vadd.xlane.f32.xlu0 %v7070
        %v7072 = vpop.xlane.xlu0 %7071
        %v7073 = vsel %vm5443, %v7046, 0.0
        %7074 = vadd.xlane.f32.xlu0 %v7073
        %v7075 = vpop.xlane.xlu0 %7074
        %v7076 = vsel %vm5443, %v7047, 0.0
        %7077 = vadd.xlane.f32.xlu0 %v7076
        %v7078 = vpop.xlane.xlu0 %7077
        %v7079 = vsel %vm5443, %v7048, 0.0
        %7080 = vadd.xlane.f32.xlu0 %v7079
        %v7081 = vpop.xlane.xlu0 %7080
        %v7082 = vsel %vm5443, %v7049, 0.0
        %7083 = vadd.xlane.f32.xlu0 %v7082
        %v7084 = vpop.xlane.xlu0 %7083
        %v7085 = vsel %vm5443, %v7050, 0.0
        %7086 = vadd.xlane.f32.xlu0 %v7085
        %v7087 = vpop.xlane.xlu0 %7086
        %v7088 = vsel %vm5443, %v7051, 0.0
        %7089 = vadd.xlane.f32.xlu0 %v7088
        %v7090 = vpop.xlane.xlu0 %7089
        %v7091 = vsel %vm5443, %v7052, 0.0
        %7092 = vadd.xlane.f32.xlu0 %v7091
        %v7093 = vpop.xlane.xlu0 %7092
        %v7094 = vsel %vm5443, %v7053, 0.0
        %7095 = vadd.xlane.f32.xlu0 %v7094
        %v7096 = vpop.xlane.xlu0 %7095
        %v7097 = vsel %vm5443, %v7054, 0.0
        %7098 = vadd.xlane.f32.xlu0 %v7097
        %v7099 = vpop.xlane.xlu0 %7098
        %v7100 = vsel %vm5443, %v7055, 0.0
        %7101 = vadd.xlane.f32.xlu0 %v7100
        %v7102 = vpop.xlane.xlu0 %7101
        %v7103 = vsel %vm5443, %v7056, 0.0
        %7104 = vadd.xlane.f32.xlu0 %v7103
        %v7105 = vpop.xlane.xlu0 %7104
        %v7106 = vsel %vm6248, %v7057, 0.0
        %7107 = vadd.xlane.f32.xlu0 %v7106
        %v7108 = vpop.xlane.xlu0 %7107
        %v7109 = vrcp.pop 48.0
        %v7110 = vmul.f32 48.0, %v7109
        %v7111 = vsub.f32 1.0, %v7110
        %v7112 = vmul.f32 %v7109, %v7111
        %v7113 = vadd.f32 %v7109, %v7112
        %vm7114 = vweird.f32 %v7109
        %v7115 = vsel %vm7114, %v7109, %v7113
        %v7116 = vmul.f32 %v7060, %v7115
        %v7117 = vmul.f32 %v7063, %v7115
        %v7118 = vmul.f32 %v7066, %v7115
        %v7119 = vmul.f32 %v7069, %v7115
        %v7120 = vmul.f32 %v7072, %v7115
        %v7121 = vmul.f32 %v7075, %v7115
        %v7122 = vmul.f32 %v7078, %v7115
        %v7123 = vmul.f32 %v7081, %v7115
        %v7124 = vmul.f32 %v7084, %v7115
        %v7125 = vmul.f32 %v7087, %v7115
        %v7126 = vmul.f32 %v7090, %v7115
        %v7127 = vmul.f32 %v7093, %v7115
        %v7128 = vmul.f32 %v7096, %v7115
        %v7129 = vmul.f32 %v7099, %v7115
        %v7130 = vmul.f32 %v7102, %v7115
        %v7131 = vmul.f32 %v7105, %v7115
        %v7132 = vmul.f32 %v7108, %v7115
        %v7133 = vsub.f32 %v7041, %v7116
        %v7134 = vsub.f32 %v7042, %v7117
        %v7135 = vsub.f32 %v7043, %v7118
        %v7136 = vsub.f32 %v7044, %v7119
        %v7137 = vsub.f32 %v7045, %v7120
        %v7138 = vsub.f32 %v7046, %v7121
        %v7139 = vsub.f32 %v7047, %v7122
        %v7140 = vsub.f32 %v7048, %v7123
        %v7141 = vsub.f32 %v7049, %v7124
        %v7142 = vsub.f32 %v7050, %v7125
        %v7143 = vsub.f32 %v7051, %v7126
        %v7144 = vsub.f32 %v7052, %v7127
        %v7145 = vsub.f32 %v7053, %v7128
        %v7146 = vsub.f32 %v7054, %v7129
        %v7147 = vsub.f32 %v7055, %v7130
        %v7148 = vsub.f32 %v7056, %v7131
        %v7149 = vsub.f32 %v7057, %v7132
        %v7150 = vmul.f32 %v7133, %v7133
        %v7151 = vmul.f32 %v7134, %v7134
        %v7152 = vmul.f32 %v7135, %v7135
        %v7153 = vmul.f32 %v7136, %v7136
        %v7154 = vmul.f32 %v7137, %v7137
        %v7155 = vmul.f32 %v7138, %v7138
        %v7156 = vmul.f32 %v7139, %v7139
        %v7157 = vmul.f32 %v7140, %v7140
        %v7158 = vmul.f32 %v7141, %v7141
        %v7159 = vmul.f32 %v7142, %v7142
        %v7160 = vmul.f32 %v7143, %v7143
        %v7161 = vmul.f32 %v7144, %v7144
        %v7162 = vmul.f32 %v7145, %v7145
        %v7163 = vmul.f32 %v7146, %v7146
        %v7164 = vmul.f32 %v7147, %v7147
        %v7165 = vmul.f32 %v7148, %v7148
        %v7166 = vmul.f32 %v7149, %v7149
        %v7167 = vsel %vm5443, %v7150, 0.0
        %7168 = vadd.xlane.f32.xlu0 %v7167
        %v7169 = vpop.xlane.xlu0 %7168
        %v7170 = vsel %vm5443, %v7151, 0.0
        %7171 = vadd.xlane.f32.xlu0 %v7170
        %v7172 = vpop.xlane.xlu0 %7171
        %v7173 = vsel %vm5443, %v7152, 0.0
        %7174 = vadd.xlane.f32.xlu0 %v7173
        %v7175 = vpop.xlane.xlu0 %7174
        %v7176 = vsel %vm5443, %v7153, 0.0
        %7177 = vadd.xlane.f32.xlu0 %v7176
        %v7178 = vpop.xlane.xlu0 %7177
        %v7179 = vsel %vm5443, %v7154, 0.0
        %7180 = vadd.xlane.f32.xlu0 %v7179
        %v7181 = vpop.xlane.xlu0 %7180
        %v7182 = vsel %vm5443, %v7155, 0.0
        %7183 = vadd.xlane.f32.xlu0 %v7182
        %v7184 = vpop.xlane.xlu0 %7183
        %v7185 = vsel %vm5443, %v7156, 0.0
        %7186 = vadd.xlane.f32.xlu0 %v7185
        %v7187 = vpop.xlane.xlu0 %7186
        %v7188 = vsel %vm5443, %v7157, 0.0
        %7189 = vadd.xlane.f32.xlu0 %v7188
        %v7190 = vpop.xlane.xlu0 %7189
        %v7191 = vsel %vm5443, %v7158, 0.0
        %7192 = vadd.xlane.f32.xlu0 %v7191
        %v7193 = vpop.xlane.xlu0 %7192
        %v7194 = vsel %vm5443, %v7159, 0.0
        %7195 = vadd.xlane.f32.xlu0 %v7194
        %v7196 = vpop.xlane.xlu0 %7195
        %v7197 = vsel %vm5443, %v7160, 0.0
        %7198 = vadd.xlane.f32.xlu0 %v7197
        %v7199 = vpop.xlane.xlu0 %7198
        %v7200 = vsel %vm5443, %v7161, 0.0
        %7201 = vadd.xlane.f32.xlu0 %v7200
        %v7202 = vpop.xlane.xlu0 %7201
        %v7203 = vsel %vm5443, %v7162, 0.0
        %7204 = vadd.xlane.f32.xlu0 %v7203
        %v7205 = vpop.xlane.xlu0 %7204
        %v7206 = vsel %vm5443, %v7163, 0.0
        %7207 = vadd.xlane.f32.xlu0 %v7206
        %v7208 = vpop.xlane.xlu0 %7207
        %v7209 = vsel %vm5443, %v7164, 0.0
        %7210 = vadd.xlane.f32.xlu0 %v7209
        %v7211 = vpop.xlane.xlu0 %7210
        %v7212 = vsel %vm5443, %v7165, 0.0
        %7213 = vadd.xlane.f32.xlu0 %v7212
        %v7214 = vpop.xlane.xlu0 %7213
        %v7215 = vsel %vm6248, %v7166, 0.0
        %7216 = vadd.xlane.f32.xlu0 %v7215
        %v7217 = vpop.xlane.xlu0 %7216
        %v7218 = vmul.f32 %v7169, %v7115
        %v7219 = vmul.f32 %v7172, %v7115
        %v7220 = vmul.f32 %v7175, %v7115
        %v7221 = vmul.f32 %v7178, %v7115
        %v7222 = vmul.f32 %v7181, %v7115
        %v7223 = vmul.f32 %v7184, %v7115
        %v7224 = vmul.f32 %v7187, %v7115
        %v7225 = vmul.f32 %v7190, %v7115
        %v7226 = vmul.f32 %v7193, %v7115
        %v7227 = vmul.f32 %v7196, %v7115
        %v7228 = vmul.f32 %v7199, %v7115
        %v7229 = vmul.f32 %v7202, %v7115
        %v7230 = vmul.f32 %v7205, %v7115
        %v7231 = vmul.f32 %v7208, %v7115
        %v7232 = vmul.f32 %v7211, %v7115
        %v7233 = vmul.f32 %v7214, %v7115
        %v7234 = vmul.f32 %v7217, %v7115
        %v7235 = vadd.f32 %v7218, 1e-06
        %v7236 = vadd.f32 %v7219, 1e-06
        %v7237 = vadd.f32 %v7220, 1e-06
        %v7238 = vadd.f32 %v7221, 1e-06
        %v7239 = vadd.f32 %v7222, 1e-06
        %v7240 = vadd.f32 %v7223, 1e-06
        %v7241 = vadd.f32 %v7224, 1e-06
        %v7242 = vadd.f32 %v7225, 1e-06
        %v7243 = vadd.f32 %v7226, 1e-06
        %v7244 = vadd.f32 %v7227, 1e-06
        %v7245 = vadd.f32 %v7228, 1e-06
        %v7246 = vadd.f32 %v7229, 1e-06
        %v7247 = vadd.f32 %v7230, 1e-06
        %v7248 = vadd.f32 %v7231, 1e-06
        %v7249 = vadd.f32 %v7232, 1e-06
        %v7250 = vadd.f32 %v7233, 1e-06
        %v7251 = vadd.f32 %v7234, 1e-06
        %v7252 = vrsqrt.pop %v7235
        %v7253 = vmul.f32 %v7252, %v7235
        %v7254 = vmul.f32 %v7253, %v7252
        %v7255 = vmul.f32 0.5, %v7254
        %v7256 = vsub.f32 1.5, %v7255
        %v7257 = vmul.f32 %v7252, %v7256
        %vm7258 = vweird.f32 %v7235
        %vm7259 = vweird.f32 %v7252
        %vm7260 = vmor %vm7258, %vm7259
        %v7261 = vsel %vm7260, %v7252, %v7257
        %v7262 = vrsqrt.pop %v7236
        %v7263 = vmul.f32 %v7262, %v7236
        %v7264 = vmul.f32 %v7263, %v7262
        %v7265 = vmul.f32 0.5, %v7264
        %v7266 = vsub.f32 1.5, %v7265
        %v7267 = vmul.f32 %v7262, %v7266
        %vm7268 = vweird.f32 %v7236
        %vm7269 = vweird.f32 %v7262
        %vm7270 = vmor %vm7268, %vm7269
        %v7271 = vsel %vm7270, %v7262, %v7267
        %v7272 = vrsqrt.pop %v7237
        %v7273 = vmul.f32 %v7272, %v7237
        %v7274 = vmul.f32 %v7273, %v7272
        %v7275 = vmul.f32 0.5, %v7274
        %v7276 = vsub.f32 1.5, %v7275
        %v7277 = vmul.f32 %v7272, %v7276
        %vm7278 = vweird.f32 %v7237
        %vm7279 = vweird.f32 %v7272
        %vm7280 = vmor %vm7278, %vm7279
        %v7281 = vsel %vm7280, %v7272, %v7277
        %v7282 = vrsqrt.pop %v7238
        %v7283 = vmul.f32 %v7282, %v7238
        %v7284 = vmul.f32 %v7283, %v7282
        %v7285 = vmul.f32 0.5, %v7284
        %v7286 = vsub.f32 1.5, %v7285
        %v7287 = vmul.f32 %v7282, %v7286
        %vm7288 = vweird.f32 %v7238
        %vm7289 = vweird.f32 %v7282
        %vm7290 = vmor %vm7288, %vm7289
        %v7291 = vsel %vm7290, %v7282, %v7287
        %v7292 = vrsqrt.pop %v7239
        %v7293 = vmul.f32 %v7292, %v7239
        %v7294 = vmul.f32 %v7293, %v7292
        %v7295 = vmul.f32 0.5, %v7294
        %v7296 = vsub.f32 1.5, %v7295
        %v7297 = vmul.f32 %v7292, %v7296
        %vm7298 = vweird.f32 %v7239
        %vm7299 = vweird.f32 %v7292
        %vm7300 = vmor %vm7298, %vm7299
        %v7301 = vsel %vm7300, %v7292, %v7297
        %v7302 = vrsqrt.pop %v7240
        %v7303 = vmul.f32 %v7302, %v7240
        %v7304 = vmul.f32 %v7303, %v7302
        %v7305 = vmul.f32 0.5, %v7304
        %v7306 = vsub.f32 1.5, %v7305
        %v7307 = vmul.f32 %v7302, %v7306
        %vm7308 = vweird.f32 %v7240
        %vm7309 = vweird.f32 %v7302
        %vm7310 = vmor %vm7308, %vm7309
        %v7311 = vsel %vm7310, %v7302, %v7307
        %v7312 = vrsqrt.pop %v7241
        %v7313 = vmul.f32 %v7312, %v7241
        %v7314 = vmul.f32 %v7313, %v7312
        %v7315 = vmul.f32 0.5, %v7314
        %v7316 = vsub.f32 1.5, %v7315
        %v7317 = vmul.f32 %v7312, %v7316
        %vm7318 = vweird.f32 %v7241
        %vm7319 = vweird.f32 %v7312
        %vm7320 = vmor %vm7318, %vm7319
        %v7321 = vsel %vm7320, %v7312, %v7317
        %v7322 = vrsqrt.pop %v7242
        %v7323 = vmul.f32 %v7322, %v7242
        %v7324 = vmul.f32 %v7323, %v7322
        %v7325 = vmul.f32 0.5, %v7324
        %v7326 = vsub.f32 1.5, %v7325
        %v7327 = vmul.f32 %v7322, %v7326
        %vm7328 = vweird.f32 %v7242
        %vm7329 = vweird.f32 %v7322
        %vm7330 = vmor %vm7328, %vm7329
        %v7331 = vsel %vm7330, %v7322, %v7327
        %v7332 = vrsqrt.pop %v7243
        %v7333 = vmul.f32 %v7332, %v7243
        %v7334 = vmul.f32 %v7333, %v7332
        %v7335 = vmul.f32 0.5, %v7334
        %v7336 = vsub.f32 1.5, %v7335
        %v7337 = vmul.f32 %v7332, %v7336
        %vm7338 = vweird.f32 %v7243
        %vm7339 = vweird.f32 %v7332
        %vm7340 = vmor %vm7338, %vm7339
        %v7341 = vsel %vm7340, %v7332, %v7337
        %v7342 = vrsqrt.pop %v7244
        %v7343 = vmul.f32 %v7342, %v7244
        %v7344 = vmul.f32 %v7343, %v7342
        %v7345 = vmul.f32 0.5, %v7344
        %v7346 = vsub.f32 1.5, %v7345
        %v7347 = vmul.f32 %v7342, %v7346
        %vm7348 = vweird.f32 %v7244
        %vm7349 = vweird.f32 %v7342
        %vm7350 = vmor %vm7348, %vm7349
        %v7351 = vsel %vm7350, %v7342, %v7347
        %v7352 = vrsqrt.pop %v7245
        %v7353 = vmul.f32 %v7352, %v7245
        %v7354 = vmul.f32 %v7353, %v7352
        %v7355 = vmul.f32 0.5, %v7354
        %v7356 = vsub.f32 1.5, %v7355
        %v7357 = vmul.f32 %v7352, %v7356
        %vm7358 = vweird.f32 %v7245
        %vm7359 = vweird.f32 %v7352
        %vm7360 = vmor %vm7358, %vm7359
        %v7361 = vsel %vm7360, %v7352, %v7357
        %v7362 = vrsqrt.pop %v7246
        %v7363 = vmul.f32 %v7362, %v7246
        %v7364 = vmul.f32 %v7363, %v7362
        %v7365 = vmul.f32 0.5, %v7364
        %v7366 = vsub.f32 1.5, %v7365
        %v7367 = vmul.f32 %v7362, %v7366
        %vm7368 = vweird.f32 %v7246
        %vm7369 = vweird.f32 %v7362
        %vm7370 = vmor %vm7368, %vm7369
        %v7371 = vsel %vm7370, %v7362, %v7367
        %v7372 = vrsqrt.pop %v7247
        %v7373 = vmul.f32 %v7372, %v7247
        %v7374 = vmul.f32 %v7373, %v7372
        %v7375 = vmul.f32 0.5, %v7374
        %v7376 = vsub.f32 1.5, %v7375
        %v7377 = vmul.f32 %v7372, %v7376
        %vm7378 = vweird.f32 %v7247
        %vm7379 = vweird.f32 %v7372
        %vm7380 = vmor %vm7378, %vm7379
        %v7381 = vsel %vm7380, %v7372, %v7377
        %v7382 = vrsqrt.pop %v7248
        %v7383 = vmul.f32 %v7382, %v7248
        %v7384 = vmul.f32 %v7383, %v7382
        %v7385 = vmul.f32 0.5, %v7384
        %v7386 = vsub.f32 1.5, %v7385
        %v7387 = vmul.f32 %v7382, %v7386
        %vm7388 = vweird.f32 %v7248
        %vm7389 = vweird.f32 %v7382
        %vm7390 = vmor %vm7388, %vm7389
        %v7391 = vsel %vm7390, %v7382, %v7387
        %v7392 = vrsqrt.pop %v7249
        %v7393 = vmul.f32 %v7392, %v7249
        %v7394 = vmul.f32 %v7393, %v7392
        %v7395 = vmul.f32 0.5, %v7394
        %v7396 = vsub.f32 1.5, %v7395
        %v7397 = vmul.f32 %v7392, %v7396
        %vm7398 = vweird.f32 %v7249
        %vm7399 = vweird.f32 %v7392
        %vm7400 = vmor %vm7398, %vm7399
        %v7401 = vsel %vm7400, %v7392, %v7397
        %v7402 = vrsqrt.pop %v7250
        %v7403 = vmul.f32 %v7402, %v7250
        %v7404 = vmul.f32 %v7403, %v7402
        %v7405 = vmul.f32 0.5, %v7404
        %v7406 = vsub.f32 1.5, %v7405
        %v7407 = vmul.f32 %v7402, %v7406
        %vm7408 = vweird.f32 %v7250
        %vm7409 = vweird.f32 %v7402
        %vm7410 = vmor %vm7408, %vm7409
        %v7411 = vsel %vm7410, %v7402, %v7407
        %v7412 = vrsqrt.pop %v7251
        %v7413 = vmul.f32 %v7412, %v7251
        %v7414 = vmul.f32 %v7413, %v7412
        %v7415 = vmul.f32 0.5, %v7414
        %v7416 = vsub.f32 1.5, %v7415
        %v7417 = vmul.f32 %v7412, %v7416
        %vm7418 = vweird.f32 %v7251
        %vm7419 = vweird.f32 %v7412
        %vm7420 = vmor %vm7418, %vm7419
        %v7421 = vsel %vm7420, %v7412, %v7417
        %v7422 = vmul.f32 %v7133, %v7261
        %v7423 = vmul.f32 %v7134, %v7271
        %v7424 = vmul.f32 %v7135, %v7281
        %v7425 = vmul.f32 %v7136, %v7291
        %v7426 = vmul.f32 %v7137, %v7301
        %v7427 = vmul.f32 %v7138, %v7311
        %v7428 = vmul.f32 %v7139, %v7321
        %v7429 = vmul.f32 %v7140, %v7331
        %v7430 = vmul.f32 %v7141, %v7341
        %v7431 = vmul.f32 %v7142, %v7351
        %v7432 = vmul.f32 %v7143, %v7361
        %v7433 = vmul.f32 %v7144, %v7371
        %v7434 = vmul.f32 %v7145, %v7381
        %v7435 = vmul.f32 %v7146, %v7391
        %v7436 = vmul.f32 %v7147, %v7401
        %v7437 = vmul.f32 %v7148, %v7411
        %v7438 = vmul.f32 %v7149, %v7421
        %v7439 = vld [vmem:[%s5 + $0xc] sm:$0x1]
        %v7440 = vperm.slane %v7439, 0
        %v7441 = vmul.f32 %v7422, %v7440
        %v7442 = vmul.f32 %v7423, %v7440
        %v7443 = vmul.f32 %v7424, %v7440
        %v7444 = vmul.f32 %v7425, %v7440
        %v7445 = vmul.f32 %v7426, %v7440
        %v7446 = vmul.f32 %v7427, %v7440
        %v7447 = vmul.f32 %v7428, %v7440
        %v7448 = vmul.f32 %v7429, %v7440
        %v7449 = vmul.f32 %v7430, %v7440
        %v7450 = vmul.f32 %v7431, %v7440
        %v7451 = vmul.f32 %v7432, %v7440
        %v7452 = vmul.f32 %v7433, %v7440
        %v7453 = vmul.f32 %v7434, %v7440
        %v7454 = vmul.f32 %v7435, %v7440
        %v7455 = vmul.f32 %v7436, %v7440
        %v7456 = vmul.f32 %v7437, %v7440
        %v7457 = vmul.f32 %v7438, %v7440
        %v7458 = vld [vmem:[%s5 + $0xd] sm:$0x1]
        %v7459 = vperm.slane %v7458, 0
        %v7460 = vadd.f32 %v7441, %v7459
        %v7461 = vadd.f32 %v7442, %v7459
        %v7462 = vadd.f32 %v7443, %v7459
        %v7463 = vadd.f32 %v7444, %v7459
        %v7464 = vadd.f32 %v7445, %v7459
        %v7465 = vadd.f32 %v7446, %v7459
        %v7466 = vadd.f32 %v7447, %v7459
        %v7467 = vadd.f32 %v7448, %v7459
        %v7468 = vadd.f32 %v7449, %v7459
        %v7469 = vadd.f32 %v7450, %v7459
        %v7470 = vadd.f32 %v7451, %v7459
        %v7471 = vadd.f32 %v7452, %v7459
        %v7472 = vadd.f32 %v7453, %v7459
        %v7473 = vadd.f32 %v7454, %v7459
        %v7474 = vadd.f32 %v7455, %v7459
        %v7475 = vadd.f32 %v7456, %v7459
        %v7476 = vadd.f32 %v7457, %v7459
        %7477 = vst.msk [vmem:[#allocation5] sm:$0xff] %vm5443, %v7460
        %7478 = vst.msk [vmem:[#allocation5 + $0x8] sm:$0xff] %vm5443, %v7461
        %7479 = vst.msk [vmem:[#allocation5 + $0x10] sm:$0xff] %vm5443, %v7462
        %7480 = vst.msk [vmem:[#allocation5 + $0x18] sm:$0xff] %vm5443, %v7463
        %7481 = vst.msk [vmem:[#allocation5 + $0x20] sm:$0xff] %vm5443, %v7464
        %7482 = vst.msk [vmem:[#allocation5 + $0x28] sm:$0xff] %vm5443, %v7465
        %7483 = vst.msk [vmem:[#allocation5 + $0x30] sm:$0xff] %vm5443, %v7466
        %7484 = vst.msk [vmem:[#allocation5 + $0x38] sm:$0xff] %vm5443, %v7467
        %7485 = vst.msk [vmem:[#allocation5 + $0x40] sm:$0xff] %vm5443, %v7468
        %7486 = vst.msk [vmem:[#allocation5 + $0x48] sm:$0xff] %vm5443, %v7469
        %7487 = vst.msk [vmem:[#allocation5 + $0x50] sm:$0xff] %vm5443, %v7470
        %7488 = vst.msk [vmem:[#allocation5 + $0x58] sm:$0xff] %vm5443, %v7471
        %7489 = vst.msk [vmem:[#allocation5 + $0x60] sm:$0xff] %vm5443, %v7472
        %7490 = vst.msk [vmem:[#allocation5 + $0x68] sm:$0xff] %vm5443, %v7473
        %7491 = vst.msk [vmem:[#allocation5 + $0x70] sm:$0xff] %vm5443, %v7474
        %7492 = vst.msk [vmem:[#allocation5 + $0x78] sm:$0xff] %vm5443, %v7475
        %7493 = vst.msk [vmem:[#allocation5 + $0x80] sm:$0x3f] %vm6248, %v7476
        loop: start=0, step=1, limit=8
        $region45: #{tpu_custom_call.1} parent=43 // loop_pre_header
          _
        $region46: #{tpu_custom_call.1} parent=43 // loop_header
          %s7495 = sphi 0, %s7499
          %p7496 = scmp.ge.s32.totalorder %s7495, 8
        $region47: #{tpu_custom_call.1} parent=43 // loop_header_branch
          %7498 = sbr.rel (%p7496) target = $region51
        $region48: #{tpu_custom_call.1} parent=43 // loop_body
          %s7500 = smul.u32 %s7495, 18
          %s7501 = scalar_lea.vmem [#allocation5], %s7500
          %v7502 = vld [vmem:[%s7501] sm:$0xff]
          %s7503 = smul.u32 %s7495, 8
          %s7504 = scalar_lea.vmem %s259, %s7503 [#allocation6]
          %7505 = vst.msk [vmem:[%s7504] sm:$0xff] %vm5443, %v7502
        $region49: #{tpu_custom_call.1} parent=43 // loop_footer
          %s7499 = sadd.s32 1, %s7495
        $region50: #{tpu_custom_call.1} parent=43 // loop_footer_branch
          %7494 = sbr.rel target = $region46
        $region51: #{tpu_custom_call.1} parent=43 // loop_exit
          _
        %s7506 = sand.u32 %s164, 1
        %s7507 = scalar_lea.sflag [#allocation7], %s7506
        %s7508 = sand.u32 %s164, 1
        %s7509 = smul.addr %s7508, 64
        %s7510 = scalar_lea.vmem [#allocation6], %s7509
        // Predicated region
        $region52: #{tpu_custom_call.1} parent=43 // pred_check
          %p7511 = pneg %p174
        $region53: #{tpu_custom_call.1} parent=43 // pred_check_branch
          %7513 = sbr.rel (%p7511) target = $region55
        $region54: #{tpu_custom_call.1} parent=43 // pred_region
          %7515 = vsyncadd %s7507, 0
          %s7516 = smul.addr %s20, 8
          %s7517 = smul.addr %s7516, 8
          %s7518 = scalar_lea.hbm %s6, %s7517
          %s7519 = sshll.u32 %s7510, 4
          %s7520 = int_to_ptr.vmem [resolvable:$true] %s7519
          %s7521 = sshll.u32 %s7518, 4
          %s7522 = int_to_ptr.hbm [resolvable:$true] %s7521
          %7527 = dma.vmem_to_hbm [thread:$0]  %s7520, 1024, %s7522, %s7507, 128, 128, 8
        $region55: #{tpu_custom_call.1} parent=43 // pred_fallthru
          _
      $region44: #{tpu_custom_call.1} parent=5 // pred_fallthru
        _
      %p7528 = scmp.le.s32.totalorder 2, %s15
      // Predicated region
      $region56: #{tpu_custom_call.1} parent=5 // pred_check
        %p7529 = pneg %p7528
      $region57: #{tpu_custom_call.1} parent=5 // pred_check_branch
        %7531 = sbr.rel (%p7529) target = $region59
      $region58: #{tpu_custom_call.1} parent=5 // pred_region
        %s7532 = ssub.s32 %s15, 2
        // Predicated region
        $region60: #{tpu_custom_call.1} parent=58 // pred_check
          %p7533 = pneg %p180
        $region61: #{tpu_custom_call.1} parent=58 // pred_check_branch
          %7535 = sbr.rel (%p7533) target = $region63
        $region62: #{tpu_custom_call.1} parent=58 // pred_region
          %s7536 = sand.u32 %s165, 1
          %s7537 = scalar_lea.sflag [#allocation7], %s7536
          %s7538 = sand.u32 %s165, 1
          %s7539 = smul.addr %s7538, 64
          %s7540 = scalar_lea.vmem [#allocation6], %s7539
          %7542 = dma.done %s7537, 1024
        $region63: #{tpu_custom_call.1} parent=58 // pred_fallthru
          _
      $region59: #{tpu_custom_call.1} parent=5 // pred_fallthru
        _
    $region6: #{tpu_custom_call.1} parent=1 // loop_footer
      %s19 = sadd.s32 1, %s15
    $region7: #{tpu_custom_call.1} parent=1 // loop_footer_branch
      %14 = sbr.rel target = $region3
    $region8: #{tpu_custom_call.1} parent=1 // loop_exit
      _
    %7543 = vsyncpa [#allocation7], 1
    %s7544 = scalar_lea.sflag [#allocation7], 1
    %7545 = vsyncpa %s7544, 1

</llo_original>
